<compile_context>
chip_gen: v5e
topology: v5e:2x2
jax: 0.10.0
libtpu: 0.0.40
codegen_flags: <defaults>
</compile_context>

<pallas_src>
import functools

import jax
import jax.numpy as jnp
from jax.experimental import pallas as pl
from jax.experimental.pallas import tpu as pltpu

_VMEM_LIMIT = 64 * 1024 * 1024  # explicit scoped-VMEM budget (v7x physical = 64 MiB)


def _round_up(v, m):
    return (v + m - 1) // m * m


# ----------------------------------------------------------------------------
# conv1x1 == per-pixel matmul over channels (row-tiled, bf16 MXU operands)
# ----------------------------------------------------------------------------

def _matmul_bias_kernel(x_ref, w_ref, b_ref, o_ref):
    o_ref[...] = (jnp.dot(x_ref[...].astype(jnp.bfloat16),
                          w_ref[...].astype(jnp.bfloat16),
                          preferred_element_type=jnp.float32)
                  + b_ref[...]).astype(o_ref.dtype)


def matmul_bias(x, w, b, *, tm=2048, out_dtype=None):
    """x: (rows, K) @ w: (K, N) + b: (N,). Rows padded to the row tile (no divisibility assert)."""
    rows, k = x.shape
    n = w.shape[1]
    out_dtype = out_dtype or x.dtype
    tm = max(8, min(tm, _round_up(rows, 8)))
    rows_p = _round_up(rows, tm)
    if rows_p != rows:
        x = jnp.pad(x, ((0, rows_p - rows), (0, 0)))
    y = pl.pallas_call(
        _matmul_bias_kernel,
        out_shape=jax.ShapeDtypeStruct((rows_p, n), out_dtype),
        grid=(rows_p // tm,),
        in_specs=[pl.BlockSpec((tm, k), lambda i: (i, 0)),
                  pl.BlockSpec((k, n), lambda i: (0, 0)),
                  pl.BlockSpec((1, n), lambda i: (0, 0))],
        out_specs=pl.BlockSpec((tm, n), lambda i: (i, 0)),
        compiler_params=pltpu.CompilerParams(
            dimension_semantics=("parallel",),
            vmem_limit_bytes=_VMEM_LIMIT),
    )(x, w, b.reshape(1, n))
    return y[:rows] if rows_p != rows else y


def conv1x1_nhwc(x, w, b, *, out_dtype=jnp.bfloat16):
    n, h, wd, cin = x.shape
    y = matmul_bias(x.reshape(n * h * wd, cin), w, b, out_dtype=out_dtype)
    return y.reshape(n, h, wd, w.shape[1])


# ----------------------------------------------------------------------------
# RCAB body (row-tiled): LayerNorm -> dwsep3x3 + LeakyReLU -> dwsep3x3
#                        -> per-tile channel-sum for the CA pool (pass 1 of 2)
# ----------------------------------------------------------------------------

def _rcab_body_kernel(xm_ref, xt_ref, xb_ref, g_ref, be_ref,
                      dw1_ref, pw1_ref, b1_ref, dw2_ref, pw2_ref, b2_ref,
                      y_ref, psum_ref, *, relu_slope, eps, cdt):
    t = pl.program_id(1)
    nt = pl.num_programs(1)
    mask_top = (t > 0).astype(jnp.float32)          # 0 on the first row tile
    mask_bot = (t < nt - 1).astype(jnp.float32)     # 0 on the last row tile
    th, w, c = y_ref.shape[1], y_ref.shape[2], y_ref.shape[3]

    gamma = g_ref[...]                              # (1,1,C) f32
    beta = be_ref[...]

    def layernorm(a):                               # a: (rows, W, C) f32, per-pixel over C
        mu = jnp.mean(a, axis=-1, keepdims=True)
        var = jnp.mean((a - mu) ** 2, axis=-1, keepdims=True)
        return (a - mu) * jax.lax.rsqrt(var + eps) * gamma + beta

    # LayerNorm is per pixel, so halo rows normalize independently; out-of-image halo rows
    # are zeroed AFTER the norm (the reference zero-pads the LN output, and LN(0) != 0).
    v_top = (layernorm(xt_ref[0].astype(jnp.float32)) * mask_top).astype(cdt)   # (2, W, C)
    v_mid = layernorm(xm_ref[0].astype(jnp.float32)).astype(cdt)                # (th, W, C)
    v_bot = (layernorm(xb_ref[0].astype(jnp.float32)) * mask_bot).astype(cdt)   # (2, W, C)
    v = jnp.concatenate([v_top, v_mid, v_bot], axis=0)                          # (th+4, W, C)

    def dwsep(vin, dw_ref, pw_ref, bias_ref, out_rows, slope):
        # TODO(synk): emd.DepthWiseSeparableConv2d source unavailable; assumed depthwise 3x3
        #             (+bias) then pointwise 1x1 (+bias); dw bias is pre-folded into bias_ref.
        rows, wv, cv = vin.shape
        zcol = jnp.zeros((rows, 1, cv), vin.dtype)
        vp = jnp.concatenate([zcol, vin, zcol], axis=1)      # zero W-padding, value level
        dww = dw_ref[...]                                    # (3,3,C), compute dtype
        acc = jnp.zeros((out_rows, wv, cv), vin.dtype)       # bf16 taps on v6e/v7x
        for dh in range(3):
            for dwc in range(3):
                acc = acc + vp[dh:dh + out_rows, dwc:dwc + wv, :] * dww[dh, dwc]
        y = jnp.dot(acc.reshape(out_rows * wv, cv), pw_ref[...],
                    preferred_element_type=jnp.float32) + bias_ref[...]
        if slope is not None:
            y = jnp.where(y >= 0.0, y, y * slope)
        return y.reshape(out_rows, wv, cv)                   # f32

    y1 = dwsep(v, dw1_ref, pw1_ref, b1_ref, th + 2, relu_slope)      # (th+2, W, C) f32
    # The intermediate is zero-padded before the second conv in the reference, so out-of-image
    # halo rows of y1 (which carry bias/activation terms) are zeroed at the image boundary.
    y1 = jnp.concatenate([y1[:1] * mask_top,
                          y1[1:th + 1],
                          y1[th + 1:] * mask_bot], axis=0).astype(cdt)
    y2 = dwsep(y1, dw2_ref, pw2_ref, b2_ref, th, None)               # (th, W, C) f32

    psum_ref[...] = jnp.sum(y2.reshape(th * w, c), axis=0,
                            keepdims=True).reshape(1, 1, 1, c)       # partial CA pool (f32)
    y_ref[0] = y2.astype(y_ref.dtype)


# ----------------------------------------------------------------------------
# RCAB finalize (row-tiled, pass 2): channel attention scale + short residual
#                                    (+ fused long residual on the last group)
# ----------------------------------------------------------------------------

def _rcab_finalize_kernel(*refs, add_long):
    if add_long:
        (x_ref, y_ref, long_ref, pool_ref,
         wa_ref, ba_ref, wb_ref, bb_ref, o_ref) = refs
    else:
        (x_ref, y_ref, pool_ref,
         wa_ref, ba_ref, wb_ref, bb_ref, o_ref) = refs
        long_ref = None
    c = o_ref.shape[3]
    m = pool_ref[0]                                                   # (1, C) f32 global mean
    z = jnp.maximum(jnp.dot(m, wa_ref[...],
                            preferred_element_type=jnp.float32) + ba_ref[...], 0.0)
    s = jax.nn.sigmoid(jnp.dot(z, wb_ref[...],
                               preferred_element_type=jnp.float32) + bb_ref[...])  # (1, C)
    out = (x_ref[0].astype(jnp.float32)
           + y_ref[0].astype(jnp.float32) * s.reshape(1, 1, c))
    if add_long:
        out = out + long_ref[0].astype(jnp.float32)
    o_ref[0] = out.astype(o_ref.dtype)


def rcab_block(x, p, *, long_res=None, relu_slope=0.2, eps=1e-5,
               tile_h=8, compute_dtype=jnp.bfloat16, act_dtype=jnp.bfloat16):
    """One ResidualChannelAttentionBlock = body pallas_call + finalize pallas_call.

    TODO(synk): for features < 128 every channel-last vector uses <128 lanes and output
    stores are masked; folding spatial positions into the lane dim is left out here.
    """
    n, h, w, c = x.shape
    assert h % 2 == 0, "RCAB row tiling needs an even image height"
    th = min(tile_h, h)
    while th > 2 and (h % th or th % 2):
        th -= 1
    if h % th or th % 2:
        th = 2
    ht = h // th
    cr = p["ca_wa"].shape[1]
    f32 = jnp.float32

    # Fold the depthwise bias through the pointwise conv (exact):
    #   pw(dw(v) + b_dw) + b_pw = pw(dw(v)) + (b_dw @ W_pw + b_pw)
    eff_b1 = (p["dw1_b"].astype(f32) @ p["pw1_w"].astype(f32)
              + p["pw1_b"].astype(f32)).reshape(1, c)
    eff_b2 = (p["dw2_b"].astype(f32) @ p["pw2_w"].astype(f32)
              + p["pw2_b"].astype(f32)).reshape(1, c)

    tile = pl.BlockSpec((1, th, w, c), lambda i, t: (i, t, 0, 0))
    # 2-row halos: clamped block indices; out-of-image rows are masked inside the kernel.
    halo_top = pl.BlockSpec(
        (1, 2, w, c), lambda i, t: (i, jnp.maximum(t * (th // 2) - 1, 0), 0, 0))
    halo_bot = pl.BlockSpec(
        (1, 2, w, c), lambda i, t: (i, jnp.minimum((t + 1) * (th // 2), h // 2 - 1), 0, 0))
    cvec3 = pl.BlockSpec((1, 1, c), lambda i, t: (0, 0, 0))
    cvec2 = pl.BlockSpec((1, c), lambda i, t: (0, 0))
    dwspec = pl.BlockSpec((3, 3, c), lambda i, t: (0, 0, 0))
    pwspec = pl.BlockSpec((c, c), lambda i, t: (0, 0))
    cparams = pltpu.CompilerParams(dimension_semantics=("parallel", "parallel"),
                                   vmem_limit_bytes=_VMEM_LIMIT)

    y, psum = pl.pallas_call(
        functools.partial(_rcab_body_kernel, relu_slope=relu_slope, eps=eps,
                          cdt=compute_dtype),
        out_shape=(jax.ShapeDtypeStruct((n, h, w, c), act_dtype),
                   jax.ShapeDtypeStruct((n, ht, 1, c), jnp.float32)),
        grid=(n, ht),
        in_specs=[tile, halo_top, halo_bot, cvec3, cvec3,
                  dwspec, pwspec, cvec2, dwspec, pwspec, cvec2],
        out_specs=(tile, pl.BlockSpec((1, 1, 1, c), lambda i, t: (i, t, 0, 0))),
        compiler_params=cparams,
    )(x, x, x,
      p["ln_gamma"].reshape(1, 1, c).astype(f32),
      p["ln_beta"].reshape(1, 1, c).astype(f32),
      p["dw1_w"].astype(compute_dtype), p["pw1_w"].astype(compute_dtype), eff_b1,
      p["dw2_w"].astype(compute_dtype), p["pw2_w"].astype(compute_dtype), eff_b2)

    pool = psum.sum(axis=1) * (1.0 / (h * w))        # (N, 1, C) f32 global average of y2

    add_long = long_res is not None
    in_specs = [tile, tile] + ([tile] if add_long else []) + [
        pl.BlockSpec((1, 1, c), lambda i, t: (i, 0, 0)),     # pooled mean per batch
        pl.BlockSpec((c, cr), lambda i, t: (0, 0)),          # ca_wa
        pl.BlockSpec((1, cr), lambda i, t: (0, 0)),          # ca_ba
        pl.BlockSpec((cr, c), lambda i, t: (0, 0)),          # ca_wb
        cvec2,                                               # ca_bb
    ]
    args = [x, y] + ([long_res] if add_long else []) + [
        pool,
        p["ca_wa"].astype(f32), p["ca_ba"].reshape(1, cr).astype(f32),
        p["ca_wb"].astype(f32), p["ca_bb"].reshape(1, c).astype(f32)]
    return pl.pallas_call(
        functools.partial(_rcab_finalize_kernel, add_long=add_long),
        out_shape=jax.ShapeDtypeStruct((n, h, w, c), act_dtype),
        grid=(n, ht),
        in_specs=in_specs,
        out_specs=tile,
        compiler_params=cparams,
    )(*args)


# ----------------------------------------------------------------------------
# conv_down: 4x4, stride 2, pad 1.  bf16 space-to-depth (factor 2) in the wrapper,
# row-tiled kernel with a 1-row halo fetched via a size-1 BlockSpec, four 2x2-tap
# MXU matmuls accumulated in f32.
# ----------------------------------------------------------------------------

def _conv_down_kernel(zm_ref, zn_ref, w_ref, b_ref, o_ref, *, cdt):
    zm = zm_ref[0]                                   # (tho,  Wo+1, 4C)
    zn = zn_ref[0]                                   # (1,    Wo+1, 4C)
    z = jnp.concatenate([zm, zn], axis=0).astype(cdt)
    tho = zm.shape[0]
    wo = zm.shape[1] - 1
    k = zm.shape[2]
    f = b_ref.shape[-1]
    acc = jnp.zeros((tho * wo, f), jnp.float32)
    for qi in range(2):
        for qj in range(2):
            patch = z[qi:qi + tho, qj:qj + wo, :].reshape(tho * wo, k)
            acc = acc + jnp.dot(patch, w_ref[qi, qj],
                                preferred_element_type=jnp.float32)
    acc = acc + b_ref[...]
    o_ref[0] = acc.reshape(tho, wo, f).astype(o_ref.dtype)


def conv_down(x, w_hwio, b, *, tile_h=8, out_dtype=jnp.float32,
              compute_dtype=jnp.bfloat16):
    n, h, wd, c = x.shape
    f = w_hwio.shape[-1]
    assert h % 2 == 0 and wd % 2 == 0
    ho, wo = h // 2, wd // 2
    tho = min(tile_h, ho)
    while ho % tho:
        tho -= 1
    htd = ho // tho
    # TODO(synk): the pad + space-to-depth still runs as an XLA op (one bf16 pass over x);
    #             fully in-kernel s2d would need strided in-VMEM gathers.
    xp = jnp.pad(x, ((0, 0), (1, 1), (1, 1), (0, 0)))
    # z[n, a, b, (ri, rj, c)] = pad(x)[n, 2a+ri, 2b+rj, c]
    z = xp.reshape(n, ho + 1, 2, wo + 1, 2, c).transpose(0, 1, 3, 2, 4, 5)
    z = z.reshape(n, ho + 1, wo + 1, 4 * c)
    # wk[qi, qj, (ri, rj, c), f] = w[2*qi+ri, 2*qj+rj, c, f]
    wk = w_hwio.reshape(2, 2, 2, 2, c, f).transpose(0, 2, 1, 3, 4, 5).reshape(2, 2, 4 * c, f)
    zmain = pl.BlockSpec((1, tho, wo + 1, 4 * c), lambda i, t: (i, t, 0, 0))
    znext = pl.BlockSpec((1, 1, wo + 1, 4 * c), lambda i, t: (i, (t + 1) * tho, 0, 0))
    return pl.pallas_call(
        functools.partial(_conv_down_kernel, cdt=compute_dtype),
        out_shape=jax.ShapeDtypeStruct((n, ho, wo, f), out_dtype),
        grid=(n, htd),
        in_specs=[zmain, znext,
                  pl.BlockSpec((2, 2, 4 * c, f), lambda i, t: (0, 0, 0, 0)),
                  pl.BlockSpec((1, f), lambda i, t: (0, 0))],
        out_specs=pl.BlockSpec((1, tho, wo, f), lambda i, t: (i, t, 0, 0)),
        compiler_params=pltpu.CompilerParams(
            dimension_semantics=("parallel", "parallel"),
            vmem_limit_bytes=_VMEM_LIMIT),
    )(z, z, wk.astype(compute_dtype), b.reshape(1, f).astype(jnp.float32))


# ----------------------------------------------------------------------------
# Module: parameter init + forward
# ----------------------------------------------------------------------------

def init_params(key, in_channel, skip_channel, features, num_groups=1,
                channels_reduction=4, down_sample=True):
    cin = in_channel + skip_channel
    cr = features // channels_reduction
    keys = iter(jax.random.split(key, 64))

    def nrm(shape, scale=0.1):
        return (scale * jax.random.normal(next(keys), shape)).astype(jnp.float32)

    p = {"conv1_w": nrm((cin, features)), "conv1_b": nrm((features,))}
    for g in range(num_groups):
        p[f"rcab_{g}"] = {
            "ln_gamma": jnp.ones((features,), jnp.float32),
            "ln_beta": jnp.zeros((features,), jnp.float32),
            "dw1_w": nrm((3, 3, features)), "dw1_b": nrm((features,)),
            "pw1_w": nrm((features, features)), "pw1_b": nrm((features,)),
            "dw2_w": nrm((3, 3, features)), "dw2_b": nrm((features,)),
            "pw2_w": nrm((features, features)), "pw2_b": nrm((features,)),
            "ca_wa": nrm((features, cr)), "ca_ba": nrm((cr,)),
            "ca_wb": nrm((cr, features)), "ca_bb": nrm((features,)),
        }
    if down_sample:
        p["cd_w"] = nrm((4, 4, features, features))   # HWIO (permute from torch OIHW)
        p["cd_b"] = nrm((features,))
    return p


def unet_encoder_block(params, x, skip=None, *, num_groups=1, relu_slope=0.2,
                       down_sample=True, tile_h=8, compute_dtype=jnp.bfloat16):
    """x, skip: NHWC float32. Returns (downsampled f32, features bf16) like the torch module."""
    if skip is not None:
        # TODO(synk): tnf.interpolate path for mismatched spatial sizes not implemented;
        #             example inputs share spatial dims, so only channel concat is needed.
        x = jnp.concatenate([x, skip], axis=-1)
    x = conv1x1_nhwc(x, params["conv1_w"], params["conv1_b"], out_dtype=jnp.bfloat16)
    shortcut_long = x
    # TODO(synk): for num_groups > 1 each group still round-trips bf16 activations through HBM;
    #             a single grouped pallas_call would need the CA global pool restructured.
    for g in range(num_groups):
        p = params[f"rcab_{g}"]
        long_res = shortcut_long if g == num_groups - 1 else None   # fused long-residual add
        x = rcab_block(x, p, long_res=long_res, relu_slope=relu_slope,
                       tile_h=tile_h, compute_dtype=compute_dtype)
    if down_sample:
        down = conv_down(x, params["cd_w"], params["cd_b"], tile_h=tile_h,
                         compute_dtype=compute_dtype)
        return down, x
    return x


# ----------------------------------------------------------------------------
# Pure-JAX reference (for numerical validation of the fused kernels)
# ----------------------------------------------------------------------------

def _reference(params, x, skip, num_groups, relu_slope):
    def lrelu(v):
        return jnp.where(v >= 0, v, v * relu_slope)

    def dwsep(v, dw_w, dw_b, pw_w, pw_b):
        h, w = v.shape[1], v.shape[2]
        vp = jnp.pad(v, ((0, 0), (1, 1), (1, 1), (0, 0)))
        acc = sum(vp[:, i:i + h, j:j + w, :] * dw_w[i, j]
                  for i in range(3) for j in range(3))
        acc = acc + dw_b
        return jnp.einsum("nhwc,cf->nhwf", acc, pw_w) + pw_b

    if skip is not None:
        x = jnp.concatenate([x, skip], axis=-1)
    x = jnp.einsum("nhwc,cf->nhwf", x, params["conv1_w"]) + params["conv1_b"]
    long_res = x
    for g in range(num_groups):
        p = params[f"rcab_{g}"]
        sc = x
        mu = jnp.mean(x, -1, keepdims=True)
        var = jnp.mean((x - mu) ** 2, -1, keepdims=True)
        y = (x - mu) * jax.lax.rsqrt(var + 1e-5) * p["ln_gamma"] + p["ln_beta"]
        y = lrelu(dwsep(y, p["dw1_w"], p["dw1_b"], p["pw1_w"], p["pw1_b"]))
        y = dwsep(y, p["dw2_w"], p["dw2_b"], p["pw2_w"], p["pw2_b"])
        m = jnp.mean(y, axis=(1, 2))                               # (N, C)
        z = jnp.maximum(m @ p["ca_wa"] + p["ca_ba"], 0.0)
        s = jax.nn.sigmoid(z @ p["ca_wb"] + p["ca_bb"])
        x = sc + y * s[:, None, None, :]
    x = x + long_res
    down = jax.lax.conv_general_dilated(
        x, params["cd_w"], window_strides=(2, 2), padding=((1, 1), (1, 1)),
        dimension_numbers=("NHWC", "HWIO", "NHWC")) + params["cd_b"]
    return down, x


# ----------------------------------------------------------------------------
# Demo
# ----------------------------------------------------------------------------

if __name__ == "__main__":
    N, H, W = 2, 16, 16
    IN_CH, SKIP_CH, FEATURES = 4, 4, 32

    key = jax.random.PRNGKey(0)
    kx, ks, kp = jax.random.split(key, 3)
    x = jax.random.normal(kx, (N, H, W, IN_CH), jnp.float32)       # NHWC
    skip = jax.random.normal(ks, (N, H, W, SKIP_CH), jnp.float32)  # NHWC

    params = init_params(kp, IN_CH, SKIP_CH, FEATURES,
                         num_groups=1, channels_reduction=4, down_sample=True)

    fwd = jax.jit(functools.partial(unet_encoder_block, num_groups=1,
                                    relu_slope=0.2, down_sample=True, tile_h=8))
    down, feats = fwd(params, x, skip)
    down = jax.block_until_ready(down)
    feats = jax.block_until_ready(feats)

    assert down.shape == (N, H // 2, W // 2, FEATURES), down.shape
    assert feats.shape == (N, H, W, FEATURES), feats.shape
    assert bool(jnp.all(jnp.isfinite(down.astype(jnp.float32))))
    assert bool(jnp.all(jnp.isfinite(feats.astype(jnp.float32))))

    # Numerical check against a pure-JAX f32 reference (bf16 inter-kernel activations +
    # bf16 VPU/MXU operands inside the kernels -> moderate tolerance).
    down_ref, feats_ref = _reference(params, x, skip, num_groups=1, relu_slope=0.2)
    for got, ref in ((feats.astype(jnp.float32), feats_ref),
                     (down.astype(jnp.float32), down_ref)):
        err = float(jnp.max(jnp.abs(got - ref)))
        tol = 5e-2 + 3e-2 * float(jnp.max(jnp.abs(ref)))
        assert err < tol, (err, tol)

    print("KERNEL_OK")
</pallas_src>

<mosaic_0001>
module attributes {stable_mosaic.version = 11 : i64} {
  func.func @_matmul_bias_kernel(%arg0: i32, %arg1: memref<512x8xf32, #tpu.memory_space<vmem>>, %arg2: memref<8x32xf32, #tpu.memory_space<vmem>>, %arg3: memref<1x32xf32, #tpu.memory_space<vmem>>, %arg4: memref<512x32xbf16, #tpu.memory_space<vmem>>) attributes {dimension_semantics = [#tpu.dimension_semantics<parallel>], iteration_bounds = array<i64: 1>, scalar_prefetch = 0 : i64, scratch_operands = 0 : i64, tpu.core_type = #tpu.core_type<tc>, window_params = [{transform_indices = @transform_0, window_bounds = array<i64: 512, 8>}, {pipeline_mode = #tpu.pipeline_mode<synchronous>, transform_indices = @transform_1, window_bounds = array<i64: 8, 32>}, {pipeline_mode = #tpu.pipeline_mode<synchronous>, transform_indices = @transform_2, window_bounds = array<i64: 1, 32>}, {transform_indices = @transform_3, window_bounds = array<i64: 512, 32>}]} {
    %c0 = arith.constant 0 : index
    %c0_0 = arith.constant 0 : index
    %0 = vector.load %arg1[%c0, %c0_0] : memref<512x8xf32, #tpu.memory_space<vmem>>, vector<512x8xf32>
    %1 = arith.truncf %0 : vector<512x8xf32> to vector<512x8xbf16>
    %c0_1 = arith.constant 0 : index
    %c0_2 = arith.constant 0 : index
    %2 = vector.load %arg2[%c0_1, %c0_2] : memref<8x32xf32, #tpu.memory_space<vmem>>, vector<8x32xf32>
    %3 = arith.truncf %2 : vector<8x32xf32> to vector<8x32xbf16>
    %cst = arith.constant dense<0.000000e+00> : vector<512x32xf32>
    %4 = tpu.matmul %1, %3, %cst {dimension_numbers = #tpu.dot_dimension_numbers<[1], [0], [0], [1], [0, 0, 1, 1], [], []>} : vector<512x8xbf16>, vector<8x32xbf16>, vector<512x32xf32> -> vector<512x32xf32>
    %c0_3 = arith.constant 0 : index
    %c0_4 = arith.constant 0 : index
    %5 = vector.load %arg3[%c0_3, %c0_4] : memref<1x32xf32, #tpu.memory_space<vmem>>, vector<1x32xf32>
    %6 = vector.broadcast %5 : vector<1x32xf32> to vector<512x32xf32>
    %7 = arith.addf %4, %6 : vector<512x32xf32>
    %8 = arith.truncf %7 : vector<512x32xf32> to vector<512x32xbf16>
    %c0_5 = arith.constant 0 : index
    %c0_6 = arith.constant 0 : index
    %9 = vector.load %arg4[%c0_5, %c0_6] : memref<512x32xbf16, #tpu.memory_space<vmem>>, vector<512x32xbf16>
    tpu.vector_store %arg4[%c0_5, %c0_6], %8 {strides = array<i32>} : memref<512x32xbf16, #tpu.memory_space<vmem>>, vector<512x32xbf16>,
    return
  }
  func.func @transform_0(%arg0: i32) -> (i32, i32) {
    %c0_i32 = arith.constant 0 : i32
    %c0_i32_0 = arith.constant 0 : i32
    return %arg0, %c0_i32 : i32, i32
  }
  func.func @transform_1(%arg0: i32) -> (i32, i32) {
    %c0_i32 = arith.constant 0 : i32
    %c0_i32_0 = arith.constant 0 : i32
    %c0_i32_1 = arith.constant 0 : i32
    return %c0_i32, %c0_i32_0 : i32, i32
  }
  func.func @transform_2(%arg0: i32) -> (i32, i32) {
    %c0_i32 = arith.constant 0 : i32
    %c0_i32_0 = arith.constant 0 : i32
    %c0_i32_1 = arith.constant 0 : i32
    return %c0_i32, %c0_i32_0 : i32, i32
  }
  func.func @transform_3(%arg0: i32) -> (i32, i32) {
    %c0_i32 = arith.constant 0 : i32
    %c0_i32_0 = arith.constant 0 : i32
    return %arg0, %c0_i32 : i32, i32
  }
}

module attributes {stable_mosaic.version = 11 : i64} {
  func.func @_rcab_body_kernel(%arg0: i32, %arg1: i32, %arg2: memref<1x8x16x32xbf16, #tpu.memory_space<vmem>>, %arg3: memref<1x2x16x32xbf16, #tpu.memory_space<vmem>>, %arg4: memref<1x2x16x32xbf16, #tpu.memory_space<vmem>>, %arg5: memref<1x1x32xf32, #tpu.memory_space<vmem>>, %arg6: memref<1x1x32xf32, #tpu.memory_space<vmem>>, %arg7: memref<3x3x32xbf16, #tpu.memory_space<vmem>>, %arg8: memref<32x32xbf16, #tpu.memory_space<vmem>>, %arg9: memref<1x32xf32, #tpu.memory_space<vmem>>, %arg10: memref<3x3x32xbf16, #tpu.memory_space<vmem>>, %arg11: memref<32x32xbf16, #tpu.memory_space<vmem>>, %arg12: memref<1x32xf32, #tpu.memory_space<vmem>>, %arg13: memref<1x8x16x32xbf16, #tpu.memory_space<vmem>>, %arg14: memref<1x1x1x32xf32, #tpu.memory_space<vmem>>) attributes {dimension_semantics = [#tpu.dimension_semantics<parallel>, #tpu.dimension_semantics<parallel>], iteration_bounds = array<i64: 2, 2>, scalar_prefetch = 0 : i64, scratch_operands = 0 : i64, tpu.core_type = #tpu.core_type<tc>, window_params = [{transform_indices = @transform_0, window_bounds = array<i64: 1, 8, 16, 32>}, {transform_indices = @transform_1, window_bounds = array<i64: 1, 2, 16, 32>}, {transform_indices = @transform_2, window_bounds = array<i64: 1, 2, 16, 32>}, {pipeline_mode = #tpu.pipeline_mode<synchronous>, transform_indices = @transform_3, window_bounds = array<i64: 1, 1, 32>}, {pipeline_mode = #tpu.pipeline_mode<synchronous>, transform_indices = @transform_4, window_bounds = array<i64: 1, 1, 32>}, {pipeline_mode = #tpu.pipeline_mode<synchronous>, transform_indices = @transform_5, window_bounds = array<i64: 3, 3, 32>}, {pipeline_mode = #tpu.pipeline_mode<synchronous>, transform_indices = @transform_6, window_bounds = array<i64: 32, 32>}, {pipeline_mode = #tpu.pipeline_mode<synchronous>, transform_indices = @transform_7, window_bounds = array<i64: 1, 32>}, {pipeline_mode = #tpu.pipeline_mode<synchronous>, transform_indices = @transform_8, window_bounds = array<i64: 3, 3, 32>}, {pipeline_mode = #tpu.pipeline_mode<synchronous>, transform_indices = @transform_9, window_bounds = array<i64: 32, 32>}, {pipeline_mode = #tpu.pipeline_mode<synchronous>, transform_indices = @transform_10, window_bounds = array<i64: 1, 32>}, {transform_indices = @transform_11, window_bounds = array<i64: 1, 8, 16, 32>}, {transform_indices = @transform_12, window_bounds = array<i64: 1, 1, 1, 32>}]} {
    %c0_i32 = arith.constant 0 : i32
    %0 = arith.cmpi sgt, %arg1, %c0_i32 : i32
    %1 = arith.extui %0 : i1 to i32
    %2 = arith.sitofp %1 : i32 to f32
    %c1_i32 = arith.constant 1 : i32
    %3 = arith.cmpi slt, %arg1, %c1_i32 : i32
    %4 = arith.extui %3 : i1 to i32
    %5 = arith.sitofp %4 : i32 to f32
    %c0 = arith.constant 0 : index
    %c0_0 = arith.constant 0 : index
    %c0_1 = arith.constant 0 : index
    %6 = vector.load %arg5[%c0, %c0_0, %c0_1] : memref<1x1x32xf32, #tpu.memory_space<vmem>>, vector<1x1x32xf32>
    %c0_2 = arith.constant 0 : index
    %c0_3 = arith.constant 0 : index
    %c0_4 = arith.constant 0 : index
    %7 = vector.load %arg6[%c0_2, %c0_3, %c0_4] : memref<1x1x32xf32, #tpu.memory_space<vmem>>, vector<1x1x32xf32>
    %c0_5 = arith.constant 0 : index
    %c0_6 = arith.constant 0 : index
    %c0_7 = arith.constant 0 : index
    %c0_8 = arith.constant 0 : index
    %8 = vector.load %arg3[%c0_5, %c0_6, %c0_7, %c0_8] : memref<1x2x16x32xbf16, #tpu.memory_space<vmem>>, vector<1x2x16x32xbf16>
    %9 = vector.shape_cast %8 : vector<1x2x16x32xbf16> to vector<2x16x32xbf16>
    %10 = arith.extf %9 : vector<2x16x32xbf16> to vector<2x16x32xf32>
    %cst = arith.constant dense<0.000000e+00> : vector<2x16xf32>
    %11 = vector.multi_reduction <add>, %10, %cst [2] : vector<2x16x32xf32> to vector<2x16xf32>
    %12 = vector.shape_cast %11 : vector<2x16xf32> to vector<2x16x1xf32>
    %cst_9 = arith.constant 3.200000e+01 : f32
    %13 = vector.broadcast %cst_9 : f32 to vector<2x16x1xf32>
    %14 = arith.divf %12, %13 : vector<2x16x1xf32>
    %15 = vector.broadcast %14 : vector<2x16x1xf32> to vector<2x16x32xf32>
    %16 = arith.subf %10, %15 : vector<2x16x32xf32>
    %17 = arith.mulf %16, %16 : vector<2x16x32xf32>
    %cst_10 = arith.constant dense<0.000000e+00> : vector<2x16xf32>
    %18 = vector.multi_reduction <add>, %17, %cst_10 [2] : vector<2x16x32xf32> to vector<2x16xf32>
    %19 = vector.shape_cast %18 : vector<2x16xf32> to vector<2x16x1xf32>
    %cst_11 = arith.constant 3.200000e+01 : f32
    %20 = vector.broadcast %cst_11 : f32 to vector<2x16x1xf32>
    %21 = arith.divf %19, %20 : vector<2x16x1xf32>
    %22 = vector.broadcast %14 : vector<2x16x1xf32> to vector<2x16x32xf32>
    %23 = arith.subf %10, %22 : vector<2x16x32xf32>
    %cst_12 = arith.constant 9.99999974E-6 : f32
    %24 = vector.broadcast %cst_12 : f32 to vector<2x16x1xf32>
    %25 = arith.addf %21, %24 : vector<2x16x1xf32>
    %26 = math.rsqrt %25 : vector<2x16x1xf32>
    %27 = vector.broadcast %26 : vector<2x16x1xf32> to vector<2x16x32xf32>
    %28 = arith.mulf %23, %27 : vector<2x16x32xf32>
    %29 = vector.broadcast %6 : vector<1x1x32xf32> to vector<2x16x32xf32>
    %30 = arith.mulf %28, %29 : vector<2x16x32xf32>
    %31 = vector.broadcast %7 : vector<1x1x32xf32> to vector<2x16x32xf32>
    %32 = arith.addf %30, %31 : vector<2x16x32xf32>
    %33 = vector.broadcast %2 : f32 to vector<2x16x32xf32>
    %34 = arith.mulf %32, %33 : vector<2x16x32xf32>
    %35 = arith.truncf %34 : vector<2x16x32xf32> to vector<2x16x32xbf16>
    %c0_13 = arith.constant 0 : index
    %c0_14 = arith.constant 0 : index
    %c0_15 = arith.constant 0 : index
    %c0_16 = arith.constant 0 : index
    %36 = vector.load %arg2[%c0_13, %c0_14, %c0_15, %c0_16] : memref<1x8x16x32xbf16, #tpu.memory_space<vmem>>, vector<1x8x16x32xbf16>
    %37 = vector.shape_cast %36 : vector<1x8x16x32xbf16> to vector<8x16x32xbf16>
    %38 = arith.extf %37 : vector<8x16x32xbf16> to vector<8x16x32xf32>
    %cst_17 = arith.constant dense<0.000000e+00> : vector<8x16xf32>
    %39 = vector.multi_reduction <add>, %38, %cst_17 [2] : vector<8x16x32xf32> to vector<8x16xf32>
    %40 = vector.shape_cast %39 : vector<8x16xf32> to vector<8x16x1xf32>
    %cst_18 = arith.constant 3.200000e+01 : f32
    %41 = vector.broadcast %cst_18 : f32 to vector<8x16x1xf32>
    %42 = arith.divf %40, %41 : vector<8x16x1xf32>
    %43 = vector.broadcast %42 : vector<8x16x1xf32> to vector<8x16x32xf32>
    %44 = arith.subf %38, %43 : vector<8x16x32xf32>
    %45 = arith.mulf %44, %44 : vector<8x16x32xf32>
    %cst_19 = arith.constant dense<0.000000e+00> : vector<8x16xf32>
    %46 = vector.multi_reduction <add>, %45, %cst_19 [2] : vector<8x16x32xf32> to vector<8x16xf32>
    %47 = vector.shape_cast %46 : vector<8x16xf32> to vector<8x16x1xf32>
    %cst_20 = arith.constant 3.200000e+01 : f32
    %48 = vector.broadcast %cst_20 : f32 to vector<8x16x1xf32>
    %49 = arith.divf %47, %48 : vector<8x16x1xf32>
    %50 = vector.broadcast %42 : vector<8x16x1xf32> to vector<8x16x32xf32>
    %51 = arith.subf %38, %50 : vector<8x16x32xf32>
    %cst_21 = arith.constant 9.99999974E-6 : f32
    %52 = vector.broadcast %cst_21 : f32 to vector<8x16x1xf32>
    %53 = arith.addf %49, %52 : vector<8x16x1xf32>
    %54 = math.rsqrt %53 : vector<8x16x1xf32>
    %55 = vector.broadcast %54 : vector<8x16x1xf32> to vector<8x16x32xf32>
    %56 = arith.mulf %51, %55 : vector<8x16x32xf32>
    %57 = vector.broadcast %6 : vector<1x1x32xf32> to vector<8x16x32xf32>
    %58 = arith.mulf %56, %57 : vector<8x16x32xf32>
    %59 = vector.broadcast %7 : vector<1x1x32xf32> to vector<8x16x32xf32>
    %60 = arith.addf %58, %59 : vector<8x16x32xf32>
    %61 = arith.truncf %60 : vector<8x16x32xf32> to vector<8x16x32xbf16>
    %c0_22 = arith.constant 0 : index
    %c0_23 = arith.constant 0 : index
    %c0_24 = arith.constant 0 : index
    %c0_25 = arith.constant 0 : index
    %62 = vector.load %arg4[%c0_22, %c0_23, %c0_24, %c0_25] : memref<1x2x16x32xbf16, #tpu.memory_space<vmem>>, vector<1x2x16x32xbf16>
    %63 = vector.shape_cast %62 : vector<1x2x16x32xbf16> to vector<2x16x32xbf16>
    %64 = arith.extf %63 : vector<2x16x32xbf16> to vector<2x16x32xf32>
    %cst_26 = arith.constant dense<0.000000e+00> : vector<2x16xf32>
    %65 = vector.multi_reduction <add>, %64, %cst_26 [2] : vector<2x16x32xf32> to vector<2x16xf32>
    %66 = vector.shape_cast %65 : vector<2x16xf32> to vector<2x16x1xf32>
    %cst_27 = arith.constant 3.200000e+01 : f32
    %67 = vector.broadcast %cst_27 : f32 to vector<2x16x1xf32>
    %68 = arith.divf %66, %67 : vector<2x16x1xf32>
    %69 = vector.broadcast %68 : vector<2x16x1xf32> to vector<2x16x32xf32>
    %70 = arith.subf %64, %69 : vector<2x16x32xf32>
    %71 = arith.mulf %70, %70 : vector<2x16x32xf32>
    %cst_28 = arith.constant dense<0.000000e+00> : vector<2x16xf32>
    %72 = vector.multi_reduction <add>, %71, %cst_28 [2] : vector<2x16x32xf32> to vector<2x16xf32>
    %73 = vector.shape_cast %72 : vector<2x16xf32> to vector<2x16x1xf32>
    %cst_29 = arith.constant 3.200000e+01 : f32
    %74 = vector.broadcast %cst_29 : f32 to vector<2x16x1xf32>
    %75 = arith.divf %73, %74 : vector<2x16x1xf32>
    %76 = vector.broadcast %68 : vector<2x16x1xf32> to vector<2x16x32xf32>
    %77 = arith.subf %64, %76 : vector<2x16x32xf32>
    %cst_30 = arith.constant 9.99999974E-6 : f32
    %78 = vector.broadcast %cst_30 : f32 to vector<2x16x1xf32>
    %79 = arith.addf %75, %78 : vector<2x16x1xf32>
    %80 = math.rsqrt %79 : vector<2x16x1xf32>
    %81 = vector.broadcast %80 : vector<2x16x1xf32> to vector<2x16x32xf32>
    %82 = arith.mulf %77, %81 : vector<2x16x32xf32>
    %83 = vector.broadcast %6 : vector<1x1x32xf32> to vector<2x16x32xf32>
    %84 = arith.mulf %82, %83 : vector<2x16x32xf32>
    %85 = vector.broadcast %7 : vector<1x1x32xf32> to vector<2x16x32xf32>
    %86 = arith.addf %84, %85 : vector<2x16x32xf32>
    %87 = vector.broadcast %5 : f32 to vector<2x16x32xf32>
    %88 = arith.mulf %86, %87 : vector<2x16x32xf32>
    %89 = arith.truncf %88 : vector<2x16x32xf32> to vector<2x16x32xbf16>
    %90 = tpu.concatenate %35, %61, %89 in 0 : vector<2x16x32xbf16>, vector<8x16x32xbf16>, vector<2x16x32xbf16> -> vector<12x16x32xbf16>
    %cst_31 = arith.constant 0.000000e+00 : bf16
    %91 = vector.broadcast %cst_31 : bf16 to vector<12x1x32xbf16>
    %92 = tpu.concatenate %91, %90, %91 in 1 : vector<12x1x32xbf16>, vector<12x16x32xbf16>, vector<12x1x32xbf16> -> vector<12x18x32xbf16>
    %c0_32 = arith.constant 0 : index
    %c0_33 = arith.constant 0 : index
    %c0_34 = arith.constant 0 : index
    %93 = vector.load %arg7[%c0_32, %c0_33, %c0_34] : memref<3x3x32xbf16, #tpu.memory_space<vmem>>, vector<3x3x32xbf16>
    %cst_35 = arith.constant 0.000000e+00 : bf16
    %94 = vector.broadcast %cst_35 : bf16 to vector<10x16x32xbf16>
    %95 = vector.extract_strided_slice %92 {offsets = [0, 0, 0], sizes = [10, 16, 32], strides = [1, 1, 1]} : vector<12x18x32xbf16> to vector<10x16x32xbf16>
    %96 = vector.extract_strided_slice %93 {offsets = [0, 0, 0], sizes = [1, 1, 32], strides = [1, 1, 1]} : vector<3x3x32xbf16> to vector<1x1x32xbf16>
    %97 = vector.shape_cast %96 : vector<1x1x32xbf16> to vector<32xbf16>
    %98 = vector.shape_cast %97 : vector<32xbf16> to vector<1x1x32xbf16>
    %99 = vector.broadcast %98 : vector<1x1x32xbf16> to vector<10x16x32xbf16>
    %100 = arith.mulf %95, %99 : vector<10x16x32xbf16>
    %101 = arith.addf %94, %100 : vector<10x16x32xbf16>
    %102 = vector.extract_strided_slice %92 {offsets = [0, 1, 0], sizes = [10, 16, 32], strides = [1, 1, 1]} : vector<12x18x32xbf16> to vector<10x16x32xbf16>
    %103 = vector.extract_strided_slice %93 {offsets = [0, 1, 0], sizes = [1, 1, 32], strides = [1, 1, 1]} : vector<3x3x32xbf16> to vector<1x1x32xbf16>
    %104 = vector.shape_cast %103 : vector<1x1x32xbf16> to vector<32xbf16>
    %105 = vector.shape_cast %104 : vector<32xbf16> to vector<1x1x32xbf16>
    %106 = vector.broadcast %105 : vector<1x1x32xbf16> to vector<10x16x32xbf16>
    %107 = arith.mulf %102, %106 : vector<10x16x32xbf16>
    %108 = arith.addf %101, %107 : vector<10x16x32xbf16>
    %109 = vector.extract_strided_slice %92 {offsets = [0, 2, 0], sizes = [10, 16, 32], strides = [1, 1, 1]} : vector<12x18x32xbf16> to vector<10x16x32xbf16>
    %110 = vector.extract_strided_slice %93 {offsets = [0, 2, 0], sizes = [1, 1, 32], strides = [1, 1, 1]} : vector<3x3x32xbf16> to vector<1x1x32xbf16>
    %111 = vector.shape_cast %110 : vector<1x1x32xbf16> to vector<32xbf16>
    %112 = vector.shape_cast %111 : vector<32xbf16> to vector<1x1x32xbf16>
    %113 = vector.broadcast %112 : vector<1x1x32xbf16> to vector<10x16x32xbf16>
    %114 = arith.mulf %109, %113 : vector<10x16x32xbf16>
    %115 = arith.addf %108, %114 : vector<10x16x32xbf16>
    %116 = vector.extract_strided_slice %92 {offsets = [1, 0, 0], sizes = [10, 16, 32], strides = [1, 1, 1]} : vector<12x18x32xbf16> to vector<10x16x32xbf16>
    %117 = vector.extract_strided_slice %93 {offsets = [1, 0, 0], sizes = [1, 1, 32], strides = [1, 1, 1]} : vector<3x3x32xbf16> to vector<1x1x32xbf16>
    %118 = vector.shape_cast %117 : vector<1x1x32xbf16> to vector<32xbf16>
    %119 = vector.shape_cast %118 : vector<32xbf16> to vector<1x1x32xbf16>
    %120 = vector.broadcast %119 : vector<1x1x32xbf16> to vector<10x16x32xbf16>
    %121 = arith.mulf %116, %120 : vector<10x16x32xbf16>
    %122 = arith.addf %115, %121 : vector<10x16x32xbf16>
    %123 = vector.extract_strided_slice %92 {offsets = [1, 1, 0], sizes = [10, 16, 32], strides = [1, 1, 1]} : vector<12x18x32xbf16> to vector<10x16x32xbf16>
    %124 = vector.extract_strided_slice %93 {offsets = [1, 1, 0], sizes = [1, 1, 32], strides = [1, 1, 1]} : vector<3x3x32xbf16> to vector<1x1x32xbf16>
    %125 = vector.shape_cast %124 : vector<1x1x32xbf16> to vector<32xbf16>
    %126 = vector.shape_cast %125 : vector<32xbf16> to vector<1x1x32xbf16>
    %127 = vector.broadcast %126 : vector<1x1x32xbf16> to vector<10x16x32xbf16>
    %128 = arith.mulf %123, %127 : vector<10x16x32xbf16>
    %129 = arith.addf %122, %128 : vector<10x16x32xbf16>
    %130 = vector.extract_strided_slice %92 {offsets = [1, 2, 0], sizes = [10, 16, 32], strides = [1, 1, 1]} : vector<12x18x32xbf16> to vector<10x16x32xbf16>
    %131 = vector.extract_strided_slice %93 {offsets = [1, 2, 0], sizes = [1, 1, 32], strides = [1, 1, 1]} : vector<3x3x32xbf16> to vector<1x1x32xbf16>
    %132 = vector.shape_cast %131 : vector<1x1x32xbf16> to vector<32xbf16>
    %133 = vector.shape_cast %132 : vector<32xbf16> to vector<1x1x32xbf16>
    %134 = vector.broadcast %133 : vector<1x1x32xbf16> to vector<10x16x32xbf16>
    %135 = arith.mulf %130, %134 : vector<10x16x32xbf16>
    %136 = arith.addf %129, %135 : vector<10x16x32xbf16>
    %137 = vector.extract_strided_slice %92 {offsets = [2, 0, 0], sizes = [10, 16, 32], strides = [1, 1, 1]} : vector<12x18x32xbf16> to vector<10x16x32xbf16>
    %138 = vector.extract_strided_slice %93 {offsets = [2, 0, 0], sizes = [1, 1, 32], strides = [1, 1, 1]} : vector<3x3x32xbf16> to vector<1x1x32xbf16>
    %139 = vector.shape_cast %138 : vector<1x1x32xbf16> to vector<32xbf16>
    %140 = vector.shape_cast %139 : vector<32xbf16> to vector<1x1x32xbf16>
    %141 = vector.broadcast %140 : vector<1x1x32xbf16> to vector<10x16x32xbf16>
    %142 = arith.mulf %137, %141 : vector<10x16x32xbf16>
    %143 = arith.addf %136, %142 : vector<10x16x32xbf16>
    %144 = vector.extract_strided_slice %92 {offsets = [2, 1, 0], sizes = [10, 16, 32], strides = [1, 1, 1]} : vector<12x18x32xbf16> to vector<10x16x32xbf16>
    %145 = vector.extract_strided_slice %93 {offsets = [2, 1, 0], sizes = [1, 1, 32], strides = [1, 1, 1]} : vector<3x3x32xbf16> to vector<1x1x32xbf16>
    %146 = vector.shape_cast %145 : vector<1x1x32xbf16> to vector<32xbf16>
    %147 = vector.shape_cast %146 : vector<32xbf16> to vector<1x1x32xbf16>
    %148 = vector.broadcast %147 : vector<1x1x32xbf16> to vector<10x16x32xbf16>
    %149 = arith.mulf %144, %148 : vector<10x16x32xbf16>
    %150 = arith.addf %143, %149 : vector<10x16x32xbf16>
    %151 = vector.extract_strided_slice %92 {offsets = [2, 2, 0], sizes = [10, 16, 32], strides = [1, 1, 1]} : vector<12x18x32xbf16> to vector<10x16x32xbf16>
    %152 = vector.extract_strided_slice %93 {offsets = [2, 2, 0], sizes = [1, 1, 32], strides = [1, 1, 1]} : vector<3x3x32xbf16> to vector<1x1x32xbf16>
    %153 = vector.shape_cast %152 : vector<1x1x32xbf16> to vector<32xbf16>
    %154 = vector.shape_cast %153 : vector<32xbf16> to vector<1x1x32xbf16>
    %155 = vector.broadcast %154 : vector<1x1x32xbf16> to vector<10x16x32xbf16>
    %156 = arith.mulf %151, %155 : vector<10x16x32xbf16>
    %157 = arith.addf %150, %156 : vector<10x16x32xbf16>
    %158 = vector.shape_cast %157 : vector<10x16x32xbf16> to vector<160x32xbf16>
    %c0_36 = arith.constant 0 : index
    %c0_37 = arith.constant 0 : index
    %159 = vector.load %arg8[%c0_36, %c0_37] : memref<32x32xbf16, #tpu.memory_space<vmem>>, vector<32x32xbf16>
    %cst_38 = arith.constant dense<0.000000e+00> : vector<160x32xf32>
    %160 = tpu.matmul %158, %159, %cst_38 {dimension_numbers = #tpu.dot_dimension_numbers<[1], [0], [0], [1], [0, 0, 1, 1], [], []>} : vector<160x32xbf16>, vector<32x32xbf16>, vector<160x32xf32> -> vector<160x32xf32>
    %c0_39 = arith.constant 0 : index
    %c0_40 = arith.constant 0 : index
    %161 = vector.load %arg9[%c0_39, %c0_40] : memref<1x32xf32, #tpu.memory_space<vmem>>, vector<1x32xf32>
    %162 = vector.broadcast %161 : vector<1x32xf32> to vector<160x32xf32>
    %163 = arith.addf %160, %162 : vector<160x32xf32>
    %cst_41 = arith.constant 0.000000e+00 : f32
    %164 = vector.broadcast %cst_41 : f32 to vector<160x32xf32>
    %165 = arith.cmpf oge, %163, %164 : vector<160x32xf32>
    %cst_42 = arith.constant 2.000000e-01 : f32
    %166 = vector.broadcast %cst_42 : f32 to vector<160x32xf32>
    %167 = arith.mulf %163, %166 : vector<160x32xf32>
    %168 = arith.select %165, %163, %167 : vector<160x32xi1>, vector<160x32xf32>
    %169 = vector.shape_cast %168 : vector<160x32xf32> to vector<10x16x32xf32>
    %170 = vector.extract_strided_slice %169 {offsets = [0, 0, 0], sizes = [1, 16, 32], strides = [1, 1, 1]} : vector<10x16x32xf32> to vector<1x16x32xf32>
    %171 = vector.broadcast %2 : f32 to vector<1x16x32xf32>
    %172 = arith.mulf %170, %171 : vector<1x16x32xf32>
    %173 = vector.extract_strided_slice %169 {offsets = [1, 0, 0], sizes = [8, 16, 32], strides = [1, 1, 1]} : vector<10x16x32xf32> to vector<8x16x32xf32>
    %174 = vector.extract_strided_slice %169 {offsets = [9, 0, 0], sizes = [1, 16, 32], strides = [1, 1, 1]} : vector<10x16x32xf32> to vector<1x16x32xf32>
    %175 = vector.broadcast %5 : f32 to vector<1x16x32xf32>
    %176 = arith.mulf %174, %175 : vector<1x16x32xf32>
    %177 = tpu.concatenate %172, %173, %176 in 0 : vector<1x16x32xf32>, vector<8x16x32xf32>, vector<1x16x32xf32> -> vector<10x16x32xf32>
    %178 = arith.truncf %177 : vector<10x16x32xf32> to vector<10x16x32xbf16>
    %cst_43 = arith.constant 0.000000e+00 : bf16
    %179 = vector.broadcast %cst_43 : bf16 to vector<10x1x32xbf16>
    %180 = tpu.concatenate %179, %178, %179 in 1 : vector<10x1x32xbf16>, vector<10x16x32xbf16>, vector<10x1x32xbf16> -> vector<10x18x32xbf16>
    %c0_44 = arith.constant 0 : index
    %c0_45 = arith.constant 0 : index
    %c0_46 = arith.constant 0 : index
    %181 = vector.load %arg10[%c0_44, %c0_45, %c0_46] : memref<3x3x32xbf16, #tpu.memory_space<vmem>>, vector<3x3x32xbf16>
    %cst_47 = arith.constant 0.000000e+00 : bf16
    %182 = vector.broadcast %cst_47 : bf16 to vector<8x16x32xbf16>
    %183 = vector.extract_strided_slice %180 {offsets = [0, 0, 0], sizes = [8, 16, 32], strides = [1, 1, 1]} : vector<10x18x32xbf16> to vector<8x16x32xbf16>
    %184 = vector.extract_strided_slice %181 {offsets = [0, 0, 0], sizes = [1, 1, 32], strides = [1, 1, 1]} : vector<3x3x32xbf16> to vector<1x1x32xbf16>
    %185 = vector.shape_cast %184 : vector<1x1x32xbf16> to vector<32xbf16>
    %186 = vector.shape_cast %185 : vector<32xbf16> to vector<1x1x32xbf16>
    %187 = vector.broadcast %186 : vector<1x1x32xbf16> to vector<8x16x32xbf16>
    %188 = arith.mulf %183, %187 : vector<8x16x32xbf16>
    %189 = arith.addf %182, %188 : vector<8x16x32xbf16>
    %190 = vector.extract_strided_slice %180 {offsets = [0, 1, 0], sizes = [8, 16, 32], strides = [1, 1, 1]} : vector<10x18x32xbf16> to vector<8x16x32xbf16>
    %191 = vector.extract_strided_slice %181 {offsets = [0, 1, 0], sizes = [1, 1, 32], strides = [1, 1, 1]} : vector<3x3x32xbf16> to vector<1x1x32xbf16>
    %192 = vector.shape_cast %191 : vector<1x1x32xbf16> to vector<32xbf16>
    %193 = vector.shape_cast %192 : vector<32xbf16> to vector<1x1x32xbf16>
    %194 = vector.broadcast %193 : vector<1x1x32xbf16> to vector<8x16x32xbf16>
    %195 = arith.mulf %190, %194 : vector<8x16x32xbf16>
    %196 = arith.addf %189, %195 : vector<8x16x32xbf16>
    %197 = vector.extract_strided_slice %180 {offsets = [0, 2, 0], sizes = [8, 16, 32], strides = [1, 1, 1]} : vector<10x18x32xbf16> to vector<8x16x32xbf16>
    %198 = vector.extract_strided_slice %181 {offsets = [0, 2, 0], sizes = [1, 1, 32], strides = [1, 1, 1]} : vector<3x3x32xbf16> to vector<1x1x32xbf16>
    %199 = vector.shape_cast %198 : vector<1x1x32xbf16> to vector<32xbf16>
    %200 = vector.shape_cast %199 : vector<32xbf16> to vector<1x1x32xbf16>
    %201 = vector.broadcast %200 : vector<1x1x32xbf16> to vector<8x16x32xbf16>
    %202 = arith.mulf %197, %201 : vector<8x16x32xbf16>
    %203 = arith.addf %196, %202 : vector<8x16x32xbf16>
    %204 = vector.extract_strided_slice %180 {offsets = [1, 0, 0], sizes = [8, 16, 32], strides = [1, 1, 1]} : vector<10x18x32xbf16> to vector<8x16x32xbf16>
    %205 = vector.extract_strided_slice %181 {offsets = [1, 0, 0], sizes = [1, 1, 32], strides = [1, 1, 1]} : vector<3x3x32xbf16> to vector<1x1x32xbf16>
    %206 = vector.shape_cast %205 : vector<1x1x32xbf16> to vector<32xbf16>
    %207 = vector.shape_cast %206 : vector<32xbf16> to vector<1x1x32xbf16>
    %208 = vector.broadcast %207 : vector<1x1x32xbf16> to vector<8x16x32xbf16>
    %209 = arith.mulf %204, %208 : vector<8x16x32xbf16>
    %210 = arith.addf %203, %209 : vector<8x16x32xbf16>
    %211 = vector.extract_strided_slice %180 {offsets = [1, 1, 0], sizes = [8, 16, 32], strides = [1, 1, 1]} : vector<10x18x32xbf16> to vector<8x16x32xbf16>
    %212 = vector.extract_strided_slice %181 {offsets = [1, 1, 0], sizes = [1, 1, 32], strides = [1, 1, 1]} : vector<3x3x32xbf16> to vector<1x1x32xbf16>
    %213 = vector.shape_cast %212 : vector<1x1x32xbf16> to vector<32xbf16>
    %214 = vector.shape_cast %213 : vector<32xbf16> to vector<1x1x32xbf16>
    %215 = vector.broadcast %214 : vector<1x1x32xbf16> to vector<8x16x32xbf16>
    %216 = arith.mulf %211, %215 : vector<8x16x32xbf16>
    %217 = arith.addf %210, %216 : vector<8x16x32xbf16>
    %218 = vector.extract_strided_slice %180 {offsets = [1, 2, 0], sizes = [8, 16, 32], strides = [1, 1, 1]} : vector<10x18x32xbf16> to vector<8x16x32xbf16>
    %219 = vector.extract_strided_slice %181 {offsets = [1, 2, 0], sizes = [1, 1, 32], strides = [1, 1, 1]} : vector<3x3x32xbf16> to vector<1x1x32xbf16>
    %220 = vector.shape_cast %219 : vector<1x1x32xbf16> to vector<32xbf16>
    %221 = vector.shape_cast %220 : vector<32xbf16> to vector<1x1x32xbf16>
    %222 = vector.broadcast %221 : vector<1x1x32xbf16> to vector<8x16x32xbf16>
    %223 = arith.mulf %218, %222 : vector<8x16x32xbf16>
    %224 = arith.addf %217, %223 : vector<8x16x32xbf16>
    %225 = vector.extract_strided_slice %180 {offsets = [2, 0, 0], sizes = [8, 16, 32], strides = [1, 1, 1]} : vector<10x18x32xbf16> to vector<8x16x32xbf16>
    %226 = vector.extract_strided_slice %181 {offsets = [2, 0, 0], sizes = [1, 1, 32], strides = [1, 1, 1]} : vector<3x3x32xbf16> to vector<1x1x32xbf16>
    %227 = vector.shape_cast %226 : vector<1x1x32xbf16> to vector<32xbf16>
    %228 = vector.shape_cast %227 : vector<32xbf16> to vector<1x1x32xbf16>
    %229 = vector.broadcast %228 : vector<1x1x32xbf16> to vector<8x16x32xbf16>
    %230 = arith.mulf %225, %229 : vector<8x16x32xbf16>
    %231 = arith.addf %224, %230 : vector<8x16x32xbf16>
    %232 = vector.extract_strided_slice %180 {offsets = [2, 1, 0], sizes = [8, 16, 32], strides = [1, 1, 1]} : vector<10x18x32xbf16> to vector<8x16x32xbf16>
    %233 = vector.extract_strided_slice %181 {offsets = [2, 1, 0], sizes = [1, 1, 32], strides = [1, 1, 1]} : vector<3x3x32xbf16> to vector<1x1x32xbf16>
    %234 = vector.shape_cast %233 : vector<1x1x32xbf16> to vector<32xbf16>
    %235 = vector.shape_cast %234 : vector<32xbf16> to vector<1x1x32xbf16>
    %236 = vector.broadcast %235 : vector<1x1x32xbf16> to vector<8x16x32xbf16>
    %237 = arith.mulf %232, %236 : vector<8x16x32xbf16>
    %238 = arith.addf %231, %237 : vector<8x16x32xbf16>
    %239 = vector.extract_strided_slice %180 {offsets = [2, 2, 0], sizes = [8, 16, 32], strides = [1, 1, 1]} : vector<10x18x32xbf16> to vector<8x16x32xbf16>
    %240 = vector.extract_strided_slice %181 {offsets = [2, 2, 0], sizes = [1, 1, 32], strides = [1, 1, 1]} : vector<3x3x32xbf16> to vector<1x1x32xbf16>
    %241 = vector.shape_cast %240 : vector<1x1x32xbf16> to vector<32xbf16>
    %242 = vector.shape_cast %241 : vector<32xbf16> to vector<1x1x32xbf16>
    %243 = vector.broadcast %242 : vector<1x1x32xbf16> to vector<8x16x32xbf16>
    %244 = arith.mulf %239, %243 : vector<8x16x32xbf16>
    %245 = arith.addf %238, %244 : vector<8x16x32xbf16>
    %246 = vector.shape_cast %245 : vector<8x16x32xbf16> to vector<128x32xbf16>
    %c0_48 = arith.constant 0 : index
    %c0_49 = arith.constant 0 : index
    %247 = vector.load %arg11[%c0_48, %c0_49] : memref<32x32xbf16, #tpu.memory_space<vmem>>, vector<32x32xbf16>
    %cst_50 = arith.constant dense<0.000000e+00> : vector<128x32xf32>
    %248 = tpu.matmul %246, %247, %cst_50 {dimension_numbers = #tpu.dot_dimension_numbers<[1], [0], [0], [1], [0, 0, 1, 1], [], []>} : vector<128x32xbf16>, vector<32x32xbf16>, vector<128x32xf32> -> vector<128x32xf32>
    %c0_51 = arith.constant 0 : index
    %c0_52 = arith.constant 0 : index
    %249 = vector.load %arg12[%c0_51, %c0_52] : memref<1x32xf32, #tpu.memory_space<vmem>>, vector<1x32xf32>
    %250 = vector.broadcast %249 : vector<1x32xf32> to vector<128x32xf32>
    %251 = arith.addf %248, %250 : vector<128x32xf32>
    %252 = vector.shape_cast %251 : vector<128x32xf32> to vector<8x16x32xf32>
    %253 = vector.shape_cast %252 : vector<8x16x32xf32> to vector<128x32xf32>
    %cst_53 = arith.constant dense<0.000000e+00> : vector<32xf32>
    %254 = vector.multi_reduction <add>, %253, %cst_53 [0] : vector<128x32xf32> to vector<32xf32>
    %255 = vector.shape_cast %254 : vector<32xf32> to vector<1x32xf32>
    %256 = vector.shape_cast %255 : vector<1x32xf32> to vector<1x1x1x32xf32>
    %c0_54 = arith.constant 0 : index
    %c0_55 = arith.constant 0 : index
    %c0_56 = arith.constant 0 : index
    %c0_57 = arith.constant 0 : index
    %257 = vector.load %arg14[%c0_54, %c0_55, %c0_56, %c0_57] : memref<1x1x1x32xf32, #tpu.memory_space<vmem>>, vector<1x1x1x32xf32>
    tpu.vector_store %arg14[%c0_54, %c0_55, %c0_56, %c0_57], %256 {strides = array<i32>} : memref<1x1x1x32xf32, #tpu.memory_space<vmem>>, vector<1x1x1x32xf32>,
    %258 = arith.truncf %252 : vector<8x16x32xf32> to vector<8x16x32xbf16>
    %c0_58 = arith.constant 0 : index
    %c0_59 = arith.constant 0 : index
    %c0_60 = arith.constant 0 : index
    %c0_61 = arith.constant 0 : index
    %259 = vector.load %arg13[%c0_58, %c0_59, %c0_60, %c0_61] : memref<1x8x16x32xbf16, #tpu.memory_space<vmem>>, vector<1x8x16x32xbf16>
    %260 = vector.shape_cast %259 : vector<1x8x16x32xbf16> to vector<8x16x32xbf16>
    %261 = vector.shape_cast %258 : vector<8x16x32xbf16> to vector<1x8x16x32xbf16>
    tpu.vector_store %arg13[%c0_58, %c0_59, %c0_60, %c0_61], %261 {strides = array<i32>} : memref<1x8x16x32xbf16, #tpu.memory_space<vmem>>, vector<1x8x16x32xbf16>,
    return
  }
  func.func @transform_0(%arg0: i32, %arg1: i32) -> (i32, i32, i32, i32) {
    %c0_i32 = arith.constant 0 : i32
    %c0_i32_0 = arith.constant 0 : i32
    %c0_i32_1 = arith.constant 0 : i32
    return %arg0, %arg1, %c0_i32, %c0_i32_0 : i32, i32, i32, i32
  }
  func.func @transform_1(%arg0: i32, %arg1: i32) -> (i32, i32, i32, i32) {
    %c4_i32 = arith.constant 4 : i32
    %0 = arith.muli %arg1, %c4_i32 : i32
    %c1_i32 = arith.constant 1 : i32
    %1 = arith.subi %0, %c1_i32 : i32
    %c0_i32 = arith.constant 0 : i32
    %2 = arith.maxsi %1, %c0_i32 : i32
    %c0_i32_0 = arith.constant 0 : i32
    %c0_i32_1 = arith.constant 0 : i32
    %c0_i32_2 = arith.constant 0 : i32
    return %arg0, %2, %c0_i32_0, %c0_i32_1 : i32, i32, i32, i32
  }
  func.func @transform_2(%arg0: i32, %arg1: i32) -> (i32, i32, i32, i32) {
    %c1_i32 = arith.constant 1 : i32
    %0 = arith.addi %arg1, %c1_i32 : i32
    %c4_i32 = arith.constant 4 : i32
    %1 = arith.muli %0, %c4_i32 : i32
    %c7_i32 = arith.constant 7 : i32
    %2 = arith.minsi %1, %c7_i32 : i32
    %c0_i32 = arith.constant 0 : i32
    %c0_i32_0 = arith.constant 0 : i32
    %c0_i32_1 = arith.constant 0 : i32
    return %arg0, %2, %c0_i32, %c0_i32_0 : i32, i32, i32, i32
  }
  func.func @transform_3(%arg0: i32, %arg1: i32) -> (i32, i32, i32) {
    %c0_i32 = arith.constant 0 : i32
    %c0_i32_0 = arith.constant 0 : i32
    %c0_i32_1 = arith.constant 0 : i32
    %c0_i32_2 = arith.constant 0 : i32
    return %c0_i32, %c0_i32_0, %c0_i32_1 : i32, i32, i32
  }
  func.func @transform_4(%arg0: i32, %arg1: i32) -> (i32, i32, i32) {
    %c0_i32 = arith.constant 0 : i32
    %c0_i32_0 = arith.constant 0 : i32
    %c0_i32_1 = arith.constant 0 : i32
    %c0_i32_2 = arith.constant 0 : i32
    return %c0_i32, %c0_i32_0, %c0_i32_1 : i32, i32, i32
  }
  func.func @transform_5(%arg0: i32, %arg1: i32) -> (i32, i32, i32) {
    %c0_i32 = arith.constant 0 : i32
    %c0_i32_0 = arith.constant 0 : i32
    %c0_i32_1 = arith.constant 0 : i32
    %c0_i32_2 = arith.constant 0 : i32
    return %c0_i32, %c0_i32_0, %c0_i32_1 : i32, i32, i32
  }
  func.func @transform_6(%arg0: i32, %arg1: i32) -> (i32, i32) {
    %c0_i32 = arith.constant 0 : i32
    %c0_i32_0 = arith.constant 0 : i32
    %c0_i32_1 = arith.constant 0 : i32
    return %c0_i32, %c0_i32_0 : i32, i32
  }
  func.func @transform_7(%arg0: i32, %arg1: i32) -> (i32, i32) {
    %c0_i32 = arith.constant 0 : i32
    %c0_i32_0 = arith.constant 0 : i32
    %c0_i32_1 = arith.constant 0 : i32
    return %c0_i32, %c0_i32_0 : i32, i32
  }
  func.func @transform_8(%arg0: i32, %arg1: i32) -> (i32, i32, i32) {
    %c0_i32 = arith.constant 0 : i32
    %c0_i32_0 = arith.constant 0 : i32
    %c0_i32_1 = arith.constant 0 : i32
    %c0_i32_2 = arith.constant 0 : i32
    return %c0_i32, %c0_i32_0, %c0_i32_1 : i32, i32, i32
  }
  func.func @transform_9(%arg0: i32, %arg1: i32) -> (i32, i32) {
    %c0_i32 = arith.constant 0 : i32
    %c0_i32_0 = arith.constant 0 : i32
    %c0_i32_1 = arith.constant 0 : i32
    return %c0_i32, %c0_i32_0 : i32, i32
  }
  func.func @transform_10(%arg0: i32, %arg1: i32) -> (i32, i32) {
    %c0_i32 = arith.constant 0 : i32
    %c0_i32_0 = arith.constant 0 : i32
    %c0_i32_1 = arith.constant 0 : i32
    return %c0_i32, %c0_i32_0 : i32, i32
  }
  func.func @transform_11(%arg0: i32, %arg1: i32) -> (i32, i32, i32, i32) {
    %c0_i32 = arith.constant 0 : i32
    %c0_i32_0 = arith.constant 0 : i32
    %c0_i32_1 = arith.constant 0 : i32
    return %arg0, %arg1, %c0_i32, %c0_i32_0 : i32, i32, i32, i32
  }
  func.func @transform_12(%arg0: i32, %arg1: i32) -> (i32, i32, i32, i32) {
    %c0_i32 = arith.constant 0 : i32
    %c0_i32_0 = arith.constant 0 : i32
    %c0_i32_1 = arith.constant 0 : i32
    return %arg0, %arg1, %c0_i32, %c0_i32_0 : i32, i32, i32, i32
  }
}

module attributes {stable_mosaic.version = 11 : i64} {
  func.func @_rcab_finalize_kernel(%arg0: i32, %arg1: i32, %arg2: memref<1x8x16x32xbf16, #tpu.memory_space<vmem>>, %arg3: memref<1x8x16x32xbf16, #tpu.memory_space<vmem>>, %arg4: memref<1x8x16x32xbf16, #tpu.memory_space<vmem>>, %arg5: memref<1x1x32xf32, #tpu.memory_space<vmem>>, %arg6: memref<32x8xf32, #tpu.memory_space<vmem>>, %arg7: memref<1x8xf32, #tpu.memory_space<vmem>>, %arg8: memref<8x32xf32, #tpu.memory_space<vmem>>, %arg9: memref<1x32xf32, #tpu.memory_space<vmem>>, %arg10: memref<1x8x16x32xbf16, #tpu.memory_space<vmem>>) attributes {dimension_semantics = [#tpu.dimension_semantics<parallel>, #tpu.dimension_semantics<parallel>], iteration_bounds = array<i64: 2, 2>, scalar_prefetch = 0 : i64, scratch_operands = 0 : i64, tpu.core_type = #tpu.core_type<tc>, window_params = [{transform_indices = @transform_0, window_bounds = array<i64: 1, 8, 16, 32>}, {transform_indices = @transform_1, window_bounds = array<i64: 1, 8, 16, 32>}, {transform_indices = @transform_2, window_bounds = array<i64: 1, 8, 16, 32>}, {transform_indices = @transform_3, window_bounds = array<i64: 1, 1, 32>}, {pipeline_mode = #tpu.pipeline_mode<synchronous>, transform_indices = @transform_4, window_bounds = array<i64: 32, 8>}, {pipeline_mode = #tpu.pipeline_mode<synchronous>, transform_indices = @transform_5, window_bounds = array<i64: 1, 8>}, {pipeline_mode = #tpu.pipeline_mode<synchronous>, transform_indices = @transform_6, window_bounds = array<i64: 8, 32>}, {pipeline_mode = #tpu.pipeline_mode<synchronous>, transform_indices = @transform_7, window_bounds = array<i64: 1, 32>}, {transform_indices = @transform_8, window_bounds = array<i64: 1, 8, 16, 32>}]} {
    %c0 = arith.constant 0 : index
    %c0_0 = arith.constant 0 : index
    %c0_1 = arith.constant 0 : index
    %0 = vector.load %arg5[%c0, %c0_0, %c0_1] : memref<1x1x32xf32, #tpu.memory_space<vmem>>, vector<1x1x32xf32>
    %1 = vector.shape_cast %0 : vector<1x1x32xf32> to vector<1x32xf32>
    %c0_2 = arith.constant 0 : index
    %c0_3 = arith.constant 0 : index
    %2 = vector.load %arg6[%c0_2, %c0_3] : memref<32x8xf32, #tpu.memory_space<vmem>>, vector<32x8xf32>
    %cst = arith.constant dense<0.000000e+00> : vector<1x8xf32>
    %3 = tpu.matmul %1, %2, %cst {dimension_numbers = #tpu.dot_dimension_numbers<[1], [0], [0], [1], [0, 0, 1, 1], [], []>} : vector<1x32xf32>, vector<32x8xf32>, vector<1x8xf32> -> vector<1x8xf32>
    %c0_4 = arith.constant 0 : index
    %c0_5 = arith.constant 0 : index
    %4 = vector.load %arg7[%c0_4, %c0_5] : memref<1x8xf32, #tpu.memory_space<vmem>>, vector<1x8xf32>
    %5 = arith.addf %3, %4 : vector<1x8xf32>
    %cst_6 = arith.constant 0.000000e+00 : f32
    %6 = vector.broadcast %cst_6 : f32 to vector<1x8xf32>
    %7 = arith.maximumf %5, %6 : vector<1x8xf32>
    %c0_7 = arith.constant 0 : index
    %c0_8 = arith.constant 0 : index
    %8 = vector.load %arg8[%c0_7, %c0_8] : memref<8x32xf32, #tpu.memory_space<vmem>>, vector<8x32xf32>
    %cst_9 = arith.constant dense<0.000000e+00> : vector<1x32xf32>
    %9 = tpu.matmul %7, %8, %cst_9 {dimension_numbers = #tpu.dot_dimension_numbers<[1], [0], [0], [1], [0, 0, 1, 1], [], []>} : vector<1x8xf32>, vector<8x32xf32>, vector<1x32xf32> -> vector<1x32xf32>
    %c0_10 = arith.constant 0 : index
    %c0_11 = arith.constant 0 : index
    %10 = vector.load %arg9[%c0_10, %c0_11] : memref<1x32xf32, #tpu.memory_space<vmem>>, vector<1x32xf32>
    %11 = arith.addf %9, %10 : vector<1x32xf32>
    %12 = arith.negf %11 : vector<1x32xf32>
    %13 = math.exp %12 : vector<1x32xf32>
    %cst_12 = arith.constant 1.000000e+00 : f32
    %14 = vector.broadcast %cst_12 : f32 to vector<1x32xf32>
    %15 = arith.addf %14, %13 : vector<1x32xf32>
    %16 = arith.divf %14, %15 : vector<1x32xf32>
    %c0_13 = arith.constant 0 : index
    %c0_14 = arith.constant 0 : index
    %c0_15 = arith.constant 0 : index
    %c0_16 = arith.constant 0 : index
    %17 = vector.load %arg2[%c0_13, %c0_14, %c0_15, %c0_16] : memref<1x8x16x32xbf16, #tpu.memory_space<vmem>>, vector<1x8x16x32xbf16>
    %18 = vector.shape_cast %17 : vector<1x8x16x32xbf16> to vector<8x16x32xbf16>
    %19 = arith.extf %18 : vector<8x16x32xbf16> to vector<8x16x32xf32>
    %c0_17 = arith.constant 0 : index
    %c0_18 = arith.constant 0 : index
    %c0_19 = arith.constant 0 : index
    %c0_20 = arith.constant 0 : index
    %20 = vector.load %arg3[%c0_17, %c0_18, %c0_19, %c0_20] : memref<1x8x16x32xbf16, #tpu.memory_space<vmem>>, vector<1x8x16x32xbf16>
    %21 = vector.shape_cast %20 : vector<1x8x16x32xbf16> to vector<8x16x32xbf16>
    %22 = arith.extf %21 : vector<8x16x32xbf16> to vector<8x16x32xf32>
    %23 = vector.shape_cast %16 : vector<1x32xf32> to vector<1x1x32xf32>
    %24 = vector.broadcast %23 : vector<1x1x32xf32> to vector<8x16x32xf32>
    %25 = arith.mulf %22, %24 : vector<8x16x32xf32>
    %26 = arith.addf %19, %25 : vector<8x16x32xf32>
    %c0_21 = arith.constant 0 : index
    %c0_22 = arith.constant 0 : index
    %c0_23 = arith.constant 0 : index
    %c0_24 = arith.constant 0 : index
    %27 = vector.load %arg4[%c0_21, %c0_22, %c0_23, %c0_24] : memref<1x8x16x32xbf16, #tpu.memory_space<vmem>>, vector<1x8x16x32xbf16>
    %28 = vector.shape_cast %27 : vector<1x8x16x32xbf16> to vector<8x16x32xbf16>
    %29 = arith.extf %28 : vector<8x16x32xbf16> to vector<8x16x32xf32>
    %30 = arith.addf %26, %29 : vector<8x16x32xf32>
    %31 = arith.truncf %30 : vector<8x16x32xf32> to vector<8x16x32xbf16>
    %c0_25 = arith.constant 0 : index
    %c0_26 = arith.constant 0 : index
    %c0_27 = arith.constant 0 : index
    %c0_28 = arith.constant 0 : index
    %32 = vector.load %arg10[%c0_25, %c0_26, %c0_27, %c0_28] : memref<1x8x16x32xbf16, #tpu.memory_space<vmem>>, vector<1x8x16x32xbf16>
    %33 = vector.shape_cast %32 : vector<1x8x16x32xbf16> to vector<8x16x32xbf16>
    %34 = vector.shape_cast %31 : vector<8x16x32xbf16> to vector<1x8x16x32xbf16>
    tpu.vector_store %arg10[%c0_25, %c0_26, %c0_27, %c0_28], %34 {strides = array<i32>} : memref<1x8x16x32xbf16, #tpu.memory_space<vmem>>, vector<1x8x16x32xbf16>,
    return
  }
  func.func @transform_0(%arg0: i32, %arg1: i32) -> (i32, i32, i32, i32) {
    %c0_i32 = arith.constant 0 : i32
    %c0_i32_0 = arith.constant 0 : i32
    %c0_i32_1 = arith.constant 0 : i32
    return %arg0, %arg1, %c0_i32, %c0_i32_0 : i32, i32, i32, i32
  }
  func.func @transform_1(%arg0: i32, %arg1: i32) -> (i32, i32, i32, i32) {
    %c0_i32 = arith.constant 0 : i32
    %c0_i32_0 = arith.constant 0 : i32
    %c0_i32_1 = arith.constant 0 : i32
    return %arg0, %arg1, %c0_i32, %c0_i32_0 : i32, i32, i32, i32
  }
  func.func @transform_2(%arg0: i32, %arg1: i32) -> (i32, i32, i32, i32) {
    %c0_i32 = arith.constant 0 : i32
    %c0_i32_0 = arith.constant 0 : i32
    %c0_i32_1 = arith.constant 0 : i32
    return %arg0, %arg1, %c0_i32, %c0_i32_0 : i32, i32, i32, i32
  }
  func.func @transform_3(%arg0: i32, %arg1: i32) -> (i32, i32, i32) {
    %c0_i32 = arith.constant 0 : i32
    %c0_i32_0 = arith.constant 0 : i32
    %c0_i32_1 = arith.constant 0 : i32
    return %arg0, %c0_i32, %c0_i32_0 : i32, i32, i32
  }
  func.func @transform_4(%arg0: i32, %arg1: i32) -> (i32, i32) {
    %c0_i32 = arith.constant 0 : i32
    %c0_i32_0 = arith.constant 0 : i32
    %c0_i32_1 = arith.constant 0 : i32
    return %c0_i32, %c0_i32_0 : i32, i32
  }
  func.func @transform_5(%arg0: i32, %arg1: i32) -> (i32, i32) {
    %c0_i32 = arith.constant 0 : i32
    %c0_i32_0 = arith.constant 0 : i32
    %c0_i32_1 = arith.constant 0 : i32
    return %c0_i32, %c0_i32_0 : i32, i32
  }
  func.func @transform_6(%arg0: i32, %arg1: i32) -> (i32, i32) {
    %c0_i32 = arith.constant 0 : i32
    %c0_i32_0 = arith.constant 0 : i32
    %c0_i32_1 = arith.constant 0 : i32
    return %c0_i32, %c0_i32_0 : i32, i32
  }
  func.func @transform_7(%arg0: i32, %arg1: i32) -> (i32, i32) {
    %c0_i32 = arith.constant 0 : i32
    %c0_i32_0 = arith.constant 0 : i32
    %c0_i32_1 = arith.constant 0 : i32
    return %c0_i32, %c0_i32_0 : i32, i32
  }
  func.func @transform_8(%arg0: i32, %arg1: i32) -> (i32, i32, i32, i32) {
    %c0_i32 = arith.constant 0 : i32
    %c0_i32_0 = arith.constant 0 : i32
    %c0_i32_1 = arith.constant 0 : i32
    return %arg0, %arg1, %c0_i32, %c0_i32_0 : i32, i32, i32, i32
  }
}

module attributes {stable_mosaic.version = 11 : i64} {
  func.func @_conv_down_kernel(%arg0: i32, %arg1: i32, %arg2: memref<1x8x9x128xbf16, #tpu.memory_space<vmem>>, %arg3: memref<1x1x9x128xbf16, #tpu.memory_space<vmem>>, %arg4: memref<2x2x128x32xbf16, #tpu.memory_space<vmem>>, %arg5: memref<1x32xf32, #tpu.memory_space<vmem>>, %arg6: memref<1x8x8x32xf32, #tpu.memory_space<vmem>>) attributes {dimension_semantics = [#tpu.dimension_semantics<parallel>, #tpu.dimension_semantics<parallel>], iteration_bounds = array<i64: 2, 1>, scalar_prefetch = 0 : i64, scratch_operands = 0 : i64, tpu.core_type = #tpu.core_type<tc>, window_params = [{transform_indices = @transform_0, window_bounds = array<i64: 1, 8, 9, 128>}, {transform_indices = @transform_1, window_bounds = array<i64: 1, 1, 9, 128>}, {pipeline_mode = #tpu.pipeline_mode<synchronous>, transform_indices = @transform_2, window_bounds = array<i64: 2, 2, 128, 32>}, {pipeline_mode = #tpu.pipeline_mode<synchronous>, transform_indices = @transform_3, window_bounds = array<i64: 1, 32>}, {transform_indices = @transform_4, window_bounds = array<i64: 1, 8, 8, 32>}]} {
    %c0 = arith.constant 0 : index
    %c0_0 = arith.constant 0 : index
    %c0_1 = arith.constant 0 : index
    %c0_2 = arith.constant 0 : index
    %0 = vector.load %arg2[%c0, %c0_0, %c0_1, %c0_2] : memref<1x8x9x128xbf16, #tpu.memory_space<vmem>>, vector<1x8x9x128xbf16>
    %1 = vector.shape_cast %0 : vector<1x8x9x128xbf16> to vector<8x9x128xbf16>
    %c0_3 = arith.constant 0 : index
    %c0_4 = arith.constant 0 : index
    %c0_5 = arith.constant 0 : index
    %c0_6 = arith.constant 0 : index
    %2 = vector.load %arg3[%c0_3, %c0_4, %c0_5, %c0_6] : memref<1x1x9x128xbf16, #tpu.memory_space<vmem>>, vector<1x1x9x128xbf16>
    %3 = vector.shape_cast %2 : vector<1x1x9x128xbf16> to vector<1x9x128xbf16>
    %4 = tpu.concatenate %1, %3 in 0 : vector<8x9x128xbf16>, vector<1x9x128xbf16> -> vector<9x9x128xbf16>
    %cst = arith.constant 0.000000e+00 : f32
    %5 = vector.broadcast %cst : f32 to vector<64x32xf32>
    %6 = vector.extract_strided_slice %4 {offsets = [0, 0, 0], sizes = [8, 8, 128], strides = [1, 1, 1]} : vector<9x9x128xbf16> to vector<8x8x128xbf16>
    %7 = vector.shape_cast %6 : vector<8x8x128xbf16> to vector<64x128xbf16>
    %c0_7 = arith.constant 0 : index
    %c0_8 = arith.constant 0 : index
    %c0_9 = arith.constant 0 : index
    %c0_10 = arith.constant 0 : index
    %8 = vector.load %arg4[%c0_7, %c0_8, %c0_9, %c0_10] : memref<2x2x128x32xbf16, #tpu.memory_space<vmem>>, vector<1x1x128x32xbf16>
    %9 = vector.shape_cast %8 : vector<1x1x128x32xbf16> to vector<128x32xbf16>
    %cst_11 = arith.constant dense<0.000000e+00> : vector<64x32xf32>
    %10 = tpu.matmul %7, %9, %cst_11 {dimension_numbers = #tpu.dot_dimension_numbers<[1], [0], [0], [1], [0, 0, 1, 1], [], []>} : vector<64x128xbf16>, vector<128x32xbf16>, vector<64x32xf32> -> vector<64x32xf32>
    %11 = arith.addf %5, %10 : vector<64x32xf32>
    %12 = vector.extract_strided_slice %4 {offsets = [0, 1, 0], sizes = [8, 8, 128], strides = [1, 1, 1]} : vector<9x9x128xbf16> to vector<8x8x128xbf16>
    %13 = vector.shape_cast %12 : vector<8x8x128xbf16> to vector<64x128xbf16>
    %c0_12 = arith.constant 0 : index
    %c1 = arith.constant 1 : index
    %c0_13 = arith.constant 0 : index
    %c0_14 = arith.constant 0 : index
    %14 = vector.load %arg4[%c0_12, %c1, %c0_13, %c0_14] : memref<2x2x128x32xbf16, #tpu.memory_space<vmem>>, vector<1x1x128x32xbf16>
    %15 = vector.shape_cast %14 : vector<1x1x128x32xbf16> to vector<128x32xbf16>
    %cst_15 = arith.constant dense<0.000000e+00> : vector<64x32xf32>
    %16 = tpu.matmul %13, %15, %cst_15 {dimension_numbers = #tpu.dot_dimension_numbers<[1], [0], [0], [1], [0, 0, 1, 1], [], []>} : vector<64x128xbf16>, vector<128x32xbf16>, vector<64x32xf32> -> vector<64x32xf32>
    %17 = arith.addf %11, %16 : vector<64x32xf32>
    %18 = vector.extract_strided_slice %4 {offsets = [1, 0, 0], sizes = [8, 8, 128], strides = [1, 1, 1]} : vector<9x9x128xbf16> to vector<8x8x128xbf16>
    %19 = vector.shape_cast %18 : vector<8x8x128xbf16> to vector<64x128xbf16>
    %c1_16 = arith.constant 1 : index
    %c0_17 = arith.constant 0 : index
    %c0_18 = arith.constant 0 : index
    %c0_19 = arith.constant 0 : index
    %20 = vector.load %arg4[%c1_16, %c0_17, %c0_18, %c0_19] : memref<2x2x128x32xbf16, #tpu.memory_space<vmem>>, vector<1x1x128x32xbf16>
    %21 = vector.shape_cast %20 : vector<1x1x128x32xbf16> to vector<128x32xbf16>
    %cst_20 = arith.constant dense<0.000000e+00> : vector<64x32xf32>
    %22 = tpu.matmul %19, %21, %cst_20 {dimension_numbers = #tpu.dot_dimension_numbers<[1], [0], [0], [1], [0, 0, 1, 1], [], []>} : vector<64x128xbf16>, vector<128x32xbf16>, vector<64x32xf32> -> vector<64x32xf32>
    %23 = arith.addf %17, %22 : vector<64x32xf32>
    %24 = vector.extract_strided_slice %4 {offsets = [1, 1, 0], sizes = [8, 8, 128], strides = [1, 1, 1]} : vector<9x9x128xbf16> to vector<8x8x128xbf16>
    %25 = vector.shape_cast %24 : vector<8x8x128xbf16> to vector<64x128xbf16>
    %c1_21 = arith.constant 1 : index
    %c1_22 = arith.constant 1 : index
    %c0_23 = arith.constant 0 : index
    %c0_24 = arith.constant 0 : index
    %26 = vector.load %arg4[%c1_21, %c1_22, %c0_23, %c0_24] : memref<2x2x128x32xbf16, #tpu.memory_space<vmem>>, vector<1x1x128x32xbf16>
    %27 = vector.shape_cast %26 : vector<1x1x128x32xbf16> to vector<128x32xbf16>
    %cst_25 = arith.constant dense<0.000000e+00> : vector<64x32xf32>
    %28 = tpu.matmul %25, %27, %cst_25 {dimension_numbers = #tpu.dot_dimension_numbers<[1], [0], [0], [1], [0, 0, 1, 1], [], []>} : vector<64x128xbf16>, vector<128x32xbf16>, vector<64x32xf32> -> vector<64x32xf32>
    %29 = arith.addf %23, %28 : vector<64x32xf32>
    %c0_26 = arith.constant 0 : index
    %c0_27 = arith.constant 0 : index
    %30 = vector.load %arg5[%c0_26, %c0_27] : memref<1x32xf32, #tpu.memory_space<vmem>>, vector<1x32xf32>
    %31 = vector.broadcast %30 : vector<1x32xf32> to vector<64x32xf32>
    %32 = arith.addf %29, %31 : vector<64x32xf32>
    %33 = vector.shape_cast %32 : vector<64x32xf32> to vector<8x8x32xf32>
    %c0_28 = arith.constant 0 : index
    %c0_29 = arith.constant 0 : index
    %c0_30 = arith.constant 0 : index
    %c0_31 = arith.constant 0 : index
    %34 = vector.load %arg6[%c0_28, %c0_29, %c0_30, %c0_31] : memref<1x8x8x32xf32, #tpu.memory_space<vmem>>, vector<1x8x8x32xf32>
    %35 = vector.shape_cast %34 : vector<1x8x8x32xf32> to vector<8x8x32xf32>
    %36 = vector.shape_cast %33 : vector<8x8x32xf32> to vector<1x8x8x32xf32>
    tpu.vector_store %arg6[%c0_28, %c0_29, %c0_30, %c0_31], %36 {strides = array<i32>} : memref<1x8x8x32xf32, #tpu.memory_space<vmem>>, vector<1x8x8x32xf32>,
    return
  }
  func.func @transform_0(%arg0: i32, %arg1: i32) -> (i32, i32, i32, i32) {
    %c0_i32 = arith.constant 0 : i32
    %c0_i32_0 = arith.constant 0 : i32
    %c0_i32_1 = arith.constant 0 : i32
    return %arg0, %arg1, %c0_i32, %c0_i32_0 : i32, i32, i32, i32
  }
  func.func @transform_1(%arg0: i32, %arg1: i32) -> (i32, i32, i32, i32) {
    %c1_i32 = arith.constant 1 : i32
    %0 = arith.addi %arg1, %c1_i32 : i32
    %c8_i32 = arith.constant 8 : i32
    %1 = arith.muli %0, %c8_i32 : i32
    %c0_i32 = arith.constant 0 : i32
    %c0_i32_0 = arith.constant 0 : i32
    %c0_i32_1 = arith.constant 0 : i32
    return %arg0, %1, %c0_i32, %c0_i32_0 : i32, i32, i32, i32
  }
  func.func @transform_2(%arg0: i32, %arg1: i32) -> (i32, i32, i32, i32) {
    %c0_i32 = arith.constant 0 : i32
    %c0_i32_0 = arith.constant 0 : i32
    %c0_i32_1 = arith.constant 0 : i32
    %c0_i32_2 = arith.constant 0 : i32
    %c0_i32_3 = arith.constant 0 : i32
    return %c0_i32, %c0_i32_0, %c0_i32_1, %c0_i32_2 : i32, i32, i32, i32
  }
  func.func @transform_3(%arg0: i32, %arg1: i32) -> (i32, i32) {
    %c0_i32 = arith.constant 0 : i32
    %c0_i32_0 = arith.constant 0 : i32
    %c0_i32_1 = arith.constant 0 : i32
    return %c0_i32, %c0_i32_0 : i32, i32
  }
  func.func @transform_4(%arg0: i32, %arg1: i32) -> (i32, i32, i32, i32) {
    %c0_i32 = arith.constant 0 : i32
    %c0_i32_0 = arith.constant 0 : i32
    %c0_i32_1 = arith.constant 0 : i32
    return %arg0, %arg1, %c0_i32, %c0_i32_0 : i32, i32, i32, i32
  }
}

</mosaic_0001>

<llo_original>
// kernel: unet_encoder_block.4
$region0: #{unet_encoder_block.4}
  #allocation0 [shape = 'u32[]', space=smem, size = 0x4, offset = 0x4, fixed_abs, tag = 'smem constant byte address 0x4 - core index']
  #allocation1 [shape = 'u32[72,128]{1,0:T(1,128)}', space=vmem, size = 0x9000, scoped, tag = 'internal scratch']
  %s0 = inlined_call_operand.vmem [shape: f32[512,8], index: 0, kind: input, shape index: {}]
  %s1 = inlined_call_operand.vmem [shape: f32[8,32], index: 1, kind: input, shape index: {}]
  %s2 = inlined_call_operand.vmem [shape: f32[1,32], index: 2, kind: input, shape index: {}]
  %s3 = inlined_call_operand.vmem [shape: bf16[512,32], index: 3, kind: output, shape index: {}]
  %s4 = sld [smem:[#allocation0]]
  $region22: #{unet_encoder_block.4} parent=0
    _
  %s6 = ssub.s32 1, %s4
  %s7 = scalar_select 0, %s6, %s4
  // Predicated region
  $region2: #{unet_encoder_block.4} parent=0 // pred_check
    _
  $region3: #{unet_encoder_block.4} parent=0 // pred_check_branch
    %9 = sbr.rel (0) target = $region5
  $region4: #{unet_encoder_block.4} parent=0 // pred_region
    _
  $region5: #{unet_encoder_block.4} parent=0 // pred_fallthru
    _
  // Predicated region
  $region6: #{unet_encoder_block.4} parent=0 // pred_check
    _
  $region7: #{unet_encoder_block.4} parent=0 // pred_check_branch
    %11 = sbr.rel (0) target = $region9
  $region8: #{unet_encoder_block.4} parent=0 // pred_region
    _
  $region9: #{unet_encoder_block.4} parent=0 // pred_fallthru
    _
  // Predicated region
  $region10: #{unet_encoder_block.4} parent=0 // pred_check
    _
  $region11: #{unet_encoder_block.4} parent=0 // pred_check_branch
    %13 = sbr.rel (0) target = $region13
  $region12: #{unet_encoder_block.4} parent=0 // pred_region
    _
  $region13: #{unet_encoder_block.4} parent=0 // pred_fallthru
    _
  %v15 = vld [vmem:[%s0] sm:$0xff]
  %v16 = vld [vmem:[%s0 + $0x8] sm:$0xff]
  %v17 = vld [vmem:[%s0 + $0x10] sm:$0xff]
  %v18 = vld [vmem:[%s0 + $0x18] sm:$0xff]
  %v19 = vld [vmem:[%s0 + $0x20] sm:$0xff]
  %v20 = vld [vmem:[%s0 + $0x28] sm:$0xff]
  %v21 = vld [vmem:[%s0 + $0x30] sm:$0xff]
  %v22 = vld [vmem:[%s0 + $0x38] sm:$0xff]
  %v23 = vld [vmem:[%s0 + $0x40] sm:$0xff]
  %v24 = vld [vmem:[%s0 + $0x48] sm:$0xff]
  %v25 = vld [vmem:[%s0 + $0x50] sm:$0xff]
  %v26 = vld [vmem:[%s0 + $0x58] sm:$0xff]
  %v27 = vld [vmem:[%s0 + $0x60] sm:$0xff]
  %v28 = vld [vmem:[%s0 + $0x68] sm:$0xff]
  %v29 = vld [vmem:[%s0 + $0x70] sm:$0xff]
  %v30 = vld [vmem:[%s0 + $0x78] sm:$0xff]
  %v31 = vld [vmem:[%s0 + $0x80] sm:$0xff]
  %v32 = vld [vmem:[%s0 + $0x88] sm:$0xff]
  %v33 = vld [vmem:[%s0 + $0x90] sm:$0xff]
  %v34 = vld [vmem:[%s0 + $0x98] sm:$0xff]
  %v35 = vld [vmem:[%s0 + $0xa0] sm:$0xff]
  %v36 = vld [vmem:[%s0 + $0xa8] sm:$0xff]
  %v37 = vld [vmem:[%s0 + $0xb0] sm:$0xff]
  %v38 = vld [vmem:[%s0 + $0xb8] sm:$0xff]
  %v39 = vld [vmem:[%s0 + $0xc0] sm:$0xff]
  %v40 = vld [vmem:[%s0 + $0xc8] sm:$0xff]
  %v41 = vld [vmem:[%s0 + $0xd0] sm:$0xff]
  %v42 = vld [vmem:[%s0 + $0xd8] sm:$0xff]
  %v43 = vld [vmem:[%s0 + $0xe0] sm:$0xff]
  %v44 = vld [vmem:[%s0 + $0xe8] sm:$0xff]
  %v45 = vld [vmem:[%s0 + $0xf0] sm:$0xff]
  %v46 = vld [vmem:[%s0 + $0xf8] sm:$0xff]
  %v47 = vld [vmem:[%s0 + $0x100] sm:$0xff]
  %v48 = vld [vmem:[%s0 + $0x108] sm:$0xff]
  %v49 = vld [vmem:[%s0 + $0x110] sm:$0xff]
  %v50 = vld [vmem:[%s0 + $0x118] sm:$0xff]
  %v51 = vld [vmem:[%s0 + $0x120] sm:$0xff]
  %v52 = vld [vmem:[%s0 + $0x128] sm:$0xff]
  %v53 = vld [vmem:[%s0 + $0x130] sm:$0xff]
  %v54 = vld [vmem:[%s0 + $0x138] sm:$0xff]
  %v55 = vld [vmem:[%s0 + $0x140] sm:$0xff]
  %v56 = vld [vmem:[%s0 + $0x148] sm:$0xff]
  %v57 = vld [vmem:[%s0 + $0x150] sm:$0xff]
  %v58 = vld [vmem:[%s0 + $0x158] sm:$0xff]
  %v59 = vld [vmem:[%s0 + $0x160] sm:$0xff]
  %v60 = vld [vmem:[%s0 + $0x168] sm:$0xff]
  %v61 = vld [vmem:[%s0 + $0x170] sm:$0xff]
  %v62 = vld [vmem:[%s0 + $0x178] sm:$0xff]
  %v63 = vld [vmem:[%s0 + $0x180] sm:$0xff]
  %v64 = vld [vmem:[%s0 + $0x188] sm:$0xff]
  %v65 = vld [vmem:[%s0 + $0x190] sm:$0xff]
  %v66 = vld [vmem:[%s0 + $0x198] sm:$0xff]
  %v67 = vld [vmem:[%s0 + $0x1a0] sm:$0xff]
  %v68 = vld [vmem:[%s0 + $0x1a8] sm:$0xff]
  %v69 = vld [vmem:[%s0 + $0x1b0] sm:$0xff]
  %v70 = vld [vmem:[%s0 + $0x1b8] sm:$0xff]
  %v71 = vld [vmem:[%s0 + $0x1c0] sm:$0xff]
  %v72 = vld [vmem:[%s0 + $0x1c8] sm:$0xff]
  %v73 = vld [vmem:[%s0 + $0x1d0] sm:$0xff]
  %v74 = vld [vmem:[%s0 + $0x1d8] sm:$0xff]
  %v75 = vld [vmem:[%s0 + $0x1e0] sm:$0xff]
  %v76 = vld [vmem:[%s0 + $0x1e8] sm:$0xff]
  %v77 = vld [vmem:[%s0 + $0x1f0] sm:$0xff]
  %v78 = vld [vmem:[%s0 + $0x1f8] sm:$0xff]
  %v79 = vpack.c.bf16 %v16, %v15
  %v80 = vpack.c.bf16 %v18, %v17
  %v81 = vpack.c.bf16 %v20, %v19
  %v82 = vpack.c.bf16 %v22, %v21
  %v83 = vpack.c.bf16 %v24, %v23
  %v84 = vpack.c.bf16 %v26, %v25
  %v85 = vpack.c.bf16 %v28, %v27
  %v86 = vpack.c.bf16 %v30, %v29
  %v87 = vpack.c.bf16 %v32, %v31
  %v88 = vpack.c.bf16 %v34, %v33
  %v89 = vpack.c.bf16 %v36, %v35
  %v90 = vpack.c.bf16 %v38, %v37
  %v91 = vpack.c.bf16 %v40, %v39
  %v92 = vpack.c.bf16 %v42, %v41
  %v93 = vpack.c.bf16 %v44, %v43
  %v94 = vpack.c.bf16 %v46, %v45
  %v95 = vpack.c.bf16 %v48, %v47
  %v96 = vpack.c.bf16 %v50, %v49
  %v97 = vpack.c.bf16 %v52, %v51
  %v98 = vpack.c.bf16 %v54, %v53
  %v99 = vpack.c.bf16 %v56, %v55
  %v100 = vpack.c.bf16 %v58, %v57
  %v101 = vpack.c.bf16 %v60, %v59
  %v102 = vpack.c.bf16 %v62, %v61
  %v103 = vpack.c.bf16 %v64, %v63
  %v104 = vpack.c.bf16 %v66, %v65
  %v105 = vpack.c.bf16 %v68, %v67
  %v106 = vpack.c.bf16 %v70, %v69
  %v107 = vpack.c.bf16 %v72, %v71
  %v108 = vpack.c.bf16 %v74, %v73
  %v109 = vpack.c.bf16 %v76, %v75
  %v110 = vpack.c.bf16 %v78, %v77
  %v111 = vld [vmem:[%s1] sm:$0xff]
  %v112 = vpack.c.bf16 %v111, %v111
  %v113 = vld [vmem:[%s2] sm:$0x1]
  %v115 = vperm.slane %v113, 0
  %vm117 = vcmask 64512
  %v119 = vsel %vm117, %v79, 0
  %v122 = vsel %vm117, %v80, 0
  %v125 = vsel %vm117, %v81, 0
  %v128 = vsel %vm117, %v82, 0
  %v131 = vsel %vm117, %v83, 0
  %v134 = vsel %vm117, %v84, 0
  %v137 = vsel %vm117, %v85, 0
  %v140 = vsel %vm117, %v86, 0
  %v143 = vsel %vm117, %v87, 0
  %v146 = vsel %vm117, %v88, 0
  %v149 = vsel %vm117, %v89, 0
  %v152 = vsel %vm117, %v90, 0
  %v155 = vsel %vm117, %v91, 0
  %v158 = vsel %vm117, %v92, 0
  %v161 = vsel %vm117, %v93, 0
  %v164 = vsel %vm117, %v94, 0
  %v167 = vsel %vm117, %v95, 0
  %v170 = vsel %vm117, %v96, 0
  %v173 = vsel %vm117, %v97, 0
  %v176 = vsel %vm117, %v98, 0
  %v179 = vsel %vm117, %v99, 0
  %v182 = vsel %vm117, %v100, 0
  %v185 = vsel %vm117, %v101, 0
  %v188 = vsel %vm117, %v102, 0
  %v191 = vsel %vm117, %v103, 0
  %v194 = vsel %vm117, %v104, 0
  %v197 = vsel %vm117, %v105, 0
  %v200 = vsel %vm117, %v106, 0
  %v203 = vsel %vm117, %v107, 0
  %v206 = vsel %vm117, %v108, 0
  %v209 = vsel %vm117, %v109, 0
  %v212 = vsel %vm117, %v110, 0
  %vm214 = vcmask 1043456
  %v216 = vsel %vm214, %v112, 0
  %218 = vmatpush.bf16.msra.mxu0 0
  %219 = vmatpush.bf16.msra.mxu0 0
  %220 = vmatpush.bf16.msra.mxu0 0
  %221 = vmatpush.bf16.msra.mxu0 0
  %222 = vmatpush.bf16.msra.mxu0 0
  %223 = vmatpush.bf16.msra.mxu0 0
  %224 = vmatpush.bf16.msra.mxu0 0
  %225 = vmatpush.bf16.msra.mxu0 %v216
  %226 = vmatmul.bf16.gmra.mxu0 %v119
  %v227 = vpop.f32.mrf.mxu0
  %v228 = vadd.f32 %v115, %v227
  %v229 = vpop.f32.mrf.mxu0
  %v230 = vadd.f32 %v115, %v229
  %231 = vmatmul.bf16.gmra.mxu0 %v122
  %v232 = vpop.f32.mrf.mxu0
  %v233 = vadd.f32 %v115, %v232
  %v234 = vpop.f32.mrf.mxu0
  %v235 = vadd.f32 %v115, %v234
  %236 = vmatmul.bf16.gmra.mxu0 %v125
  %v237 = vpop.f32.mrf.mxu0
  %v238 = vadd.f32 %v115, %v237
  %v239 = vpop.f32.mrf.mxu0
  %v240 = vadd.f32 %v115, %v239
  %241 = vmatmul.bf16.gmra.mxu0 %v128
  %v242 = vpop.f32.mrf.mxu0
  %v243 = vadd.f32 %v115, %v242
  %v244 = vpop.f32.mrf.mxu0
  %v245 = vadd.f32 %v115, %v244
  %246 = vmatmul.bf16.gmra.mxu0 %v131
  %v247 = vpop.f32.mrf.mxu0
  %v248 = vadd.f32 %v115, %v247
  %v249 = vpop.f32.mrf.mxu0
  %v250 = vadd.f32 %v115, %v249
  %251 = vmatmul.bf16.gmra.mxu0 %v134
  %v252 = vpop.f32.mrf.mxu0
  %v253 = vadd.f32 %v115, %v252
  %v254 = vpop.f32.mrf.mxu0
  %v255 = vadd.f32 %v115, %v254
  %256 = vmatmul.bf16.gmra.mxu0 %v137
  %v257 = vpop.f32.mrf.mxu0
  %v258 = vadd.f32 %v115, %v257
  %v259 = vpop.f32.mrf.mxu0
  %v260 = vadd.f32 %v115, %v259
  %261 = vmatmul.bf16.gmra.mxu0 %v140
  %v262 = vpop.f32.mrf.mxu0
  %v263 = vadd.f32 %v115, %v262
  %v264 = vpop.f32.mrf.mxu0
  %v265 = vadd.f32 %v115, %v264
  %266 = vmatmul.bf16.gmra.mxu0 %v143
  %v267 = vpop.f32.mrf.mxu0
  %v268 = vadd.f32 %v115, %v267
  %v269 = vpop.f32.mrf.mxu0
  %v270 = vadd.f32 %v115, %v269
  %271 = vmatmul.bf16.gmra.mxu0 %v146
  %v272 = vpop.f32.mrf.mxu0
  %v273 = vadd.f32 %v115, %v272
  %v274 = vpop.f32.mrf.mxu0
  %v275 = vadd.f32 %v115, %v274
  %276 = vmatmul.bf16.gmra.mxu0 %v149
  %v277 = vpop.f32.mrf.mxu0
  %v278 = vadd.f32 %v115, %v277
  %v279 = vpop.f32.mrf.mxu0
  %v280 = vadd.f32 %v115, %v279
  %281 = vmatmul.bf16.gmra.mxu0 %v152
  %v282 = vpop.f32.mrf.mxu0
  %v283 = vadd.f32 %v115, %v282
  %v284 = vpop.f32.mrf.mxu0
  %v285 = vadd.f32 %v115, %v284
  %286 = vmatmul.bf16.gmra.mxu0 %v155
  %v287 = vpop.f32.mrf.mxu0
  %v288 = vadd.f32 %v115, %v287
  %v289 = vpop.f32.mrf.mxu0
  %v290 = vadd.f32 %v115, %v289
  %291 = vmatmul.bf16.gmra.mxu0 %v158
  %v292 = vpop.f32.mrf.mxu0
  %v293 = vadd.f32 %v115, %v292
  %v294 = vpop.f32.mrf.mxu0
  %v295 = vadd.f32 %v115, %v294
  %296 = vmatmul.bf16.gmra.mxu0 %v161
  %v297 = vpop.f32.mrf.mxu0
  %v298 = vadd.f32 %v115, %v297
  %v299 = vpop.f32.mrf.mxu0
  %v300 = vadd.f32 %v115, %v299
  %301 = vmatmul.bf16.gmra.mxu0 %v164
  %v302 = vpop.f32.mrf.mxu0
  %v303 = vadd.f32 %v115, %v302
  %v304 = vpop.f32.mrf.mxu0
  %v305 = vadd.f32 %v115, %v304
  %306 = vmatmul.bf16.gmra.mxu0 %v167
  %v307 = vpop.f32.mrf.mxu0
  %v308 = vadd.f32 %v115, %v307
  %v309 = vpop.f32.mrf.mxu0
  %v310 = vadd.f32 %v115, %v309
  %311 = vmatmul.bf16.gmra.mxu0 %v170
  %v312 = vpop.f32.mrf.mxu0
  %v313 = vadd.f32 %v115, %v312
  %v314 = vpop.f32.mrf.mxu0
  %v315 = vadd.f32 %v115, %v314
  %316 = vmatmul.bf16.gmra.mxu0 %v173
  %v317 = vpop.f32.mrf.mxu0
  %v318 = vadd.f32 %v115, %v317
  %v319 = vpop.f32.mrf.mxu0
  %v320 = vadd.f32 %v115, %v319
  %321 = vmatmul.bf16.gmra.mxu0 %v176
  %v322 = vpop.f32.mrf.mxu0
  %v323 = vadd.f32 %v115, %v322
  %v324 = vpop.f32.mrf.mxu0
  %v325 = vadd.f32 %v115, %v324
  %326 = vmatmul.bf16.gmra.mxu0 %v179
  %v327 = vpop.f32.mrf.mxu0
  %v328 = vadd.f32 %v115, %v327
  %v329 = vpop.f32.mrf.mxu0
  %v330 = vadd.f32 %v115, %v329
  %331 = vmatmul.bf16.gmra.mxu0 %v182
  %v332 = vpop.f32.mrf.mxu0
  %v333 = vadd.f32 %v115, %v332
  %v334 = vpop.f32.mrf.mxu0
  %v335 = vadd.f32 %v115, %v334
  %336 = vmatmul.bf16.gmra.mxu0 %v185
  %v337 = vpop.f32.mrf.mxu0
  %v338 = vadd.f32 %v115, %v337
  %v339 = vpop.f32.mrf.mxu0
  %v340 = vadd.f32 %v115, %v339
  %341 = vmatmul.bf16.gmra.mxu0 %v188
  %v342 = vpop.f32.mrf.mxu0
  %v343 = vadd.f32 %v115, %v342
  %v344 = vpop.f32.mrf.mxu0
  %v345 = vadd.f32 %v115, %v344
  %346 = vmatmul.bf16.gmra.mxu0 %v191
  %v347 = vpop.f32.mrf.mxu0
  %v348 = vadd.f32 %v115, %v347
  %v349 = vpop.f32.mrf.mxu0
  %v350 = vadd.f32 %v115, %v349
  %351 = vmatmul.bf16.gmra.mxu0 %v194
  %v352 = vpop.f32.mrf.mxu0
  %v353 = vadd.f32 %v115, %v352
  %v354 = vpop.f32.mrf.mxu0
  %v355 = vadd.f32 %v115, %v354
  %356 = vmatmul.bf16.gmra.mxu0 %v197
  %v357 = vpop.f32.mrf.mxu0
  %v358 = vadd.f32 %v115, %v357
  %v359 = vpop.f32.mrf.mxu0
  %v360 = vadd.f32 %v115, %v359
  %361 = vmatmul.bf16.gmra.mxu0 %v200
  %v362 = vpop.f32.mrf.mxu0
  %v363 = vadd.f32 %v115, %v362
  %v364 = vpop.f32.mrf.mxu0
  %v365 = vadd.f32 %v115, %v364
  %366 = vmatmul.bf16.gmra.mxu0 %v203
  %v367 = vpop.f32.mrf.mxu0
  %v368 = vadd.f32 %v115, %v367
  %v369 = vpop.f32.mrf.mxu0
  %v370 = vadd.f32 %v115, %v369
  %371 = vmatmul.bf16.gmra.mxu0 %v206
  %v372 = vpop.f32.mrf.mxu0
  %v373 = vadd.f32 %v115, %v372
  %v374 = vpop.f32.mrf.mxu0
  %v375 = vadd.f32 %v115, %v374
  %376 = vmatmul.bf16.gmra.mxu0 %v209
  %v377 = vpop.f32.mrf.mxu0
  %v378 = vadd.f32 %v115, %v377
  %v379 = vpop.f32.mrf.mxu0
  %v380 = vadd.f32 %v115, %v379
  %381 = vmatmul.bf16.gmra.mxu0 %v212
  %v382 = vpop.f32.mrf.mxu0
  %v383 = vadd.f32 %v115, %v382
  %v384 = vpop.f32.mrf.mxu0
  %v385 = vadd.f32 %v115, %v384
  %386 = vdwg.mxu0
  %v387 = vpack.c.bf16 %v228, %v228
  %v388 = vpack.c.bf16 %v230, %v230
  %v389 = vpack.c.bf16 %v233, %v233
  %v390 = vpack.c.bf16 %v235, %v235
  %v391 = vpack.c.bf16 %v238, %v238
  %v392 = vpack.c.bf16 %v240, %v240
  %v393 = vpack.c.bf16 %v243, %v243
  %v394 = vpack.c.bf16 %v245, %v245
  %v395 = vpack.c.bf16 %v248, %v248
  %v396 = vpack.c.bf16 %v250, %v250
  %v397 = vpack.c.bf16 %v253, %v253
  %v398 = vpack.c.bf16 %v255, %v255
  %v399 = vpack.c.bf16 %v258, %v258
  %v400 = vpack.c.bf16 %v260, %v260
  %v401 = vpack.c.bf16 %v263, %v263
  %v402 = vpack.c.bf16 %v265, %v265
  %v403 = vpack.c.bf16 %v268, %v268
  %v404 = vpack.c.bf16 %v270, %v270
  %v405 = vpack.c.bf16 %v273, %v273
  %v406 = vpack.c.bf16 %v275, %v275
  %v407 = vpack.c.bf16 %v278, %v278
  %v408 = vpack.c.bf16 %v280, %v280
  %v409 = vpack.c.bf16 %v283, %v283
  %v410 = vpack.c.bf16 %v285, %v285
  %v411 = vpack.c.bf16 %v288, %v288
  %v412 = vpack.c.bf16 %v290, %v290
  %v413 = vpack.c.bf16 %v293, %v293
  %v414 = vpack.c.bf16 %v295, %v295
  %v415 = vpack.c.bf16 %v298, %v298
  %v416 = vpack.c.bf16 %v300, %v300
  %v417 = vpack.c.bf16 %v303, %v303
  %v418 = vpack.c.bf16 %v305, %v305
  %v419 = vpack.c.bf16 %v308, %v308
  %v420 = vpack.c.bf16 %v310, %v310
  %v421 = vpack.c.bf16 %v313, %v313
  %v422 = vpack.c.bf16 %v315, %v315
  %v423 = vpack.c.bf16 %v318, %v318
  %v424 = vpack.c.bf16 %v320, %v320
  %v425 = vpack.c.bf16 %v323, %v323
  %v426 = vpack.c.bf16 %v325, %v325
  %v427 = vpack.c.bf16 %v328, %v328
  %v428 = vpack.c.bf16 %v330, %v330
  %v429 = vpack.c.bf16 %v333, %v333
  %v430 = vpack.c.bf16 %v335, %v335
  %v431 = vpack.c.bf16 %v338, %v338
  %v432 = vpack.c.bf16 %v340, %v340
  %v433 = vpack.c.bf16 %v343, %v343
  %v434 = vpack.c.bf16 %v345, %v345
  %v435 = vpack.c.bf16 %v348, %v348
  %v436 = vpack.c.bf16 %v350, %v350
  %v437 = vpack.c.bf16 %v353, %v353
  %v438 = vpack.c.bf16 %v355, %v355
  %v439 = vpack.c.bf16 %v358, %v358
  %v440 = vpack.c.bf16 %v360, %v360
  %v441 = vpack.c.bf16 %v363, %v363
  %v442 = vpack.c.bf16 %v365, %v365
  %v443 = vpack.c.bf16 %v368, %v368
  %v444 = vpack.c.bf16 %v370, %v370
  %v445 = vpack.c.bf16 %v373, %v373
  %v446 = vpack.c.bf16 %v375, %v375
  %v447 = vpack.c.bf16 %v378, %v378
  %v448 = vpack.c.bf16 %v380, %v380
  %v449 = vpack.c.bf16 %v383, %v383
  %v450 = vpack.c.bf16 %v385, %v385
  %vm451 = vcmask 257024
  %452 = vst.msk [vmem:[%s3] sm:$0xf] %vm451, %v387
  %453 = vst.msk [vmem:[%s3 + $0x4] sm:$0xf] %vm451, %v388
  %454 = vst.msk [vmem:[%s3 + $0x8] sm:$0xf] %vm451, %v389
  %455 = vst.msk [vmem:[%s3 + $0xc] sm:$0xf] %vm451, %v390
  %456 = vst.msk [vmem:[%s3 + $0x10] sm:$0xf] %vm451, %v391
  %457 = vst.msk [vmem:[%s3 + $0x14] sm:$0xf] %vm451, %v392
  %458 = vst.msk [vmem:[%s3 + $0x18] sm:$0xf] %vm451, %v393
  %459 = vst.msk [vmem:[%s3 + $0x1c] sm:$0xf] %vm451, %v394
  %460 = vst.msk [vmem:[%s3 + $0x20] sm:$0xf] %vm451, %v395
  %461 = vst.msk [vmem:[%s3 + $0x24] sm:$0xf] %vm451, %v396
  %462 = vst.msk [vmem:[%s3 + $0x28] sm:$0xf] %vm451, %v397
  %463 = vst.msk [vmem:[%s3 + $0x2c] sm:$0xf] %vm451, %v398
  %464 = vst.msk [vmem:[%s3 + $0x30] sm:$0xf] %vm451, %v399
  %465 = vst.msk [vmem:[%s3 + $0x34] sm:$0xf] %vm451, %v400
  %466 = vst.msk [vmem:[%s3 + $0x38] sm:$0xf] %vm451, %v401
  %467 = vst.msk [vmem:[%s3 + $0x3c] sm:$0xf] %vm451, %v402
  %468 = vst.msk [vmem:[%s3 + $0x40] sm:$0xf] %vm451, %v403
  %469 = vst.msk [vmem:[%s3 + $0x44] sm:$0xf] %vm451, %v404
  %470 = vst.msk [vmem:[%s3 + $0x48] sm:$0xf] %vm451, %v405
  %471 = vst.msk [vmem:[%s3 + $0x4c] sm:$0xf] %vm451, %v406
  %472 = vst.msk [vmem:[%s3 + $0x50] sm:$0xf] %vm451, %v407
  %473 = vst.msk [vmem:[%s3 + $0x54] sm:$0xf] %vm451, %v408
  %474 = vst.msk [vmem:[%s3 + $0x58] sm:$0xf] %vm451, %v409
  %475 = vst.msk [vmem:[%s3 + $0x5c] sm:$0xf] %vm451, %v410
  %476 = vst.msk [vmem:[%s3 + $0x60] sm:$0xf] %vm451, %v411
  %477 = vst.msk [vmem:[%s3 + $0x64] sm:$0xf] %vm451, %v412
  %478 = vst.msk [vmem:[%s3 + $0x68] sm:$0xf] %vm451, %v413
  %479 = vst.msk [vmem:[%s3 + $0x6c] sm:$0xf] %vm451, %v414
  %480 = vst.msk [vmem:[%s3 + $0x70] sm:$0xf] %vm451, %v415
  %481 = vst.msk [vmem:[%s3 + $0x74] sm:$0xf] %vm451, %v416
  %482 = vst.msk [vmem:[%s3 + $0x78] sm:$0xf] %vm451, %v417
  %483 = vst.msk [vmem:[%s3 + $0x7c] sm:$0xf] %vm451, %v418
  %484 = vst.msk [vmem:[%s3 + $0x80] sm:$0xf] %vm451, %v419
  %485 = vst.msk [vmem:[%s3 + $0x84] sm:$0xf] %vm451, %v420
  %486 = vst.msk [vmem:[%s3 + $0x88] sm:$0xf] %vm451, %v421
  %487 = vst.msk [vmem:[%s3 + $0x8c] sm:$0xf] %vm451, %v422
  %488 = vst.msk [vmem:[%s3 + $0x90] sm:$0xf] %vm451, %v423
  %489 = vst.msk [vmem:[%s3 + $0x94] sm:$0xf] %vm451, %v424
  %490 = vst.msk [vmem:[%s3 + $0x98] sm:$0xf] %vm451, %v425
  %491 = vst.msk [vmem:[%s3 + $0x9c] sm:$0xf] %vm451, %v426
  %492 = vst.msk [vmem:[%s3 + $0xa0] sm:$0xf] %vm451, %v427
  %493 = vst.msk [vmem:[%s3 + $0xa4] sm:$0xf] %vm451, %v428
  %494 = vst.msk [vmem:[%s3 + $0xa8] sm:$0xf] %vm451, %v429
  %495 = vst.msk [vmem:[%s3 + $0xac] sm:$0xf] %vm451, %v430
  %496 = vst.msk [vmem:[%s3 + $0xb0] sm:$0xf] %vm451, %v431
  %497 = vst.msk [vmem:[%s3 + $0xb4] sm:$0xf] %vm451, %v432
  %498 = vst.msk [vmem:[%s3 + $0xb8] sm:$0xf] %vm451, %v433
  %499 = vst.msk [vmem:[%s3 + $0xbc] sm:$0xf] %vm451, %v434
  %500 = vst.msk [vmem:[%s3 + $0xc0] sm:$0xf] %vm451, %v435
  %501 = vst.msk [vmem:[%s3 + $0xc4] sm:$0xf] %vm451, %v436
  %502 = vst.msk [vmem:[%s3 + $0xc8] sm:$0xf] %vm451, %v437
  %503 = vst.msk [vmem:[%s3 + $0xcc] sm:$0xf] %vm451, %v438
  %504 = vst.msk [vmem:[%s3 + $0xd0] sm:$0xf] %vm451, %v439
  %505 = vst.msk [vmem:[%s3 + $0xd4] sm:$0xf] %vm451, %v440
  %506 = vst.msk [vmem:[%s3 + $0xd8] sm:$0xf] %vm451, %v441
  %507 = vst.msk [vmem:[%s3 + $0xdc] sm:$0xf] %vm451, %v442
  %508 = vst.msk [vmem:[%s3 + $0xe0] sm:$0xf] %vm451, %v443
  %509 = vst.msk [vmem:[%s3 + $0xe4] sm:$0xf] %vm451, %v444
  %510 = vst.msk [vmem:[%s3 + $0xe8] sm:$0xf] %vm451, %v445
  %511 = vst.msk [vmem:[%s3 + $0xec] sm:$0xf] %vm451, %v446
  %512 = vst.msk [vmem:[%s3 + $0xf0] sm:$0xf] %vm451, %v447
  %513 = vst.msk [vmem:[%s3 + $0xf4] sm:$0xf] %vm451, %v448
  %514 = vst.msk [vmem:[%s3 + $0xf8] sm:$0xf] %vm451, %v449
  %515 = vst.msk [vmem:[%s3 + $0xfc] sm:$0xf] %vm451, %v450
  // Predicated region
  $region14: #{unet_encoder_block.4} parent=0 // pred_check
    _
  $region15: #{unet_encoder_block.4} parent=0 // pred_check_branch
    %517 = sbr.rel (0) target = $region17
  $region16: #{unet_encoder_block.4} parent=0 // pred_region
    _
  $region17: #{unet_encoder_block.4} parent=0 // pred_fallthru
    _
  // Predicated region
  $region18: #{unet_encoder_block.4} parent=0 // pred_check
    _
  $region19: #{unet_encoder_block.4} parent=0 // pred_check_branch
    %519 = sbr.rel (0) target = $region21
  $region20: #{unet_encoder_block.4} parent=0 // pred_region
    _
  $region21: #{unet_encoder_block.4} parent=0 // pred_fallthru
    _

// kernel: unet_encoder_block.6
$region0: #{unet_encoder_block.6}
  #allocation0 [shape = 'u32[]', space=smem, size = 0x4, offset = 0x4, fixed_abs, tag = 'smem constant byte address 0x4 - core index']
  #allocation1 [shape = 'u32[72,128]{1,0:T(1,128)}', space=vmem, size = 0x9000, scoped, tag = 'internal scratch']
  %s0 = inlined_call_operand.vmem [shape: bf16[2,16,16,32], index: 0, kind: input, shape index: {}, may-alias: {0,2}]
  %s1 = inlined_call_operand.vmem [shape: bf16[2,16,16,32], index: 1, kind: input, shape index: {}]
  %s2 = inlined_call_operand.vmem [shape: bf16[2,16,16,32], index: 2, kind: input, shape index: {}, may-alias: {0,2}]
  %s3 = inlined_call_operand.vmem [shape: f32[2,1,32], index: 3, kind: input, shape index: {}]
  %s4 = inlined_call_operand.vmem [shape: f32[32,8], index: 4, kind: input, shape index: {}]
  %s5 = inlined_call_operand.vmem [shape: f32[1,8], index: 5, kind: input, shape index: {}]
  %s6 = inlined_call_operand.vmem [shape: f32[8,32], index: 6, kind: input, shape index: {}]
  %s7 = inlined_call_operand.vmem [shape: f32[1,32], index: 7, kind: input, shape index: {}]
  %s8 = inlined_call_operand.vmem [shape: bf16[2,16,16,32], index: 8, kind: output, shape index: {}]
  %s9 = sld [smem:[#allocation0]]
  $region65: #{unet_encoder_block.6} parent=0
    _
  %s11 = ssub.s32 1, %s9
  %s12 = scalar_select 0, %s11, %s9
  loop: start=0, step=1, limit=6
  $region2: #{unet_encoder_block.6} parent=0 // loop_pre_header
    _
  $region3: #{unet_encoder_block.6} parent=0 // loop_header
    %s14 = sphi 0, %s18
    %p15 = scmp.ge.s32.totalorder %s14, 6
    %s21 = sphi 0, %s33
    %s22 = sphi 0, %s29
    %s23 = sphi 0, %s21
    %s24 = sphi 0, %s22
    %s25 = sphi 0, %s23
    %s26 = sphi 0, %s24
    %s38 = sphi 0, %s40
    %s41 = sphi 0, %s38
    %s42 = sphi 0, %s41
    %s58 = sphi 0, %s42
    %s66 = sphi 0, %s68
    %s69 = sphi 0, %s66
    %s70 = sphi 0, %s69
    %s86 = sphi 0, %s70
    %s94 = sphi 0, %s96
    %s97 = sphi 0, %s94
    %s98 = sphi 0, %s97
    %s114 = sphi 0, %s98
    %s120 = sphi 0, %s122
    %s123 = sphi 0, %s120
    %s124 = sphi 0, %s123
    %s140 = sphi 0, %s124
    %s144 = sphi 0, %s144
    %s146 = sphi 0, %s144
    %s147 = sphi 0, %s146
    %s161 = sphi 0, %s147
    %s165 = sphi 0, %s165
    %s167 = sphi 0, %s165
    %s168 = sphi 0, %s167
    %s182 = sphi 0, %s168
    %s186 = sphi 0, %s186
    %s188 = sphi 0, %s186
    %s189 = sphi 0, %s188
    %s203 = sphi 0, %s189
    %s207 = sphi 0, %s207
    %s209 = sphi 0, %s207
    %s210 = sphi 0, %s209
    %s224 = sphi 0, %s210
    %s232 = sphi 0, %s234
    %s235 = sphi 0, %s232
    %s236 = sphi 0, %s235
    %s252 = sphi 0, %s236
  $region4: #{unet_encoder_block.6} parent=0 // loop_header_branch
    %17 = sbr.rel (%p15) target = $region8
  $region5: #{unet_encoder_block.6} parent=0 // loop_body
    %s19 = ssub.s32 %s14, 1
    %s20 = ssub.s32 %s14, 2
    %s27 = sadd.s32 1, %s22
    %p28 = scmp.ge.s32.totalorder %s27, 2
    %s29 = scalar_select %p28, 0, %s27
    %s30 = sadd.s32 1, %s21
    %s31 = scalar_select %p28, %s30, %s21
    %p32 = scmp.ge.s32.totalorder %s31, 2
    %s33 = scalar_select %p32, 0, %s31
    %s34 = ssub.s32 %s21, %s33
    %s35 = ssub.s32 %s22, %s29
    %s36 = sor.u32 %s34, %s35
    %p37 = scmp.eq.s32.totalorder %s36, 0
    %s39 = sadd.s32 %s38, 1
    %s40 = scalar_select %p37, %s38, %s39
    %p43 = pneg %p37
    %p44 = scmp.eq.s32.totalorder %s14, 3
    %p45 = por %p43, %p44
    %p46 = scmp.ne.s32.totalorder %s38, %s41
    %p47 = scmp.eq.s32.totalorder %s14, 0
    %p48 = por %p46, %p47
    %p49 = scmp.ne.s32.totalorder %s38, %s41
    %p50 = scmp.eq.s32.totalorder %s19, 3
    %p51 = por %p49, %p50
    %p52 = scmp.ne.s32.totalorder %s41, %s42
    %p53 = scmp.eq.s32.totalorder %s19, 0
    %p54 = por %p52, %p53
    %p55 = scmp.ne.s32.totalorder %s41, %s42
    %p56 = scmp.eq.s32.totalorder %s20, 3
    %p57 = por %p55, %p56
    %p59 = scmp.ne.s32.totalorder %s42, %s58
    %p60 = scmp.eq.s32.totalorder %s20, 0
    %p61 = por %p59, %p60
    %s62 = ssub.s32 %s21, %s33
    %s63 = ssub.s32 %s22, %s29
    %s64 = sor.u32 %s62, %s63
    %p65 = scmp.eq.s32.totalorder %s64, 0
    %s67 = sadd.s32 %s66, 1
    %s68 = scalar_select %p65, %s66, %s67
    %p71 = pneg %p65
    %p72 = scmp.eq.s32.totalorder %s14, 3
    %p73 = por %p71, %p72
    %p74 = scmp.ne.s32.totalorder %s66, %s69
    %p75 = scmp.eq.s32.totalorder %s14, 0
    %p76 = por %p74, %p75
    %p77 = scmp.ne.s32.totalorder %s66, %s69
    %p78 = scmp.eq.s32.totalorder %s19, 3
    %p79 = por %p77, %p78
    %p80 = scmp.ne.s32.totalorder %s69, %s70
    %p81 = scmp.eq.s32.totalorder %s19, 0
    %p82 = por %p80, %p81
    %p83 = scmp.ne.s32.totalorder %s69, %s70
    %p84 = scmp.eq.s32.totalorder %s20, 3
    %p85 = por %p83, %p84
    %p87 = scmp.ne.s32.totalorder %s70, %s86
    %p88 = scmp.eq.s32.totalorder %s20, 0
    %p89 = por %p87, %p88
    %s90 = ssub.s32 %s21, %s33
    %s91 = ssub.s32 %s22, %s29
    %s92 = sor.u32 %s90, %s91
    %p93 = scmp.eq.s32.totalorder %s92, 0
    %s95 = sadd.s32 %s94, 1
    %s96 = scalar_select %p93, %s94, %s95
    %p99 = pneg %p93
    %p100 = scmp.eq.s32.totalorder %s14, 3
    %p101 = por %p99, %p100
    %p102 = scmp.ne.s32.totalorder %s94, %s97
    %p103 = scmp.eq.s32.totalorder %s14, 0
    %p104 = por %p102, %p103
    %p105 = scmp.ne.s32.totalorder %s94, %s97
    %p106 = scmp.eq.s32.totalorder %s19, 3
    %p107 = por %p105, %p106
    %p108 = scmp.ne.s32.totalorder %s97, %s98
    %p109 = scmp.eq.s32.totalorder %s19, 0
    %p110 = por %p108, %p109
    %p111 = scmp.ne.s32.totalorder %s97, %s98
    %p112 = scmp.eq.s32.totalorder %s20, 3
    %p113 = por %p111, %p112
    %p115 = scmp.ne.s32.totalorder %s98, %s114
    %p116 = scmp.eq.s32.totalorder %s20, 0
    %p117 = por %p115, %p116
    %s118 = ssub.s32 %s21, %s33
    %p119 = scmp.eq.s32.totalorder %s118, 0
    %s121 = sadd.s32 %s120, 1
    %s122 = scalar_select %p119, %s120, %s121
    %p125 = pneg %p119
    %p126 = scmp.eq.s32.totalorder %s14, 3
    %p127 = por %p125, %p126
    %p128 = scmp.ne.s32.totalorder %s120, %s123
    %p129 = scmp.eq.s32.totalorder %s14, 0
    %p130 = por %p128, %p129
    %p131 = scmp.ne.s32.totalorder %s120, %s123
    %p132 = scmp.eq.s32.totalorder %s19, 3
    %p133 = por %p131, %p132
    %p134 = scmp.ne.s32.totalorder %s123, %s124
    %p135 = scmp.eq.s32.totalorder %s19, 0
    %p136 = por %p134, %p135
    %p137 = scmp.ne.s32.totalorder %s123, %s124
    %p138 = scmp.eq.s32.totalorder %s20, 3
    %p139 = por %p137, %p138
    %p141 = scmp.ne.s32.totalorder %s124, %s140
    %p142 = scmp.eq.s32.totalorder %s20, 0
    %p143 = por %p141, %p142
    %s145 = sadd.s32 %s144, 1
    %p148 = scmp.eq.s32.totalorder %s14, 3
    %p149 = scmp.ne.s32.totalorder %s144, %s146
    %p150 = scmp.eq.s32.totalorder %s14, 0
    %p151 = por %p149, %p150
    %p152 = scmp.ne.s32.totalorder %s144, %s146
    %p153 = scmp.eq.s32.totalorder %s19, 3
    %p154 = por %p152, %p153
    %p155 = scmp.ne.s32.totalorder %s146, %s147
    %p156 = scmp.eq.s32.totalorder %s19, 0
    %p157 = por %p155, %p156
    %p158 = scmp.ne.s32.totalorder %s146, %s147
    %p159 = scmp.eq.s32.totalorder %s20, 3
    %p160 = por %p158, %p159
    %p162 = scmp.ne.s32.totalorder %s147, %s161
    %p163 = scmp.eq.s32.totalorder %s20, 0
    %p164 = por %p162, %p163
    %s166 = sadd.s32 %s165, 1
    %p169 = scmp.eq.s32.totalorder %s14, 3
    %p170 = scmp.ne.s32.totalorder %s165, %s167
    %p171 = scmp.eq.s32.totalorder %s14, 0
    %p172 = por %p170, %p171
    %p173 = scmp.ne.s32.totalorder %s165, %s167
    %p174 = scmp.eq.s32.totalorder %s19, 3
    %p175 = por %p173, %p174
    %p176 = scmp.ne.s32.totalorder %s167, %s168
    %p177 = scmp.eq.s32.totalorder %s19, 0
    %p178 = por %p176, %p177
    %p179 = scmp.ne.s32.totalorder %s167, %s168
    %p180 = scmp.eq.s32.totalorder %s20, 3
    %p181 = por %p179, %p180
    %p183 = scmp.ne.s32.totalorder %s168, %s182
    %p184 = scmp.eq.s32.totalorder %s20, 0
    %p185 = por %p183, %p184
    %s187 = sadd.s32 %s186, 1
    %p190 = scmp.eq.s32.totalorder %s14, 3
    %p191 = scmp.ne.s32.totalorder %s186, %s188
    %p192 = scmp.eq.s32.totalorder %s14, 0
    %p193 = por %p191, %p192
    %p194 = scmp.ne.s32.totalorder %s186, %s188
    %p195 = scmp.eq.s32.totalorder %s19, 3
    %p196 = por %p194, %p195
    %p197 = scmp.ne.s32.totalorder %s188, %s189
    %p198 = scmp.eq.s32.totalorder %s19, 0
    %p199 = por %p197, %p198
    %p200 = scmp.ne.s32.totalorder %s188, %s189
    %p201 = scmp.eq.s32.totalorder %s20, 3
    %p202 = por %p200, %p201
    %p204 = scmp.ne.s32.totalorder %s189, %s203
    %p205 = scmp.eq.s32.totalorder %s20, 0
    %p206 = por %p204, %p205
    %s208 = sadd.s32 %s207, 1
    %p211 = scmp.eq.s32.totalorder %s14, 3
    %p212 = scmp.ne.s32.totalorder %s207, %s209
    %p213 = scmp.eq.s32.totalorder %s14, 0
    %p214 = por %p212, %p213
    %p215 = scmp.ne.s32.totalorder %s207, %s209
    %p216 = scmp.eq.s32.totalorder %s19, 3
    %p217 = por %p215, %p216
    %p218 = scmp.ne.s32.totalorder %s209, %s210
    %p219 = scmp.eq.s32.totalorder %s19, 0
    %p220 = por %p218, %p219
    %p221 = scmp.ne.s32.totalorder %s209, %s210
    %p222 = scmp.eq.s32.totalorder %s20, 3
    %p223 = por %p221, %p222
    %p225 = scmp.ne.s32.totalorder %s210, %s224
    %p226 = scmp.eq.s32.totalorder %s20, 0
    %p227 = por %p225, %p226
    %s228 = ssub.s32 %s21, %s33
    %s229 = ssub.s32 %s22, %s29
    %s230 = sor.u32 %s228, %s229
    %p231 = scmp.eq.s32.totalorder %s230, 0
    %s233 = sadd.s32 %s232, 1
    %s234 = scalar_select %p231, %s232, %s233
    %p237 = pneg %p231
    %p238 = scmp.eq.s32.totalorder %s14, 3
    %p239 = por %p237, %p238
    %p240 = scmp.ne.s32.totalorder %s232, %s235
    %p241 = scmp.eq.s32.totalorder %s14, 0
    %p242 = por %p240, %p241
    %p243 = scmp.ne.s32.totalorder %s232, %s235
    %p244 = scmp.eq.s32.totalorder %s19, 3
    %p245 = por %p243, %p244
    %p246 = scmp.ne.s32.totalorder %s235, %s236
    %p247 = scmp.eq.s32.totalorder %s19, 0
    %p248 = por %p246, %p247
    %p249 = scmp.ne.s32.totalorder %s235, %s236
    %p250 = scmp.eq.s32.totalorder %s20, 3
    %p251 = por %p249, %p250
    %p253 = scmp.ne.s32.totalorder %s236, %s252
    %p254 = scmp.eq.s32.totalorder %s20, 0
    %p255 = por %p253, %p254
    %p256 = scmp.le.s32.totalorder 1, %s14
    %p257 = scmp.lt.s32.totalorder %s14, 5
    %p258 = pnand %p256, %p257
    %p259 = pneg %p258
    // Predicated region
    $region9: #{unet_encoder_block.6} parent=5 // pred_check
      _
    $region10: #{unet_encoder_block.6} parent=5 // pred_check_branch
      %261 = sbr.rel (%p258) target = $region12
    $region11: #{unet_encoder_block.6} parent=5 // pred_region
      %s262 = ssub.s32 %s14, 1
      // Predicated region
      $region13: #{unet_encoder_block.6} parent=11 // pred_check
        %p263 = pneg %p157
      $region14: #{unet_encoder_block.6} parent=11 // pred_check_branch
        %265 = sbr.rel (%p263) target = $region16
      $region15: #{unet_encoder_block.6} parent=11 // pred_region
        _
      $region16: #{unet_encoder_block.6} parent=11 // pred_fallthru
        _
      // Predicated region
      $region17: #{unet_encoder_block.6} parent=11 // pred_check
        %p266 = pneg %p178
      $region18: #{unet_encoder_block.6} parent=11 // pred_check_branch
        %268 = sbr.rel (%p266) target = $region20
      $region19: #{unet_encoder_block.6} parent=11 // pred_region
        _
      $region20: #{unet_encoder_block.6} parent=11 // pred_fallthru
        _
      // Predicated region
      $region21: #{unet_encoder_block.6} parent=11 // pred_check
        %p269 = pneg %p199
      $region22: #{unet_encoder_block.6} parent=11 // pred_check_branch
        %271 = sbr.rel (%p269) target = $region24
      $region23: #{unet_encoder_block.6} parent=11 // pred_region
        _
      $region24: #{unet_encoder_block.6} parent=11 // pred_fallthru
        _
      // Predicated region
      $region25: #{unet_encoder_block.6} parent=11 // pred_check
        %p272 = pneg %p220
      $region26: #{unet_encoder_block.6} parent=11 // pred_check_branch
        %274 = sbr.rel (%p272) target = $region28
      $region27: #{unet_encoder_block.6} parent=11 // pred_region
        _
      $region28: #{unet_encoder_block.6} parent=11 // pred_fallthru
        _
    $region12: #{unet_encoder_block.6} parent=5 // pred_fallthru
      _
    %p275 = scmp.lt.s32.totalorder %s14, 4
    // Predicated region
    $region29: #{unet_encoder_block.6} parent=5 // pred_check
      %p276 = pneg %p275
    $region30: #{unet_encoder_block.6} parent=5 // pred_check_branch
      %278 = sbr.rel (%p276) target = $region32
    $region31: #{unet_encoder_block.6} parent=5 // pred_region
      // Predicated region
      $region33: #{unet_encoder_block.6} parent=31 // pred_check
        %p279 = pneg %p48
      $region34: #{unet_encoder_block.6} parent=31 // pred_check_branch
        %281 = sbr.rel (%p279) target = $region36
      $region35: #{unet_encoder_block.6} parent=31 // pred_region
        %s282 = smul.u32 8, %s22
        %p283 = scmp.lt.s32.totalorder %s21, 1
        %s284 = scalar_select %p283, %s21, 1
        %p285 = scmp.lt.s32.totalorder %s282, 15
        %s286 = scalar_select %p285, %s282, 15
        %s287 = smul.addr %s286, 2
        %s288 = smul.addr %s284, 32
        %s289 = sadd.s32 %s287, %s288
        %s290 = smul.addr %s289, 4
        %s291 = scalar_lea.vmem %s0, %s290
        %s292 = smul.u32 8, %s22
      $region36: #{unet_encoder_block.6} parent=31 // pred_fallthru
        _
      // Predicated region
      $region37: #{unet_encoder_block.6} parent=31 // pred_check
        %p293 = pneg %p76
      $region38: #{unet_encoder_block.6} parent=31 // pred_check_branch
        %295 = sbr.rel (%p293) target = $region40
      $region39: #{unet_encoder_block.6} parent=31 // pred_region
        %s296 = smul.u32 8, %s22
        %p297 = scmp.lt.s32.totalorder %s21, 1
        %s298 = scalar_select %p297, %s21, 1
        %p299 = scmp.lt.s32.totalorder %s296, 15
        %s300 = scalar_select %p299, %s296, 15
        %s301 = smul.addr %s300, 2
        %s302 = smul.addr %s298, 32
        %s303 = sadd.s32 %s301, %s302
        %s304 = smul.addr %s303, 4
        %s305 = scalar_lea.vmem %s1, %s304
        %s306 = smul.u32 8, %s22
      $region40: #{unet_encoder_block.6} parent=31 // pred_fallthru
        _
      // Predicated region
      $region41: #{unet_encoder_block.6} parent=31 // pred_check
        %p307 = pneg %p104
      $region42: #{unet_encoder_block.6} parent=31 // pred_check_branch
        %309 = sbr.rel (%p307) target = $region44
      $region43: #{unet_encoder_block.6} parent=31 // pred_region
        %s310 = smul.u32 8, %s22
        %p311 = scmp.lt.s32.totalorder %s21, 1
        %s312 = scalar_select %p311, %s21, 1
        %p313 = scmp.lt.s32.totalorder %s310, 15
        %s314 = scalar_select %p313, %s310, 15
        %s315 = smul.addr %s314, 2
        %s316 = smul.addr %s312, 32
        %s317 = sadd.s32 %s315, %s316
        %s318 = smul.addr %s317, 4
        %s319 = scalar_lea.vmem %s2, %s318
        %s320 = smul.u32 8, %s22
      $region44: #{unet_encoder_block.6} parent=31 // pred_fallthru
        _
      // Predicated region
      $region45: #{unet_encoder_block.6} parent=31 // pred_check
        %p321 = pneg %p130
      $region46: #{unet_encoder_block.6} parent=31 // pred_check_branch
        %323 = sbr.rel (%p321) target = $region48
      $region47: #{unet_encoder_block.6} parent=31 // pred_region
        %p324 = scmp.lt.s32.totalorder %s21, 1
        %s325 = scalar_select %p324, %s21, 1
        %s326 = scalar_lea.vmem %s3, %s325
      $region48: #{unet_encoder_block.6} parent=31 // pred_fallthru
        _
    $region32: #{unet_encoder_block.6} parent=5 // pred_fallthru
      _
    %p327 = scmp.le.s32.totalorder 1, %s14
    %p328 = scmp.lt.s32.totalorder %s14, 5
    %p329 = pnand %p327, %p328
    %p330 = pneg %p329
    // Predicated region
    $region49: #{unet_encoder_block.6} parent=5 // pred_check
      _
    $region50: #{unet_encoder_block.6} parent=5 // pred_check_branch
      %332 = sbr.rel (%p329) target = $region52
    $region51: #{unet_encoder_block.6} parent=5 // pred_region
      %s333 = ssub.s32 %s14, 1
      %s334 = smul.u32 8, %s24
      %p335 = scmp.lt.s32.totalorder %s23, 1
      %s336 = scalar_select %p335, %s23, 1
      %p337 = scmp.lt.s32.totalorder %s334, 15
      %s338 = scalar_select %p337, %s334, 15
      %s339 = smul.addr %s338, 2
      %s340 = smul.addr %s336, 32
      %s341 = sadd.s32 %s339, %s340
      %s342 = smul.addr %s341, 4
      %s343 = scalar_lea.vmem %s0, %s342
      %p344 = pneg %p54
      %p345 = pneg %p51
      %s346 = smul.u32 8, %s24
      %p347 = scmp.lt.s32.totalorder %s23, 1
      %s348 = scalar_select %p347, %s23, 1
      %p349 = scmp.lt.s32.totalorder %s346, 15
      %s350 = scalar_select %p349, %s346, 15
      %s351 = smul.addr %s350, 2
      %s352 = smul.addr %s348, 32
      %s353 = sadd.s32 %s351, %s352
      %s354 = smul.addr %s353, 4
      %s355 = scalar_lea.vmem %s1, %s354
      %p356 = pneg %p82
      %p357 = pneg %p79
      %s358 = smul.u32 8, %s24
      %p359 = scmp.lt.s32.totalorder %s23, 1
      %s360 = scalar_select %p359, %s23, 1
      %p361 = scmp.lt.s32.totalorder %s358, 15
      %s362 = scalar_select %p361, %s358, 15
      %s363 = smul.addr %s362, 2
      %s364 = smul.addr %s360, 32
      %s365 = sadd.s32 %s363, %s364
      %s366 = smul.addr %s365, 4
      %s367 = scalar_lea.vmem %s2, %s366
      %p368 = pneg %p110
      %p369 = pneg %p107
      %p370 = scmp.lt.s32.totalorder %s23, 1
      %s371 = scalar_select %p370, %s23, 1
      %s372 = scalar_lea.vmem %s3, %s371
      %p373 = pneg %p136
      %p374 = pneg %p133
      %p375 = pneg %p157
      %p376 = pneg %p154
      %p377 = pneg %p178
      %p378 = pneg %p175
      %p379 = pneg %p199
      %p380 = pneg %p196
      %p381 = pneg %p220
      %p382 = pneg %p217
      %p383 = pneg %p248
      %p384 = pneg %p245
      %s385 = smul.u32 8, %s24
      %p386 = scmp.lt.s32.totalorder %s23, 1
      %s387 = scalar_select %p386, %s23, 1
      %p388 = scmp.lt.s32.totalorder %s385, 15
      %s389 = scalar_select %p388, %s385, 15
      %s390 = smul.addr %s389, 2
      %s391 = smul.addr %s387, 32
      %s392 = sadd.s32 %s390, %s391
      %s393 = smul.addr %s392, 4
      %s394 = scalar_lea.vmem %s8, %s393
      %s395 = smul.u32 8, %s24
      %p396 = scmp.lt.s32.totalorder %s23, 1
      %s397 = scalar_select %p396, %s23, 1
      %p398 = scmp.lt.s32.totalorder %s395, 15
      %s399 = scalar_select %p398, %s395, 15
      %s400 = smul.addr %s399, 2
      %s401 = smul.addr %s397, 32
      %s402 = sadd.s32 %s400, %s401
      %s403 = smul.addr %s402, 4
      %s404 = scalar_lea.vmem %s0, %s403
      %s405 = smul.u32 8, %s24
      %s406 = smul.u32 8, %s24
      %p407 = scmp.lt.s32.totalorder %s23, 1
      %s408 = scalar_select %p407, %s23, 1
      %p409 = scmp.lt.s32.totalorder %s406, 15
      %s410 = scalar_select %p409, %s406, 15
      %s411 = smul.addr %s410, 2
      %s412 = smul.addr %s408, 32
      %s413 = sadd.s32 %s411, %s412
      %s414 = smul.addr %s413, 4
      %s415 = scalar_lea.vmem %s1, %s414
      %s416 = smul.u32 8, %s24
      %s417 = smul.u32 8, %s24
      %p418 = scmp.lt.s32.totalorder %s23, 1
      %s419 = scalar_select %p418, %s23, 1
      %p420 = scmp.lt.s32.totalorder %s417, 15
      %s421 = scalar_select %p420, %s417, 15
      %s422 = smul.addr %s421, 2
      %s423 = smul.addr %s419, 32
      %s424 = sadd.s32 %s422, %s423
      %s425 = smul.addr %s424, 4
      %s426 = scalar_lea.vmem %s2, %s425
      %s427 = smul.u32 8, %s24
      %p428 = scmp.lt.s32.totalorder %s23, 1
      %s429 = scalar_select %p428, %s23, 1
      %s430 = scalar_lea.vmem %s3, %s429
      %s431 = smul.u32 8, %s24
      %p432 = scmp.lt.s32.totalorder %s23, 1
      %s433 = scalar_select %p432, %s23, 1
      %p434 = scmp.lt.s32.totalorder %s431, 15
      %s435 = scalar_select %p434, %s431, 15
      %s436 = smul.addr %s435, 2
      %s437 = smul.addr %s433, 32
      %s438 = sadd.s32 %s436, %s437
      %s439 = smul.addr %s438, 4
      %s440 = scalar_lea.vmem %s8, %s439
      %s441 = smul.u32 8, %s24
      %v442 = vld [vmem:[%s430] sm:$0x1]
      %v443 = vld [vmem:[%s4] sm:$0xff]
      %v444 = vld [vmem:[%s4 + $0x8] sm:$0xff]
      %v445 = vld [vmem:[%s4 + $0x10] sm:$0xff]
      %v446 = vld [vmem:[%s4 + $0x18] sm:$0xff]
      %v447 = vld [vmem:[%s5] sm:$0x1]
      %vm448 = vcmask 261120
      %v450 = vsel %vm448, %v442, 0
      %452 = vmatpush.msra.mxu0 0.0
      %453 = vmatpush.msra.mxu0 0.0
      %454 = vmatpush.msra.mxu0 0.0
      %455 = vmatpush.msra.mxu0 0.0
      %456 = vmatpush.msra.mxu0 0.0
      %457 = vmatpush.msra.mxu0 0.0
      %458 = vmatpush.msra.mxu0 0.0
      %459 = vmatpush.msra.mxu0 0.0
      %460 = vmatpush.msra.mxu0 0.0
      %461 = vmatpush.msra.mxu0 0.0
      %462 = vmatpush.msra.mxu0 0.0
      %463 = vmatpush.msra.mxu0 0.0
      %464 = vmatpush.msra.mxu0 %v446
      %465 = vmatpush.msra.mxu0 %v445
      %466 = vmatpush.msra.mxu0 %v444
      %467 = vmatpush.msra.mxu0 %v443
      %468 = vmatmul.f32.gmra.mxu0 %v450
      %v469 = vpop.f32.mrf.mxu0
      %v470 = vadd.f32 %v447, %v469
      %471 = vdwg.mxu0
      %v472 = vmax.f32 %v470, 0.0
      %v473 = vld [vmem:[%s6] sm:$0xff]
      %v474 = vld [vmem:[%s7] sm:$0x1]
      %vm475 = vcmask 64512
      %v477 = vsel %vm475, %v472, 0
      %479 = vmatpush.msra.mxu0 0.0
      %480 = vmatpush.msra.mxu0 0.0
      %481 = vmatpush.msra.mxu0 0.0
      %482 = vmatpush.msra.mxu0 0.0
      %483 = vmatpush.msra.mxu0 0.0
      %484 = vmatpush.msra.mxu0 0.0
      %485 = vmatpush.msra.mxu0 0.0
      %486 = vmatpush.msra.mxu0 0.0
      %487 = vmatpush.msra.mxu0 0.0
      %488 = vmatpush.msra.mxu0 0.0
      %489 = vmatpush.msra.mxu0 0.0
      %490 = vmatpush.msra.mxu0 0.0
      %491 = vmatpush.msra.mxu0 0.0
      %492 = vmatpush.msra.mxu0 0.0
      %493 = vmatpush.msra.mxu0 0.0
      %494 = vmatpush.msra.mxu0 %v473
      %495 = vmatmul.f32.gmra.mxu0 %v477
      %v496 = vpop.f32.mrf.mxu0
      %v497 = vadd.f32 %v474, %v496
      %498 = vdwg.mxu0
      %v499 = vxor.u32 %v497, 2147483648
      %v500 = vmul.f32 %v499, 1.442695
      %v501 = vpow.pop %v500
      %v502 = vadd.f32 %v501, 1.0
      %v503 = vrcp.pop %v502
      %v504 = vmul.f32 %v502, %v503
      %v505 = vsub.f32 1.0, %v504
      %v506 = vmul.f32 %v503, %v505
      %v507 = vadd.f32 %v503, %v506
      %vm508 = vweird.f32 %v502
      %vm509 = vweird.f32 %v503
      %vm510 = vmor %vm508, %vm509
      %v511 = vsel %vm510, %v503, %v507
      %v512 = vand.u32 2147483647, %v502
      %vm513 = vcmp.eq.f32.partialorder %v512, 8.507059e+37
      %v514 = vand.u32 %v502, 2147483648
      %v515 = vor.u32 1.1754944e-38, %v514
      %v516 = vsel %vm513, %v515, %v511
      %v517 = vmul.f32 1.0, %v516
      %v518 = vld [vmem:[%s404] sm:$0xf]
      %v519 = vld [vmem:[%s404 + $0x4] sm:$0xf]
      %v520 = vld [vmem:[%s404 + $0x8] sm:$0xf]
      %v521 = vld [vmem:[%s404 + $0xc] sm:$0xf]
      %v522 = vld [vmem:[%s404 + $0x10] sm:$0xf]
      %v523 = vld [vmem:[%s404 + $0x14] sm:$0xf]
      %v524 = vld [vmem:[%s404 + $0x18] sm:$0xf]
      %v525 = vld [vmem:[%s404 + $0x1c] sm:$0xf]
      %v526 = vld [vmem:[%s404 + $0x20] sm:$0xf]
      %v527 = vld [vmem:[%s404 + $0x24] sm:$0xf]
      %v528 = vld [vmem:[%s404 + $0x28] sm:$0xf]
      %v529 = vld [vmem:[%s404 + $0x2c] sm:$0xf]
      %v530 = vld [vmem:[%s404 + $0x30] sm:$0xf]
      %v531 = vld [vmem:[%s404 + $0x34] sm:$0xf]
      %v532 = vld [vmem:[%s404 + $0x38] sm:$0xf]
      %v533 = vld [vmem:[%s404 + $0x3c] sm:$0xf]
      %v534 = vunpack.c.l.bf16 %v518
      %v535 = vunpack.c.l.bf16 %v519
      %v536 = vunpack.c.l.bf16 %v520
      %v537 = vunpack.c.l.bf16 %v521
      %v538 = vunpack.c.l.bf16 %v522
      %v539 = vunpack.c.l.bf16 %v523
      %v540 = vunpack.c.l.bf16 %v524
      %v541 = vunpack.c.l.bf16 %v525
      %v542 = vunpack.c.l.bf16 %v526
      %v543 = vunpack.c.l.bf16 %v527
      %v544 = vunpack.c.l.bf16 %v528
      %v545 = vunpack.c.l.bf16 %v529
      %v546 = vunpack.c.l.bf16 %v530
      %v547 = vunpack.c.l.bf16 %v531
      %v548 = vunpack.c.l.bf16 %v532
      %v549 = vunpack.c.l.bf16 %v533
      %v550 = vld [vmem:[%s415] sm:$0xf]
      %v551 = vld [vmem:[%s415 + $0x4] sm:$0xf]
      %v552 = vld [vmem:[%s415 + $0x8] sm:$0xf]
      %v553 = vld [vmem:[%s415 + $0xc] sm:$0xf]
      %v554 = vld [vmem:[%s415 + $0x10] sm:$0xf]
      %v555 = vld [vmem:[%s415 + $0x14] sm:$0xf]
      %v556 = vld [vmem:[%s415 + $0x18] sm:$0xf]
      %v557 = vld [vmem:[%s415 + $0x1c] sm:$0xf]
      %v558 = vld [vmem:[%s415 + $0x20] sm:$0xf]
      %v559 = vld [vmem:[%s415 + $0x24] sm:$0xf]
      %v560 = vld [vmem:[%s415 + $0x28] sm:$0xf]
      %v561 = vld [vmem:[%s415 + $0x2c] sm:$0xf]
      %v562 = vld [vmem:[%s415 + $0x30] sm:$0xf]
      %v563 = vld [vmem:[%s415 + $0x34] sm:$0xf]
      %v564 = vld [vmem:[%s415 + $0x38] sm:$0xf]
      %v565 = vld [vmem:[%s415 + $0x3c] sm:$0xf]
      %v566 = vunpack.c.l.bf16 %v550
      %v567 = vunpack.c.l.bf16 %v551
      %v568 = vunpack.c.l.bf16 %v552
      %v569 = vunpack.c.l.bf16 %v553
      %v570 = vunpack.c.l.bf16 %v554
      %v571 = vunpack.c.l.bf16 %v555
      %v572 = vunpack.c.l.bf16 %v556
      %v573 = vunpack.c.l.bf16 %v557
      %v574 = vunpack.c.l.bf16 %v558
      %v575 = vunpack.c.l.bf16 %v559
      %v576 = vunpack.c.l.bf16 %v560
      %v577 = vunpack.c.l.bf16 %v561
      %v578 = vunpack.c.l.bf16 %v562
      %v579 = vunpack.c.l.bf16 %v563
      %v580 = vunpack.c.l.bf16 %v564
      %v581 = vunpack.c.l.bf16 %v565
      %v582 = vperm.slane %v517, 0
      %v583 = vmul.f32 %v566, %v582
      %v584 = vmul.f32 %v567, %v582
      %v585 = vmul.f32 %v568, %v582
      %v586 = vmul.f32 %v569, %v582
      %v587 = vmul.f32 %v570, %v582
      %v588 = vmul.f32 %v571, %v582
      %v589 = vmul.f32 %v572, %v582
      %v590 = vmul.f32 %v573, %v582
      %v591 = vmul.f32 %v574, %v582
      %v592 = vmul.f32 %v575, %v582
      %v593 = vmul.f32 %v576, %v582
      %v594 = vmul.f32 %v577, %v582
      %v595 = vmul.f32 %v578, %v582
      %v596 = vmul.f32 %v579, %v582
      %v597 = vmul.f32 %v580, %v582
      %v598 = vmul.f32 %v581, %v582
      %v599 = vadd.f32 %v534, %v583
      %v600 = vadd.f32 %v535, %v584
      %v601 = vadd.f32 %v536, %v585
      %v602 = vadd.f32 %v537, %v586
      %v603 = vadd.f32 %v538, %v587
      %v604 = vadd.f32 %v539, %v588
      %v605 = vadd.f32 %v540, %v589
      %v606 = vadd.f32 %v541, %v590
      %v607 = vadd.f32 %v542, %v591
      %v608 = vadd.f32 %v543, %v592
      %v609 = vadd.f32 %v544, %v593
      %v610 = vadd.f32 %v545, %v594
      %v611 = vadd.f32 %v546, %v595
      %v612 = vadd.f32 %v547, %v596
      %v613 = vadd.f32 %v548, %v597
      %v614 = vadd.f32 %v549, %v598
      %v615 = vld [vmem:[%s426] sm:$0xf]
      %v616 = vld [vmem:[%s426 + $0x4] sm:$0xf]
      %v617 = vld [vmem:[%s426 + $0x8] sm:$0xf]
      %v618 = vld [vmem:[%s426 + $0xc] sm:$0xf]
      %v619 = vld [vmem:[%s426 + $0x10] sm:$0xf]
      %v620 = vld [vmem:[%s426 + $0x14] sm:$0xf]
      %v621 = vld [vmem:[%s426 + $0x18] sm:$0xf]
      %v622 = vld [vmem:[%s426 + $0x1c] sm:$0xf]
      %v623 = vld [vmem:[%s426 + $0x20] sm:$0xf]
      %v624 = vld [vmem:[%s426 + $0x24] sm:$0xf]
      %v625 = vld [vmem:[%s426 + $0x28] sm:$0xf]
      %v626 = vld [vmem:[%s426 + $0x2c] sm:$0xf]
      %v627 = vld [vmem:[%s426 + $0x30] sm:$0xf]
      %v628 = vld [vmem:[%s426 + $0x34] sm:$0xf]
      %v629 = vld [vmem:[%s426 + $0x38] sm:$0xf]
      %v630 = vld [vmem:[%s426 + $0x3c] sm:$0xf]
      %v631 = vunpack.c.l.bf16 %v615
      %v632 = vunpack.c.l.bf16 %v616
      %v633 = vunpack.c.l.bf16 %v617
      %v634 = vunpack.c.l.bf16 %v618
      %v635 = vunpack.c.l.bf16 %v619
      %v636 = vunpack.c.l.bf16 %v620
      %v637 = vunpack.c.l.bf16 %v621
      %v638 = vunpack.c.l.bf16 %v622
      %v639 = vunpack.c.l.bf16 %v623
      %v640 = vunpack.c.l.bf16 %v624
      %v641 = vunpack.c.l.bf16 %v625
      %v642 = vunpack.c.l.bf16 %v626
      %v643 = vunpack.c.l.bf16 %v627
      %v644 = vunpack.c.l.bf16 %v628
      %v645 = vunpack.c.l.bf16 %v629
      %v646 = vunpack.c.l.bf16 %v630
      %v647 = vadd.f32 %v599, %v631
      %v648 = vadd.f32 %v600, %v632
      %v649 = vadd.f32 %v601, %v633
      %v650 = vadd.f32 %v602, %v634
      %v651 = vadd.f32 %v603, %v635
      %v652 = vadd.f32 %v604, %v636
      %v653 = vadd.f32 %v605, %v637
      %v654 = vadd.f32 %v606, %v638
      %v655 = vadd.f32 %v607, %v639
      %v656 = vadd.f32 %v608, %v640
      %v657 = vadd.f32 %v609, %v641
      %v658 = vadd.f32 %v610, %v642
      %v659 = vadd.f32 %v611, %v643
      %v660 = vadd.f32 %v612, %v644
      %v661 = vadd.f32 %v613, %v645
      %v662 = vadd.f32 %v614, %v646
      %v663 = vpack.c.bf16 %v647, %v647
      %v664 = vpack.c.bf16 %v648, %v648
      %v665 = vpack.c.bf16 %v649, %v649
      %v666 = vpack.c.bf16 %v650, %v650
      %v667 = vpack.c.bf16 %v651, %v651
      %v668 = vpack.c.bf16 %v652, %v652
      %v669 = vpack.c.bf16 %v653, %v653
      %v670 = vpack.c.bf16 %v654, %v654
      %v671 = vpack.c.bf16 %v655, %v655
      %v672 = vpack.c.bf16 %v656, %v656
      %v673 = vpack.c.bf16 %v657, %v657
      %v674 = vpack.c.bf16 %v658, %v658
      %v675 = vpack.c.bf16 %v659, %v659
      %v676 = vpack.c.bf16 %v660, %v660
      %v677 = vpack.c.bf16 %v661, %v661
      %v678 = vpack.c.bf16 %v662, %v662
      %vm679 = vcmask 257024
      %680 = vst.msk [vmem:[%s440] sm:$0xf] %vm679, %v663
      %681 = vst.msk [vmem:[%s440 + $0x4] sm:$0xf] %vm679, %v664
      %682 = vst.msk [vmem:[%s440 + $0x8] sm:$0xf] %vm679, %v665
      %683 = vst.msk [vmem:[%s440 + $0xc] sm:$0xf] %vm679, %v666
      %684 = vst.msk [vmem:[%s440 + $0x10] sm:$0xf] %vm679, %v667
      %685 = vst.msk [vmem:[%s440 + $0x14] sm:$0xf] %vm679, %v668
      %686 = vst.msk [vmem:[%s440 + $0x18] sm:$0xf] %vm679, %v669
      %687 = vst.msk [vmem:[%s440 + $0x1c] sm:$0xf] %vm679, %v670
      %688 = vst.msk [vmem:[%s440 + $0x20] sm:$0xf] %vm679, %v671
      %689 = vst.msk [vmem:[%s440 + $0x24] sm:$0xf] %vm679, %v672
      %690 = vst.msk [vmem:[%s440 + $0x28] sm:$0xf] %vm679, %v673
      %691 = vst.msk [vmem:[%s440 + $0x2c] sm:$0xf] %vm679, %v674
      %692 = vst.msk [vmem:[%s440 + $0x30] sm:$0xf] %vm679, %v675
      %693 = vst.msk [vmem:[%s440 + $0x34] sm:$0xf] %vm679, %v676
      %694 = vst.msk [vmem:[%s440 + $0x38] sm:$0xf] %vm679, %v677
      %695 = vst.msk [vmem:[%s440 + $0x3c] sm:$0xf] %vm679, %v678
      %s696 = smul.u32 8, %s24
      %p697 = scmp.lt.s32.totalorder %s23, 1
      %s698 = scalar_select %p697, %s23, 1
      %p699 = scmp.lt.s32.totalorder %s696, 15
      %s700 = scalar_select %p699, %s696, 15
      %s701 = smul.addr %s700, 2
      %s702 = smul.addr %s698, 32
      %s703 = sadd.s32 %s701, %s702
      %s704 = smul.addr %s703, 4
      %s705 = scalar_lea.vmem %s8, %s704
      // Predicated region
      $region53: #{unet_encoder_block.6} parent=51 // pred_check
        %p706 = pneg %p245
      $region54: #{unet_encoder_block.6} parent=51 // pred_check_branch
        %708 = sbr.rel (%p706) target = $region56
      $region55: #{unet_encoder_block.6} parent=51 // pred_region
        %s709 = smul.u32 8, %s24
      $region56: #{unet_encoder_block.6} parent=51 // pred_fallthru
        _
    $region52: #{unet_encoder_block.6} parent=5 // pred_fallthru
      _
    %p710 = scmp.le.s32.totalorder 2, %s14
    // Predicated region
    $region57: #{unet_encoder_block.6} parent=5 // pred_check
      %p711 = pneg %p710
    $region58: #{unet_encoder_block.6} parent=5 // pred_check_branch
      %713 = sbr.rel (%p711) target = $region60
    $region59: #{unet_encoder_block.6} parent=5 // pred_region
      %s714 = ssub.s32 %s14, 2
      // Predicated region
      $region61: #{unet_encoder_block.6} parent=59 // pred_check
        %p715 = pneg %p251
      $region62: #{unet_encoder_block.6} parent=59 // pred_check_branch
        %717 = sbr.rel (%p715) target = $region64
      $region63: #{unet_encoder_block.6} parent=59 // pred_region
        %s718 = smul.u32 8, %s26
        %p719 = scmp.lt.s32.totalorder %s25, 1
        %s720 = scalar_select %p719, %s25, 1
        %p721 = scmp.lt.s32.totalorder %s718, 15
        %s722 = scalar_select %p721, %s718, 15
        %s723 = smul.addr %s722, 2
        %s724 = smul.addr %s720, 32
        %s725 = sadd.s32 %s723, %s724
        %s726 = smul.addr %s725, 4
        %s727 = scalar_lea.vmem %s8, %s726
      $region64: #{unet_encoder_block.6} parent=59 // pred_fallthru
        _
    $region60: #{unet_encoder_block.6} parent=5 // pred_fallthru
      _
  $region6: #{unet_encoder_block.6} parent=0 // loop_footer
    %s18 = sadd.s32 1, %s14
  $region7: #{unet_encoder_block.6} parent=0 // loop_footer_branch
    %13 = sbr.rel target = $region3
  $region8: #{unet_encoder_block.6} parent=0 // loop_exit
    _

// kernel: unet_encoder_block.7
$region0: #{unet_encoder_block.7}
  #allocation0 [shape = 'u32[]', space=smem, size = 0x4, offset = 0x4, fixed_abs, tag = 'smem constant byte address 0x4 - core index']
  #allocation1 [shape = 'u32[72,128]{1,0:T(1,128)}', space=vmem, size = 0x9000, scoped, tag = 'internal scratch']
  %s0 = inlined_call_operand.vmem [shape: bf16[2,9,9,128], index: 0, kind: input, shape index: {}, may-alias: {0,1}]
  %s1 = inlined_call_operand.vmem [shape: bf16[2,9,9,128], index: 1, kind: input, shape index: {}, may-alias: {0,1}]
  %s2 = inlined_call_operand.vmem [shape: bf16[2,2,128,32], index: 2, kind: input, shape index: {}]
  %s3 = inlined_call_operand.vmem [shape: f32[1,32], index: 3, kind: input, shape index: {}]
  %s4 = inlined_call_operand.hbm [shape: f32[2,8,8,32], index: 4, kind: output, shape index: {}]
  %s5 = sld [smem:[#allocation0]]
  $region49: #{unet_encoder_block.7} parent=0
    _
  %s7 = ssub.s32 1, %s5
  %s8 = scalar_select 0, %s7, %s5
  $region1: #{unet_encoder_block.7} parent=0
    #allocation2 [shape = 'u8[65536]{0}', space=vmem, size = 0x10000, scoped, tag = 'output window, operand 0']
    #allocation3 [shape = 's32[2]{0}', space=sflag, size = 0x8, scoped, tag = 'scoped memory for unet_encoder_block.7']
    %9 = vsyncpa [#allocation3], 0
    %s10 = scalar_lea.sflag [#allocation3], 1
    %11 = vsyncpa %s10, 0
    loop: start=0, step=1, limit=4
    $region2: #{unet_encoder_block.7} parent=1 // loop_pre_header
      _
    $region3: #{unet_encoder_block.7} parent=1 // loop_header
      %s13 = sphi 0, %s17
      %p14 = scmp.ge.s32.totalorder %s13, 4
      %s20 = sphi 0, %s32
      %s21 = sphi 0, %s28
      %s22 = sphi 0, %s20
      %s23 = sphi 0, %s21
      %s24 = sphi 0, %s22
      %s25 = sphi 0, %s23
      %s37 = sphi 0, %s39
      %s40 = sphi 0, %s37
      %s41 = sphi 0, %s40
      %s57 = sphi 0, %s41
      %s69 = sphi 0, %s71
      %s72 = sphi 0, %s69
      %s73 = sphi 0, %s72
      %s89 = sphi 0, %s73
      %s93 = sphi 0, %s93
      %s95 = sphi 0, %s93
      %s96 = sphi 0, %s95
      %s110 = sphi 0, %s96
      %s114 = sphi 0, %s114
      %s116 = sphi 0, %s114
      %s117 = sphi 0, %s116
      %s131 = sphi 0, %s117
      %s139 = sphi 0, %s141
      %s142 = sphi 0, %s139
      %s143 = sphi 0, %s142
      %s159 = sphi 0, %s143
    $region4: #{unet_encoder_block.7} parent=1 // loop_header_branch
      %16 = sbr.rel (%p14) target = $region8
    $region5: #{unet_encoder_block.7} parent=1 // loop_body
      %s18 = ssub.s32 %s13, 1
      %s19 = ssub.s32 %s13, 2
      %s26 = sadd.s32 1, %s21
      %p27 = scmp.ge.s32.totalorder %s26, 1
      %s28 = scalar_select %p27, 0, %s26
      %s29 = sadd.s32 1, %s20
      %s30 = scalar_select %p27, %s29, %s20
      %p31 = scmp.ge.s32.totalorder %s30, 2
      %s32 = scalar_select %p31, 0, %s30
      %s33 = ssub.s32 %s20, %s32
      %s34 = ssub.s32 %s21, %s28
      %s35 = sor.u32 %s33, %s34
      %p36 = scmp.eq.s32.totalorder %s35, 0
      %s38 = sadd.s32 %s37, 1
      %s39 = scalar_select %p36, %s37, %s38
      %p42 = pneg %p36
      %p43 = scmp.eq.s32.totalorder %s13, 1
      %p44 = por %p42, %p43
      %p45 = scmp.ne.s32.totalorder %s37, %s40
      %p46 = scmp.eq.s32.totalorder %s13, 0
      %p47 = por %p45, %p46
      %p48 = scmp.ne.s32.totalorder %s37, %s40
      %p49 = scmp.eq.s32.totalorder %s18, 1
      %p50 = por %p48, %p49
      %p51 = scmp.ne.s32.totalorder %s40, %s41
      %p52 = scmp.eq.s32.totalorder %s18, 0
      %p53 = por %p51, %p52
      %p54 = scmp.ne.s32.totalorder %s40, %s41
      %p55 = scmp.eq.s32.totalorder %s19, 1
      %p56 = por %p54, %p55
      %p58 = scmp.ne.s32.totalorder %s41, %s57
      %p59 = scmp.eq.s32.totalorder %s19, 0
      %p60 = por %p58, %p59
      %s61 = sadd.s32 %s21, 1
      %s62 = smul.u32 %s61, 8
      %s63 = sadd.s32 %s28, 1
      %s64 = smul.u32 %s63, 8
      %s65 = ssub.s32 %s20, %s32
      %s66 = ssub.s32 %s62, %s64
      %s67 = sor.u32 %s65, %s66
      %p68 = scmp.eq.s32.totalorder %s67, 0
      %s70 = sadd.s32 %s69, 1
      %s71 = scalar_select %p68, %s69, %s70
      %p74 = pneg %p68
      %p75 = scmp.eq.s32.totalorder %s13, 1
      %p76 = por %p74, %p75
      %p77 = scmp.ne.s32.totalorder %s69, %s72
      %p78 = scmp.eq.s32.totalorder %s13, 0
      %p79 = por %p77, %p78
      %p80 = scmp.ne.s32.totalorder %s69, %s72
      %p81 = scmp.eq.s32.totalorder %s18, 1
      %p82 = por %p80, %p81
      %p83 = scmp.ne.s32.totalorder %s72, %s73
      %p84 = scmp.eq.s32.totalorder %s18, 0
      %p85 = por %p83, %p84
      %p86 = scmp.ne.s32.totalorder %s72, %s73
      %p87 = scmp.eq.s32.totalorder %s19, 1
      %p88 = por %p86, %p87
      %p90 = scmp.ne.s32.totalorder %s73, %s89
      %p91 = scmp.eq.s32.totalorder %s19, 0
      %p92 = por %p90, %p91
      %s94 = sadd.s32 %s93, 1
      %p97 = scmp.eq.s32.totalorder %s13, 1
      %p98 = scmp.ne.s32.totalorder %s93, %s95
      %p99 = scmp.eq.s32.totalorder %s13, 0
      %p100 = por %p98, %p99
      %p101 = scmp.ne.s32.totalorder %s93, %s95
      %p102 = scmp.eq.s32.totalorder %s18, 1
      %p103 = por %p101, %p102
      %p104 = scmp.ne.s32.totalorder %s95, %s96
      %p105 = scmp.eq.s32.totalorder %s18, 0
      %p106 = por %p104, %p105
      %p107 = scmp.ne.s32.totalorder %s95, %s96
      %p108 = scmp.eq.s32.totalorder %s19, 1
      %p109 = por %p107, %p108
      %p111 = scmp.ne.s32.totalorder %s96, %s110
      %p112 = scmp.eq.s32.totalorder %s19, 0
      %p113 = por %p111, %p112
      %s115 = sadd.s32 %s114, 1
      %p118 = scmp.eq.s32.totalorder %s13, 1
      %p119 = scmp.ne.s32.totalorder %s114, %s116
      %p120 = scmp.eq.s32.totalorder %s13, 0
      %p121 = por %p119, %p120
      %p122 = scmp.ne.s32.totalorder %s114, %s116
      %p123 = scmp.eq.s32.totalorder %s18, 1
      %p124 = por %p122, %p123
      %p125 = scmp.ne.s32.totalorder %s116, %s117
      %p126 = scmp.eq.s32.totalorder %s18, 0
      %p127 = por %p125, %p126
      %p128 = scmp.ne.s32.totalorder %s116, %s117
      %p129 = scmp.eq.s32.totalorder %s19, 1
      %p130 = por %p128, %p129
      %p132 = scmp.ne.s32.totalorder %s117, %s131
      %p133 = scmp.eq.s32.totalorder %s19, 0
      %p134 = por %p132, %p133
      %s135 = ssub.s32 %s20, %s32
      %s136 = ssub.s32 %s21, %s28
      %s137 = sor.u32 %s135, %s136
      %p138 = scmp.eq.s32.totalorder %s137, 0
      %s140 = sadd.s32 %s139, 1
      %s141 = scalar_select %p138, %s139, %s140
      %p144 = pneg %p138
      %p145 = scmp.eq.s32.totalorder %s13, 1
      %p146 = por %p144, %p145
      %p147 = scmp.ne.s32.totalorder %s139, %s142
      %p148 = scmp.eq.s32.totalorder %s13, 0
      %p149 = por %p147, %p148
      %p150 = scmp.ne.s32.totalorder %s139, %s142
      %p151 = scmp.eq.s32.totalorder %s18, 1
      %p152 = por %p150, %p151
      %p153 = scmp.ne.s32.totalorder %s142, %s143
      %p154 = scmp.eq.s32.totalorder %s18, 0
      %p155 = por %p153, %p154
      %p156 = scmp.ne.s32.totalorder %s142, %s143
      %p157 = scmp.eq.s32.totalorder %s19, 1
      %p158 = por %p156, %p157
      %p160 = scmp.ne.s32.totalorder %s143, %s159
      %p161 = scmp.eq.s32.totalorder %s19, 0
      %p162 = por %p160, %p161
      %p163 = scmp.le.s32.totalorder 1, %s13
      %p164 = scmp.lt.s32.totalorder %s13, 3
      %p165 = pnand %p163, %p164
      %p166 = pneg %p165
      // Predicated region
      $region9: #{unet_encoder_block.7} parent=5 // pred_check
        _
      $region10: #{unet_encoder_block.7} parent=5 // pred_check_branch
        %168 = sbr.rel (%p165) target = $region12
      $region11: #{unet_encoder_block.7} parent=5 // pred_region
        %s169 = ssub.s32 %s13, 1
        // Predicated region
        $region13: #{unet_encoder_block.7} parent=11 // pred_check
          %p170 = pneg %p106
        $region14: #{unet_encoder_block.7} parent=11 // pred_check_branch
          %172 = sbr.rel (%p170) target = $region16
        $region15: #{unet_encoder_block.7} parent=11 // pred_region
          _
        $region16: #{unet_encoder_block.7} parent=11 // pred_fallthru
          _
        // Predicated region
        $region17: #{unet_encoder_block.7} parent=11 // pred_check
          %p173 = pneg %p127
        $region18: #{unet_encoder_block.7} parent=11 // pred_check_branch
          %175 = sbr.rel (%p173) target = $region20
        $region19: #{unet_encoder_block.7} parent=11 // pred_region
          _
        $region20: #{unet_encoder_block.7} parent=11 // pred_fallthru
          _
      $region12: #{unet_encoder_block.7} parent=5 // pred_fallthru
        _
      %p176 = scmp.lt.s32.totalorder %s13, 2
      // Predicated region
      $region21: #{unet_encoder_block.7} parent=5 // pred_check
        %p177 = pneg %p176
      $region22: #{unet_encoder_block.7} parent=5 // pred_check_branch
        %179 = sbr.rel (%p177) target = $region24
      $region23: #{unet_encoder_block.7} parent=5 // pred_region
        // Predicated region
        $region25: #{unet_encoder_block.7} parent=23 // pred_check
          %p180 = pneg %p47
        $region26: #{unet_encoder_block.7} parent=23 // pred_check_branch
          %182 = sbr.rel (%p180) target = $region28
        $region27: #{unet_encoder_block.7} parent=23 // pred_region
          %s183 = smul.u32 8, %s21
          %s184 = ssub.s32 9, %s183
          %p185 = scmp.lt.s32.totalorder %s184, 8
          %s186 = scalar_select %p185, %s184, 8
          %s187 = smul.u32 4, %s186
          %s188 = smul.u32 %s187, 2
          %p189 = scmp.lt.s32.totalorder %s20, 1
          %s190 = scalar_select %p189, %s20, 1
          %p191 = scmp.lt.s32.totalorder %s183, 8
          %s192 = scalar_select %p191, %s183, 8
          %s193 = smul.addr %s192, 2
          %s194 = smul.addr %s190, 18
          %s195 = sadd.s32 %s193, %s194
          %s196 = smul.addr %s195, 4
          %s197 = scalar_lea.vmem %s0, %s196
          %s198 = smul.u32 8, %s21
          %s199 = ssub.s32 9, %s198
          %p200 = scmp.lt.s32.totalorder %s199, 8
          %s201 = scalar_select %p200, %s199, 8
          %s202 = smul.u32 4, %s201
          %s203 = smul.u32 %s202, 2
        $region28: #{unet_encoder_block.7} parent=23 // pred_fallthru
          _
        // Predicated region
        $region29: #{unet_encoder_block.7} parent=23 // pred_check
          %p204 = pneg %p79
        $region30: #{unet_encoder_block.7} parent=23 // pred_check_branch
          %206 = sbr.rel (%p204) target = $region32
        $region31: #{unet_encoder_block.7} parent=23 // pred_region
          %s207 = sadd.s32 %s21, 1
          %s208 = smul.u32 %s207, 8
          %p209 = scmp.lt.s32.totalorder %s20, 1
          %s210 = scalar_select %p209, %s20, 1
          %p211 = scmp.lt.s32.totalorder %s208, 8
          %s212 = scalar_select %p211, %s208, 8
          %s213 = smul.addr %s212, 2
          %s214 = smul.addr %s210, 18
          %s215 = sadd.s32 %s213, %s214
          %s216 = smul.addr %s215, 4
          %s217 = scalar_lea.vmem %s1, %s216
          %s218 = sadd.s32 %s21, 1
          %s219 = smul.u32 %s218, 8
        $region32: #{unet_encoder_block.7} parent=23 // pred_fallthru
          _
      $region24: #{unet_encoder_block.7} parent=5 // pred_fallthru
        _
      %p220 = scmp.le.s32.totalorder 1, %s13
      %p221 = scmp.lt.s32.totalorder %s13, 3
      %p222 = pnand %p220, %p221
      %p223 = pneg %p222
      // Predicated region
      $region33: #{unet_encoder_block.7} parent=5 // pred_check
        _
      $region34: #{unet_encoder_block.7} parent=5 // pred_check_branch
        %225 = sbr.rel (%p222) target = $region36
      $region35: #{unet_encoder_block.7} parent=5 // pred_region
        %s226 = ssub.s32 %s13, 1
        %s227 = smul.u32 8, %s23
        %s228 = ssub.s32 9, %s227
        %p229 = scmp.lt.s32.totalorder %s228, 8
        %s230 = scalar_select %p229, %s228, 8
        %s231 = smul.u32 4, %s230
        %s232 = smul.u32 %s231, 2
        %p233 = scmp.lt.s32.totalorder %s22, 1
        %s234 = scalar_select %p233, %s22, 1
        %p235 = scmp.lt.s32.totalorder %s227, 8
        %s236 = scalar_select %p235, %s227, 8
        %s237 = smul.addr %s236, 2
        %s238 = smul.addr %s234, 18
        %s239 = sadd.s32 %s237, %s238
        %s240 = smul.addr %s239, 4
        %s241 = scalar_lea.vmem %s0, %s240
        %p242 = pneg %p53
        %p243 = pneg %p50
        %s244 = sadd.s32 %s23, 1
        %s245 = smul.u32 %s244, 8
        %p246 = scmp.lt.s32.totalorder %s22, 1
        %s247 = scalar_select %p246, %s22, 1
        %p248 = scmp.lt.s32.totalorder %s245, 8
        %s249 = scalar_select %p248, %s245, 8
        %s250 = smul.addr %s249, 2
        %s251 = smul.addr %s247, 18
        %s252 = sadd.s32 %s250, %s251
        %s253 = smul.addr %s252, 4
        %s254 = scalar_lea.vmem %s1, %s253
        %p255 = pneg %p85
        %p256 = pneg %p82
        %p257 = pneg %p106
        %p258 = pneg %p103
        %p259 = pneg %p127
        %p260 = pneg %p124
        %p261 = pneg %p155
        %p262 = pneg %p152
        %s263 = sand.u32 %s142, 1
        %s264 = scalar_lea.sflag [#allocation3], %s263
        %s265 = sand.u32 %s142, 1
        %s266 = smul.addr %s265, 64
        %s267 = scalar_lea.vmem [#allocation2], %s266
        %s268 = smul.u32 8, %s23
        %s269 = ssub.s32 9, %s268
        %p270 = scmp.lt.s32.totalorder %s269, 8
        %s271 = scalar_select %p270, %s269, 8
        %s272 = smul.u32 4, %s271
        %s273 = smul.u32 %s272, 2
        %p274 = scmp.lt.s32.totalorder %s22, 1
        %s275 = scalar_select %p274, %s22, 1
        %p276 = scmp.lt.s32.totalorder %s268, 8
        %s277 = scalar_select %p276, %s268, 8
        %s278 = smul.addr %s277, 2
        %s279 = smul.addr %s275, 18
        %s280 = sadd.s32 %s278, %s279
        %s281 = smul.addr %s280, 4
        %s282 = scalar_lea.vmem %s0, %s281
        %s283 = smul.u32 8, %s23
        %s284 = ssub.s32 9, %s283
        %p285 = scmp.lt.s32.totalorder %s284, 8
        %s286 = scalar_select %p285, %s284, 8
        %s287 = smul.u32 4, %s286
        %s288 = smul.u32 %s287, 2
        %s289 = sadd.s32 %s23, 1
        %s290 = smul.u32 %s289, 8
        %p291 = scmp.lt.s32.totalorder %s22, 1
        %s292 = scalar_select %p291, %s22, 1
        %p293 = scmp.lt.s32.totalorder %s290, 8
        %s294 = scalar_select %p293, %s290, 8
        %s295 = smul.addr %s294, 2
        %s296 = smul.addr %s292, 18
        %s297 = sadd.s32 %s295, %s296
        %s298 = smul.addr %s297, 4
        %s299 = scalar_lea.vmem %s1, %s298
        %s300 = sadd.s32 %s23, 1
        %s301 = smul.u32 %s300, 8
        %s302 = smul.u32 8, %s23
        %v303 = vld [vmem:[%s282] sm:$0xf]
        %v304 = vld [vmem:[%s282 + $0x4] sm:$0x1]
        %v305 = vld [vmem:[%s282 + $0x8] sm:$0xf]
        %v306 = vld [vmem:[%s282 + $0xc] sm:$0x1]
        %v307 = vld [vmem:[%s282 + $0x10] sm:$0xf]
        %v308 = vld [vmem:[%s282 + $0x14] sm:$0x1]
        %v309 = vld [vmem:[%s282 + $0x18] sm:$0xf]
        %v310 = vld [vmem:[%s282 + $0x1c] sm:$0x1]
        %v311 = vld [vmem:[%s282 + $0x20] sm:$0xf]
        %v312 = vld [vmem:[%s282 + $0x24] sm:$0x1]
        %v313 = vld [vmem:[%s282 + $0x28] sm:$0xf]
        %v314 = vld [vmem:[%s282 + $0x2c] sm:$0x1]
        %v315 = vld [vmem:[%s282 + $0x30] sm:$0xf]
        %v316 = vld [vmem:[%s282 + $0x34] sm:$0x1]
        %v317 = vld [vmem:[%s282 + $0x38] sm:$0xf]
        %v318 = vld [vmem:[%s282 + $0x3c] sm:$0x1]
        %v319 = vld [vmem:[%s299] sm:$0xf]
        %v320 = vld [vmem:[%s299 + $0x4] sm:$0x1]
        %v321 = vld [vmem:[%s2] sm:$0xf]
        %v322 = vld [vmem:[%s2 + $0x4] sm:$0xf]
        %v323 = vld [vmem:[%s2 + $0x8] sm:$0xf]
        %v324 = vld [vmem:[%s2 + $0xc] sm:$0xf]
        %v325 = vld [vmem:[%s2 + $0x10] sm:$0xf]
        %v326 = vld [vmem:[%s2 + $0x14] sm:$0xf]
        %v327 = vld [vmem:[%s2 + $0x18] sm:$0xf]
        %v328 = vld [vmem:[%s2 + $0x1c] sm:$0xf]
        %v329 = vld [vmem:[%s2 + $0x20] sm:$0xf]
        %v330 = vld [vmem:[%s2 + $0x24] sm:$0xf]
        %v331 = vld [vmem:[%s2 + $0x28] sm:$0xf]
        %v332 = vld [vmem:[%s2 + $0x2c] sm:$0xf]
        %v333 = vld [vmem:[%s2 + $0x30] sm:$0xf]
        %v334 = vld [vmem:[%s2 + $0x34] sm:$0xf]
        %v335 = vld [vmem:[%s2 + $0x38] sm:$0xf]
        %v336 = vld [vmem:[%s2 + $0x3c] sm:$0xf]
        %vm337 = vsmask.f32 3328
        %vm338 = vsmask.f32 7440
        %vm339 = vmor %vm337, %vm338
        %v341 = vshrl.u32 %v303, 16
        %v343 = vrot.slane %v341, 4
        %v344 = vshll.u32 %v303, 16
        %v346 = vrot.slane %v344, 5
        %v347 = vor.u32 %v343, %v346
        %v348 = vrot.slane %v347, 4
        %v350 = vshll.u32 %v304, 16
        %v352 = vrot.slane %v350, 5
        %v353 = vsel %vm339, %v348, %v352
        %v355 = vshrl.u32 %v305, 16
        %v357 = vrot.slane %v355, 4
        %v358 = vshll.u32 %v305, 16
        %v360 = vrot.slane %v358, 5
        %v361 = vor.u32 %v357, %v360
        %v362 = vrot.slane %v361, 4
        %v364 = vshll.u32 %v306, 16
        %v366 = vrot.slane %v364, 5
        %v367 = vsel %vm339, %v362, %v366
        %v369 = vshrl.u32 %v307, 16
        %v371 = vrot.slane %v369, 4
        %v372 = vshll.u32 %v307, 16
        %v374 = vrot.slane %v372, 5
        %v375 = vor.u32 %v371, %v374
        %v376 = vrot.slane %v375, 4
        %v378 = vshll.u32 %v308, 16
        %v380 = vrot.slane %v378, 5
        %v381 = vsel %vm339, %v376, %v380
        %v383 = vshrl.u32 %v309, 16
        %v385 = vrot.slane %v383, 4
        %v386 = vshll.u32 %v309, 16
        %v388 = vrot.slane %v386, 5
        %v389 = vor.u32 %v385, %v388
        %v390 = vrot.slane %v389, 4
        %v392 = vshll.u32 %v310, 16
        %v394 = vrot.slane %v392, 5
        %v395 = vsel %vm339, %v390, %v394
        %v397 = vshrl.u32 %v311, 16
        %v399 = vrot.slane %v397, 4
        %v400 = vshll.u32 %v311, 16
        %v402 = vrot.slane %v400, 5
        %v403 = vor.u32 %v399, %v402
        %v404 = vrot.slane %v403, 4
        %v406 = vshll.u32 %v312, 16
        %v408 = vrot.slane %v406, 5
        %v409 = vsel %vm339, %v404, %v408
        %v411 = vshrl.u32 %v313, 16
        %v413 = vrot.slane %v411, 4
        %v414 = vshll.u32 %v313, 16
        %v416 = vrot.slane %v414, 5
        %v417 = vor.u32 %v413, %v416
        %v418 = vrot.slane %v417, 4
        %v420 = vshll.u32 %v314, 16
        %v422 = vrot.slane %v420, 5
        %v423 = vsel %vm339, %v418, %v422
        %v425 = vshrl.u32 %v315, 16
        %v427 = vrot.slane %v425, 4
        %v428 = vshll.u32 %v315, 16
        %v430 = vrot.slane %v428, 5
        %v431 = vor.u32 %v427, %v430
        %v432 = vrot.slane %v431, 4
        %v434 = vshll.u32 %v316, 16
        %v436 = vrot.slane %v434, 5
        %v437 = vsel %vm339, %v432, %v436
        %v439 = vshrl.u32 %v317, 16
        %v441 = vrot.slane %v439, 4
        %v442 = vshll.u32 %v317, 16
        %v444 = vrot.slane %v442, 5
        %v445 = vor.u32 %v441, %v444
        %v446 = vrot.slane %v445, 4
        %v448 = vshll.u32 %v318, 16
        %v450 = vrot.slane %v448, 5
        %v451 = vsel %vm339, %v446, %v450
        %s452 = scalar_lea.vmem %s2, 64
        %v453 = vld [vmem:[%s452] sm:$0xf]
        %v454 = vld [vmem:[%s452 + $0x4] sm:$0xf]
        %v455 = vld [vmem:[%s452 + $0x8] sm:$0xf]
        %v456 = vld [vmem:[%s452 + $0xc] sm:$0xf]
        %v457 = vld [vmem:[%s452 + $0x10] sm:$0xf]
        %v458 = vld [vmem:[%s452 + $0x14] sm:$0xf]
        %v459 = vld [vmem:[%s452 + $0x18] sm:$0xf]
        %v460 = vld [vmem:[%s452 + $0x1c] sm:$0xf]
        %v461 = vld [vmem:[%s452 + $0x20] sm:$0xf]
        %v462 = vld [vmem:[%s452 + $0x24] sm:$0xf]
        %v463 = vld [vmem:[%s452 + $0x28] sm:$0xf]
        %v464 = vld [vmem:[%s452 + $0x2c] sm:$0xf]
        %v465 = vld [vmem:[%s452 + $0x30] sm:$0xf]
        %v466 = vld [vmem:[%s452 + $0x34] sm:$0xf]
        %v467 = vld [vmem:[%s452 + $0x38] sm:$0xf]
        %v468 = vld [vmem:[%s452 + $0x3c] sm:$0xf]
        %v469 = vunpack.c.l.b16 %v353
        %v470 = vunpack.c.l.b16 %v367
        %v471 = vunpack.c.l.b16 %v381
        %v472 = vunpack.c.l.b16 %v395
        %v473 = vunpack.c.l.b16 %v409
        %v474 = vunpack.c.l.b16 %v423
        %v475 = vunpack.c.l.b16 %v437
        %v476 = vunpack.c.l.b16 %v451
        %v477 = vpack.c.b16 %v470, %v469
        %v478 = vpack.c.b16 %v472, %v471
        %v479 = vpack.c.b16 %v474, %v473
        %v480 = vpack.c.b16 %v476, %v475
        %v501 = vunpack.c.l.b16 %v453
        %v502 = vunpack.c.l.b16 %v454
        %v503 = vunpack.c.l.b16 %v455
        %v504 = vunpack.c.l.b16 %v456
        %v505 = vunpack.c.l.b16 %v457
        %v506 = vunpack.c.l.b16 %v458
        %v507 = vunpack.c.l.b16 %v459
        %v508 = vunpack.c.l.b16 %v460
        %v509 = vunpack.c.l.b16 %v461
        %v510 = vunpack.c.l.b16 %v462
        %v511 = vunpack.c.l.b16 %v463
        %v512 = vunpack.c.l.b16 %v464
        %v513 = vunpack.c.l.b16 %v465
        %v514 = vunpack.c.l.b16 %v466
        %v515 = vunpack.c.l.b16 %v467
        %v516 = vunpack.c.l.b16 %v468
        %v517 = vpack.c.b16 %v502, %v501
        %v518 = vpack.c.b16 %v504, %v503
        %v519 = vpack.c.b16 %v506, %v505
        %v520 = vpack.c.b16 %v508, %v507
        %v521 = vpack.c.b16 %v510, %v509
        %v522 = vpack.c.b16 %v512, %v511
        %v523 = vpack.c.b16 %v514, %v513
        %v524 = vpack.c.b16 %v516, %v515
        %533 = vmatpush.bf16.msra.mxu0 %v524
        %534 = vmatpush.bf16.msra.mxu0 %v523
        %535 = vmatpush.bf16.msra.mxu0 %v522
        %536 = vmatpush.bf16.msra.mxu0 %v521
        %537 = vmatpush.bf16.msra.mxu0 %v520
        %538 = vmatpush.bf16.msra.mxu0 %v519
        %539 = vmatpush.bf16.msra.mxu0 %v518
        %540 = vmatpush.bf16.msra.mxu0 %v517
        %541 = vmatmul.bf16.gmra.mxu0 %v477
        %v542 = vpop.f32.mrf.mxu0
        %v543 = vadd.f32 0.0, %v542
        %v544 = vpop.f32.mrf.mxu0
        %v545 = vadd.f32 0.0, %v544
        %546 = vmatmul.bf16.gmra.mxu0 %v478
        %v547 = vpop.f32.mrf.mxu0
        %v548 = vadd.f32 0.0, %v547
        %v549 = vpop.f32.mrf.mxu0
        %v550 = vadd.f32 0.0, %v549
        %551 = vmatmul.bf16.gmra.mxu0 %v479
        %v552 = vpop.f32.mrf.mxu0
        %v553 = vadd.f32 0.0, %v552
        %v554 = vpop.f32.mrf.mxu0
        %v555 = vadd.f32 0.0, %v554
        %556 = vmatmul.bf16.gmra.mxu0 %v480
        %v557 = vpop.f32.mrf.mxu0
        %v558 = vadd.f32 0.0, %v557
        %v559 = vpop.f32.mrf.mxu0
        %v560 = vadd.f32 0.0, %v559
        %561 = vdwg.mxu0
        %v570 = vunpack.c.l.b16 %v303
        %v571 = vunpack.c.l.b16 %v305
        %v572 = vunpack.c.l.b16 %v307
        %v573 = vunpack.c.l.b16 %v309
        %v574 = vunpack.c.l.b16 %v311
        %v575 = vunpack.c.l.b16 %v313
        %v576 = vunpack.c.l.b16 %v315
        %v577 = vunpack.c.l.b16 %v317
        %v578 = vpack.c.b16 %v571, %v570
        %v579 = vpack.c.b16 %v573, %v572
        %v580 = vpack.c.b16 %v575, %v574
        %v581 = vpack.c.b16 %v577, %v576
        %v602 = vunpack.c.l.b16 %v321
        %v603 = vunpack.c.l.b16 %v322
        %v604 = vunpack.c.l.b16 %v323
        %v605 = vunpack.c.l.b16 %v324
        %v606 = vunpack.c.l.b16 %v325
        %v607 = vunpack.c.l.b16 %v326
        %v608 = vunpack.c.l.b16 %v327
        %v609 = vunpack.c.l.b16 %v328
        %v610 = vunpack.c.l.b16 %v329
        %v611 = vunpack.c.l.b16 %v330
        %v612 = vunpack.c.l.b16 %v331
        %v613 = vunpack.c.l.b16 %v332
        %v614 = vunpack.c.l.b16 %v333
        %v615 = vunpack.c.l.b16 %v334
        %v616 = vunpack.c.l.b16 %v335
        %v617 = vunpack.c.l.b16 %v336
        %v618 = vpack.c.b16 %v603, %v602
        %v619 = vpack.c.b16 %v605, %v604
        %v620 = vpack.c.b16 %v607, %v606
        %v621 = vpack.c.b16 %v609, %v608
        %v622 = vpack.c.b16 %v611, %v610
        %v623 = vpack.c.b16 %v613, %v612
        %v624 = vpack.c.b16 %v615, %v614
        %v625 = vpack.c.b16 %v617, %v616
        %634 = vmatpush.bf16.msra.mxu0 %v625
        %635 = vmatpush.bf16.msra.mxu0 %v624
        %636 = vmatpush.bf16.msra.mxu0 %v623
        %637 = vmatpush.bf16.msra.mxu0 %v622
        %638 = vmatpush.bf16.msra.mxu0 %v621
        %639 = vmatpush.bf16.msra.mxu0 %v620
        %640 = vmatpush.bf16.msra.mxu0 %v619
        %641 = vmatpush.bf16.msra.mxu0 %v618
        %642 = vmatmul.bf16.gmra.mxu0 %v578
        %v643 = vpop.f32.mrf.mxu0
        %v644 = vadd.f32 %v543, %v643
        %v645 = vpop.f32.mrf.mxu0
        %v646 = vadd.f32 %v545, %v645
        %647 = vmatmul.bf16.gmra.mxu0 %v579
        %v648 = vpop.f32.mrf.mxu0
        %v649 = vadd.f32 %v548, %v648
        %v650 = vpop.f32.mrf.mxu0
        %v651 = vadd.f32 %v550, %v650
        %652 = vmatmul.bf16.gmra.mxu0 %v580
        %v653 = vpop.f32.mrf.mxu0
        %v654 = vadd.f32 %v553, %v653
        %v655 = vpop.f32.mrf.mxu0
        %v656 = vadd.f32 %v555, %v655
        %657 = vmatmul.bf16.gmra.mxu0 %v581
        %v658 = vpop.f32.mrf.mxu0
        %v659 = vadd.f32 %v558, %v658
        %v660 = vpop.f32.mrf.mxu0
        %v661 = vadd.f32 %v560, %v660
        %662 = vdwg.mxu0
        %s663 = scalar_lea.vmem %s2, 128
        %v664 = vld [vmem:[%s663] sm:$0xf]
        %v665 = vld [vmem:[%s663 + $0x4] sm:$0xf]
        %v666 = vld [vmem:[%s663 + $0x8] sm:$0xf]
        %v667 = vld [vmem:[%s663 + $0xc] sm:$0xf]
        %v668 = vld [vmem:[%s663 + $0x10] sm:$0xf]
        %v669 = vld [vmem:[%s663 + $0x14] sm:$0xf]
        %v670 = vld [vmem:[%s663 + $0x18] sm:$0xf]
        %v671 = vld [vmem:[%s663 + $0x1c] sm:$0xf]
        %v672 = vld [vmem:[%s663 + $0x20] sm:$0xf]
        %v673 = vld [vmem:[%s663 + $0x24] sm:$0xf]
        %v674 = vld [vmem:[%s663 + $0x28] sm:$0xf]
        %v675 = vld [vmem:[%s663 + $0x2c] sm:$0xf]
        %v676 = vld [vmem:[%s663 + $0x30] sm:$0xf]
        %v677 = vld [vmem:[%s663 + $0x34] sm:$0xf]
        %v678 = vld [vmem:[%s663 + $0x38] sm:$0xf]
        %v679 = vld [vmem:[%s663 + $0x3c] sm:$0xf]
        %v681 = vunpack.c.l.b16 %v319
        %v682 = vpack.c.b16 %v572, %v571
        %v683 = vpack.c.b16 %v574, %v573
        %v684 = vpack.c.b16 %v576, %v575
        %v685 = vpack.c.b16 %v681, %v577
        %v706 = vunpack.c.l.b16 %v664
        %v707 = vunpack.c.l.b16 %v665
        %v708 = vunpack.c.l.b16 %v666
        %v709 = vunpack.c.l.b16 %v667
        %v710 = vunpack.c.l.b16 %v668
        %v711 = vunpack.c.l.b16 %v669
        %v712 = vunpack.c.l.b16 %v670
        %v713 = vunpack.c.l.b16 %v671
        %v714 = vunpack.c.l.b16 %v672
        %v715 = vunpack.c.l.b16 %v673
        %v716 = vunpack.c.l.b16 %v674
        %v717 = vunpack.c.l.b16 %v675
        %v718 = vunpack.c.l.b16 %v676
        %v719 = vunpack.c.l.b16 %v677
        %v720 = vunpack.c.l.b16 %v678
        %v721 = vunpack.c.l.b16 %v679
        %v722 = vpack.c.b16 %v707, %v706
        %v723 = vpack.c.b16 %v709, %v708
        %v724 = vpack.c.b16 %v711, %v710
        %v725 = vpack.c.b16 %v713, %v712
        %v726 = vpack.c.b16 %v715, %v714
        %v727 = vpack.c.b16 %v717, %v716
        %v728 = vpack.c.b16 %v719, %v718
        %v729 = vpack.c.b16 %v721, %v720
        %738 = vmatpush.bf16.msra.mxu0 %v729
        %739 = vmatpush.bf16.msra.mxu0 %v728
        %740 = vmatpush.bf16.msra.mxu0 %v727
        %741 = vmatpush.bf16.msra.mxu0 %v726
        %742 = vmatpush.bf16.msra.mxu0 %v725
        %743 = vmatpush.bf16.msra.mxu0 %v724
        %744 = vmatpush.bf16.msra.mxu0 %v723
        %745 = vmatpush.bf16.msra.mxu0 %v722
        %746 = vmatmul.bf16.gmra.mxu0 %v682
        %v747 = vpop.f32.mrf.mxu0
        %v748 = vadd.f32 0.0, %v747
        %v749 = vpop.f32.mrf.mxu0
        %v750 = vadd.f32 0.0, %v749
        %751 = vmatmul.bf16.gmra.mxu0 %v683
        %v752 = vpop.f32.mrf.mxu0
        %v753 = vadd.f32 0.0, %v752
        %v754 = vpop.f32.mrf.mxu0
        %v755 = vadd.f32 0.0, %v754
        %756 = vmatmul.bf16.gmra.mxu0 %v684
        %v757 = vpop.f32.mrf.mxu0
        %v758 = vadd.f32 0.0, %v757
        %v759 = vpop.f32.mrf.mxu0
        %v760 = vadd.f32 0.0, %v759
        %761 = vmatmul.bf16.gmra.mxu0 %v685
        %v762 = vpop.f32.mrf.mxu0
        %v763 = vadd.f32 0.0, %v762
        %v764 = vpop.f32.mrf.mxu0
        %v765 = vadd.f32 0.0, %v764
        %766 = vdwg.mxu0
        %v767 = vadd.f32 %v644, %v748
        %v768 = vadd.f32 %v646, %v750
        %v769 = vadd.f32 %v649, %v753
        %v770 = vadd.f32 %v651, %v755
        %v771 = vadd.f32 %v654, %v758
        %v772 = vadd.f32 %v656, %v760
        %v773 = vadd.f32 %v659, %v763
        %v774 = vadd.f32 %v661, %v765
        %v776 = vshrl.u32 %v319, 16
        %v778 = vrot.slane %v776, 4
        %v779 = vshll.u32 %v319, 16
        %v781 = vrot.slane %v779, 5
        %v782 = vor.u32 %v778, %v781
        %v783 = vrot.slane %v782, 4
        %v785 = vshll.u32 %v320, 16
        %v787 = vrot.slane %v785, 5
        %v788 = vsel %vm339, %v783, %v787
        %s789 = scalar_lea.vmem %s2, 192
        %v790 = vld [vmem:[%s789] sm:$0xf]
        %v791 = vld [vmem:[%s789 + $0x4] sm:$0xf]
        %v792 = vld [vmem:[%s789 + $0x8] sm:$0xf]
        %v793 = vld [vmem:[%s789 + $0xc] sm:$0xf]
        %v794 = vld [vmem:[%s789 + $0x10] sm:$0xf]
        %v795 = vld [vmem:[%s789 + $0x14] sm:$0xf]
        %v796 = vld [vmem:[%s789 + $0x18] sm:$0xf]
        %v797 = vld [vmem:[%s789 + $0x1c] sm:$0xf]
        %v798 = vld [vmem:[%s789 + $0x20] sm:$0xf]
        %v799 = vld [vmem:[%s789 + $0x24] sm:$0xf]
        %v800 = vld [vmem:[%s789 + $0x28] sm:$0xf]
        %v801 = vld [vmem:[%s789 + $0x2c] sm:$0xf]
        %v802 = vld [vmem:[%s789 + $0x30] sm:$0xf]
        %v803 = vld [vmem:[%s789 + $0x34] sm:$0xf]
        %v804 = vld [vmem:[%s789 + $0x38] sm:$0xf]
        %v805 = vld [vmem:[%s789 + $0x3c] sm:$0xf]
        %v806 = vunpack.c.l.b16 %v788
        %v807 = vpack.c.b16 %v471, %v470
        %v808 = vpack.c.b16 %v473, %v472
        %v809 = vpack.c.b16 %v475, %v474
        %v810 = vpack.c.b16 %v806, %v476
        %v831 = vunpack.c.l.b16 %v790
        %v832 = vunpack.c.l.b16 %v791
        %v833 = vunpack.c.l.b16 %v792
        %v834 = vunpack.c.l.b16 %v793
        %v835 = vunpack.c.l.b16 %v794
        %v836 = vunpack.c.l.b16 %v795
        %v837 = vunpack.c.l.b16 %v796
        %v838 = vunpack.c.l.b16 %v797
        %v839 = vunpack.c.l.b16 %v798
        %v840 = vunpack.c.l.b16 %v799
        %v841 = vunpack.c.l.b16 %v800
        %v842 = vunpack.c.l.b16 %v801
        %v843 = vunpack.c.l.b16 %v802
        %v844 = vunpack.c.l.b16 %v803
        %v845 = vunpack.c.l.b16 %v804
        %v846 = vunpack.c.l.b16 %v805
        %v847 = vpack.c.b16 %v832, %v831
        %v848 = vpack.c.b16 %v834, %v833
        %v849 = vpack.c.b16 %v836, %v835
        %v850 = vpack.c.b16 %v838, %v837
        %v851 = vpack.c.b16 %v840, %v839
        %v852 = vpack.c.b16 %v842, %v841
        %v853 = vpack.c.b16 %v844, %v843
        %v854 = vpack.c.b16 %v846, %v845
        %863 = vmatpush.bf16.msra.mxu0 %v854
        %864 = vmatpush.bf16.msra.mxu0 %v853
        %865 = vmatpush.bf16.msra.mxu0 %v852
        %866 = vmatpush.bf16.msra.mxu0 %v851
        %867 = vmatpush.bf16.msra.mxu0 %v850
        %868 = vmatpush.bf16.msra.mxu0 %v849
        %869 = vmatpush.bf16.msra.mxu0 %v848
        %870 = vmatpush.bf16.msra.mxu0 %v847
        %871 = vmatmul.bf16.gmra.mxu0 %v807
        %v872 = vpop.f32.mrf.mxu0
        %v873 = vadd.f32 0.0, %v872
        %v874 = vpop.f32.mrf.mxu0
        %v875 = vadd.f32 0.0, %v874
        %876 = vmatmul.bf16.gmra.mxu0 %v808
        %v877 = vpop.f32.mrf.mxu0
        %v878 = vadd.f32 0.0, %v877
        %v879 = vpop.f32.mrf.mxu0
        %v880 = vadd.f32 0.0, %v879
        %881 = vmatmul.bf16.gmra.mxu0 %v809
        %v882 = vpop.f32.mrf.mxu0
        %v883 = vadd.f32 0.0, %v882
        %v884 = vpop.f32.mrf.mxu0
        %v885 = vadd.f32 0.0, %v884
        %886 = vmatmul.bf16.gmra.mxu0 %v810
        %v887 = vpop.f32.mrf.mxu0
        %v888 = vadd.f32 0.0, %v887
        %v889 = vpop.f32.mrf.mxu0
        %v890 = vadd.f32 0.0, %v889
        %891 = vdwg.mxu0
        %v892 = vadd.f32 %v767, %v873
        %v893 = vadd.f32 %v768, %v875
        %v894 = vadd.f32 %v769, %v878
        %v895 = vadd.f32 %v770, %v880
        %v896 = vadd.f32 %v771, %v883
        %v897 = vadd.f32 %v772, %v885
        %v898 = vadd.f32 %v773, %v888
        %v899 = vadd.f32 %v774, %v890
        %v900 = vld [vmem:[%s3] sm:$0x1]
        %v902 = vperm.slane %v900, 0
        %v904 = vadd.f32 %v892, %v902
        %v905 = vadd.f32 %v893, %v902
        %v906 = vadd.f32 %v894, %v902
        %v907 = vadd.f32 %v895, %v902
        %v908 = vadd.f32 %v896, %v902
        %v909 = vadd.f32 %v897, %v902
        %v910 = vadd.f32 %v898, %v902
        %v911 = vadd.f32 %v899, %v902
        %vm912 = vcmask 261120
        %913 = vst.msk [vmem:[%s267] sm:$0xff] %vm912, %v904
        %914 = vst.msk [vmem:[%s267 + $0x8] sm:$0xff] %vm912, %v905
        %915 = vst.msk [vmem:[%s267 + $0x10] sm:$0xff] %vm912, %v906
        %916 = vst.msk [vmem:[%s267 + $0x18] sm:$0xff] %vm912, %v907
        %917 = vst.msk [vmem:[%s267 + $0x20] sm:$0xff] %vm912, %v908
        %918 = vst.msk [vmem:[%s267 + $0x28] sm:$0xff] %vm912, %v909
        %919 = vst.msk [vmem:[%s267 + $0x30] sm:$0xff] %vm912, %v910
        %920 = vst.msk [vmem:[%s267 + $0x38] sm:$0xff] %vm912, %v911
        %s921 = sand.u32 %s142, 1
        %s922 = scalar_lea.sflag [#allocation3], %s921
        %s923 = sand.u32 %s142, 1
        %s924 = smul.addr %s923, 64
        %s925 = scalar_lea.vmem [#allocation2], %s924
        // Predicated region
        $region37: #{unet_encoder_block.7} parent=35 // pred_check
          %p926 = pneg %p152
        $region38: #{unet_encoder_block.7} parent=35 // pred_check_branch
          %928 = sbr.rel (%p926) target = $region40
        $region39: #{unet_encoder_block.7} parent=35 // pred_region
          %s929 = smul.u32 8, %s23
          %931 = vsyncadd %s922, 0
          %s932 = smul.addr %s22, 8
          %s933 = sadd.s32 %s929, %s932
          %s934 = smul.addr %s933, 8
          %s935 = scalar_lea.hbm %s4, %s934
          %s936 = sshll.u32 %s925, 4
          %s937 = int_to_ptr.vmem [resolvable:$true] %s936
          %s938 = sshll.u32 %s935, 4
          %s939 = int_to_ptr.hbm [resolvable:$true] %s938
          %944 = dma.vmem_to_hbm [thread:$0]  %s937, 1024, %s939, %s922, 128, 128, 8
        $region40: #{unet_encoder_block.7} parent=35 // pred_fallthru
          _
      $region36: #{unet_encoder_block.7} parent=5 // pred_fallthru
        _
      %p945 = scmp.le.s32.totalorder 2, %s13
      // Predicated region
      $region41: #{unet_encoder_block.7} parent=5 // pred_check
        %p946 = pneg %p945
      $region42: #{unet_encoder_block.7} parent=5 // pred_check_branch
        %948 = sbr.rel (%p946) target = $region44
      $region43: #{unet_encoder_block.7} parent=5 // pred_region
        %s949 = ssub.s32 %s13, 2
        // Predicated region
        $region45: #{unet_encoder_block.7} parent=43 // pred_check
          %p950 = pneg %p158
        $region46: #{unet_encoder_block.7} parent=43 // pred_check_branch
          %952 = sbr.rel (%p950) target = $region48
        $region47: #{unet_encoder_block.7} parent=43 // pred_region
          %s953 = sand.u32 %s143, 1
          %s954 = scalar_lea.sflag [#allocation3], %s953
          %s955 = sand.u32 %s143, 1
          %s956 = smul.addr %s955, 64
          %s957 = scalar_lea.vmem [#allocation2], %s956
          %959 = dma.done %s954, 1024
        $region48: #{unet_encoder_block.7} parent=43 // pred_fallthru
          _
      $region44: #{unet_encoder_block.7} parent=5 // pred_fallthru
        _
    $region6: #{unet_encoder_block.7} parent=1 // loop_footer
      %s17 = sadd.s32 1, %s13
    $region7: #{unet_encoder_block.7} parent=1 // loop_footer_branch
      %12 = sbr.rel target = $region3
    $region8: #{unet_encoder_block.7} parent=1 // loop_exit
      _
    %960 = vsyncpa [#allocation3], 1
    %s961 = scalar_lea.sflag [#allocation3], 1
    %962 = vsyncpa %s961, 1

// kernel: unet_encoder_block.5
$region0: #{unet_encoder_block.5}
  #allocation0 [shape = 'u32[]', space=smem, size = 0x4, offset = 0x4, fixed_abs, tag = 'smem constant byte address 0x4 - core index']
  #allocation1 [shape = 'u32[72,128]{1,0:T(1,128)}', space=vmem, size = 0x9000, scoped, tag = 'internal scratch']
  %s0 = inlined_call_operand.vmem [shape: bf16[2,16,16,32], index: 0, kind: input, shape index: {}, may-alias: {0,1,2}]
  %s1 = inlined_call_operand.vmem [shape: bf16[2,16,16,32], index: 1, kind: input, shape index: {}, may-alias: {0,1,2}]
  %s2 = inlined_call_operand.vmem [shape: bf16[2,16,16,32], index: 2, kind: input, shape index: {}, may-alias: {0,1,2}]
  %s3 = inlined_call_operand.vmem [shape: f32[1,1,32], index: 3, kind: input, shape index: {}]
  %s4 = inlined_call_operand.vmem [shape: f32[1,1,32], index: 4, kind: input, shape index: {}]
  %s5 = inlined_call_operand.vmem [shape: bf16[3,3,32], index: 5, kind: input, shape index: {}]
  %s6 = inlined_call_operand.vmem [shape: bf16[32,32], index: 6, kind: input, shape index: {}]
  %s7 = inlined_call_operand.vmem [shape: f32[1,32], index: 7, kind: input, shape index: {}]
  %s8 = inlined_call_operand.vmem [shape: bf16[3,3,32], index: 8, kind: input, shape index: {}]
  %s9 = inlined_call_operand.vmem [shape: bf16[32,32], index: 9, kind: input, shape index: {}]
  %s10 = inlined_call_operand.vmem [shape: f32[1,32], index: 10, kind: input, shape index: {}]
  %s11 = inlined_call_operand.vmem [shape: bf16[2,16,16,32], index: 11, kind: output, shape index: {0}]
  %s12 = inlined_call_operand.vmem [shape: f32[2,2,1,32], index: 12, kind: output, shape index: {1}]
  %13 = xla_tuple %s11, %s12
  %s14 = sld [smem:[#allocation0]]
  $region85: #{unet_encoder_block.5} parent=0
    _
  %s16 = ssub.s32 1, %s14
  %s17 = scalar_select 0, %s16, %s14
  loop: start=0, step=1, limit=6
  $region2: #{unet_encoder_block.5} parent=0 // loop_pre_header
    _
  $region3: #{unet_encoder_block.5} parent=0 // loop_header
    %s19 = sphi 0, %s23
    %p20 = scmp.ge.s32.totalorder %s19, 6
    %s26 = sphi 0, %s38
    %s27 = sphi 0, %s34
    %s28 = sphi 0, %s26
    %s29 = sphi 0, %s27
    %s30 = sphi 0, %s28
    %s31 = sphi 0, %s29
    %s43 = sphi 0, %s45
    %s46 = sphi 0, %s43
    %s47 = sphi 0, %s46
    %s63 = sphi 0, %s47
    %s79 = sphi 0, %s81
    %s82 = sphi 0, %s79
    %s83 = sphi 0, %s82
    %s99 = sphi 0, %s83
    %s115 = sphi 0, %s117
    %s118 = sphi 0, %s115
    %s119 = sphi 0, %s118
    %s135 = sphi 0, %s119
    %s139 = sphi 0, %s139
    %s141 = sphi 0, %s139
    %s142 = sphi 0, %s141
    %s156 = sphi 0, %s142
    %s160 = sphi 0, %s160
    %s162 = sphi 0, %s160
    %s163 = sphi 0, %s162
    %s177 = sphi 0, %s163
    %s181 = sphi 0, %s181
    %s183 = sphi 0, %s181
    %s184 = sphi 0, %s183
    %s198 = sphi 0, %s184
    %s202 = sphi 0, %s202
    %s204 = sphi 0, %s202
    %s205 = sphi 0, %s204
    %s219 = sphi 0, %s205
    %s223 = sphi 0, %s223
    %s225 = sphi 0, %s223
    %s226 = sphi 0, %s225
    %s240 = sphi 0, %s226
    %s244 = sphi 0, %s244
    %s246 = sphi 0, %s244
    %s247 = sphi 0, %s246
    %s261 = sphi 0, %s247
    %s265 = sphi 0, %s265
    %s267 = sphi 0, %s265
    %s268 = sphi 0, %s267
    %s282 = sphi 0, %s268
    %s286 = sphi 0, %s286
    %s288 = sphi 0, %s286
    %s289 = sphi 0, %s288
    %s303 = sphi 0, %s289
    %s311 = sphi 0, %s313
    %s314 = sphi 0, %s311
    %s315 = sphi 0, %s314
    %s331 = sphi 0, %s315
    %s339 = sphi 0, %s341
    %s342 = sphi 0, %s339
    %s343 = sphi 0, %s342
    %s359 = sphi 0, %s343
  $region4: #{unet_encoder_block.5} parent=0 // loop_header_branch
    %22 = sbr.rel (%p20) target = $region8
  $region5: #{unet_encoder_block.5} parent=0 // loop_body
    %s24 = ssub.s32 %s19, 1
    %s25 = ssub.s32 %s19, 2
    %s32 = sadd.s32 1, %s27
    %p33 = scmp.ge.s32.totalorder %s32, 2
    %s34 = scalar_select %p33, 0, %s32
    %s35 = sadd.s32 1, %s26
    %s36 = scalar_select %p33, %s35, %s26
    %p37 = scmp.ge.s32.totalorder %s36, 2
    %s38 = scalar_select %p37, 0, %s36
    %s39 = ssub.s32 %s26, %s38
    %s40 = ssub.s32 %s27, %s34
    %s41 = sor.u32 %s39, %s40
    %p42 = scmp.eq.s32.totalorder %s41, 0
    %s44 = sadd.s32 %s43, 1
    %s45 = scalar_select %p42, %s43, %s44
    %p48 = pneg %p42
    %p49 = scmp.eq.s32.totalorder %s19, 3
    %p50 = por %p48, %p49
    %p51 = scmp.ne.s32.totalorder %s43, %s46
    %p52 = scmp.eq.s32.totalorder %s19, 0
    %p53 = por %p51, %p52
    %p54 = scmp.ne.s32.totalorder %s43, %s46
    %p55 = scmp.eq.s32.totalorder %s24, 3
    %p56 = por %p54, %p55
    %p57 = scmp.ne.s32.totalorder %s46, %s47
    %p58 = scmp.eq.s32.totalorder %s24, 0
    %p59 = por %p57, %p58
    %p60 = scmp.ne.s32.totalorder %s46, %s47
    %p61 = scmp.eq.s32.totalorder %s25, 3
    %p62 = por %p60, %p61
    %p64 = scmp.ne.s32.totalorder %s47, %s63
    %p65 = scmp.eq.s32.totalorder %s25, 0
    %p66 = por %p64, %p65
    %s67 = smul.u32 %s27, 4
    %s68 = ssub.s32 %s67, 1
    %p69 = scmp.gt.s32.totalorder %s68, 0
    %s70 = scalar_select %p69, %s68, 0
    %s71 = smul.u32 %s34, 4
    %s72 = ssub.s32 %s71, 1
    %p73 = scmp.gt.s32.totalorder %s72, 0
    %s74 = scalar_select %p73, %s72, 0
    %s75 = ssub.s32 %s26, %s38
    %s76 = ssub.s32 %s70, %s74
    %s77 = sor.u32 %s75, %s76
    %p78 = scmp.eq.s32.totalorder %s77, 0
    %s80 = sadd.s32 %s79, 1
    %s81 = scalar_select %p78, %s79, %s80
    %p84 = pneg %p78
    %p85 = scmp.eq.s32.totalorder %s19, 3
    %p86 = por %p84, %p85
    %p87 = scmp.ne.s32.totalorder %s79, %s82
    %p88 = scmp.eq.s32.totalorder %s19, 0
    %p89 = por %p87, %p88
    %p90 = scmp.ne.s32.totalorder %s79, %s82
    %p91 = scmp.eq.s32.totalorder %s24, 3
    %p92 = por %p90, %p91
    %p93 = scmp.ne.s32.totalorder %s82, %s83
    %p94 = scmp.eq.s32.totalorder %s24, 0
    %p95 = por %p93, %p94
    %p96 = scmp.ne.s32.totalorder %s82, %s83
    %p97 = scmp.eq.s32.totalorder %s25, 3
    %p98 = por %p96, %p97
    %p100 = scmp.ne.s32.totalorder %s83, %s99
    %p101 = scmp.eq.s32.totalorder %s25, 0
    %p102 = por %p100, %p101
    %s103 = sadd.s32 %s27, 1
    %s104 = smul.u32 %s103, 4
    %p105 = scmp.lt.s32.totalorder %s104, 7
    %s106 = scalar_select %p105, %s104, 7
    %s107 = sadd.s32 %s34, 1
    %s108 = smul.u32 %s107, 4
    %p109 = scmp.lt.s32.totalorder %s108, 7
    %s110 = scalar_select %p109, %s108, 7
    %s111 = ssub.s32 %s26, %s38
    %s112 = ssub.s32 %s106, %s110
    %s113 = sor.u32 %s111, %s112
    %p114 = scmp.eq.s32.totalorder %s113, 0
    %s116 = sadd.s32 %s115, 1
    %s117 = scalar_select %p114, %s115, %s116
    %p120 = pneg %p114
    %p121 = scmp.eq.s32.totalorder %s19, 3
    %p122 = por %p120, %p121
    %p123 = scmp.ne.s32.totalorder %s115, %s118
    %p124 = scmp.eq.s32.totalorder %s19, 0
    %p125 = por %p123, %p124
    %p126 = scmp.ne.s32.totalorder %s115, %s118
    %p127 = scmp.eq.s32.totalorder %s24, 3
    %p128 = por %p126, %p127
    %p129 = scmp.ne.s32.totalorder %s118, %s119
    %p130 = scmp.eq.s32.totalorder %s24, 0
    %p131 = por %p129, %p130
    %p132 = scmp.ne.s32.totalorder %s118, %s119
    %p133 = scmp.eq.s32.totalorder %s25, 3
    %p134 = por %p132, %p133
    %p136 = scmp.ne.s32.totalorder %s119, %s135
    %p137 = scmp.eq.s32.totalorder %s25, 0
    %p138 = por %p136, %p137
    %s140 = sadd.s32 %s139, 1
    %p143 = scmp.eq.s32.totalorder %s19, 3
    %p144 = scmp.ne.s32.totalorder %s139, %s141
    %p145 = scmp.eq.s32.totalorder %s19, 0
    %p146 = por %p144, %p145
    %p147 = scmp.ne.s32.totalorder %s139, %s141
    %p148 = scmp.eq.s32.totalorder %s24, 3
    %p149 = por %p147, %p148
    %p150 = scmp.ne.s32.totalorder %s141, %s142
    %p151 = scmp.eq.s32.totalorder %s24, 0
    %p152 = por %p150, %p151
    %p153 = scmp.ne.s32.totalorder %s141, %s142
    %p154 = scmp.eq.s32.totalorder %s25, 3
    %p155 = por %p153, %p154
    %p157 = scmp.ne.s32.totalorder %s142, %s156
    %p158 = scmp.eq.s32.totalorder %s25, 0
    %p159 = por %p157, %p158
    %s161 = sadd.s32 %s160, 1
    %p164 = scmp.eq.s32.totalorder %s19, 3
    %p165 = scmp.ne.s32.totalorder %s160, %s162
    %p166 = scmp.eq.s32.totalorder %s19, 0
    %p167 = por %p165, %p166
    %p168 = scmp.ne.s32.totalorder %s160, %s162
    %p169 = scmp.eq.s32.totalorder %s24, 3
    %p170 = por %p168, %p169
    %p171 = scmp.ne.s32.totalorder %s162, %s163
    %p172 = scmp.eq.s32.totalorder %s24, 0
    %p173 = por %p171, %p172
    %p174 = scmp.ne.s32.totalorder %s162, %s163
    %p175 = scmp.eq.s32.totalorder %s25, 3
    %p176 = por %p174, %p175
    %p178 = scmp.ne.s32.totalorder %s163, %s177
    %p179 = scmp.eq.s32.totalorder %s25, 0
    %p180 = por %p178, %p179
    %s182 = sadd.s32 %s181, 1
    %p185 = scmp.eq.s32.totalorder %s19, 3
    %p186 = scmp.ne.s32.totalorder %s181, %s183
    %p187 = scmp.eq.s32.totalorder %s19, 0
    %p188 = por %p186, %p187
    %p189 = scmp.ne.s32.totalorder %s181, %s183
    %p190 = scmp.eq.s32.totalorder %s24, 3
    %p191 = por %p189, %p190
    %p192 = scmp.ne.s32.totalorder %s183, %s184
    %p193 = scmp.eq.s32.totalorder %s24, 0
    %p194 = por %p192, %p193
    %p195 = scmp.ne.s32.totalorder %s183, %s184
    %p196 = scmp.eq.s32.totalorder %s25, 3
    %p197 = por %p195, %p196
    %p199 = scmp.ne.s32.totalorder %s184, %s198
    %p200 = scmp.eq.s32.totalorder %s25, 0
    %p201 = por %p199, %p200
    %s203 = sadd.s32 %s202, 1
    %p206 = scmp.eq.s32.totalorder %s19, 3
    %p207 = scmp.ne.s32.totalorder %s202, %s204
    %p208 = scmp.eq.s32.totalorder %s19, 0
    %p209 = por %p207, %p208
    %p210 = scmp.ne.s32.totalorder %s202, %s204
    %p211 = scmp.eq.s32.totalorder %s24, 3
    %p212 = por %p210, %p211
    %p213 = scmp.ne.s32.totalorder %s204, %s205
    %p214 = scmp.eq.s32.totalorder %s24, 0
    %p215 = por %p213, %p214
    %p216 = scmp.ne.s32.totalorder %s204, %s205
    %p217 = scmp.eq.s32.totalorder %s25, 3
    %p218 = por %p216, %p217
    %p220 = scmp.ne.s32.totalorder %s205, %s219
    %p221 = scmp.eq.s32.totalorder %s25, 0
    %p222 = por %p220, %p221
    %s224 = sadd.s32 %s223, 1
    %p227 = scmp.eq.s32.totalorder %s19, 3
    %p228 = scmp.ne.s32.totalorder %s223, %s225
    %p229 = scmp.eq.s32.totalorder %s19, 0
    %p230 = por %p228, %p229
    %p231 = scmp.ne.s32.totalorder %s223, %s225
    %p232 = scmp.eq.s32.totalorder %s24, 3
    %p233 = por %p231, %p232
    %p234 = scmp.ne.s32.totalorder %s225, %s226
    %p235 = scmp.eq.s32.totalorder %s24, 0
    %p236 = por %p234, %p235
    %p237 = scmp.ne.s32.totalorder %s225, %s226
    %p238 = scmp.eq.s32.totalorder %s25, 3
    %p239 = por %p237, %p238
    %p241 = scmp.ne.s32.totalorder %s226, %s240
    %p242 = scmp.eq.s32.totalorder %s25, 0
    %p243 = por %p241, %p242
    %s245 = sadd.s32 %s244, 1
    %p248 = scmp.eq.s32.totalorder %s19, 3
    %p249 = scmp.ne.s32.totalorder %s244, %s246
    %p250 = scmp.eq.s32.totalorder %s19, 0
    %p251 = por %p249, %p250
    %p252 = scmp.ne.s32.totalorder %s244, %s246
    %p253 = scmp.eq.s32.totalorder %s24, 3
    %p254 = por %p252, %p253
    %p255 = scmp.ne.s32.totalorder %s246, %s247
    %p256 = scmp.eq.s32.totalorder %s24, 0
    %p257 = por %p255, %p256
    %p258 = scmp.ne.s32.totalorder %s246, %s247
    %p259 = scmp.eq.s32.totalorder %s25, 3
    %p260 = por %p258, %p259
    %p262 = scmp.ne.s32.totalorder %s247, %s261
    %p263 = scmp.eq.s32.totalorder %s25, 0
    %p264 = por %p262, %p263
    %s266 = sadd.s32 %s265, 1
    %p269 = scmp.eq.s32.totalorder %s19, 3
    %p270 = scmp.ne.s32.totalorder %s265, %s267
    %p271 = scmp.eq.s32.totalorder %s19, 0
    %p272 = por %p270, %p271
    %p273 = scmp.ne.s32.totalorder %s265, %s267
    %p274 = scmp.eq.s32.totalorder %s24, 3
    %p275 = por %p273, %p274
    %p276 = scmp.ne.s32.totalorder %s267, %s268
    %p277 = scmp.eq.s32.totalorder %s24, 0
    %p278 = por %p276, %p277
    %p279 = scmp.ne.s32.totalorder %s267, %s268
    %p280 = scmp.eq.s32.totalorder %s25, 3
    %p281 = por %p279, %p280
    %p283 = scmp.ne.s32.totalorder %s268, %s282
    %p284 = scmp.eq.s32.totalorder %s25, 0
    %p285 = por %p283, %p284
    %s287 = sadd.s32 %s286, 1
    %p290 = scmp.eq.s32.totalorder %s19, 3
    %p291 = scmp.ne.s32.totalorder %s286, %s288
    %p292 = scmp.eq.s32.totalorder %s19, 0
    %p293 = por %p291, %p292
    %p294 = scmp.ne.s32.totalorder %s286, %s288
    %p295 = scmp.eq.s32.totalorder %s24, 3
    %p296 = por %p294, %p295
    %p297 = scmp.ne.s32.totalorder %s288, %s289
    %p298 = scmp.eq.s32.totalorder %s24, 0
    %p299 = por %p297, %p298
    %p300 = scmp.ne.s32.totalorder %s288, %s289
    %p301 = scmp.eq.s32.totalorder %s25, 3
    %p302 = por %p300, %p301
    %p304 = scmp.ne.s32.totalorder %s289, %s303
    %p305 = scmp.eq.s32.totalorder %s25, 0
    %p306 = por %p304, %p305
    %s307 = ssub.s32 %s26, %s38
    %s308 = ssub.s32 %s27, %s34
    %s309 = sor.u32 %s307, %s308
    %p310 = scmp.eq.s32.totalorder %s309, 0
    %s312 = sadd.s32 %s311, 1
    %s313 = scalar_select %p310, %s311, %s312
    %p316 = pneg %p310
    %p317 = scmp.eq.s32.totalorder %s19, 3
    %p318 = por %p316, %p317
    %p319 = scmp.ne.s32.totalorder %s311, %s314
    %p320 = scmp.eq.s32.totalorder %s19, 0
    %p321 = por %p319, %p320
    %p322 = scmp.ne.s32.totalorder %s311, %s314
    %p323 = scmp.eq.s32.totalorder %s24, 3
    %p324 = por %p322, %p323
    %p325 = scmp.ne.s32.totalorder %s314, %s315
    %p326 = scmp.eq.s32.totalorder %s24, 0
    %p327 = por %p325, %p326
    %p328 = scmp.ne.s32.totalorder %s314, %s315
    %p329 = scmp.eq.s32.totalorder %s25, 3
    %p330 = por %p328, %p329
    %p332 = scmp.ne.s32.totalorder %s315, %s331
    %p333 = scmp.eq.s32.totalorder %s25, 0
    %p334 = por %p332, %p333
    %s335 = ssub.s32 %s26, %s38
    %s336 = ssub.s32 %s27, %s34
    %s337 = sor.u32 %s335, %s336
    %p338 = scmp.eq.s32.totalorder %s337, 0
    %s340 = sadd.s32 %s339, 1
    %s341 = scalar_select %p338, %s339, %s340
    %p344 = pneg %p338
    %p345 = scmp.eq.s32.totalorder %s19, 3
    %p346 = por %p344, %p345
    %p347 = scmp.ne.s32.totalorder %s339, %s342
    %p348 = scmp.eq.s32.totalorder %s19, 0
    %p349 = por %p347, %p348
    %p350 = scmp.ne.s32.totalorder %s339, %s342
    %p351 = scmp.eq.s32.totalorder %s24, 3
    %p352 = por %p350, %p351
    %p353 = scmp.ne.s32.totalorder %s342, %s343
    %p354 = scmp.eq.s32.totalorder %s24, 0
    %p355 = por %p353, %p354
    %p356 = scmp.ne.s32.totalorder %s342, %s343
    %p357 = scmp.eq.s32.totalorder %s25, 3
    %p358 = por %p356, %p357
    %p360 = scmp.ne.s32.totalorder %s343, %s359
    %p361 = scmp.eq.s32.totalorder %s25, 0
    %p362 = por %p360, %p361
    %p363 = scmp.le.s32.totalorder 1, %s19
    %p364 = scmp.lt.s32.totalorder %s19, 5
    %p365 = pnand %p363, %p364
    %p366 = pneg %p365
    // Predicated region
    $region9: #{unet_encoder_block.5} parent=5 // pred_check
      _
    $region10: #{unet_encoder_block.5} parent=5 // pred_check_branch
      %368 = sbr.rel (%p365) target = $region12
    $region11: #{unet_encoder_block.5} parent=5 // pred_region
      %s369 = ssub.s32 %s19, 1
      // Predicated region
      $region13: #{unet_encoder_block.5} parent=11 // pred_check
        %p370 = pneg %p152
      $region14: #{unet_encoder_block.5} parent=11 // pred_check_branch
        %372 = sbr.rel (%p370) target = $region16
      $region15: #{unet_encoder_block.5} parent=11 // pred_region
        _
      $region16: #{unet_encoder_block.5} parent=11 // pred_fallthru
        _
      // Predicated region
      $region17: #{unet_encoder_block.5} parent=11 // pred_check
        %p373 = pneg %p173
      $region18: #{unet_encoder_block.5} parent=11 // pred_check_branch
        %375 = sbr.rel (%p373) target = $region20
      $region19: #{unet_encoder_block.5} parent=11 // pred_region
        _
      $region20: #{unet_encoder_block.5} parent=11 // pred_fallthru
        _
      // Predicated region
      $region21: #{unet_encoder_block.5} parent=11 // pred_check
        %p376 = pneg %p194
      $region22: #{unet_encoder_block.5} parent=11 // pred_check_branch
        %378 = sbr.rel (%p376) target = $region24
      $region23: #{unet_encoder_block.5} parent=11 // pred_region
        _
      $region24: #{unet_encoder_block.5} parent=11 // pred_fallthru
        _
      // Predicated region
      $region25: #{unet_encoder_block.5} parent=11 // pred_check
        %p379 = pneg %p215
      $region26: #{unet_encoder_block.5} parent=11 // pred_check_branch
        %381 = sbr.rel (%p379) target = $region28
      $region27: #{unet_encoder_block.5} parent=11 // pred_region
        _
      $region28: #{unet_encoder_block.5} parent=11 // pred_fallthru
        _
      // Predicated region
      $region29: #{unet_encoder_block.5} parent=11 // pred_check
        %p382 = pneg %p236
      $region30: #{unet_encoder_block.5} parent=11 // pred_check_branch
        %384 = sbr.rel (%p382) target = $region32
      $region31: #{unet_encoder_block.5} parent=11 // pred_region
        _
      $region32: #{unet_encoder_block.5} parent=11 // pred_fallthru
        _
      // Predicated region
      $region33: #{unet_encoder_block.5} parent=11 // pred_check
        %p385 = pneg %p257
      $region34: #{unet_encoder_block.5} parent=11 // pred_check_branch
        %387 = sbr.rel (%p385) target = $region36
      $region35: #{unet_encoder_block.5} parent=11 // pred_region
        _
      $region36: #{unet_encoder_block.5} parent=11 // pred_fallthru
        _
      // Predicated region
      $region37: #{unet_encoder_block.5} parent=11 // pred_check
        %p388 = pneg %p278
      $region38: #{unet_encoder_block.5} parent=11 // pred_check_branch
        %390 = sbr.rel (%p388) target = $region40
      $region39: #{unet_encoder_block.5} parent=11 // pred_region
        _
      $region40: #{unet_encoder_block.5} parent=11 // pred_fallthru
        _
      // Predicated region
      $region41: #{unet_encoder_block.5} parent=11 // pred_check
        %p391 = pneg %p299
      $region42: #{unet_encoder_block.5} parent=11 // pred_check_branch
        %393 = sbr.rel (%p391) target = $region44
      $region43: #{unet_encoder_block.5} parent=11 // pred_region
        _
      $region44: #{unet_encoder_block.5} parent=11 // pred_fallthru
        _
    $region12: #{unet_encoder_block.5} parent=5 // pred_fallthru
      _
    %p394 = scmp.lt.s32.totalorder %s19, 4
    // Predicated region
    $region45: #{unet_encoder_block.5} parent=5 // pred_check
      %p395 = pneg %p394
    $region46: #{unet_encoder_block.5} parent=5 // pred_check_branch
      %397 = sbr.rel (%p395) target = $region48
    $region47: #{unet_encoder_block.5} parent=5 // pred_region
      // Predicated region
      $region49: #{unet_encoder_block.5} parent=47 // pred_check
        %p398 = pneg %p53
      $region50: #{unet_encoder_block.5} parent=47 // pred_check_branch
        %400 = sbr.rel (%p398) target = $region52
      $region51: #{unet_encoder_block.5} parent=47 // pred_region
        %s401 = smul.u32 8, %s27
        %p402 = scmp.lt.s32.totalorder %s26, 1
        %s403 = scalar_select %p402, %s26, 1
        %p404 = scmp.lt.s32.totalorder %s401, 15
        %s405 = scalar_select %p404, %s401, 15
        %s406 = smul.addr %s405, 2
        %s407 = smul.addr %s403, 32
        %s408 = sadd.s32 %s406, %s407
        %s409 = smul.addr %s408, 4
        %s410 = scalar_lea.vmem %s0, %s409
        %s411 = smul.u32 8, %s27
      $region52: #{unet_encoder_block.5} parent=47 // pred_fallthru
        _
      // Predicated region
      $region53: #{unet_encoder_block.5} parent=47 // pred_check
        %p412 = pneg %p89
      $region54: #{unet_encoder_block.5} parent=47 // pred_check_branch
        %414 = sbr.rel (%p412) target = $region56
      $region55: #{unet_encoder_block.5} parent=47 // pred_region
        %s415 = smul.u32 %s27, 4
        %s416 = ssub.s32 %s415, 1
        %p417 = scmp.gt.s32.totalorder %s416, 0
        %s418 = scalar_select %p417, %s416, 0
        %s419 = smul.u32 2, %s418
        %p420 = scmp.lt.s32.totalorder %s26, 1
        %s421 = scalar_select %p420, %s26, 1
        %p422 = scmp.lt.s32.totalorder %s419, 15
        %s423 = scalar_select %p422, %s419, 15
        %s424 = smul.addr %s423, 2
        %s425 = smul.addr %s421, 32
        %s426 = sadd.s32 %s424, %s425
        %s427 = smul.addr %s426, 4
        %s428 = scalar_lea.vmem %s1, %s427
        %s429 = smul.u32 %s27, 4
        %s430 = ssub.s32 %s429, 1
        %p431 = scmp.gt.s32.totalorder %s430, 0
        %s432 = scalar_select %p431, %s430, 0
        %s433 = smul.u32 2, %s432
      $region56: #{unet_encoder_block.5} parent=47 // pred_fallthru
        _
      // Predicated region
      $region57: #{unet_encoder_block.5} parent=47 // pred_check
        %p434 = pneg %p125
      $region58: #{unet_encoder_block.5} parent=47 // pred_check_branch
        %436 = sbr.rel (%p434) target = $region60
      $region59: #{unet_encoder_block.5} parent=47 // pred_region
        %s437 = sadd.s32 %s27, 1
        %s438 = smul.u32 %s437, 4
        %p439 = scmp.lt.s32.totalorder %s438, 7
        %s440 = scalar_select %p439, %s438, 7
        %s441 = smul.u32 2, %s440
        %p442 = scmp.lt.s32.totalorder %s26, 1
        %s443 = scalar_select %p442, %s26, 1
        %p444 = scmp.lt.s32.totalorder %s441, 15
        %s445 = scalar_select %p444, %s441, 15
        %s446 = smul.addr %s445, 2
        %s447 = smul.addr %s443, 32
        %s448 = sadd.s32 %s446, %s447
        %s449 = smul.addr %s448, 4
        %s450 = scalar_lea.vmem %s2, %s449
        %s451 = sadd.s32 %s27, 1
        %s452 = smul.u32 %s451, 4
        %p453 = scmp.lt.s32.totalorder %s452, 7
        %s454 = scalar_select %p453, %s452, 7
        %s455 = smul.u32 2, %s454
      $region60: #{unet_encoder_block.5} parent=47 // pred_fallthru
        _
    $region48: #{unet_encoder_block.5} parent=5 // pred_fallthru
      _
    %p456 = scmp.le.s32.totalorder 1, %s19
    %p457 = scmp.lt.s32.totalorder %s19, 5
    %p458 = pnand %p456, %p457
    %p459 = pneg %p458
    // Predicated region
    $region61: #{unet_encoder_block.5} parent=5 // pred_check
      _
    $region62: #{unet_encoder_block.5} parent=5 // pred_check_branch
      %461 = sbr.rel (%p458) target = $region64
    $region63: #{unet_encoder_block.5} parent=5 // pred_region
      %s462 = ssub.s32 %s19, 1
      %s463 = smul.u32 8, %s29
      %p464 = scmp.lt.s32.totalorder %s28, 1
      %s465 = scalar_select %p464, %s28, 1
      %p466 = scmp.lt.s32.totalorder %s463, 15
      %s467 = scalar_select %p466, %s463, 15
      %s468 = smul.addr %s467, 2
      %s469 = smul.addr %s465, 32
      %s470 = sadd.s32 %s468, %s469
      %s471 = smul.addr %s470, 4
      %s472 = scalar_lea.vmem %s0, %s471
      %p473 = pneg %p59
      %p474 = pneg %p56
      %s475 = smul.u32 %s29, 4
      %s476 = ssub.s32 %s475, 1
      %p477 = scmp.gt.s32.totalorder %s476, 0
      %s478 = scalar_select %p477, %s476, 0
      %s479 = smul.u32 2, %s478
      %p480 = scmp.lt.s32.totalorder %s28, 1
      %s481 = scalar_select %p480, %s28, 1
      %p482 = scmp.lt.s32.totalorder %s479, 15
      %s483 = scalar_select %p482, %s479, 15
      %s484 = smul.addr %s483, 2
      %s485 = smul.addr %s481, 32
      %s486 = sadd.s32 %s484, %s485
      %s487 = smul.addr %s486, 4
      %s488 = scalar_lea.vmem %s1, %s487
      %p489 = pneg %p95
      %p490 = pneg %p92
      %s491 = sadd.s32 %s29, 1
      %s492 = smul.u32 %s491, 4
      %p493 = scmp.lt.s32.totalorder %s492, 7
      %s494 = scalar_select %p493, %s492, 7
      %s495 = smul.u32 2, %s494
      %p496 = scmp.lt.s32.totalorder %s28, 1
      %s497 = scalar_select %p496, %s28, 1
      %p498 = scmp.lt.s32.totalorder %s495, 15
      %s499 = scalar_select %p498, %s495, 15
      %s500 = smul.addr %s499, 2
      %s501 = smul.addr %s497, 32
      %s502 = sadd.s32 %s500, %s501
      %s503 = smul.addr %s502, 4
      %s504 = scalar_lea.vmem %s2, %s503
      %p505 = pneg %p131
      %p506 = pneg %p128
      %p507 = pneg %p152
      %p508 = pneg %p149
      %p509 = pneg %p173
      %p510 = pneg %p170
      %p511 = pneg %p194
      %p512 = pneg %p191
      %p513 = pneg %p215
      %p514 = pneg %p212
      %p515 = pneg %p236
      %p516 = pneg %p233
      %p517 = pneg %p257
      %p518 = pneg %p254
      %p519 = pneg %p278
      %p520 = pneg %p275
      %p521 = pneg %p299
      %p522 = pneg %p296
      %p523 = pneg %p327
      %p524 = pneg %p324
      %s525 = smul.u32 8, %s29
      %p526 = scmp.lt.s32.totalorder %s28, 1
      %s527 = scalar_select %p526, %s28, 1
      %p528 = scmp.lt.s32.totalorder %s525, 15
      %s529 = scalar_select %p528, %s525, 15
      %s530 = smul.addr %s529, 2
      %s531 = smul.addr %s527, 32
      %s532 = sadd.s32 %s530, %s531
      %s533 = smul.addr %s532, 4
      %s534 = scalar_lea.vmem %s11, %s533
      %p535 = pneg %p355
      %p536 = pneg %p352
      %p537 = scmp.lt.s32.totalorder %s28, 1
      %s538 = scalar_select %p537, %s28, 1
      %p539 = scmp.lt.s32.totalorder %s29, 1
      %s540 = scalar_select %p539, %s29, 1
      %s541 = smul.addr %s538, 2
      %s542 = sadd.s32 %s540, %s541
      %s543 = scalar_lea.vmem %s12, %s542
      %s544 = smul.u32 8, %s29
      %p545 = scmp.lt.s32.totalorder %s28, 1
      %s546 = scalar_select %p545, %s28, 1
      %p547 = scmp.lt.s32.totalorder %s544, 15
      %s548 = scalar_select %p547, %s544, 15
      %s549 = smul.addr %s548, 2
      %s550 = smul.addr %s546, 32
      %s551 = sadd.s32 %s549, %s550
      %s552 = smul.addr %s551, 4
      %s553 = scalar_lea.vmem %s0, %s552
      %s554 = smul.u32 8, %s29
      %s555 = smul.u32 %s29, 4
      %s556 = ssub.s32 %s555, 1
      %p557 = scmp.gt.s32.totalorder %s556, 0
      %s558 = scalar_select %p557, %s556, 0
      %s559 = smul.u32 2, %s558
      %p560 = scmp.lt.s32.totalorder %s28, 1
      %s561 = scalar_select %p560, %s28, 1
      %p562 = scmp.lt.s32.totalorder %s559, 15
      %s563 = scalar_select %p562, %s559, 15
      %s564 = smul.addr %s563, 2
      %s565 = smul.addr %s561, 32
      %s566 = sadd.s32 %s564, %s565
      %s567 = smul.addr %s566, 4
      %s568 = scalar_lea.vmem %s1, %s567
      %s569 = smul.u32 %s29, 4
      %s570 = ssub.s32 %s569, 1
      %p571 = scmp.gt.s32.totalorder %s570, 0
      %s572 = scalar_select %p571, %s570, 0
      %s573 = smul.u32 2, %s572
      %s574 = sadd.s32 %s29, 1
      %s575 = smul.u32 %s574, 4
      %p576 = scmp.lt.s32.totalorder %s575, 7
      %s577 = scalar_select %p576, %s575, 7
      %s578 = smul.u32 2, %s577
      %p579 = scmp.lt.s32.totalorder %s28, 1
      %s580 = scalar_select %p579, %s28, 1
      %p581 = scmp.lt.s32.totalorder %s578, 15
      %s582 = scalar_select %p581, %s578, 15
      %s583 = smul.addr %s582, 2
      %s584 = smul.addr %s580, 32
      %s585 = sadd.s32 %s583, %s584
      %s586 = smul.addr %s585, 4
      %s587 = scalar_lea.vmem %s2, %s586
      %s588 = sadd.s32 %s29, 1
      %s589 = smul.u32 %s588, 4
      %p590 = scmp.lt.s32.totalorder %s589, 7
      %s591 = scalar_select %p590, %s589, 7
      %s592 = smul.u32 2, %s591
      %s593 = smul.u32 8, %s29
      %p594 = scmp.lt.s32.totalorder %s28, 1
      %s595 = scalar_select %p594, %s28, 1
      %p596 = scmp.lt.s32.totalorder %s593, 15
      %s597 = scalar_select %p596, %s593, 15
      %s598 = smul.addr %s597, 2
      %s599 = smul.addr %s595, 32
      %s600 = sadd.s32 %s598, %s599
      %s601 = smul.addr %s600, 4
      %s602 = scalar_lea.vmem %s11, %s601
      %s603 = smul.u32 8, %s29
      %p604 = scmp.lt.s32.totalorder %s28, 1
      %s605 = scalar_select %p604, %s28, 1
      %p606 = scmp.lt.s32.totalorder %s29, 1
      %s607 = scalar_select %p606, %s29, 1
      %s608 = smul.addr %s605, 2
      %s609 = sadd.s32 %s607, %s608
      %s610 = scalar_lea.vmem %s12, %s609
      %p612 = scmp.gt.s32.totalorder %s29, 0
      %s613 = scalar_select %p612, 1, 0
      %s614 = scvt.s32.f32 %s613
      %p615 = scmp.lt.s32.totalorder %s29, 1
      %s616 = scalar_select %p615, 1, 0
      %s617 = scvt.s32.f32 %s616
      %v618 = vld [vmem:[%s3] sm:$0x1]
      %v619 = vld [vmem:[%s4] sm:$0x1]
      %v620 = vld [vmem:[%s568] sm:$0xf]
      %v621 = vld [vmem:[%s568 + $0x4] sm:$0xf]
      %v622 = vld [vmem:[%s568 + $0x8] sm:$0xf]
      %v623 = vld [vmem:[%s568 + $0xc] sm:$0xf]
      %v624 = vunpack.c.l.bf16 %v620
      %v625 = vunpack.c.l.bf16 %v621
      %v626 = vunpack.c.l.bf16 %v622
      %v627 = vunpack.c.l.bf16 %v623
      %vm628 = vcmask 261120
      %v629 = vsel %vm628, %v624, 0.0
      %630 = vadd.xlane.f32.xlu0 %v629
      %v631 = vpop.xlane.xlu0 %630
      %v632 = vsel %vm628, %v625, 0.0
      %633 = vadd.xlane.f32.xlu0 %v632
      %v634 = vpop.xlane.xlu0 %633
      %v635 = vsel %vm628, %v626, 0.0
      %636 = vadd.xlane.f32.xlu0 %v635
      %v637 = vpop.xlane.xlu0 %636
      %v638 = vsel %vm628, %v627, 0.0
      %639 = vadd.xlane.f32.xlu0 %v638
      %v640 = vpop.xlane.xlu0 %639
      %v641 = vrcp.pop 32.0
      %v642 = vmul.f32 32.0, %v641
      %v643 = vsub.f32 1.0, %v642
      %v644 = vmul.f32 %v641, %v643
      %v645 = vadd.f32 %v641, %v644
      %vm646 = vweird.f32 %v641
      %v647 = vsel %vm646, %v641, %v645
      %v648 = vmul.f32 %v631, %v647
      %v649 = vmul.f32 %v634, %v647
      %v650 = vmul.f32 %v637, %v647
      %v651 = vmul.f32 %v640, %v647
      %v652 = vsub.f32 %v624, %v648
      %v653 = vsub.f32 %v625, %v649
      %v654 = vsub.f32 %v626, %v650
      %v655 = vsub.f32 %v627, %v651
      %v656 = vmul.f32 %v652, %v652
      %v657 = vmul.f32 %v653, %v653
      %v658 = vmul.f32 %v654, %v654
      %v659 = vmul.f32 %v655, %v655
      %v660 = vsel %vm628, %v656, 0.0
      %661 = vadd.xlane.f32.xlu0 %v660
      %v662 = vpop.xlane.xlu0 %661
      %v663 = vsel %vm628, %v657, 0.0
      %664 = vadd.xlane.f32.xlu0 %v663
      %v665 = vpop.xlane.xlu0 %664
      %v666 = vsel %vm628, %v658, 0.0
      %667 = vadd.xlane.f32.xlu0 %v666
      %v668 = vpop.xlane.xlu0 %667
      %v669 = vsel %vm628, %v659, 0.0
      %670 = vadd.xlane.f32.xlu0 %v669
      %v671 = vpop.xlane.xlu0 %670
      %v672 = vmul.f32 %v662, %v647
      %v673 = vmul.f32 %v665, %v647
      %v674 = vmul.f32 %v668, %v647
      %v675 = vmul.f32 %v671, %v647
      %v676 = vadd.f32 %v672, 1e-05
      %v677 = vadd.f32 %v673, 1e-05
      %v678 = vadd.f32 %v674, 1e-05
      %v679 = vadd.f32 %v675, 1e-05
      %v680 = vrsqrt.pop %v676
      %v681 = vmul.f32 %v680, %v676
      %v682 = vmul.f32 %v681, %v680
      %v683 = vmul.f32 0.5, %v682
      %v684 = vsub.f32 1.5, %v683
      %v685 = vmul.f32 %v680, %v684
      %vm686 = vweird.f32 %v676
      %vm687 = vweird.f32 %v680
      %vm688 = vmor %vm686, %vm687
      %v689 = vsel %vm688, %v680, %v685
      %v690 = vrsqrt.pop %v677
      %v691 = vmul.f32 %v690, %v677
      %v692 = vmul.f32 %v691, %v690
      %v693 = vmul.f32 0.5, %v692
      %v694 = vsub.f32 1.5, %v693
      %v695 = vmul.f32 %v690, %v694
      %vm696 = vweird.f32 %v677
      %vm697 = vweird.f32 %v690
      %vm698 = vmor %vm696, %vm697
      %v699 = vsel %vm698, %v690, %v695
      %v700 = vrsqrt.pop %v678
      %v701 = vmul.f32 %v700, %v678
      %v702 = vmul.f32 %v701, %v700
      %v703 = vmul.f32 0.5, %v702
      %v704 = vsub.f32 1.5, %v703
      %v705 = vmul.f32 %v700, %v704
      %vm706 = vweird.f32 %v678
      %vm707 = vweird.f32 %v700
      %vm708 = vmor %vm706, %vm707
      %v709 = vsel %vm708, %v700, %v705
      %v710 = vrsqrt.pop %v679
      %v711 = vmul.f32 %v710, %v679
      %v712 = vmul.f32 %v711, %v710
      %v713 = vmul.f32 0.5, %v712
      %v714 = vsub.f32 1.5, %v713
      %v715 = vmul.f32 %v710, %v714
      %vm716 = vweird.f32 %v679
      %vm717 = vweird.f32 %v710
      %vm718 = vmor %vm716, %vm717
      %v719 = vsel %vm718, %v710, %v715
      %v720 = vmul.f32 %v652, %v689
      %v721 = vmul.f32 %v653, %v699
      %v722 = vmul.f32 %v654, %v709
      %v723 = vmul.f32 %v655, %v719
      %v725 = vperm.slane %v618, 0
      %v727 = vmul.f32 %v720, %v725
      %v728 = vmul.f32 %v721, %v725
      %v729 = vmul.f32 %v722, %v725
      %v730 = vmul.f32 %v723, %v725
      %v732 = vperm.slane %v619, 0
      %v734 = vadd.f32 %v727, %v732
      %v735 = vadd.f32 %v728, %v732
      %v736 = vadd.f32 %v729, %v732
      %v737 = vadd.f32 %v730, %v732
      %v738 = vstv %s614
      %v739 = vmul.f32 %v734, %v738
      %v740 = vmul.f32 %v735, %v738
      %v741 = vmul.f32 %v736, %v738
      %v742 = vmul.f32 %v737, %v738
      %v743 = vpack.c.bf16 %v739, %v739
      %v744 = vpack.c.bf16 %v740, %v740
      %v745 = vpack.c.bf16 %v741, %v741
      %v746 = vpack.c.bf16 %v742, %v742
      %v747 = vld [vmem:[%s553] sm:$0xf]
      %v748 = vld [vmem:[%s553 + $0x4] sm:$0xf]
      %v749 = vld [vmem:[%s553 + $0x8] sm:$0xf]
      %v750 = vld [vmem:[%s553 + $0xc] sm:$0xf]
      %v751 = vld [vmem:[%s553 + $0x10] sm:$0xf]
      %v752 = vld [vmem:[%s553 + $0x14] sm:$0xf]
      %v753 = vld [vmem:[%s553 + $0x18] sm:$0xf]
      %v754 = vld [vmem:[%s553 + $0x1c] sm:$0xf]
      %v755 = vld [vmem:[%s553 + $0x20] sm:$0xf]
      %v756 = vld [vmem:[%s553 + $0x24] sm:$0xf]
      %v757 = vld [vmem:[%s553 + $0x28] sm:$0xf]
      %v758 = vld [vmem:[%s553 + $0x2c] sm:$0xf]
      %v759 = vld [vmem:[%s553 + $0x30] sm:$0xf]
      %v760 = vld [vmem:[%s553 + $0x34] sm:$0xf]
      %v761 = vld [vmem:[%s553 + $0x38] sm:$0xf]
      %v762 = vld [vmem:[%s553 + $0x3c] sm:$0xf]
      %v763 = vunpack.c.l.bf16 %v747
      %v764 = vunpack.c.l.bf16 %v748
      %v765 = vunpack.c.l.bf16 %v749
      %v766 = vunpack.c.l.bf16 %v750
      %v767 = vunpack.c.l.bf16 %v751
      %v768 = vunpack.c.l.bf16 %v752
      %v769 = vunpack.c.l.bf16 %v753
      %v770 = vunpack.c.l.bf16 %v754
      %v771 = vunpack.c.l.bf16 %v755
      %v772 = vunpack.c.l.bf16 %v756
      %v773 = vunpack.c.l.bf16 %v757
      %v774 = vunpack.c.l.bf16 %v758
      %v775 = vunpack.c.l.bf16 %v759
      %v776 = vunpack.c.l.bf16 %v760
      %v777 = vunpack.c.l.bf16 %v761
      %v778 = vunpack.c.l.bf16 %v762
      %v779 = vsel %vm628, %v763, 0.0
      %780 = vadd.xlane.f32.xlu0 %v779
      %v781 = vpop.xlane.xlu0 %780
      %v782 = vsel %vm628, %v764, 0.0
      %783 = vadd.xlane.f32.xlu0 %v782
      %v784 = vpop.xlane.xlu0 %783
      %v785 = vsel %vm628, %v765, 0.0
      %786 = vadd.xlane.f32.xlu0 %v785
      %v787 = vpop.xlane.xlu0 %786
      %v788 = vsel %vm628, %v766, 0.0
      %789 = vadd.xlane.f32.xlu0 %v788
      %v790 = vpop.xlane.xlu0 %789
      %v791 = vsel %vm628, %v767, 0.0
      %792 = vadd.xlane.f32.xlu0 %v791
      %v793 = vpop.xlane.xlu0 %792
      %v794 = vsel %vm628, %v768, 0.0
      %795 = vadd.xlane.f32.xlu0 %v794
      %v796 = vpop.xlane.xlu0 %795
      %v797 = vsel %vm628, %v769, 0.0
      %798 = vadd.xlane.f32.xlu0 %v797
      %v799 = vpop.xlane.xlu0 %798
      %v800 = vsel %vm628, %v770, 0.0
      %801 = vadd.xlane.f32.xlu0 %v800
      %v802 = vpop.xlane.xlu0 %801
      %v803 = vsel %vm628, %v771, 0.0
      %804 = vadd.xlane.f32.xlu0 %v803
      %v805 = vpop.xlane.xlu0 %804
      %v806 = vsel %vm628, %v772, 0.0
      %807 = vadd.xlane.f32.xlu0 %v806
      %v808 = vpop.xlane.xlu0 %807
      %v809 = vsel %vm628, %v773, 0.0
      %810 = vadd.xlane.f32.xlu0 %v809
      %v811 = vpop.xlane.xlu0 %810
      %v812 = vsel %vm628, %v774, 0.0
      %813 = vadd.xlane.f32.xlu0 %v812
      %v814 = vpop.xlane.xlu0 %813
      %v815 = vsel %vm628, %v775, 0.0
      %816 = vadd.xlane.f32.xlu0 %v815
      %v817 = vpop.xlane.xlu0 %816
      %v818 = vsel %vm628, %v776, 0.0
      %819 = vadd.xlane.f32.xlu0 %v818
      %v820 = vpop.xlane.xlu0 %819
      %v821 = vsel %vm628, %v777, 0.0
      %822 = vadd.xlane.f32.xlu0 %v821
      %v823 = vpop.xlane.xlu0 %822
      %v824 = vsel %vm628, %v778, 0.0
      %825 = vadd.xlane.f32.xlu0 %v824
      %v826 = vpop.xlane.xlu0 %825
      %v827 = vmul.f32 %v781, %v647
      %v828 = vmul.f32 %v784, %v647
      %v829 = vmul.f32 %v787, %v647
      %v830 = vmul.f32 %v790, %v647
      %v831 = vmul.f32 %v793, %v647
      %v832 = vmul.f32 %v796, %v647
      %v833 = vmul.f32 %v799, %v647
      %v834 = vmul.f32 %v802, %v647
      %v835 = vmul.f32 %v805, %v647
      %v836 = vmul.f32 %v808, %v647
      %v837 = vmul.f32 %v811, %v647
      %v838 = vmul.f32 %v814, %v647
      %v839 = vmul.f32 %v817, %v647
      %v840 = vmul.f32 %v820, %v647
      %v841 = vmul.f32 %v823, %v647
      %v842 = vmul.f32 %v826, %v647
      %v843 = vsub.f32 %v763, %v827
      %v844 = vsub.f32 %v764, %v828
      %v845 = vsub.f32 %v765, %v829
      %v846 = vsub.f32 %v766, %v830
      %v847 = vsub.f32 %v767, %v831
      %v848 = vsub.f32 %v768, %v832
      %v849 = vsub.f32 %v769, %v833
      %v850 = vsub.f32 %v770, %v834
      %v851 = vsub.f32 %v771, %v835
      %v852 = vsub.f32 %v772, %v836
      %v853 = vsub.f32 %v773, %v837
      %v854 = vsub.f32 %v774, %v838
      %v855 = vsub.f32 %v775, %v839
      %v856 = vsub.f32 %v776, %v840
      %v857 = vsub.f32 %v777, %v841
      %v858 = vsub.f32 %v778, %v842
      %v859 = vmul.f32 %v843, %v843
      %v860 = vmul.f32 %v844, %v844
      %v861 = vmul.f32 %v845, %v845
      %v862 = vmul.f32 %v846, %v846
      %v863 = vmul.f32 %v847, %v847
      %v864 = vmul.f32 %v848, %v848
      %v865 = vmul.f32 %v849, %v849
      %v866 = vmul.f32 %v850, %v850
      %v867 = vmul.f32 %v851, %v851
      %v868 = vmul.f32 %v852, %v852
      %v869 = vmul.f32 %v853, %v853
      %v870 = vmul.f32 %v854, %v854
      %v871 = vmul.f32 %v855, %v855
      %v872 = vmul.f32 %v856, %v856
      %v873 = vmul.f32 %v857, %v857
      %v874 = vmul.f32 %v858, %v858
      %v875 = vsel %vm628, %v859, 0.0
      %876 = vadd.xlane.f32.xlu0 %v875
      %v877 = vpop.xlane.xlu0 %876
      %v878 = vsel %vm628, %v860, 0.0
      %879 = vadd.xlane.f32.xlu0 %v878
      %v880 = vpop.xlane.xlu0 %879
      %v881 = vsel %vm628, %v861, 0.0
      %882 = vadd.xlane.f32.xlu0 %v881
      %v883 = vpop.xlane.xlu0 %882
      %v884 = vsel %vm628, %v862, 0.0
      %885 = vadd.xlane.f32.xlu0 %v884
      %v886 = vpop.xlane.xlu0 %885
      %v887 = vsel %vm628, %v863, 0.0
      %888 = vadd.xlane.f32.xlu0 %v887
      %v889 = vpop.xlane.xlu0 %888
      %v890 = vsel %vm628, %v864, 0.0
      %891 = vadd.xlane.f32.xlu0 %v890
      %v892 = vpop.xlane.xlu0 %891
      %v893 = vsel %vm628, %v865, 0.0
      %894 = vadd.xlane.f32.xlu0 %v893
      %v895 = vpop.xlane.xlu0 %894
      %v896 = vsel %vm628, %v866, 0.0
      %897 = vadd.xlane.f32.xlu0 %v896
      %v898 = vpop.xlane.xlu0 %897
      %v899 = vsel %vm628, %v867, 0.0
      %900 = vadd.xlane.f32.xlu0 %v899
      %v901 = vpop.xlane.xlu0 %900
      %v902 = vsel %vm628, %v868, 0.0
      %903 = vadd.xlane.f32.xlu0 %v902
      %v904 = vpop.xlane.xlu0 %903
      %v905 = vsel %vm628, %v869, 0.0
      %906 = vadd.xlane.f32.xlu0 %v905
      %v907 = vpop.xlane.xlu0 %906
      %v908 = vsel %vm628, %v870, 0.0
      %909 = vadd.xlane.f32.xlu0 %v908
      %v910 = vpop.xlane.xlu0 %909
      %v911 = vsel %vm628, %v871, 0.0
      %912 = vadd.xlane.f32.xlu0 %v911
      %v913 = vpop.xlane.xlu0 %912
      %v914 = vsel %vm628, %v872, 0.0
      %915 = vadd.xlane.f32.xlu0 %v914
      %v916 = vpop.xlane.xlu0 %915
      %v917 = vsel %vm628, %v873, 0.0
      %918 = vadd.xlane.f32.xlu0 %v917
      %v919 = vpop.xlane.xlu0 %918
      %v920 = vsel %vm628, %v874, 0.0
      %921 = vadd.xlane.f32.xlu0 %v920
      %v922 = vpop.xlane.xlu0 %921
      %v923 = vmul.f32 %v877, %v647
      %v924 = vmul.f32 %v880, %v647
      %v925 = vmul.f32 %v883, %v647
      %v926 = vmul.f32 %v886, %v647
      %v927 = vmul.f32 %v889, %v647
      %v928 = vmul.f32 %v892, %v647
      %v929 = vmul.f32 %v895, %v647
      %v930 = vmul.f32 %v898, %v647
      %v931 = vmul.f32 %v901, %v647
      %v932 = vmul.f32 %v904, %v647
      %v933 = vmul.f32 %v907, %v647
      %v934 = vmul.f32 %v910, %v647
      %v935 = vmul.f32 %v913, %v647
      %v936 = vmul.f32 %v916, %v647
      %v937 = vmul.f32 %v919, %v647
      %v938 = vmul.f32 %v922, %v647
      %v939 = vadd.f32 %v923, 1e-05
      %v940 = vadd.f32 %v924, 1e-05
      %v941 = vadd.f32 %v925, 1e-05
      %v942 = vadd.f32 %v926, 1e-05
      %v943 = vadd.f32 %v927, 1e-05
      %v944 = vadd.f32 %v928, 1e-05
      %v945 = vadd.f32 %v929, 1e-05
      %v946 = vadd.f32 %v930, 1e-05
      %v947 = vadd.f32 %v931, 1e-05
      %v948 = vadd.f32 %v932, 1e-05
      %v949 = vadd.f32 %v933, 1e-05
      %v950 = vadd.f32 %v934, 1e-05
      %v951 = vadd.f32 %v935, 1e-05
      %v952 = vadd.f32 %v936, 1e-05
      %v953 = vadd.f32 %v937, 1e-05
      %v954 = vadd.f32 %v938, 1e-05
      %v955 = vrsqrt.pop %v939
      %v956 = vmul.f32 %v955, %v939
      %v957 = vmul.f32 %v956, %v955
      %v958 = vmul.f32 0.5, %v957
      %v959 = vsub.f32 1.5, %v958
      %v960 = vmul.f32 %v955, %v959
      %vm961 = vweird.f32 %v939
      %vm962 = vweird.f32 %v955
      %vm963 = vmor %vm961, %vm962
      %v964 = vsel %vm963, %v955, %v960
      %v965 = vrsqrt.pop %v940
      %v966 = vmul.f32 %v965, %v940
      %v967 = vmul.f32 %v966, %v965
      %v968 = vmul.f32 0.5, %v967
      %v969 = vsub.f32 1.5, %v968
      %v970 = vmul.f32 %v965, %v969
      %vm971 = vweird.f32 %v940
      %vm972 = vweird.f32 %v965
      %vm973 = vmor %vm971, %vm972
      %v974 = vsel %vm973, %v965, %v970
      %v975 = vrsqrt.pop %v941
      %v976 = vmul.f32 %v975, %v941
      %v977 = vmul.f32 %v976, %v975
      %v978 = vmul.f32 0.5, %v977
      %v979 = vsub.f32 1.5, %v978
      %v980 = vmul.f32 %v975, %v979
      %vm981 = vweird.f32 %v941
      %vm982 = vweird.f32 %v975
      %vm983 = vmor %vm981, %vm982
      %v984 = vsel %vm983, %v975, %v980
      %v985 = vrsqrt.pop %v942
      %v986 = vmul.f32 %v985, %v942
      %v987 = vmul.f32 %v986, %v985
      %v988 = vmul.f32 0.5, %v987
      %v989 = vsub.f32 1.5, %v988
      %v990 = vmul.f32 %v985, %v989
      %vm991 = vweird.f32 %v942
      %vm992 = vweird.f32 %v985
      %vm993 = vmor %vm991, %vm992
      %v994 = vsel %vm993, %v985, %v990
      %v995 = vrsqrt.pop %v943
      %v996 = vmul.f32 %v995, %v943
      %v997 = vmul.f32 %v996, %v995
      %v998 = vmul.f32 0.5, %v997
      %v999 = vsub.f32 1.5, %v998
      %v1000 = vmul.f32 %v995, %v999
      %vm1001 = vweird.f32 %v943
      %vm1002 = vweird.f32 %v995
      %vm1003 = vmor %vm1001, %vm1002
      %v1004 = vsel %vm1003, %v995, %v1000
      %v1005 = vrsqrt.pop %v944
      %v1006 = vmul.f32 %v1005, %v944
      %v1007 = vmul.f32 %v1006, %v1005
      %v1008 = vmul.f32 0.5, %v1007
      %v1009 = vsub.f32 1.5, %v1008
      %v1010 = vmul.f32 %v1005, %v1009
      %vm1011 = vweird.f32 %v944
      %vm1012 = vweird.f32 %v1005
      %vm1013 = vmor %vm1011, %vm1012
      %v1014 = vsel %vm1013, %v1005, %v1010
      %v1015 = vrsqrt.pop %v945
      %v1016 = vmul.f32 %v1015, %v945
      %v1017 = vmul.f32 %v1016, %v1015
      %v1018 = vmul.f32 0.5, %v1017
      %v1019 = vsub.f32 1.5, %v1018
      %v1020 = vmul.f32 %v1015, %v1019
      %vm1021 = vweird.f32 %v945
      %vm1022 = vweird.f32 %v1015
      %vm1023 = vmor %vm1021, %vm1022
      %v1024 = vsel %vm1023, %v1015, %v1020
      %v1025 = vrsqrt.pop %v946
      %v1026 = vmul.f32 %v1025, %v946
      %v1027 = vmul.f32 %v1026, %v1025
      %v1028 = vmul.f32 0.5, %v1027
      %v1029 = vsub.f32 1.5, %v1028
      %v1030 = vmul.f32 %v1025, %v1029
      %vm1031 = vweird.f32 %v946
      %vm1032 = vweird.f32 %v1025
      %vm1033 = vmor %vm1031, %vm1032
      %v1034 = vsel %vm1033, %v1025, %v1030
      %v1035 = vrsqrt.pop %v947
      %v1036 = vmul.f32 %v1035, %v947
      %v1037 = vmul.f32 %v1036, %v1035
      %v1038 = vmul.f32 0.5, %v1037
      %v1039 = vsub.f32 1.5, %v1038
      %v1040 = vmul.f32 %v1035, %v1039
      %vm1041 = vweird.f32 %v947
      %vm1042 = vweird.f32 %v1035
      %vm1043 = vmor %vm1041, %vm1042
      %v1044 = vsel %vm1043, %v1035, %v1040
      %v1045 = vrsqrt.pop %v948
      %v1046 = vmul.f32 %v1045, %v948
      %v1047 = vmul.f32 %v1046, %v1045
      %v1048 = vmul.f32 0.5, %v1047
      %v1049 = vsub.f32 1.5, %v1048
      %v1050 = vmul.f32 %v1045, %v1049
      %vm1051 = vweird.f32 %v948
      %vm1052 = vweird.f32 %v1045
      %vm1053 = vmor %vm1051, %vm1052
      %v1054 = vsel %vm1053, %v1045, %v1050
      %v1055 = vrsqrt.pop %v949
      %v1056 = vmul.f32 %v1055, %v949
      %v1057 = vmul.f32 %v1056, %v1055
      %v1058 = vmul.f32 0.5, %v1057
      %v1059 = vsub.f32 1.5, %v1058
      %v1060 = vmul.f32 %v1055, %v1059
      %vm1061 = vweird.f32 %v949
      %vm1062 = vweird.f32 %v1055
      %vm1063 = vmor %vm1061, %vm1062
      %v1064 = vsel %vm1063, %v1055, %v1060
      %v1065 = vrsqrt.pop %v950
      %v1066 = vmul.f32 %v1065, %v950
      %v1067 = vmul.f32 %v1066, %v1065
      %v1068 = vmul.f32 0.5, %v1067
      %v1069 = vsub.f32 1.5, %v1068
      %v1070 = vmul.f32 %v1065, %v1069
      %vm1071 = vweird.f32 %v950
      %vm1072 = vweird.f32 %v1065
      %vm1073 = vmor %vm1071, %vm1072
      %v1074 = vsel %vm1073, %v1065, %v1070
      %v1075 = vrsqrt.pop %v951
      %v1076 = vmul.f32 %v1075, %v951
      %v1077 = vmul.f32 %v1076, %v1075
      %v1078 = vmul.f32 0.5, %v1077
      %v1079 = vsub.f32 1.5, %v1078
      %v1080 = vmul.f32 %v1075, %v1079
      %vm1081 = vweird.f32 %v951
      %vm1082 = vweird.f32 %v1075
      %vm1083 = vmor %vm1081, %vm1082
      %v1084 = vsel %vm1083, %v1075, %v1080
      %v1085 = vrsqrt.pop %v952
      %v1086 = vmul.f32 %v1085, %v952
      %v1087 = vmul.f32 %v1086, %v1085
      %v1088 = vmul.f32 0.5, %v1087
      %v1089 = vsub.f32 1.5, %v1088
      %v1090 = vmul.f32 %v1085, %v1089
      %vm1091 = vweird.f32 %v952
      %vm1092 = vweird.f32 %v1085
      %vm1093 = vmor %vm1091, %vm1092
      %v1094 = vsel %vm1093, %v1085, %v1090
      %v1095 = vrsqrt.pop %v953
      %v1096 = vmul.f32 %v1095, %v953
      %v1097 = vmul.f32 %v1096, %v1095
      %v1098 = vmul.f32 0.5, %v1097
      %v1099 = vsub.f32 1.5, %v1098
      %v1100 = vmul.f32 %v1095, %v1099
      %vm1101 = vweird.f32 %v953
      %vm1102 = vweird.f32 %v1095
      %vm1103 = vmor %vm1101, %vm1102
      %v1104 = vsel %vm1103, %v1095, %v1100
      %v1105 = vrsqrt.pop %v954
      %v1106 = vmul.f32 %v1105, %v954
      %v1107 = vmul.f32 %v1106, %v1105
      %v1108 = vmul.f32 0.5, %v1107
      %v1109 = vsub.f32 1.5, %v1108
      %v1110 = vmul.f32 %v1105, %v1109
      %vm1111 = vweird.f32 %v954
      %vm1112 = vweird.f32 %v1105
      %vm1113 = vmor %vm1111, %vm1112
      %v1114 = vsel %vm1113, %v1105, %v1110
      %v1115 = vmul.f32 %v843, %v964
      %v1116 = vmul.f32 %v844, %v974
      %v1117 = vmul.f32 %v845, %v984
      %v1118 = vmul.f32 %v846, %v994
      %v1119 = vmul.f32 %v847, %v1004
      %v1120 = vmul.f32 %v848, %v1014
      %v1121 = vmul.f32 %v849, %v1024
      %v1122 = vmul.f32 %v850, %v1034
      %v1123 = vmul.f32 %v851, %v1044
      %v1124 = vmul.f32 %v852, %v1054
      %v1125 = vmul.f32 %v853, %v1064
      %v1126 = vmul.f32 %v854, %v1074
      %v1127 = vmul.f32 %v855, %v1084
      %v1128 = vmul.f32 %v856, %v1094
      %v1129 = vmul.f32 %v857, %v1104
      %v1130 = vmul.f32 %v858, %v1114
      %v1131 = vmul.f32 %v1115, %v725
      %v1132 = vmul.f32 %v1116, %v725
      %v1133 = vmul.f32 %v1117, %v725
      %v1134 = vmul.f32 %v1118, %v725
      %v1135 = vmul.f32 %v1119, %v725
      %v1136 = vmul.f32 %v1120, %v725
      %v1137 = vmul.f32 %v1121, %v725
      %v1138 = vmul.f32 %v1122, %v725
      %v1139 = vmul.f32 %v1123, %v725
      %v1140 = vmul.f32 %v1124, %v725
      %v1141 = vmul.f32 %v1125, %v725
      %v1142 = vmul.f32 %v1126, %v725
      %v1143 = vmul.f32 %v1127, %v725
      %v1144 = vmul.f32 %v1128, %v725
      %v1145 = vmul.f32 %v1129, %v725
      %v1146 = vmul.f32 %v1130, %v725
      %v1147 = vadd.f32 %v1131, %v732
      %v1148 = vadd.f32 %v1132, %v732
      %v1149 = vadd.f32 %v1133, %v732
      %v1150 = vadd.f32 %v1134, %v732
      %v1151 = vadd.f32 %v1135, %v732
      %v1152 = vadd.f32 %v1136, %v732
      %v1153 = vadd.f32 %v1137, %v732
      %v1154 = vadd.f32 %v1138, %v732
      %v1155 = vadd.f32 %v1139, %v732
      %v1156 = vadd.f32 %v1140, %v732
      %v1157 = vadd.f32 %v1141, %v732
      %v1158 = vadd.f32 %v1142, %v732
      %v1159 = vadd.f32 %v1143, %v732
      %v1160 = vadd.f32 %v1144, %v732
      %v1161 = vadd.f32 %v1145, %v732
      %v1162 = vadd.f32 %v1146, %v732
      %v1163 = vpack.c.bf16 %v1147, %v1147
      %v1164 = vpack.c.bf16 %v1148, %v1148
      %v1165 = vpack.c.bf16 %v1149, %v1149
      %v1166 = vpack.c.bf16 %v1150, %v1150
      %v1167 = vpack.c.bf16 %v1151, %v1151
      %v1168 = vpack.c.bf16 %v1152, %v1152
      %v1169 = vpack.c.bf16 %v1153, %v1153
      %v1170 = vpack.c.bf16 %v1154, %v1154
      %v1171 = vpack.c.bf16 %v1155, %v1155
      %v1172 = vpack.c.bf16 %v1156, %v1156
      %v1173 = vpack.c.bf16 %v1157, %v1157
      %v1174 = vpack.c.bf16 %v1158, %v1158
      %v1175 = vpack.c.bf16 %v1159, %v1159
      %v1176 = vpack.c.bf16 %v1160, %v1160
      %v1177 = vpack.c.bf16 %v1161, %v1161
      %v1178 = vpack.c.bf16 %v1162, %v1162
      %v1179 = vld [vmem:[%s587] sm:$0xf]
      %v1180 = vld [vmem:[%s587 + $0x4] sm:$0xf]
      %v1181 = vld [vmem:[%s587 + $0x8] sm:$0xf]
      %v1182 = vld [vmem:[%s587 + $0xc] sm:$0xf]
      %v1183 = vunpack.c.l.bf16 %v1179
      %v1184 = vunpack.c.l.bf16 %v1180
      %v1185 = vunpack.c.l.bf16 %v1181
      %v1186 = vunpack.c.l.bf16 %v1182
      %v1187 = vsel %vm628, %v1183, 0.0
      %1188 = vadd.xlane.f32.xlu0 %v1187
      %v1189 = vpop.xlane.xlu0 %1188
      %v1190 = vsel %vm628, %v1184, 0.0
      %1191 = vadd.xlane.f32.xlu0 %v1190
      %v1192 = vpop.xlane.xlu0 %1191
      %v1193 = vsel %vm628, %v1185, 0.0
      %1194 = vadd.xlane.f32.xlu0 %v1193
      %v1195 = vpop.xlane.xlu0 %1194
      %v1196 = vsel %vm628, %v1186, 0.0
      %1197 = vadd.xlane.f32.xlu0 %v1196
      %v1198 = vpop.xlane.xlu0 %1197
      %v1199 = vmul.f32 %v1189, %v647
      %v1200 = vmul.f32 %v1192, %v647
      %v1201 = vmul.f32 %v1195, %v647
      %v1202 = vmul.f32 %v1198, %v647
      %v1203 = vsub.f32 %v1183, %v1199
      %v1204 = vsub.f32 %v1184, %v1200
      %v1205 = vsub.f32 %v1185, %v1201
      %v1206 = vsub.f32 %v1186, %v1202
      %v1207 = vmul.f32 %v1203, %v1203
      %v1208 = vmul.f32 %v1204, %v1204
      %v1209 = vmul.f32 %v1205, %v1205
      %v1210 = vmul.f32 %v1206, %v1206
      %v1211 = vsel %vm628, %v1207, 0.0
      %1212 = vadd.xlane.f32.xlu0 %v1211
      %v1213 = vpop.xlane.xlu0 %1212
      %v1214 = vsel %vm628, %v1208, 0.0
      %1215 = vadd.xlane.f32.xlu0 %v1214
      %v1216 = vpop.xlane.xlu0 %1215
      %v1217 = vsel %vm628, %v1209, 0.0
      %1218 = vadd.xlane.f32.xlu0 %v1217
      %v1219 = vpop.xlane.xlu0 %1218
      %v1220 = vsel %vm628, %v1210, 0.0
      %1221 = vadd.xlane.f32.xlu0 %v1220
      %v1222 = vpop.xlane.xlu0 %1221
      %v1223 = vmul.f32 %v1213, %v647
      %v1224 = vmul.f32 %v1216, %v647
      %v1225 = vmul.f32 %v1219, %v647
      %v1226 = vmul.f32 %v1222, %v647
      %v1227 = vadd.f32 %v1223, 1e-05
      %v1228 = vadd.f32 %v1224, 1e-05
      %v1229 = vadd.f32 %v1225, 1e-05
      %v1230 = vadd.f32 %v1226, 1e-05
      %v1231 = vrsqrt.pop %v1227
      %v1232 = vmul.f32 %v1231, %v1227
      %v1233 = vmul.f32 %v1232, %v1231
      %v1234 = vmul.f32 0.5, %v1233
      %v1235 = vsub.f32 1.5, %v1234
      %v1236 = vmul.f32 %v1231, %v1235
      %vm1237 = vweird.f32 %v1227
      %vm1238 = vweird.f32 %v1231
      %vm1239 = vmor %vm1237, %vm1238
      %v1240 = vsel %vm1239, %v1231, %v1236
      %v1241 = vrsqrt.pop %v1228
      %v1242 = vmul.f32 %v1241, %v1228
      %v1243 = vmul.f32 %v1242, %v1241
      %v1244 = vmul.f32 0.5, %v1243
      %v1245 = vsub.f32 1.5, %v1244
      %v1246 = vmul.f32 %v1241, %v1245
      %vm1247 = vweird.f32 %v1228
      %vm1248 = vweird.f32 %v1241
      %vm1249 = vmor %vm1247, %vm1248
      %v1250 = vsel %vm1249, %v1241, %v1246
      %v1251 = vrsqrt.pop %v1229
      %v1252 = vmul.f32 %v1251, %v1229
      %v1253 = vmul.f32 %v1252, %v1251
      %v1254 = vmul.f32 0.5, %v1253
      %v1255 = vsub.f32 1.5, %v1254
      %v1256 = vmul.f32 %v1251, %v1255
      %vm1257 = vweird.f32 %v1229
      %vm1258 = vweird.f32 %v1251
      %vm1259 = vmor %vm1257, %vm1258
      %v1260 = vsel %vm1259, %v1251, %v1256
      %v1261 = vrsqrt.pop %v1230
      %v1262 = vmul.f32 %v1261, %v1230
      %v1263 = vmul.f32 %v1262, %v1261
      %v1264 = vmul.f32 0.5, %v1263
      %v1265 = vsub.f32 1.5, %v1264
      %v1266 = vmul.f32 %v1261, %v1265
      %vm1267 = vweird.f32 %v1230
      %vm1268 = vweird.f32 %v1261
      %vm1269 = vmor %vm1267, %vm1268
      %v1270 = vsel %vm1269, %v1261, %v1266
      %v1271 = vmul.f32 %v1203, %v1240
      %v1272 = vmul.f32 %v1204, %v1250
      %v1273 = vmul.f32 %v1205, %v1260
      %v1274 = vmul.f32 %v1206, %v1270
      %v1275 = vmul.f32 %v1271, %v725
      %v1276 = vmul.f32 %v1272, %v725
      %v1277 = vmul.f32 %v1273, %v725
      %v1278 = vmul.f32 %v1274, %v725
      %v1279 = vadd.f32 %v1275, %v732
      %v1280 = vadd.f32 %v1276, %v732
      %v1281 = vadd.f32 %v1277, %v732
      %v1282 = vadd.f32 %v1278, %v732
      %v1283 = vstv %s617
      %v1284 = vmul.f32 %v1279, %v1283
      %v1285 = vmul.f32 %v1280, %v1283
      %v1286 = vmul.f32 %v1281, %v1283
      %v1287 = vmul.f32 %v1282, %v1283
      %v1288 = vpack.c.bf16 %v1284, %v1284
      %v1289 = vpack.c.bf16 %v1285, %v1285
      %v1290 = vpack.c.bf16 %v1286, %v1286
      %v1291 = vpack.c.bf16 %v1287, %v1287
      %v1316 = vunpack.c.l.b16 %v743
      %v1317 = vunpack.c.l.b16 %v744
      %v1318 = vunpack.c.l.b16 %v745
      %v1319 = vunpack.c.l.b16 %v746
      %v1320 = vunpack.c.l.b16 %v1163
      %v1321 = vunpack.c.l.b16 %v1164
      %v1322 = vunpack.c.l.b16 %v1165
      %v1323 = vunpack.c.l.b16 %v1166
      %v1324 = vunpack.c.l.b16 %v1167
      %v1325 = vunpack.c.l.b16 %v1168
      %v1326 = vunpack.c.l.b16 %v1169
      %v1327 = vunpack.c.l.b16 %v1170
      %v1328 = vunpack.c.l.b16 %v1171
      %v1329 = vunpack.c.l.b16 %v1172
      %v1330 = vunpack.c.l.b16 %v1173
      %v1331 = vunpack.c.l.b16 %v1174
      %v1332 = vunpack.c.l.b16 %v1175
      %v1333 = vunpack.c.l.b16 %v1176
      %v1334 = vunpack.c.l.b16 %v1177
      %v1335 = vunpack.c.l.b16 %v1178
      %v1336 = vunpack.c.l.b16 %v1288
      %v1337 = vunpack.c.l.b16 %v1289
      %v1338 = vunpack.c.l.b16 %v1290
      %v1339 = vunpack.c.l.b16 %v1291
      %v1340 = vpack.c.b16 %v1317, %v1316
      %v1341 = vpack.c.b16 %v1319, %v1318
      %v1342 = vpack.c.b16 %v1321, %v1320
      %v1343 = vpack.c.b16 %v1323, %v1322
      %v1344 = vpack.c.b16 %v1325, %v1324
      %v1345 = vpack.c.b16 %v1327, %v1326
      %v1346 = vpack.c.b16 %v1329, %v1328
      %v1347 = vpack.c.b16 %v1331, %v1330
      %v1348 = vpack.c.b16 %v1333, %v1332
      %v1349 = vpack.c.b16 %v1335, %v1334
      %v1350 = vpack.c.b16 %v1337, %v1336
      %v1351 = vpack.c.b16 %v1339, %v1338
      %v1353 = vshrl.u32 %v1340, 16
      %v1355 = vrot.slane %v1353, 7
      %v1356 = vshll.u32 %v1340, 16
      %v1358 = vor.u32 %v1355, %v1356
      %v1360 = vshrl.u32 %v1341, 16
      %v1362 = vrot.slane %v1360, 7
      %v1363 = vshll.u32 %v1341, 16
      %v1365 = vor.u32 %v1362, %v1363
      %v1367 = vshrl.u32 %v1342, 16
      %v1369 = vrot.slane %v1367, 7
      %v1370 = vshll.u32 %v1342, 16
      %v1372 = vor.u32 %v1369, %v1370
      %v1374 = vshrl.u32 %v1343, 16
      %v1376 = vrot.slane %v1374, 7
      %v1377 = vshll.u32 %v1343, 16
      %v1379 = vor.u32 %v1376, %v1377
      %v1381 = vshrl.u32 %v1344, 16
      %v1383 = vrot.slane %v1381, 7
      %v1384 = vshll.u32 %v1344, 16
      %v1386 = vor.u32 %v1383, %v1384
      %v1388 = vshrl.u32 %v1345, 16
      %v1390 = vrot.slane %v1388, 7
      %v1391 = vshll.u32 %v1345, 16
      %v1393 = vor.u32 %v1390, %v1391
      %v1395 = vshrl.u32 %v1346, 16
      %v1397 = vrot.slane %v1395, 7
      %v1398 = vshll.u32 %v1346, 16
      %v1400 = vor.u32 %v1397, %v1398
      %v1402 = vshrl.u32 %v1347, 16
      %v1404 = vrot.slane %v1402, 7
      %v1405 = vshll.u32 %v1347, 16
      %v1407 = vor.u32 %v1404, %v1405
      %v1409 = vshrl.u32 %v1348, 16
      %v1411 = vrot.slane %v1409, 7
      %v1412 = vshll.u32 %v1348, 16
      %v1414 = vor.u32 %v1411, %v1412
      %v1416 = vshrl.u32 %v1349, 16
      %v1418 = vrot.slane %v1416, 7
      %v1419 = vshll.u32 %v1349, 16
      %v1421 = vor.u32 %v1418, %v1419
      %v1423 = vshrl.u32 %v1350, 16
      %v1425 = vrot.slane %v1423, 7
      %v1426 = vshll.u32 %v1350, 16
      %v1428 = vor.u32 %v1425, %v1426
      %v1430 = vshrl.u32 %v1351, 16
      %v1432 = vrot.slane %v1430, 7
      %v1433 = vshll.u32 %v1351, 16
      %v1435 = vor.u32 %v1432, %v1433
      %vm1460 = vcmask 1040384
      %vm1461 = vsmask.f32 256
      %vm1462 = vmand %vm1460, %vm1461
      %v1463 = vsel %vm1462, 0, %v1358
      %v1464 = vsel %vm1462, 0, %v1365
      %v1465 = vsel %vm1462, 0, %v1372
      %v1466 = vsel %vm1462, 0, %v1379
      %v1467 = vsel %vm1462, 0, %v1386
      %v1468 = vsel %vm1462, 0, %v1393
      %v1469 = vsel %vm1462, 0, %v1400
      %v1470 = vsel %vm1462, 0, %v1407
      %v1471 = vsel %vm1462, 0, %v1414
      %v1472 = vsel %vm1462, 0, %v1421
      %v1473 = vsel %vm1462, 0, %v1428
      %v1474 = vsel %vm1462, 0, %v1435
      %v1475 = vsel %vm1462, %v1355, 0
      %v1476 = vsel %vm1462, %v1362, 0
      %v1477 = vsel %vm1462, %v1369, 0
      %v1478 = vsel %vm1462, %v1376, 0
      %v1479 = vsel %vm1462, %v1383, 0
      %v1480 = vsel %vm1462, %v1390, 0
      %v1481 = vsel %vm1462, %v1397, 0
      %v1482 = vsel %vm1462, %v1404, 0
      %v1483 = vsel %vm1462, %v1411, 0
      %v1484 = vsel %vm1462, %v1418, 0
      %v1485 = vsel %vm1462, %v1425, 0
      %v1486 = vsel %vm1462, %v1432, 0
      %v1487 = vld [vmem:[%s5] sm:$0x3]
      %v1488 = vld [vmem:[%s5 + $0x2] sm:$0x3]
      %v1489 = vld [vmem:[%s5 + $0x4] sm:$0x3]
      %v1491 = vpack.i.b16 %v1487, %v1487
      %v1493 = vperm.slane %v1491, 0
      %v1494 = vunpack.c.l.bf16 %v1463
      %v1495 = vunpack.c.h.bf16 %v1463
      %v1496 = vunpack.c.l.bf16 %v1464
      %v1497 = vunpack.c.h.bf16 %v1464
      %v1498 = vunpack.c.l.bf16 %v1465
      %v1499 = vunpack.c.h.bf16 %v1465
      %v1500 = vunpack.c.l.bf16 %v1466
      %v1501 = vunpack.c.h.bf16 %v1466
      %v1502 = vunpack.c.l.bf16 %v1467
      %v1503 = vunpack.c.h.bf16 %v1467
      %v1504 = vunpack.c.l.bf16 %v1468
      %v1505 = vunpack.c.h.bf16 %v1468
      %v1506 = vunpack.c.l.bf16 %v1469
      %v1507 = vunpack.c.h.bf16 %v1469
      %v1508 = vunpack.c.l.bf16 %v1470
      %v1509 = vunpack.c.h.bf16 %v1470
      %v1510 = vunpack.c.l.bf16 %v1471
      %v1511 = vunpack.c.h.bf16 %v1471
      %v1512 = vunpack.c.l.bf16 %v1472
      %v1513 = vunpack.c.h.bf16 %v1472
      %v1514 = vunpack.c.l.bf16 %v1493
      %v1515 = vmul.f32 %v1494, %v1514
      %v1516 = vmul.f32 %v1495, %v1514
      %v1517 = vmul.f32 %v1496, %v1514
      %v1518 = vmul.f32 %v1497, %v1514
      %v1519 = vmul.f32 %v1498, %v1514
      %v1520 = vmul.f32 %v1499, %v1514
      %v1521 = vmul.f32 %v1500, %v1514
      %v1522 = vmul.f32 %v1501, %v1514
      %v1523 = vmul.f32 %v1502, %v1514
      %v1524 = vmul.f32 %v1503, %v1514
      %v1525 = vmul.f32 %v1504, %v1514
      %v1526 = vmul.f32 %v1505, %v1514
      %v1527 = vmul.f32 %v1506, %v1514
      %v1528 = vmul.f32 %v1507, %v1514
      %v1529 = vmul.f32 %v1508, %v1514
      %v1530 = vmul.f32 %v1509, %v1514
      %v1531 = vmul.f32 %v1510, %v1514
      %v1532 = vmul.f32 %v1511, %v1514
      %v1533 = vmul.f32 %v1512, %v1514
      %v1534 = vmul.f32 %v1513, %v1514
      %v1535 = vpack.c.bf16 %v1515, %v1515
      %v1536 = vpack.c.bf16 %v1516, %v1516
      %v1537 = vpack.c.bf16 %v1517, %v1517
      %v1538 = vpack.c.bf16 %v1518, %v1518
      %v1539 = vpack.c.bf16 %v1519, %v1519
      %v1540 = vpack.c.bf16 %v1520, %v1520
      %v1541 = vpack.c.bf16 %v1521, %v1521
      %v1542 = vpack.c.bf16 %v1522, %v1522
      %v1543 = vpack.c.bf16 %v1523, %v1523
      %v1544 = vpack.c.bf16 %v1524, %v1524
      %v1545 = vpack.c.bf16 %v1525, %v1525
      %v1546 = vpack.c.bf16 %v1526, %v1526
      %v1547 = vpack.c.bf16 %v1527, %v1527
      %v1548 = vpack.c.bf16 %v1528, %v1528
      %v1549 = vpack.c.bf16 %v1529, %v1529
      %v1550 = vpack.c.bf16 %v1530, %v1530
      %v1551 = vpack.c.bf16 %v1531, %v1531
      %v1552 = vpack.c.bf16 %v1532, %v1532
      %v1553 = vpack.c.bf16 %v1533, %v1533
      %v1554 = vpack.c.bf16 %v1534, %v1534
      %v1555 = vunpack.c.l.bf16 %v1535
      %v1556 = vunpack.c.l.bf16 %v1536
      %v1557 = vunpack.c.l.bf16 %v1537
      %v1558 = vunpack.c.l.bf16 %v1538
      %v1559 = vunpack.c.l.bf16 %v1539
      %v1560 = vunpack.c.l.bf16 %v1540
      %v1561 = vunpack.c.l.bf16 %v1541
      %v1562 = vunpack.c.l.bf16 %v1542
      %v1563 = vunpack.c.l.bf16 %v1543
      %v1564 = vunpack.c.l.bf16 %v1544
      %v1565 = vunpack.c.l.bf16 %v1545
      %v1566 = vunpack.c.l.bf16 %v1546
      %v1567 = vunpack.c.l.bf16 %v1547
      %v1568 = vunpack.c.l.bf16 %v1548
      %v1569 = vunpack.c.l.bf16 %v1549
      %v1570 = vunpack.c.l.bf16 %v1550
      %v1571 = vunpack.c.l.bf16 %v1551
      %v1572 = vunpack.c.l.bf16 %v1552
      %v1573 = vunpack.c.l.bf16 %v1553
      %v1574 = vunpack.c.l.bf16 %v1554
      %v1575 = vadd.f32 %v1555, 0.0
      %v1576 = vadd.f32 %v1556, 0.0
      %v1577 = vadd.f32 %v1557, 0.0
      %v1578 = vadd.f32 %v1558, 0.0
      %v1579 = vadd.f32 %v1559, 0.0
      %v1580 = vadd.f32 %v1560, 0.0
      %v1581 = vadd.f32 %v1561, 0.0
      %v1582 = vadd.f32 %v1562, 0.0
      %v1583 = vadd.f32 %v1563, 0.0
      %v1584 = vadd.f32 %v1564, 0.0
      %v1585 = vadd.f32 %v1565, 0.0
      %v1586 = vadd.f32 %v1566, 0.0
      %v1587 = vadd.f32 %v1567, 0.0
      %v1588 = vadd.f32 %v1568, 0.0
      %v1589 = vadd.f32 %v1569, 0.0
      %v1590 = vadd.f32 %v1570, 0.0
      %v1591 = vadd.f32 %v1571, 0.0
      %v1592 = vadd.f32 %v1572, 0.0
      %v1593 = vadd.f32 %v1573, 0.0
      %v1594 = vadd.f32 %v1574, 0.0
      %v1595 = vpack.c.bf16 %v1575, %v1575
      %v1596 = vpack.c.bf16 %v1576, %v1576
      %v1597 = vpack.c.bf16 %v1577, %v1577
      %v1598 = vpack.c.bf16 %v1578, %v1578
      %v1599 = vpack.c.bf16 %v1579, %v1579
      %v1600 = vpack.c.bf16 %v1580, %v1580
      %v1601 = vpack.c.bf16 %v1581, %v1581
      %v1602 = vpack.c.bf16 %v1582, %v1582
      %v1603 = vpack.c.bf16 %v1583, %v1583
      %v1604 = vpack.c.bf16 %v1584, %v1584
      %v1605 = vpack.c.bf16 %v1585, %v1585
      %v1606 = vpack.c.bf16 %v1586, %v1586
      %v1607 = vpack.c.bf16 %v1587, %v1587
      %v1608 = vpack.c.bf16 %v1588, %v1588
      %v1609 = vpack.c.bf16 %v1589, %v1589
      %v1610 = vpack.c.bf16 %v1590, %v1590
      %v1611 = vpack.c.bf16 %v1591, %v1591
      %v1612 = vpack.c.bf16 %v1592, %v1592
      %v1613 = vpack.c.bf16 %v1593, %v1593
      %v1614 = vpack.c.bf16 %v1594, %v1594
      %v1615 = vshrl.u32 %v1487, 16
      %v1616 = vpack.i.b16 %v1615, %v1615
      %v1618 = vperm.slane %v1616, 0
      %v1619 = vunpack.c.l.bf16 %v1475
      %v1620 = vunpack.c.l.bf16 %v1476
      %v1621 = vunpack.c.l.bf16 %v1477
      %v1622 = vunpack.c.l.bf16 %v1478
      %v1623 = vunpack.c.l.bf16 %v1479
      %v1624 = vunpack.c.l.bf16 %v1480
      %v1625 = vunpack.c.l.bf16 %v1481
      %v1626 = vunpack.c.l.bf16 %v1482
      %v1627 = vunpack.c.l.bf16 %v1483
      %v1628 = vunpack.c.l.bf16 %v1484
      %v1629 = vunpack.c.l.bf16 %v1618
      %v1630 = vmul.f32 %v1494, %v1629
      %v1631 = vmul.f32 %v1495, %v1629
      %v1632 = vmul.f32 %v1619, %v1629
      %v1633 = vmul.f32 %v1496, %v1629
      %v1634 = vmul.f32 %v1497, %v1629
      %v1635 = vmul.f32 %v1620, %v1629
      %v1636 = vmul.f32 %v1498, %v1629
      %v1637 = vmul.f32 %v1499, %v1629
      %v1638 = vmul.f32 %v1621, %v1629
      %v1639 = vmul.f32 %v1500, %v1629
      %v1640 = vmul.f32 %v1501, %v1629
      %v1641 = vmul.f32 %v1622, %v1629
      %v1642 = vmul.f32 %v1502, %v1629
      %v1643 = vmul.f32 %v1503, %v1629
      %v1644 = vmul.f32 %v1623, %v1629
      %v1645 = vmul.f32 %v1504, %v1629
      %v1646 = vmul.f32 %v1505, %v1629
      %v1647 = vmul.f32 %v1624, %v1629
      %v1648 = vmul.f32 %v1506, %v1629
      %v1649 = vmul.f32 %v1507, %v1629
      %v1650 = vmul.f32 %v1625, %v1629
      %v1651 = vmul.f32 %v1508, %v1629
      %v1652 = vmul.f32 %v1509, %v1629
      %v1653 = vmul.f32 %v1626, %v1629
      %v1654 = vmul.f32 %v1510, %v1629
      %v1655 = vmul.f32 %v1511, %v1629
      %v1656 = vmul.f32 %v1627, %v1629
      %v1657 = vmul.f32 %v1512, %v1629
      %v1658 = vmul.f32 %v1513, %v1629
      %v1659 = vmul.f32 %v1628, %v1629
      %v1660 = vpack.c.bf16 %v1630, %v1630
      %v1661 = vpack.c.bf16 %v1631, %v1631
      %v1662 = vpack.c.bf16 %v1632, %v1632
      %v1663 = vpack.c.bf16 %v1633, %v1633
      %v1664 = vpack.c.bf16 %v1634, %v1634
      %v1665 = vpack.c.bf16 %v1635, %v1635
      %v1666 = vpack.c.bf16 %v1636, %v1636
      %v1667 = vpack.c.bf16 %v1637, %v1637
      %v1668 = vpack.c.bf16 %v1638, %v1638
      %v1669 = vpack.c.bf16 %v1639, %v1639
      %v1670 = vpack.c.bf16 %v1640, %v1640
      %v1671 = vpack.c.bf16 %v1641, %v1641
      %v1672 = vpack.c.bf16 %v1642, %v1642
      %v1673 = vpack.c.bf16 %v1643, %v1643
      %v1674 = vpack.c.bf16 %v1644, %v1644
      %v1675 = vpack.c.bf16 %v1645, %v1645
      %v1676 = vpack.c.bf16 %v1646, %v1646
      %v1677 = vpack.c.bf16 %v1647, %v1647
      %v1678 = vpack.c.bf16 %v1648, %v1648
      %v1679 = vpack.c.bf16 %v1649, %v1649
      %v1680 = vpack.c.bf16 %v1650, %v1650
      %v1681 = vpack.c.bf16 %v1651, %v1651
      %v1682 = vpack.c.bf16 %v1652, %v1652
      %v1683 = vpack.c.bf16 %v1653, %v1653
      %v1684 = vpack.c.bf16 %v1654, %v1654
      %v1685 = vpack.c.bf16 %v1655, %v1655
      %v1686 = vpack.c.bf16 %v1656, %v1656
      %v1687 = vpack.c.bf16 %v1657, %v1657
      %v1688 = vpack.c.bf16 %v1658, %v1658
      %v1689 = vpack.c.bf16 %v1659, %v1659
      %v1690 = vunpack.c.l.bf16 %v1595
      %v1691 = vunpack.c.l.bf16 %v1596
      %v1692 = vunpack.c.l.bf16 %v1597
      %v1693 = vunpack.c.l.bf16 %v1598
      %v1694 = vunpack.c.l.bf16 %v1599
      %v1695 = vunpack.c.l.bf16 %v1600
      %v1696 = vunpack.c.l.bf16 %v1601
      %v1697 = vunpack.c.l.bf16 %v1602
      %v1698 = vunpack.c.l.bf16 %v1603
      %v1699 = vunpack.c.l.bf16 %v1604
      %v1700 = vunpack.c.l.bf16 %v1605
      %v1701 = vunpack.c.l.bf16 %v1606
      %v1702 = vunpack.c.l.bf16 %v1607
      %v1703 = vunpack.c.l.bf16 %v1608
      %v1704 = vunpack.c.l.bf16 %v1609
      %v1705 = vunpack.c.l.bf16 %v1610
      %v1706 = vunpack.c.l.bf16 %v1611
      %v1707 = vunpack.c.l.bf16 %v1612
      %v1708 = vunpack.c.l.bf16 %v1613
      %v1709 = vunpack.c.l.bf16 %v1614
      %v1710 = vunpack.c.l.bf16 %v1660
      %v1711 = vunpack.c.l.bf16 %v1661
      %v1712 = vunpack.c.l.bf16 %v1662
      %v1713 = vunpack.c.l.bf16 %v1663
      %v1714 = vunpack.c.l.bf16 %v1664
      %v1715 = vunpack.c.l.bf16 %v1665
      %v1716 = vunpack.c.l.bf16 %v1666
      %v1717 = vunpack.c.l.bf16 %v1667
      %v1718 = vunpack.c.l.bf16 %v1668
      %v1719 = vunpack.c.l.bf16 %v1669
      %v1720 = vunpack.c.l.bf16 %v1670
      %v1721 = vunpack.c.l.bf16 %v1671
      %v1722 = vunpack.c.l.bf16 %v1672
      %v1723 = vunpack.c.l.bf16 %v1673
      %v1724 = vunpack.c.l.bf16 %v1674
      %v1725 = vunpack.c.l.bf16 %v1675
      %v1726 = vunpack.c.l.bf16 %v1676
      %v1727 = vunpack.c.l.bf16 %v1677
      %v1728 = vunpack.c.l.bf16 %v1678
      %v1729 = vunpack.c.l.bf16 %v1679
      %v1730 = vunpack.c.l.bf16 %v1680
      %v1731 = vunpack.c.l.bf16 %v1681
      %v1732 = vunpack.c.l.bf16 %v1682
      %v1733 = vunpack.c.l.bf16 %v1683
      %v1734 = vunpack.c.l.bf16 %v1684
      %v1735 = vunpack.c.l.bf16 %v1685
      %v1736 = vunpack.c.l.bf16 %v1686
      %v1737 = vunpack.c.l.bf16 %v1687
      %v1738 = vunpack.c.l.bf16 %v1688
      %v1739 = vunpack.c.l.bf16 %v1689
      %vm1770 = vcmask 1046528
      %v1771 = vrot.slane %v1710, 1
      %v1772 = vrot.slane %v1711, 1
      %v1773 = vsel %vm1770, %v1771, %v1772
      %v1774 = vrot.slane %v1712, 1
      %v1775 = vsel %vm1770, %v1772, %v1774
      %v1776 = vrot.slane %v1713, 1
      %v1777 = vrot.slane %v1714, 1
      %v1778 = vsel %vm1770, %v1776, %v1777
      %v1779 = vrot.slane %v1715, 1
      %v1780 = vsel %vm1770, %v1777, %v1779
      %v1781 = vrot.slane %v1716, 1
      %v1782 = vrot.slane %v1717, 1
      %v1783 = vsel %vm1770, %v1781, %v1782
      %v1784 = vrot.slane %v1718, 1
      %v1785 = vsel %vm1770, %v1782, %v1784
      %v1786 = vrot.slane %v1719, 1
      %v1787 = vrot.slane %v1720, 1
      %v1788 = vsel %vm1770, %v1786, %v1787
      %v1789 = vrot.slane %v1721, 1
      %v1790 = vsel %vm1770, %v1787, %v1789
      %v1791 = vrot.slane %v1722, 1
      %v1792 = vrot.slane %v1723, 1
      %v1793 = vsel %vm1770, %v1791, %v1792
      %v1794 = vrot.slane %v1724, 1
      %v1795 = vsel %vm1770, %v1792, %v1794
      %v1796 = vrot.slane %v1725, 1
      %v1797 = vrot.slane %v1726, 1
      %v1798 = vsel %vm1770, %v1796, %v1797
      %v1799 = vrot.slane %v1727, 1
      %v1800 = vsel %vm1770, %v1797, %v1799
      %v1801 = vrot.slane %v1728, 1
      %v1802 = vrot.slane %v1729, 1
      %v1803 = vsel %vm1770, %v1801, %v1802
      %v1804 = vrot.slane %v1730, 1
      %v1805 = vsel %vm1770, %v1802, %v1804
      %v1806 = vrot.slane %v1731, 1
      %v1807 = vrot.slane %v1732, 1
      %v1808 = vsel %vm1770, %v1806, %v1807
      %v1809 = vrot.slane %v1733, 1
      %v1810 = vsel %vm1770, %v1807, %v1809
      %v1811 = vrot.slane %v1734, 1
      %v1812 = vrot.slane %v1735, 1
      %v1813 = vsel %vm1770, %v1811, %v1812
      %v1814 = vrot.slane %v1736, 1
      %v1815 = vsel %vm1770, %v1812, %v1814
      %v1816 = vrot.slane %v1737, 1
      %v1817 = vrot.slane %v1738, 1
      %v1818 = vsel %vm1770, %v1816, %v1817
      %v1819 = vrot.slane %v1739, 1
      %v1820 = vsel %vm1770, %v1817, %v1819
      %v1841 = vadd.f32 %v1690, %v1773
      %v1842 = vadd.f32 %v1691, %v1775
      %v1843 = vadd.f32 %v1692, %v1778
      %v1844 = vadd.f32 %v1693, %v1780
      %v1845 = vadd.f32 %v1694, %v1783
      %v1846 = vadd.f32 %v1695, %v1785
      %v1847 = vadd.f32 %v1696, %v1788
      %v1848 = vadd.f32 %v1697, %v1790
      %v1849 = vadd.f32 %v1698, %v1793
      %v1850 = vadd.f32 %v1699, %v1795
      %v1851 = vadd.f32 %v1700, %v1798
      %v1852 = vadd.f32 %v1701, %v1800
      %v1853 = vadd.f32 %v1702, %v1803
      %v1854 = vadd.f32 %v1703, %v1805
      %v1855 = vadd.f32 %v1704, %v1808
      %v1856 = vadd.f32 %v1705, %v1810
      %v1857 = vadd.f32 %v1706, %v1813
      %v1858 = vadd.f32 %v1707, %v1815
      %v1859 = vadd.f32 %v1708, %v1818
      %v1860 = vadd.f32 %v1709, %v1820
      %v1861 = vpack.c.bf16 %v1841, %v1841
      %v1862 = vpack.c.bf16 %v1842, %v1842
      %v1863 = vpack.c.bf16 %v1843, %v1843
      %v1864 = vpack.c.bf16 %v1844, %v1844
      %v1865 = vpack.c.bf16 %v1845, %v1845
      %v1866 = vpack.c.bf16 %v1846, %v1846
      %v1867 = vpack.c.bf16 %v1847, %v1847
      %v1868 = vpack.c.bf16 %v1848, %v1848
      %v1869 = vpack.c.bf16 %v1849, %v1849
      %v1870 = vpack.c.bf16 %v1850, %v1850
      %v1871 = vpack.c.bf16 %v1851, %v1851
      %v1872 = vpack.c.bf16 %v1852, %v1852
      %v1873 = vpack.c.bf16 %v1853, %v1853
      %v1874 = vpack.c.bf16 %v1854, %v1854
      %v1875 = vpack.c.bf16 %v1855, %v1855
      %v1876 = vpack.c.bf16 %v1856, %v1856
      %v1877 = vpack.c.bf16 %v1857, %v1857
      %v1878 = vpack.c.bf16 %v1858, %v1858
      %v1879 = vpack.c.bf16 %v1859, %v1859
      %v1880 = vpack.c.bf16 %v1860, %v1860
      %v1881 = vperm.slane %v1491, 1
      %v1882 = vunpack.c.l.bf16 %v1881
      %v1883 = vmul.f32 %v1494, %v1882
      %v1884 = vmul.f32 %v1495, %v1882
      %v1885 = vmul.f32 %v1619, %v1882
      %v1886 = vmul.f32 %v1496, %v1882
      %v1887 = vmul.f32 %v1497, %v1882
      %v1888 = vmul.f32 %v1620, %v1882
      %v1889 = vmul.f32 %v1498, %v1882
      %v1890 = vmul.f32 %v1499, %v1882
      %v1891 = vmul.f32 %v1621, %v1882
      %v1892 = vmul.f32 %v1500, %v1882
      %v1893 = vmul.f32 %v1501, %v1882
      %v1894 = vmul.f32 %v1622, %v1882
      %v1895 = vmul.f32 %v1502, %v1882
      %v1896 = vmul.f32 %v1503, %v1882
      %v1897 = vmul.f32 %v1623, %v1882
      %v1898 = vmul.f32 %v1504, %v1882
      %v1899 = vmul.f32 %v1505, %v1882
      %v1900 = vmul.f32 %v1624, %v1882
      %v1901 = vmul.f32 %v1506, %v1882
      %v1902 = vmul.f32 %v1507, %v1882
      %v1903 = vmul.f32 %v1625, %v1882
      %v1904 = vmul.f32 %v1508, %v1882
      %v1905 = vmul.f32 %v1509, %v1882
      %v1906 = vmul.f32 %v1626, %v1882
      %v1907 = vmul.f32 %v1510, %v1882
      %v1908 = vmul.f32 %v1511, %v1882
      %v1909 = vmul.f32 %v1627, %v1882
      %v1910 = vmul.f32 %v1512, %v1882
      %v1911 = vmul.f32 %v1513, %v1882
      %v1912 = vmul.f32 %v1628, %v1882
      %v1913 = vpack.c.bf16 %v1883, %v1883
      %v1914 = vpack.c.bf16 %v1884, %v1884
      %v1915 = vpack.c.bf16 %v1885, %v1885
      %v1916 = vpack.c.bf16 %v1886, %v1886
      %v1917 = vpack.c.bf16 %v1887, %v1887
      %v1918 = vpack.c.bf16 %v1888, %v1888
      %v1919 = vpack.c.bf16 %v1889, %v1889
      %v1920 = vpack.c.bf16 %v1890, %v1890
      %v1921 = vpack.c.bf16 %v1891, %v1891
      %v1922 = vpack.c.bf16 %v1892, %v1892
      %v1923 = vpack.c.bf16 %v1893, %v1893
      %v1924 = vpack.c.bf16 %v1894, %v1894
      %v1925 = vpack.c.bf16 %v1895, %v1895
      %v1926 = vpack.c.bf16 %v1896, %v1896
      %v1927 = vpack.c.bf16 %v1897, %v1897
      %v1928 = vpack.c.bf16 %v1898, %v1898
      %v1929 = vpack.c.bf16 %v1899, %v1899
      %v1930 = vpack.c.bf16 %v1900, %v1900
      %v1931 = vpack.c.bf16 %v1901, %v1901
      %v1932 = vpack.c.bf16 %v1902, %v1902
      %v1933 = vpack.c.bf16 %v1903, %v1903
      %v1934 = vpack.c.bf16 %v1904, %v1904
      %v1935 = vpack.c.bf16 %v1905, %v1905
      %v1936 = vpack.c.bf16 %v1906, %v1906
      %v1937 = vpack.c.bf16 %v1907, %v1907
      %v1938 = vpack.c.bf16 %v1908, %v1908
      %v1939 = vpack.c.bf16 %v1909, %v1909
      %v1940 = vpack.c.bf16 %v1910, %v1910
      %v1941 = vpack.c.bf16 %v1911, %v1911
      %v1942 = vpack.c.bf16 %v1912, %v1912
      %v1943 = vunpack.c.l.bf16 %v1861
      %v1944 = vunpack.c.l.bf16 %v1862
      %v1945 = vunpack.c.l.bf16 %v1863
      %v1946 = vunpack.c.l.bf16 %v1864
      %v1947 = vunpack.c.l.bf16 %v1865
      %v1948 = vunpack.c.l.bf16 %v1866
      %v1949 = vunpack.c.l.bf16 %v1867
      %v1950 = vunpack.c.l.bf16 %v1868
      %v1951 = vunpack.c.l.bf16 %v1869
      %v1952 = vunpack.c.l.bf16 %v1870
      %v1953 = vunpack.c.l.bf16 %v1871
      %v1954 = vunpack.c.l.bf16 %v1872
      %v1955 = vunpack.c.l.bf16 %v1873
      %v1956 = vunpack.c.l.bf16 %v1874
      %v1957 = vunpack.c.l.bf16 %v1875
      %v1958 = vunpack.c.l.bf16 %v1876
      %v1959 = vunpack.c.l.bf16 %v1877
      %v1960 = vunpack.c.l.bf16 %v1878
      %v1961 = vunpack.c.l.bf16 %v1879
      %v1962 = vunpack.c.l.bf16 %v1880
      %v1963 = vunpack.c.l.bf16 %v1913
      %v1964 = vunpack.c.l.bf16 %v1914
      %v1965 = vunpack.c.l.bf16 %v1915
      %v1966 = vunpack.c.l.bf16 %v1916
      %v1967 = vunpack.c.l.bf16 %v1917
      %v1968 = vunpack.c.l.bf16 %v1918
      %v1969 = vunpack.c.l.bf16 %v1919
      %v1970 = vunpack.c.l.bf16 %v1920
      %v1971 = vunpack.c.l.bf16 %v1921
      %v1972 = vunpack.c.l.bf16 %v1922
      %v1973 = vunpack.c.l.bf16 %v1923
      %v1974 = vunpack.c.l.bf16 %v1924
      %v1975 = vunpack.c.l.bf16 %v1925
      %v1976 = vunpack.c.l.bf16 %v1926
      %v1977 = vunpack.c.l.bf16 %v1927
      %v1978 = vunpack.c.l.bf16 %v1928
      %v1979 = vunpack.c.l.bf16 %v1929
      %v1980 = vunpack.c.l.bf16 %v1930
      %v1981 = vunpack.c.l.bf16 %v1931
      %v1982 = vunpack.c.l.bf16 %v1932
      %v1983 = vunpack.c.l.bf16 %v1933
      %v1984 = vunpack.c.l.bf16 %v1934
      %v1985 = vunpack.c.l.bf16 %v1935
      %v1986 = vunpack.c.l.bf16 %v1936
      %v1987 = vunpack.c.l.bf16 %v1937
      %v1988 = vunpack.c.l.bf16 %v1938
      %v1989 = vunpack.c.l.bf16 %v1939
      %v1990 = vunpack.c.l.bf16 %v1940
      %v1991 = vunpack.c.l.bf16 %v1941
      %v1992 = vunpack.c.l.bf16 %v1942
      %vm2023 = vcmask 1045504
      %v2024 = vrot.slane %v1963, 2
      %v2025 = vrot.slane %v1964, 2
      %v2026 = vsel %vm2023, %v2024, %v2025
      %v2027 = vrot.slane %v1965, 2
      %v2028 = vsel %vm2023, %v2025, %v2027
      %v2029 = vrot.slane %v1966, 2
      %v2030 = vrot.slane %v1967, 2
      %v2031 = vsel %vm2023, %v2029, %v2030
      %v2032 = vrot.slane %v1968, 2
      %v2033 = vsel %vm2023, %v2030, %v2032
      %v2034 = vrot.slane %v1969, 2
      %v2035 = vrot.slane %v1970, 2
      %v2036 = vsel %vm2023, %v2034, %v2035
      %v2037 = vrot.slane %v1971, 2
      %v2038 = vsel %vm2023, %v2035, %v2037
      %v2039 = vrot.slane %v1972, 2
      %v2040 = vrot.slane %v1973, 2
      %v2041 = vsel %vm2023, %v2039, %v2040
      %v2042 = vrot.slane %v1974, 2
      %v2043 = vsel %vm2023, %v2040, %v2042
      %v2044 = vrot.slane %v1975, 2
      %v2045 = vrot.slane %v1976, 2
      %v2046 = vsel %vm2023, %v2044, %v2045
      %v2047 = vrot.slane %v1977, 2
      %v2048 = vsel %vm2023, %v2045, %v2047
      %v2049 = vrot.slane %v1978, 2
      %v2050 = vrot.slane %v1979, 2
      %v2051 = vsel %vm2023, %v2049, %v2050
      %v2052 = vrot.slane %v1980, 2
      %v2053 = vsel %vm2023, %v2050, %v2052
      %v2054 = vrot.slane %v1981, 2
      %v2055 = vrot.slane %v1982, 2
      %v2056 = vsel %vm2023, %v2054, %v2055
      %v2057 = vrot.slane %v1983, 2
      %v2058 = vsel %vm2023, %v2055, %v2057
      %v2059 = vrot.slane %v1984, 2
      %v2060 = vrot.slane %v1985, 2
      %v2061 = vsel %vm2023, %v2059, %v2060
      %v2062 = vrot.slane %v1986, 2
      %v2063 = vsel %vm2023, %v2060, %v2062
      %v2064 = vrot.slane %v1987, 2
      %v2065 = vrot.slane %v1988, 2
      %v2066 = vsel %vm2023, %v2064, %v2065
      %v2067 = vrot.slane %v1989, 2
      %v2068 = vsel %vm2023, %v2065, %v2067
      %v2069 = vrot.slane %v1990, 2
      %v2070 = vrot.slane %v1991, 2
      %v2071 = vsel %vm2023, %v2069, %v2070
      %v2072 = vrot.slane %v1992, 2
      %v2073 = vsel %vm2023, %v2070, %v2072
      %v2094 = vadd.f32 %v1943, %v2026
      %v2095 = vadd.f32 %v1944, %v2028
      %v2096 = vadd.f32 %v1945, %v2031
      %v2097 = vadd.f32 %v1946, %v2033
      %v2098 = vadd.f32 %v1947, %v2036
      %v2099 = vadd.f32 %v1948, %v2038
      %v2100 = vadd.f32 %v1949, %v2041
      %v2101 = vadd.f32 %v1950, %v2043
      %v2102 = vadd.f32 %v1951, %v2046
      %v2103 = vadd.f32 %v1952, %v2048
      %v2104 = vadd.f32 %v1953, %v2051
      %v2105 = vadd.f32 %v1954, %v2053
      %v2106 = vadd.f32 %v1955, %v2056
      %v2107 = vadd.f32 %v1956, %v2058
      %v2108 = vadd.f32 %v1957, %v2061
      %v2109 = vadd.f32 %v1958, %v2063
      %v2110 = vadd.f32 %v1959, %v2066
      %v2111 = vadd.f32 %v1960, %v2068
      %v2112 = vadd.f32 %v1961, %v2071
      %v2113 = vadd.f32 %v1962, %v2073
      %v2114 = vpack.c.bf16 %v2094, %v2094
      %v2115 = vpack.c.bf16 %v2095, %v2095
      %v2116 = vpack.c.bf16 %v2096, %v2096
      %v2117 = vpack.c.bf16 %v2097, %v2097
      %v2118 = vpack.c.bf16 %v2098, %v2098
      %v2119 = vpack.c.bf16 %v2099, %v2099
      %v2120 = vpack.c.bf16 %v2100, %v2100
      %v2121 = vpack.c.bf16 %v2101, %v2101
      %v2122 = vpack.c.bf16 %v2102, %v2102
      %v2123 = vpack.c.bf16 %v2103, %v2103
      %v2124 = vpack.c.bf16 %v2104, %v2104
      %v2125 = vpack.c.bf16 %v2105, %v2105
      %v2126 = vpack.c.bf16 %v2106, %v2106
      %v2127 = vpack.c.bf16 %v2107, %v2107
      %v2128 = vpack.c.bf16 %v2108, %v2108
      %v2129 = vpack.c.bf16 %v2109, %v2109
      %v2130 = vpack.c.bf16 %v2110, %v2110
      %v2131 = vpack.c.bf16 %v2111, %v2111
      %v2132 = vpack.c.bf16 %v2112, %v2112
      %v2133 = vpack.c.bf16 %v2113, %v2113
      %v2135 = vpack.i.b16 %v1488, %v1488
      %v2137 = vperm.slane %v2135, 0
      %v2138 = vunpack.c.l.bf16 %v1473
      %v2139 = vunpack.c.h.bf16 %v1473
      %v2140 = vunpack.c.l.bf16 %v2137
      %v2141 = vmul.f32 %v1496, %v2140
      %v2142 = vmul.f32 %v1497, %v2140
      %v2143 = vmul.f32 %v1498, %v2140
      %v2144 = vmul.f32 %v1499, %v2140
      %v2145 = vmul.f32 %v1500, %v2140
      %v2146 = vmul.f32 %v1501, %v2140
      %v2147 = vmul.f32 %v1502, %v2140
      %v2148 = vmul.f32 %v1503, %v2140
      %v2149 = vmul.f32 %v1504, %v2140
      %v2150 = vmul.f32 %v1505, %v2140
      %v2151 = vmul.f32 %v1506, %v2140
      %v2152 = vmul.f32 %v1507, %v2140
      %v2153 = vmul.f32 %v1508, %v2140
      %v2154 = vmul.f32 %v1509, %v2140
      %v2155 = vmul.f32 %v1510, %v2140
      %v2156 = vmul.f32 %v1511, %v2140
      %v2157 = vmul.f32 %v1512, %v2140
      %v2158 = vmul.f32 %v1513, %v2140
      %v2159 = vmul.f32 %v2138, %v2140
      %v2160 = vmul.f32 %v2139, %v2140
      %v2161 = vpack.c.bf16 %v2141, %v2141
      %v2162 = vpack.c.bf16 %v2142, %v2142
      %v2163 = vpack.c.bf16 %v2143, %v2143
      %v2164 = vpack.c.bf16 %v2144, %v2144
      %v2165 = vpack.c.bf16 %v2145, %v2145
      %v2166 = vpack.c.bf16 %v2146, %v2146
      %v2167 = vpack.c.bf16 %v2147, %v2147
      %v2168 = vpack.c.bf16 %v2148, %v2148
      %v2169 = vpack.c.bf16 %v2149, %v2149
      %v2170 = vpack.c.bf16 %v2150, %v2150
      %v2171 = vpack.c.bf16 %v2151, %v2151
      %v2172 = vpack.c.bf16 %v2152, %v2152
      %v2173 = vpack.c.bf16 %v2153, %v2153
      %v2174 = vpack.c.bf16 %v2154, %v2154
      %v2175 = vpack.c.bf16 %v2155, %v2155
      %v2176 = vpack.c.bf16 %v2156, %v2156
      %v2177 = vpack.c.bf16 %v2157, %v2157
      %v2178 = vpack.c.bf16 %v2158, %v2158
      %v2179 = vpack.c.bf16 %v2159, %v2159
      %v2180 = vpack.c.bf16 %v2160, %v2160
      %v2181 = vunpack.c.l.bf16 %v2114
      %v2182 = vunpack.c.l.bf16 %v2115
      %v2183 = vunpack.c.l.bf16 %v2116
      %v2184 = vunpack.c.l.bf16 %v2117
      %v2185 = vunpack.c.l.bf16 %v2118
      %v2186 = vunpack.c.l.bf16 %v2119
      %v2187 = vunpack.c.l.bf16 %v2120
      %v2188 = vunpack.c.l.bf16 %v2121
      %v2189 = vunpack.c.l.bf16 %v2122
      %v2190 = vunpack.c.l.bf16 %v2123
      %v2191 = vunpack.c.l.bf16 %v2124
      %v2192 = vunpack.c.l.bf16 %v2125
      %v2193 = vunpack.c.l.bf16 %v2126
      %v2194 = vunpack.c.l.bf16 %v2127
      %v2195 = vunpack.c.l.bf16 %v2128
      %v2196 = vunpack.c.l.bf16 %v2129
      %v2197 = vunpack.c.l.bf16 %v2130
      %v2198 = vunpack.c.l.bf16 %v2131
      %v2199 = vunpack.c.l.bf16 %v2132
      %v2200 = vunpack.c.l.bf16 %v2133
      %v2201 = vunpack.c.l.bf16 %v2161
      %v2202 = vunpack.c.l.bf16 %v2162
      %v2203 = vunpack.c.l.bf16 %v2163
      %v2204 = vunpack.c.l.bf16 %v2164
      %v2205 = vunpack.c.l.bf16 %v2165
      %v2206 = vunpack.c.l.bf16 %v2166
      %v2207 = vunpack.c.l.bf16 %v2167
      %v2208 = vunpack.c.l.bf16 %v2168
      %v2209 = vunpack.c.l.bf16 %v2169
      %v2210 = vunpack.c.l.bf16 %v2170
      %v2211 = vunpack.c.l.bf16 %v2171
      %v2212 = vunpack.c.l.bf16 %v2172
      %v2213 = vunpack.c.l.bf16 %v2173
      %v2214 = vunpack.c.l.bf16 %v2174
      %v2215 = vunpack.c.l.bf16 %v2175
      %v2216 = vunpack.c.l.bf16 %v2176
      %v2217 = vunpack.c.l.bf16 %v2177
      %v2218 = vunpack.c.l.bf16 %v2178
      %v2219 = vunpack.c.l.bf16 %v2179
      %v2220 = vunpack.c.l.bf16 %v2180
      %v2221 = vadd.f32 %v2181, %v2201
      %v2222 = vadd.f32 %v2182, %v2202
      %v2223 = vadd.f32 %v2183, %v2203
      %v2224 = vadd.f32 %v2184, %v2204
      %v2225 = vadd.f32 %v2185, %v2205
      %v2226 = vadd.f32 %v2186, %v2206
      %v2227 = vadd.f32 %v2187, %v2207
      %v2228 = vadd.f32 %v2188, %v2208
      %v2229 = vadd.f32 %v2189, %v2209
      %v2230 = vadd.f32 %v2190, %v2210
      %v2231 = vadd.f32 %v2191, %v2211
      %v2232 = vadd.f32 %v2192, %v2212
      %v2233 = vadd.f32 %v2193, %v2213
      %v2234 = vadd.f32 %v2194, %v2214
      %v2235 = vadd.f32 %v2195, %v2215
      %v2236 = vadd.f32 %v2196, %v2216
      %v2237 = vadd.f32 %v2197, %v2217
      %v2238 = vadd.f32 %v2198, %v2218
      %v2239 = vadd.f32 %v2199, %v2219
      %v2240 = vadd.f32 %v2200, %v2220
      %v2241 = vpack.c.bf16 %v2221, %v2221
      %v2242 = vpack.c.bf16 %v2222, %v2222
      %v2243 = vpack.c.bf16 %v2223, %v2223
      %v2244 = vpack.c.bf16 %v2224, %v2224
      %v2245 = vpack.c.bf16 %v2225, %v2225
      %v2246 = vpack.c.bf16 %v2226, %v2226
      %v2247 = vpack.c.bf16 %v2227, %v2227
      %v2248 = vpack.c.bf16 %v2228, %v2228
      %v2249 = vpack.c.bf16 %v2229, %v2229
      %v2250 = vpack.c.bf16 %v2230, %v2230
      %v2251 = vpack.c.bf16 %v2231, %v2231
      %v2252 = vpack.c.bf16 %v2232, %v2232
      %v2253 = vpack.c.bf16 %v2233, %v2233
      %v2254 = vpack.c.bf16 %v2234, %v2234
      %v2255 = vpack.c.bf16 %v2235, %v2235
      %v2256 = vpack.c.bf16 %v2236, %v2236
      %v2257 = vpack.c.bf16 %v2237, %v2237
      %v2258 = vpack.c.bf16 %v2238, %v2238
      %v2259 = vpack.c.bf16 %v2239, %v2239
      %v2260 = vpack.c.bf16 %v2240, %v2240
      %v2261 = vshrl.u32 %v1488, 16
      %v2262 = vpack.i.b16 %v2261, %v2261
      %v2264 = vperm.slane %v2262, 0
      %v2265 = vunpack.c.l.bf16 %v1485
      %v2266 = vunpack.c.l.bf16 %v2264
      %v2267 = vmul.f32 %v1496, %v2266
      %v2268 = vmul.f32 %v1497, %v2266
      %v2269 = vmul.f32 %v1620, %v2266
      %v2270 = vmul.f32 %v1498, %v2266
      %v2271 = vmul.f32 %v1499, %v2266
      %v2272 = vmul.f32 %v1621, %v2266
      %v2273 = vmul.f32 %v1500, %v2266
      %v2274 = vmul.f32 %v1501, %v2266
      %v2275 = vmul.f32 %v1622, %v2266
      %v2276 = vmul.f32 %v1502, %v2266
      %v2277 = vmul.f32 %v1503, %v2266
      %v2278 = vmul.f32 %v1623, %v2266
      %v2279 = vmul.f32 %v1504, %v2266
      %v2280 = vmul.f32 %v1505, %v2266
      %v2281 = vmul.f32 %v1624, %v2266
      %v2282 = vmul.f32 %v1506, %v2266
      %v2283 = vmul.f32 %v1507, %v2266
      %v2284 = vmul.f32 %v1625, %v2266
      %v2285 = vmul.f32 %v1508, %v2266
      %v2286 = vmul.f32 %v1509, %v2266
      %v2287 = vmul.f32 %v1626, %v2266
      %v2288 = vmul.f32 %v1510, %v2266
      %v2289 = vmul.f32 %v1511, %v2266
      %v2290 = vmul.f32 %v1627, %v2266
      %v2291 = vmul.f32 %v1512, %v2266
      %v2292 = vmul.f32 %v1513, %v2266
      %v2293 = vmul.f32 %v1628, %v2266
      %v2294 = vmul.f32 %v2138, %v2266
      %v2295 = vmul.f32 %v2139, %v2266
      %v2296 = vmul.f32 %v2265, %v2266
      %v2297 = vpack.c.bf16 %v2267, %v2267
      %v2298 = vpack.c.bf16 %v2268, %v2268
      %v2299 = vpack.c.bf16 %v2269, %v2269
      %v2300 = vpack.c.bf16 %v2270, %v2270
      %v2301 = vpack.c.bf16 %v2271, %v2271
      %v2302 = vpack.c.bf16 %v2272, %v2272
      %v2303 = vpack.c.bf16 %v2273, %v2273
      %v2304 = vpack.c.bf16 %v2274, %v2274
      %v2305 = vpack.c.bf16 %v2275, %v2275
      %v2306 = vpack.c.bf16 %v2276, %v2276
      %v2307 = vpack.c.bf16 %v2277, %v2277
      %v2308 = vpack.c.bf16 %v2278, %v2278
      %v2309 = vpack.c.bf16 %v2279, %v2279
      %v2310 = vpack.c.bf16 %v2280, %v2280
      %v2311 = vpack.c.bf16 %v2281, %v2281
      %v2312 = vpack.c.bf16 %v2282, %v2282
      %v2313 = vpack.c.bf16 %v2283, %v2283
      %v2314 = vpack.c.bf16 %v2284, %v2284
      %v2315 = vpack.c.bf16 %v2285, %v2285
      %v2316 = vpack.c.bf16 %v2286, %v2286
      %v2317 = vpack.c.bf16 %v2287, %v2287
      %v2318 = vpack.c.bf16 %v2288, %v2288
      %v2319 = vpack.c.bf16 %v2289, %v2289
      %v2320 = vpack.c.bf16 %v2290, %v2290
      %v2321 = vpack.c.bf16 %v2291, %v2291
      %v2322 = vpack.c.bf16 %v2292, %v2292
      %v2323 = vpack.c.bf16 %v2293, %v2293
      %v2324 = vpack.c.bf16 %v2294, %v2294
      %v2325 = vpack.c.bf16 %v2295, %v2295
      %v2326 = vpack.c.bf16 %v2296, %v2296
      %v2327 = vunpack.c.l.bf16 %v2241
      %v2328 = vunpack.c.l.bf16 %v2242
      %v2329 = vunpack.c.l.bf16 %v2243
      %v2330 = vunpack.c.l.bf16 %v2244
      %v2331 = vunpack.c.l.bf16 %v2245
      %v2332 = vunpack.c.l.bf16 %v2246
      %v2333 = vunpack.c.l.bf16 %v2247
      %v2334 = vunpack.c.l.bf16 %v2248
      %v2335 = vunpack.c.l.bf16 %v2249
      %v2336 = vunpack.c.l.bf16 %v2250
      %v2337 = vunpack.c.l.bf16 %v2251
      %v2338 = vunpack.c.l.bf16 %v2252
      %v2339 = vunpack.c.l.bf16 %v2253
      %v2340 = vunpack.c.l.bf16 %v2254
      %v2341 = vunpack.c.l.bf16 %v2255
      %v2342 = vunpack.c.l.bf16 %v2256
      %v2343 = vunpack.c.l.bf16 %v2257
      %v2344 = vunpack.c.l.bf16 %v2258
      %v2345 = vunpack.c.l.bf16 %v2259
      %v2346 = vunpack.c.l.bf16 %v2260
      %v2347 = vunpack.c.l.bf16 %v2297
      %v2348 = vunpack.c.l.bf16 %v2298
      %v2349 = vunpack.c.l.bf16 %v2299
      %v2350 = vunpack.c.l.bf16 %v2300
      %v2351 = vunpack.c.l.bf16 %v2301
      %v2352 = vunpack.c.l.bf16 %v2302
      %v2353 = vunpack.c.l.bf16 %v2303
      %v2354 = vunpack.c.l.bf16 %v2304
      %v2355 = vunpack.c.l.bf16 %v2305
      %v2356 = vunpack.c.l.bf16 %v2306
      %v2357 = vunpack.c.l.bf16 %v2307
      %v2358 = vunpack.c.l.bf16 %v2308
      %v2359 = vunpack.c.l.bf16 %v2309
      %v2360 = vunpack.c.l.bf16 %v2310
      %v2361 = vunpack.c.l.bf16 %v2311
      %v2362 = vunpack.c.l.bf16 %v2312
      %v2363 = vunpack.c.l.bf16 %v2313
      %v2364 = vunpack.c.l.bf16 %v2314
      %v2365 = vunpack.c.l.bf16 %v2315
      %v2366 = vunpack.c.l.bf16 %v2316
      %v2367 = vunpack.c.l.bf16 %v2317
      %v2368 = vunpack.c.l.bf16 %v2318
      %v2369 = vunpack.c.l.bf16 %v2319
      %v2370 = vunpack.c.l.bf16 %v2320
      %v2371 = vunpack.c.l.bf16 %v2321
      %v2372 = vunpack.c.l.bf16 %v2322
      %v2373 = vunpack.c.l.bf16 %v2323
      %v2374 = vunpack.c.l.bf16 %v2324
      %v2375 = vunpack.c.l.bf16 %v2325
      %v2376 = vunpack.c.l.bf16 %v2326
      %v2407 = vrot.slane %v2347, 1
      %v2408 = vrot.slane %v2348, 1
      %v2409 = vsel %vm1770, %v2407, %v2408
      %v2410 = vrot.slane %v2349, 1
      %v2411 = vsel %vm1770, %v2408, %v2410
      %v2412 = vrot.slane %v2350, 1
      %v2413 = vrot.slane %v2351, 1
      %v2414 = vsel %vm1770, %v2412, %v2413
      %v2415 = vrot.slane %v2352, 1
      %v2416 = vsel %vm1770, %v2413, %v2415
      %v2417 = vrot.slane %v2353, 1
      %v2418 = vrot.slane %v2354, 1
      %v2419 = vsel %vm1770, %v2417, %v2418
      %v2420 = vrot.slane %v2355, 1
      %v2421 = vsel %vm1770, %v2418, %v2420
      %v2422 = vrot.slane %v2356, 1
      %v2423 = vrot.slane %v2357, 1
      %v2424 = vsel %vm1770, %v2422, %v2423
      %v2425 = vrot.slane %v2358, 1
      %v2426 = vsel %vm1770, %v2423, %v2425
      %v2427 = vrot.slane %v2359, 1
      %v2428 = vrot.slane %v2360, 1
      %v2429 = vsel %vm1770, %v2427, %v2428
      %v2430 = vrot.slane %v2361, 1
      %v2431 = vsel %vm1770, %v2428, %v2430
      %v2432 = vrot.slane %v2362, 1
      %v2433 = vrot.slane %v2363, 1
      %v2434 = vsel %vm1770, %v2432, %v2433
      %v2435 = vrot.slane %v2364, 1
      %v2436 = vsel %vm1770, %v2433, %v2435
      %v2437 = vrot.slane %v2365, 1
      %v2438 = vrot.slane %v2366, 1
      %v2439 = vsel %vm1770, %v2437, %v2438
      %v2440 = vrot.slane %v2367, 1
      %v2441 = vsel %vm1770, %v2438, %v2440
      %v2442 = vrot.slane %v2368, 1
      %v2443 = vrot.slane %v2369, 1
      %v2444 = vsel %vm1770, %v2442, %v2443
      %v2445 = vrot.slane %v2370, 1
      %v2446 = vsel %vm1770, %v2443, %v2445
      %v2447 = vrot.slane %v2371, 1
      %v2448 = vrot.slane %v2372, 1
      %v2449 = vsel %vm1770, %v2447, %v2448
      %v2450 = vrot.slane %v2373, 1
      %v2451 = vsel %vm1770, %v2448, %v2450
      %v2452 = vrot.slane %v2374, 1
      %v2453 = vrot.slane %v2375, 1
      %v2454 = vsel %vm1770, %v2452, %v2453
      %v2455 = vrot.slane %v2376, 1
      %v2456 = vsel %vm1770, %v2453, %v2455
      %v2477 = vadd.f32 %v2327, %v2409
      %v2478 = vadd.f32 %v2328, %v2411
      %v2479 = vadd.f32 %v2329, %v2414
      %v2480 = vadd.f32 %v2330, %v2416
      %v2481 = vadd.f32 %v2331, %v2419
      %v2482 = vadd.f32 %v2332, %v2421
      %v2483 = vadd.f32 %v2333, %v2424
      %v2484 = vadd.f32 %v2334, %v2426
      %v2485 = vadd.f32 %v2335, %v2429
      %v2486 = vadd.f32 %v2336, %v2431
      %v2487 = vadd.f32 %v2337, %v2434
      %v2488 = vadd.f32 %v2338, %v2436
      %v2489 = vadd.f32 %v2339, %v2439
      %v2490 = vadd.f32 %v2340, %v2441
      %v2491 = vadd.f32 %v2341, %v2444
      %v2492 = vadd.f32 %v2342, %v2446
      %v2493 = vadd.f32 %v2343, %v2449
      %v2494 = vadd.f32 %v2344, %v2451
      %v2495 = vadd.f32 %v2345, %v2454
      %v2496 = vadd.f32 %v2346, %v2456
      %v2497 = vpack.c.bf16 %v2477, %v2477
      %v2498 = vpack.c.bf16 %v2478, %v2478
      %v2499 = vpack.c.bf16 %v2479, %v2479
      %v2500 = vpack.c.bf16 %v2480, %v2480
      %v2501 = vpack.c.bf16 %v2481, %v2481
      %v2502 = vpack.c.bf16 %v2482, %v2482
      %v2503 = vpack.c.bf16 %v2483, %v2483
      %v2504 = vpack.c.bf16 %v2484, %v2484
      %v2505 = vpack.c.bf16 %v2485, %v2485
      %v2506 = vpack.c.bf16 %v2486, %v2486
      %v2507 = vpack.c.bf16 %v2487, %v2487
      %v2508 = vpack.c.bf16 %v2488, %v2488
      %v2509 = vpack.c.bf16 %v2489, %v2489
      %v2510 = vpack.c.bf16 %v2490, %v2490
      %v2511 = vpack.c.bf16 %v2491, %v2491
      %v2512 = vpack.c.bf16 %v2492, %v2492
      %v2513 = vpack.c.bf16 %v2493, %v2493
      %v2514 = vpack.c.bf16 %v2494, %v2494
      %v2515 = vpack.c.bf16 %v2495, %v2495
      %v2516 = vpack.c.bf16 %v2496, %v2496
      %v2517 = vperm.slane %v2135, 1
      %v2518 = vunpack.c.l.bf16 %v2517
      %v2519 = vmul.f32 %v1496, %v2518
      %v2520 = vmul.f32 %v1497, %v2518
      %v2521 = vmul.f32 %v1620, %v2518
      %v2522 = vmul.f32 %v1498, %v2518
      %v2523 = vmul.f32 %v1499, %v2518
      %v2524 = vmul.f32 %v1621, %v2518
      %v2525 = vmul.f32 %v1500, %v2518
      %v2526 = vmul.f32 %v1501, %v2518
      %v2527 = vmul.f32 %v1622, %v2518
      %v2528 = vmul.f32 %v1502, %v2518
      %v2529 = vmul.f32 %v1503, %v2518
      %v2530 = vmul.f32 %v1623, %v2518
      %v2531 = vmul.f32 %v1504, %v2518
      %v2532 = vmul.f32 %v1505, %v2518
      %v2533 = vmul.f32 %v1624, %v2518
      %v2534 = vmul.f32 %v1506, %v2518
      %v2535 = vmul.f32 %v1507, %v2518
      %v2536 = vmul.f32 %v1625, %v2518
      %v2537 = vmul.f32 %v1508, %v2518
      %v2538 = vmul.f32 %v1509, %v2518
      %v2539 = vmul.f32 %v1626, %v2518
      %v2540 = vmul.f32 %v1510, %v2518
      %v2541 = vmul.f32 %v1511, %v2518
      %v2542 = vmul.f32 %v1627, %v2518
      %v2543 = vmul.f32 %v1512, %v2518
      %v2544 = vmul.f32 %v1513, %v2518
      %v2545 = vmul.f32 %v1628, %v2518
      %v2546 = vmul.f32 %v2138, %v2518
      %v2547 = vmul.f32 %v2139, %v2518
      %v2548 = vmul.f32 %v2265, %v2518
      %v2549 = vpack.c.bf16 %v2519, %v2519
      %v2550 = vpack.c.bf16 %v2520, %v2520
      %v2551 = vpack.c.bf16 %v2521, %v2521
      %v2552 = vpack.c.bf16 %v2522, %v2522
      %v2553 = vpack.c.bf16 %v2523, %v2523
      %v2554 = vpack.c.bf16 %v2524, %v2524
      %v2555 = vpack.c.bf16 %v2525, %v2525
      %v2556 = vpack.c.bf16 %v2526, %v2526
      %v2557 = vpack.c.bf16 %v2527, %v2527
      %v2558 = vpack.c.bf16 %v2528, %v2528
      %v2559 = vpack.c.bf16 %v2529, %v2529
      %v2560 = vpack.c.bf16 %v2530, %v2530
      %v2561 = vpack.c.bf16 %v2531, %v2531
      %v2562 = vpack.c.bf16 %v2532, %v2532
      %v2563 = vpack.c.bf16 %v2533, %v2533
      %v2564 = vpack.c.bf16 %v2534, %v2534
      %v2565 = vpack.c.bf16 %v2535, %v2535
      %v2566 = vpack.c.bf16 %v2536, %v2536
      %v2567 = vpack.c.bf16 %v2537, %v2537
      %v2568 = vpack.c.bf16 %v2538, %v2538
      %v2569 = vpack.c.bf16 %v2539, %v2539
      %v2570 = vpack.c.bf16 %v2540, %v2540
      %v2571 = vpack.c.bf16 %v2541, %v2541
      %v2572 = vpack.c.bf16 %v2542, %v2542
      %v2573 = vpack.c.bf16 %v2543, %v2543
      %v2574 = vpack.c.bf16 %v2544, %v2544
      %v2575 = vpack.c.bf16 %v2545, %v2545
      %v2576 = vpack.c.bf16 %v2546, %v2546
      %v2577 = vpack.c.bf16 %v2547, %v2547
      %v2578 = vpack.c.bf16 %v2548, %v2548
      %v2579 = vunpack.c.l.bf16 %v2497
      %v2580 = vunpack.c.l.bf16 %v2498
      %v2581 = vunpack.c.l.bf16 %v2499
      %v2582 = vunpack.c.l.bf16 %v2500
      %v2583 = vunpack.c.l.bf16 %v2501
      %v2584 = vunpack.c.l.bf16 %v2502
      %v2585 = vunpack.c.l.bf16 %v2503
      %v2586 = vunpack.c.l.bf16 %v2504
      %v2587 = vunpack.c.l.bf16 %v2505
      %v2588 = vunpack.c.l.bf16 %v2506
      %v2589 = vunpack.c.l.bf16 %v2507
      %v2590 = vunpack.c.l.bf16 %v2508
      %v2591 = vunpack.c.l.bf16 %v2509
      %v2592 = vunpack.c.l.bf16 %v2510
      %v2593 = vunpack.c.l.bf16 %v2511
      %v2594 = vunpack.c.l.bf16 %v2512
      %v2595 = vunpack.c.l.bf16 %v2513
      %v2596 = vunpack.c.l.bf16 %v2514
      %v2597 = vunpack.c.l.bf16 %v2515
      %v2598 = vunpack.c.l.bf16 %v2516
      %v2599 = vunpack.c.l.bf16 %v2549
      %v2600 = vunpack.c.l.bf16 %v2550
      %v2601 = vunpack.c.l.bf16 %v2551
      %v2602 = vunpack.c.l.bf16 %v2552
      %v2603 = vunpack.c.l.bf16 %v2553
      %v2604 = vunpack.c.l.bf16 %v2554
      %v2605 = vunpack.c.l.bf16 %v2555
      %v2606 = vunpack.c.l.bf16 %v2556
      %v2607 = vunpack.c.l.bf16 %v2557
      %v2608 = vunpack.c.l.bf16 %v2558
      %v2609 = vunpack.c.l.bf16 %v2559
      %v2610 = vunpack.c.l.bf16 %v2560
      %v2611 = vunpack.c.l.bf16 %v2561
      %v2612 = vunpack.c.l.bf16 %v2562
      %v2613 = vunpack.c.l.bf16 %v2563
      %v2614 = vunpack.c.l.bf16 %v2564
      %v2615 = vunpack.c.l.bf16 %v2565
      %v2616 = vunpack.c.l.bf16 %v2566
      %v2617 = vunpack.c.l.bf16 %v2567
      %v2618 = vunpack.c.l.bf16 %v2568
      %v2619 = vunpack.c.l.bf16 %v2569
      %v2620 = vunpack.c.l.bf16 %v2570
      %v2621 = vunpack.c.l.bf16 %v2571
      %v2622 = vunpack.c.l.bf16 %v2572
      %v2623 = vunpack.c.l.bf16 %v2573
      %v2624 = vunpack.c.l.bf16 %v2574
      %v2625 = vunpack.c.l.bf16 %v2575
      %v2626 = vunpack.c.l.bf16 %v2576
      %v2627 = vunpack.c.l.bf16 %v2577
      %v2628 = vunpack.c.l.bf16 %v2578
      %v2659 = vrot.slane %v2599, 2
      %v2660 = vrot.slane %v2600, 2
      %v2661 = vsel %vm2023, %v2659, %v2660
      %v2662 = vrot.slane %v2601, 2
      %v2663 = vsel %vm2023, %v2660, %v2662
      %v2664 = vrot.slane %v2602, 2
      %v2665 = vrot.slane %v2603, 2
      %v2666 = vsel %vm2023, %v2664, %v2665
      %v2667 = vrot.slane %v2604, 2
      %v2668 = vsel %vm2023, %v2665, %v2667
      %v2669 = vrot.slane %v2605, 2
      %v2670 = vrot.slane %v2606, 2
      %v2671 = vsel %vm2023, %v2669, %v2670
      %v2672 = vrot.slane %v2607, 2
      %v2673 = vsel %vm2023, %v2670, %v2672
      %v2674 = vrot.slane %v2608, 2
      %v2675 = vrot.slane %v2609, 2
      %v2676 = vsel %vm2023, %v2674, %v2675
      %v2677 = vrot.slane %v2610, 2
      %v2678 = vsel %vm2023, %v2675, %v2677
      %v2679 = vrot.slane %v2611, 2
      %v2680 = vrot.slane %v2612, 2
      %v2681 = vsel %vm2023, %v2679, %v2680
      %v2682 = vrot.slane %v2613, 2
      %v2683 = vsel %vm2023, %v2680, %v2682
      %v2684 = vrot.slane %v2614, 2
      %v2685 = vrot.slane %v2615, 2
      %v2686 = vsel %vm2023, %v2684, %v2685
      %v2687 = vrot.slane %v2616, 2
      %v2688 = vsel %vm2023, %v2685, %v2687
      %v2689 = vrot.slane %v2617, 2
      %v2690 = vrot.slane %v2618, 2
      %v2691 = vsel %vm2023, %v2689, %v2690
      %v2692 = vrot.slane %v2619, 2
      %v2693 = vsel %vm2023, %v2690, %v2692
      %v2694 = vrot.slane %v2620, 2
      %v2695 = vrot.slane %v2621, 2
      %v2696 = vsel %vm2023, %v2694, %v2695
      %v2697 = vrot.slane %v2622, 2
      %v2698 = vsel %vm2023, %v2695, %v2697
      %v2699 = vrot.slane %v2623, 2
      %v2700 = vrot.slane %v2624, 2
      %v2701 = vsel %vm2023, %v2699, %v2700
      %v2702 = vrot.slane %v2625, 2
      %v2703 = vsel %vm2023, %v2700, %v2702
      %v2704 = vrot.slane %v2626, 2
      %v2705 = vrot.slane %v2627, 2
      %v2706 = vsel %vm2023, %v2704, %v2705
      %v2707 = vrot.slane %v2628, 2
      %v2708 = vsel %vm2023, %v2705, %v2707
      %v2729 = vadd.f32 %v2579, %v2661
      %v2730 = vadd.f32 %v2580, %v2663
      %v2731 = vadd.f32 %v2581, %v2666
      %v2732 = vadd.f32 %v2582, %v2668
      %v2733 = vadd.f32 %v2583, %v2671
      %v2734 = vadd.f32 %v2584, %v2673
      %v2735 = vadd.f32 %v2585, %v2676
      %v2736 = vadd.f32 %v2586, %v2678
      %v2737 = vadd.f32 %v2587, %v2681
      %v2738 = vadd.f32 %v2588, %v2683
      %v2739 = vadd.f32 %v2589, %v2686
      %v2740 = vadd.f32 %v2590, %v2688
      %v2741 = vadd.f32 %v2591, %v2691
      %v2742 = vadd.f32 %v2592, %v2693
      %v2743 = vadd.f32 %v2593, %v2696
      %v2744 = vadd.f32 %v2594, %v2698
      %v2745 = vadd.f32 %v2595, %v2701
      %v2746 = vadd.f32 %v2596, %v2703
      %v2747 = vadd.f32 %v2597, %v2706
      %v2748 = vadd.f32 %v2598, %v2708
      %v2749 = vpack.c.bf16 %v2729, %v2729
      %v2750 = vpack.c.bf16 %v2730, %v2730
      %v2751 = vpack.c.bf16 %v2731, %v2731
      %v2752 = vpack.c.bf16 %v2732, %v2732
      %v2753 = vpack.c.bf16 %v2733, %v2733
      %v2754 = vpack.c.bf16 %v2734, %v2734
      %v2755 = vpack.c.bf16 %v2735, %v2735
      %v2756 = vpack.c.bf16 %v2736, %v2736
      %v2757 = vpack.c.bf16 %v2737, %v2737
      %v2758 = vpack.c.bf16 %v2738, %v2738
      %v2759 = vpack.c.bf16 %v2739, %v2739
      %v2760 = vpack.c.bf16 %v2740, %v2740
      %v2761 = vpack.c.bf16 %v2741, %v2741
      %v2762 = vpack.c.bf16 %v2742, %v2742
      %v2763 = vpack.c.bf16 %v2743, %v2743
      %v2764 = vpack.c.bf16 %v2744, %v2744
      %v2765 = vpack.c.bf16 %v2745, %v2745
      %v2766 = vpack.c.bf16 %v2746, %v2746
      %v2767 = vpack.c.bf16 %v2747, %v2747
      %v2768 = vpack.c.bf16 %v2748, %v2748
      %v2770 = vpack.i.b16 %v1489, %v1489
      %v2772 = vperm.slane %v2770, 0
      %v2773 = vunpack.c.l.bf16 %v1474
      %v2774 = vunpack.c.h.bf16 %v1474
      %v2775 = vunpack.c.l.bf16 %v2772
      %v2776 = vmul.f32 %v1498, %v2775
      %v2777 = vmul.f32 %v1499, %v2775
      %v2778 = vmul.f32 %v1500, %v2775
      %v2779 = vmul.f32 %v1501, %v2775
      %v2780 = vmul.f32 %v1502, %v2775
      %v2781 = vmul.f32 %v1503, %v2775
      %v2782 = vmul.f32 %v1504, %v2775
      %v2783 = vmul.f32 %v1505, %v2775
      %v2784 = vmul.f32 %v1506, %v2775
      %v2785 = vmul.f32 %v1507, %v2775
      %v2786 = vmul.f32 %v1508, %v2775
      %v2787 = vmul.f32 %v1509, %v2775
      %v2788 = vmul.f32 %v1510, %v2775
      %v2789 = vmul.f32 %v1511, %v2775
      %v2790 = vmul.f32 %v1512, %v2775
      %v2791 = vmul.f32 %v1513, %v2775
      %v2792 = vmul.f32 %v2138, %v2775
      %v2793 = vmul.f32 %v2139, %v2775
      %v2794 = vmul.f32 %v2773, %v2775
      %v2795 = vmul.f32 %v2774, %v2775
      %v2796 = vpack.c.bf16 %v2776, %v2776
      %v2797 = vpack.c.bf16 %v2777, %v2777
      %v2798 = vpack.c.bf16 %v2778, %v2778
      %v2799 = vpack.c.bf16 %v2779, %v2779
      %v2800 = vpack.c.bf16 %v2780, %v2780
      %v2801 = vpack.c.bf16 %v2781, %v2781
      %v2802 = vpack.c.bf16 %v2782, %v2782
      %v2803 = vpack.c.bf16 %v2783, %v2783
      %v2804 = vpack.c.bf16 %v2784, %v2784
      %v2805 = vpack.c.bf16 %v2785, %v2785
      %v2806 = vpack.c.bf16 %v2786, %v2786
      %v2807 = vpack.c.bf16 %v2787, %v2787
      %v2808 = vpack.c.bf16 %v2788, %v2788
      %v2809 = vpack.c.bf16 %v2789, %v2789
      %v2810 = vpack.c.bf16 %v2790, %v2790
      %v2811 = vpack.c.bf16 %v2791, %v2791
      %v2812 = vpack.c.bf16 %v2792, %v2792
      %v2813 = vpack.c.bf16 %v2793, %v2793
      %v2814 = vpack.c.bf16 %v2794, %v2794
      %v2815 = vpack.c.bf16 %v2795, %v2795
      %v2816 = vunpack.c.l.bf16 %v2749
      %v2817 = vunpack.c.l.bf16 %v2750
      %v2818 = vunpack.c.l.bf16 %v2751
      %v2819 = vunpack.c.l.bf16 %v2752
      %v2820 = vunpack.c.l.bf16 %v2753
      %v2821 = vunpack.c.l.bf16 %v2754
      %v2822 = vunpack.c.l.bf16 %v2755
      %v2823 = vunpack.c.l.bf16 %v2756
      %v2824 = vunpack.c.l.bf16 %v2757
      %v2825 = vunpack.c.l.bf16 %v2758
      %v2826 = vunpack.c.l.bf16 %v2759
      %v2827 = vunpack.c.l.bf16 %v2760
      %v2828 = vunpack.c.l.bf16 %v2761
      %v2829 = vunpack.c.l.bf16 %v2762
      %v2830 = vunpack.c.l.bf16 %v2763
      %v2831 = vunpack.c.l.bf16 %v2764
      %v2832 = vunpack.c.l.bf16 %v2765
      %v2833 = vunpack.c.l.bf16 %v2766
      %v2834 = vunpack.c.l.bf16 %v2767
      %v2835 = vunpack.c.l.bf16 %v2768
      %v2836 = vunpack.c.l.bf16 %v2796
      %v2837 = vunpack.c.l.bf16 %v2797
      %v2838 = vunpack.c.l.bf16 %v2798
      %v2839 = vunpack.c.l.bf16 %v2799
      %v2840 = vunpack.c.l.bf16 %v2800
      %v2841 = vunpack.c.l.bf16 %v2801
      %v2842 = vunpack.c.l.bf16 %v2802
      %v2843 = vunpack.c.l.bf16 %v2803
      %v2844 = vunpack.c.l.bf16 %v2804
      %v2845 = vunpack.c.l.bf16 %v2805
      %v2846 = vunpack.c.l.bf16 %v2806
      %v2847 = vunpack.c.l.bf16 %v2807
      %v2848 = vunpack.c.l.bf16 %v2808
      %v2849 = vunpack.c.l.bf16 %v2809
      %v2850 = vunpack.c.l.bf16 %v2810
      %v2851 = vunpack.c.l.bf16 %v2811
      %v2852 = vunpack.c.l.bf16 %v2812
      %v2853 = vunpack.c.l.bf16 %v2813
      %v2854 = vunpack.c.l.bf16 %v2814
      %v2855 = vunpack.c.l.bf16 %v2815
      %v2856 = vadd.f32 %v2816, %v2836
      %v2857 = vadd.f32 %v2817, %v2837
      %v2858 = vadd.f32 %v2818, %v2838
      %v2859 = vadd.f32 %v2819, %v2839
      %v2860 = vadd.f32 %v2820, %v2840
      %v2861 = vadd.f32 %v2821, %v2841
      %v2862 = vadd.f32 %v2822, %v2842
      %v2863 = vadd.f32 %v2823, %v2843
      %v2864 = vadd.f32 %v2824, %v2844
      %v2865 = vadd.f32 %v2825, %v2845
      %v2866 = vadd.f32 %v2826, %v2846
      %v2867 = vadd.f32 %v2827, %v2847
      %v2868 = vadd.f32 %v2828, %v2848
      %v2869 = vadd.f32 %v2829, %v2849
      %v2870 = vadd.f32 %v2830, %v2850
      %v2871 = vadd.f32 %v2831, %v2851
      %v2872 = vadd.f32 %v2832, %v2852
      %v2873 = vadd.f32 %v2833, %v2853
      %v2874 = vadd.f32 %v2834, %v2854
      %v2875 = vadd.f32 %v2835, %v2855
      %v2876 = vpack.c.bf16 %v2856, %v2856
      %v2877 = vpack.c.bf16 %v2857, %v2857
      %v2878 = vpack.c.bf16 %v2858, %v2858
      %v2879 = vpack.c.bf16 %v2859, %v2859
      %v2880 = vpack.c.bf16 %v2860, %v2860
      %v2881 = vpack.c.bf16 %v2861, %v2861
      %v2882 = vpack.c.bf16 %v2862, %v2862
      %v2883 = vpack.c.bf16 %v2863, %v2863
      %v2884 = vpack.c.bf16 %v2864, %v2864
      %v2885 = vpack.c.bf16 %v2865, %v2865
      %v2886 = vpack.c.bf16 %v2866, %v2866
      %v2887 = vpack.c.bf16 %v2867, %v2867
      %v2888 = vpack.c.bf16 %v2868, %v2868
      %v2889 = vpack.c.bf16 %v2869, %v2869
      %v2890 = vpack.c.bf16 %v2870, %v2870
      %v2891 = vpack.c.bf16 %v2871, %v2871
      %v2892 = vpack.c.bf16 %v2872, %v2872
      %v2893 = vpack.c.bf16 %v2873, %v2873
      %v2894 = vpack.c.bf16 %v2874, %v2874
      %v2895 = vpack.c.bf16 %v2875, %v2875
      %v2896 = vshrl.u32 %v1489, 16
      %v2897 = vpack.i.b16 %v2896, %v2896
      %v2899 = vperm.slane %v2897, 0
      %v2900 = vunpack.c.l.bf16 %v1486
      %v2901 = vunpack.c.l.bf16 %v2899
      %v2902 = vmul.f32 %v1498, %v2901
      %v2903 = vmul.f32 %v1499, %v2901
      %v2904 = vmul.f32 %v1621, %v2901
      %v2905 = vmul.f32 %v1500, %v2901
      %v2906 = vmul.f32 %v1501, %v2901
      %v2907 = vmul.f32 %v1622, %v2901
      %v2908 = vmul.f32 %v1502, %v2901
      %v2909 = vmul.f32 %v1503, %v2901
      %v2910 = vmul.f32 %v1623, %v2901
      %v2911 = vmul.f32 %v1504, %v2901
      %v2912 = vmul.f32 %v1505, %v2901
      %v2913 = vmul.f32 %v1624, %v2901
      %v2914 = vmul.f32 %v1506, %v2901
      %v2915 = vmul.f32 %v1507, %v2901
      %v2916 = vmul.f32 %v1625, %v2901
      %v2917 = vmul.f32 %v1508, %v2901
      %v2918 = vmul.f32 %v1509, %v2901
      %v2919 = vmul.f32 %v1626, %v2901
      %v2920 = vmul.f32 %v1510, %v2901
      %v2921 = vmul.f32 %v1511, %v2901
      %v2922 = vmul.f32 %v1627, %v2901
      %v2923 = vmul.f32 %v1512, %v2901
      %v2924 = vmul.f32 %v1513, %v2901
      %v2925 = vmul.f32 %v1628, %v2901
      %v2926 = vmul.f32 %v2138, %v2901
      %v2927 = vmul.f32 %v2139, %v2901
      %v2928 = vmul.f32 %v2265, %v2901
      %v2929 = vmul.f32 %v2773, %v2901
      %v2930 = vmul.f32 %v2774, %v2901
      %v2931 = vmul.f32 %v2900, %v2901
      %v2932 = vpack.c.bf16 %v2902, %v2902
      %v2933 = vpack.c.bf16 %v2903, %v2903
      %v2934 = vpack.c.bf16 %v2904, %v2904
      %v2935 = vpack.c.bf16 %v2905, %v2905
      %v2936 = vpack.c.bf16 %v2906, %v2906
      %v2937 = vpack.c.bf16 %v2907, %v2907
      %v2938 = vpack.c.bf16 %v2908, %v2908
      %v2939 = vpack.c.bf16 %v2909, %v2909
      %v2940 = vpack.c.bf16 %v2910, %v2910
      %v2941 = vpack.c.bf16 %v2911, %v2911
      %v2942 = vpack.c.bf16 %v2912, %v2912
      %v2943 = vpack.c.bf16 %v2913, %v2913
      %v2944 = vpack.c.bf16 %v2914, %v2914
      %v2945 = vpack.c.bf16 %v2915, %v2915
      %v2946 = vpack.c.bf16 %v2916, %v2916
      %v2947 = vpack.c.bf16 %v2917, %v2917
      %v2948 = vpack.c.bf16 %v2918, %v2918
      %v2949 = vpack.c.bf16 %v2919, %v2919
      %v2950 = vpack.c.bf16 %v2920, %v2920
      %v2951 = vpack.c.bf16 %v2921, %v2921
      %v2952 = vpack.c.bf16 %v2922, %v2922
      %v2953 = vpack.c.bf16 %v2923, %v2923
      %v2954 = vpack.c.bf16 %v2924, %v2924
      %v2955 = vpack.c.bf16 %v2925, %v2925
      %v2956 = vpack.c.bf16 %v2926, %v2926
      %v2957 = vpack.c.bf16 %v2927, %v2927
      %v2958 = vpack.c.bf16 %v2928, %v2928
      %v2959 = vpack.c.bf16 %v2929, %v2929
      %v2960 = vpack.c.bf16 %v2930, %v2930
      %v2961 = vpack.c.bf16 %v2931, %v2931
      %v2962 = vunpack.c.l.bf16 %v2876
      %v2963 = vunpack.c.l.bf16 %v2877
      %v2964 = vunpack.c.l.bf16 %v2878
      %v2965 = vunpack.c.l.bf16 %v2879
      %v2966 = vunpack.c.l.bf16 %v2880
      %v2967 = vunpack.c.l.bf16 %v2881
      %v2968 = vunpack.c.l.bf16 %v2882
      %v2969 = vunpack.c.l.bf16 %v2883
      %v2970 = vunpack.c.l.bf16 %v2884
      %v2971 = vunpack.c.l.bf16 %v2885
      %v2972 = vunpack.c.l.bf16 %v2886
      %v2973 = vunpack.c.l.bf16 %v2887
      %v2974 = vunpack.c.l.bf16 %v2888
      %v2975 = vunpack.c.l.bf16 %v2889
      %v2976 = vunpack.c.l.bf16 %v2890
      %v2977 = vunpack.c.l.bf16 %v2891
      %v2978 = vunpack.c.l.bf16 %v2892
      %v2979 = vunpack.c.l.bf16 %v2893
      %v2980 = vunpack.c.l.bf16 %v2894
      %v2981 = vunpack.c.l.bf16 %v2895
      %v2982 = vunpack.c.l.bf16 %v2932
      %v2983 = vunpack.c.l.bf16 %v2933
      %v2984 = vunpack.c.l.bf16 %v2934
      %v2985 = vunpack.c.l.bf16 %v2935
      %v2986 = vunpack.c.l.bf16 %v2936
      %v2987 = vunpack.c.l.bf16 %v2937
      %v2988 = vunpack.c.l.bf16 %v2938
      %v2989 = vunpack.c.l.bf16 %v2939
      %v2990 = vunpack.c.l.bf16 %v2940
      %v2991 = vunpack.c.l.bf16 %v2941
      %v2992 = vunpack.c.l.bf16 %v2942
      %v2993 = vunpack.c.l.bf16 %v2943
      %v2994 = vunpack.c.l.bf16 %v2944
      %v2995 = vunpack.c.l.bf16 %v2945
      %v2996 = vunpack.c.l.bf16 %v2946
      %v2997 = vunpack.c.l.bf16 %v2947
      %v2998 = vunpack.c.l.bf16 %v2948
      %v2999 = vunpack.c.l.bf16 %v2949
      %v3000 = vunpack.c.l.bf16 %v2950
      %v3001 = vunpack.c.l.bf16 %v2951
      %v3002 = vunpack.c.l.bf16 %v2952
      %v3003 = vunpack.c.l.bf16 %v2953
      %v3004 = vunpack.c.l.bf16 %v2954
      %v3005 = vunpack.c.l.bf16 %v2955
      %v3006 = vunpack.c.l.bf16 %v2956
      %v3007 = vunpack.c.l.bf16 %v2957
      %v3008 = vunpack.c.l.bf16 %v2958
      %v3009 = vunpack.c.l.bf16 %v2959
      %v3010 = vunpack.c.l.bf16 %v2960
      %v3011 = vunpack.c.l.bf16 %v2961
      %v3042 = vrot.slane %v2982, 1
      %v3043 = vrot.slane %v2983, 1
      %v3044 = vsel %vm1770, %v3042, %v3043
      %v3045 = vrot.slane %v2984, 1
      %v3046 = vsel %vm1770, %v3043, %v3045
      %v3047 = vrot.slane %v2985, 1
      %v3048 = vrot.slane %v2986, 1
      %v3049 = vsel %vm1770, %v3047, %v3048
      %v3050 = vrot.slane %v2987, 1
      %v3051 = vsel %vm1770, %v3048, %v3050
      %v3052 = vrot.slane %v2988, 1
      %v3053 = vrot.slane %v2989, 1
      %v3054 = vsel %vm1770, %v3052, %v3053
      %v3055 = vrot.slane %v2990, 1
      %v3056 = vsel %vm1770, %v3053, %v3055
      %v3057 = vrot.slane %v2991, 1
      %v3058 = vrot.slane %v2992, 1
      %v3059 = vsel %vm1770, %v3057, %v3058
      %v3060 = vrot.slane %v2993, 1
      %v3061 = vsel %vm1770, %v3058, %v3060
      %v3062 = vrot.slane %v2994, 1
      %v3063 = vrot.slane %v2995, 1
      %v3064 = vsel %vm1770, %v3062, %v3063
      %v3065 = vrot.slane %v2996, 1
      %v3066 = vsel %vm1770, %v3063, %v3065
      %v3067 = vrot.slane %v2997, 1
      %v3068 = vrot.slane %v2998, 1
      %v3069 = vsel %vm1770, %v3067, %v3068
      %v3070 = vrot.slane %v2999, 1
      %v3071 = vsel %vm1770, %v3068, %v3070
      %v3072 = vrot.slane %v3000, 1
      %v3073 = vrot.slane %v3001, 1
      %v3074 = vsel %vm1770, %v3072, %v3073
      %v3075 = vrot.slane %v3002, 1
      %v3076 = vsel %vm1770, %v3073, %v3075
      %v3077 = vrot.slane %v3003, 1
      %v3078 = vrot.slane %v3004, 1
      %v3079 = vsel %vm1770, %v3077, %v3078
      %v3080 = vrot.slane %v3005, 1
      %v3081 = vsel %vm1770, %v3078, %v3080
      %v3082 = vrot.slane %v3006, 1
      %v3083 = vrot.slane %v3007, 1
      %v3084 = vsel %vm1770, %v3082, %v3083
      %v3085 = vrot.slane %v3008, 1
      %v3086 = vsel %vm1770, %v3083, %v3085
      %v3087 = vrot.slane %v3009, 1
      %v3088 = vrot.slane %v3010, 1
      %v3089 = vsel %vm1770, %v3087, %v3088
      %v3090 = vrot.slane %v3011, 1
      %v3091 = vsel %vm1770, %v3088, %v3090
      %v3112 = vadd.f32 %v2962, %v3044
      %v3113 = vadd.f32 %v2963, %v3046
      %v3114 = vadd.f32 %v2964, %v3049
      %v3115 = vadd.f32 %v2965, %v3051
      %v3116 = vadd.f32 %v2966, %v3054
      %v3117 = vadd.f32 %v2967, %v3056
      %v3118 = vadd.f32 %v2968, %v3059
      %v3119 = vadd.f32 %v2969, %v3061
      %v3120 = vadd.f32 %v2970, %v3064
      %v3121 = vadd.f32 %v2971, %v3066
      %v3122 = vadd.f32 %v2972, %v3069
      %v3123 = vadd.f32 %v2973, %v3071
      %v3124 = vadd.f32 %v2974, %v3074
      %v3125 = vadd.f32 %v2975, %v3076
      %v3126 = vadd.f32 %v2976, %v3079
      %v3127 = vadd.f32 %v2977, %v3081
      %v3128 = vadd.f32 %v2978, %v3084
      %v3129 = vadd.f32 %v2979, %v3086
      %v3130 = vadd.f32 %v2980, %v3089
      %v3131 = vadd.f32 %v2981, %v3091
      %v3132 = vpack.c.bf16 %v3112, %v3112
      %v3133 = vpack.c.bf16 %v3113, %v3113
      %v3134 = vpack.c.bf16 %v3114, %v3114
      %v3135 = vpack.c.bf16 %v3115, %v3115
      %v3136 = vpack.c.bf16 %v3116, %v3116
      %v3137 = vpack.c.bf16 %v3117, %v3117
      %v3138 = vpack.c.bf16 %v3118, %v3118
      %v3139 = vpack.c.bf16 %v3119, %v3119
      %v3140 = vpack.c.bf16 %v3120, %v3120
      %v3141 = vpack.c.bf16 %v3121, %v3121
      %v3142 = vpack.c.bf16 %v3122, %v3122
      %v3143 = vpack.c.bf16 %v3123, %v3123
      %v3144 = vpack.c.bf16 %v3124, %v3124
      %v3145 = vpack.c.bf16 %v3125, %v3125
      %v3146 = vpack.c.bf16 %v3126, %v3126
      %v3147 = vpack.c.bf16 %v3127, %v3127
      %v3148 = vpack.c.bf16 %v3128, %v3128
      %v3149 = vpack.c.bf16 %v3129, %v3129
      %v3150 = vpack.c.bf16 %v3130, %v3130
      %v3151 = vpack.c.bf16 %v3131, %v3131
      %v3152 = vperm.slane %v2770, 1
      %v3153 = vunpack.c.l.bf16 %v3152
      %v3154 = vmul.f32 %v1498, %v3153
      %v3155 = vmul.f32 %v1499, %v3153
      %v3156 = vmul.f32 %v1621, %v3153
      %v3157 = vmul.f32 %v1500, %v3153
      %v3158 = vmul.f32 %v1501, %v3153
      %v3159 = vmul.f32 %v1622, %v3153
      %v3160 = vmul.f32 %v1502, %v3153
      %v3161 = vmul.f32 %v1503, %v3153
      %v3162 = vmul.f32 %v1623, %v3153
      %v3163 = vmul.f32 %v1504, %v3153
      %v3164 = vmul.f32 %v1505, %v3153
      %v3165 = vmul.f32 %v1624, %v3153
      %v3166 = vmul.f32 %v1506, %v3153
      %v3167 = vmul.f32 %v1507, %v3153
      %v3168 = vmul.f32 %v1625, %v3153
      %v3169 = vmul.f32 %v1508, %v3153
      %v3170 = vmul.f32 %v1509, %v3153
      %v3171 = vmul.f32 %v1626, %v3153
      %v3172 = vmul.f32 %v1510, %v3153
      %v3173 = vmul.f32 %v1511, %v3153
      %v3174 = vmul.f32 %v1627, %v3153
      %v3175 = vmul.f32 %v1512, %v3153
      %v3176 = vmul.f32 %v1513, %v3153
      %v3177 = vmul.f32 %v1628, %v3153
      %v3178 = vmul.f32 %v2138, %v3153
      %v3179 = vmul.f32 %v2139, %v3153
      %v3180 = vmul.f32 %v2265, %v3153
      %v3181 = vmul.f32 %v2773, %v3153
      %v3182 = vmul.f32 %v2774, %v3153
      %v3183 = vmul.f32 %v2900, %v3153
      %v3184 = vpack.c.bf16 %v3154, %v3154
      %v3185 = vpack.c.bf16 %v3155, %v3155
      %v3186 = vpack.c.bf16 %v3156, %v3156
      %v3187 = vpack.c.bf16 %v3157, %v3157
      %v3188 = vpack.c.bf16 %v3158, %v3158
      %v3189 = vpack.c.bf16 %v3159, %v3159
      %v3190 = vpack.c.bf16 %v3160, %v3160
      %v3191 = vpack.c.bf16 %v3161, %v3161
      %v3192 = vpack.c.bf16 %v3162, %v3162
      %v3193 = vpack.c.bf16 %v3163, %v3163
      %v3194 = vpack.c.bf16 %v3164, %v3164
      %v3195 = vpack.c.bf16 %v3165, %v3165
      %v3196 = vpack.c.bf16 %v3166, %v3166
      %v3197 = vpack.c.bf16 %v3167, %v3167
      %v3198 = vpack.c.bf16 %v3168, %v3168
      %v3199 = vpack.c.bf16 %v3169, %v3169
      %v3200 = vpack.c.bf16 %v3170, %v3170
      %v3201 = vpack.c.bf16 %v3171, %v3171
      %v3202 = vpack.c.bf16 %v3172, %v3172
      %v3203 = vpack.c.bf16 %v3173, %v3173
      %v3204 = vpack.c.bf16 %v3174, %v3174
      %v3205 = vpack.c.bf16 %v3175, %v3175
      %v3206 = vpack.c.bf16 %v3176, %v3176
      %v3207 = vpack.c.bf16 %v3177, %v3177
      %v3208 = vpack.c.bf16 %v3178, %v3178
      %v3209 = vpack.c.bf16 %v3179, %v3179
      %v3210 = vpack.c.bf16 %v3180, %v3180
      %v3211 = vpack.c.bf16 %v3181, %v3181
      %v3212 = vpack.c.bf16 %v3182, %v3182
      %v3213 = vpack.c.bf16 %v3183, %v3183
      %v3214 = vunpack.c.l.bf16 %v3132
      %v3215 = vunpack.c.l.bf16 %v3133
      %v3216 = vunpack.c.l.bf16 %v3134
      %v3217 = vunpack.c.l.bf16 %v3135
      %v3218 = vunpack.c.l.bf16 %v3136
      %v3219 = vunpack.c.l.bf16 %v3137
      %v3220 = vunpack.c.l.bf16 %v3138
      %v3221 = vunpack.c.l.bf16 %v3139
      %v3222 = vunpack.c.l.bf16 %v3140
      %v3223 = vunpack.c.l.bf16 %v3141
      %v3224 = vunpack.c.l.bf16 %v3142
      %v3225 = vunpack.c.l.bf16 %v3143
      %v3226 = vunpack.c.l.bf16 %v3144
      %v3227 = vunpack.c.l.bf16 %v3145
      %v3228 = vunpack.c.l.bf16 %v3146
      %v3229 = vunpack.c.l.bf16 %v3147
      %v3230 = vunpack.c.l.bf16 %v3148
      %v3231 = vunpack.c.l.bf16 %v3149
      %v3232 = vunpack.c.l.bf16 %v3150
      %v3233 = vunpack.c.l.bf16 %v3151
      %v3234 = vunpack.c.l.bf16 %v3184
      %v3235 = vunpack.c.l.bf16 %v3185
      %v3236 = vunpack.c.l.bf16 %v3186
      %v3237 = vunpack.c.l.bf16 %v3187
      %v3238 = vunpack.c.l.bf16 %v3188
      %v3239 = vunpack.c.l.bf16 %v3189
      %v3240 = vunpack.c.l.bf16 %v3190
      %v3241 = vunpack.c.l.bf16 %v3191
      %v3242 = vunpack.c.l.bf16 %v3192
      %v3243 = vunpack.c.l.bf16 %v3193
      %v3244 = vunpack.c.l.bf16 %v3194
      %v3245 = vunpack.c.l.bf16 %v3195
      %v3246 = vunpack.c.l.bf16 %v3196
      %v3247 = vunpack.c.l.bf16 %v3197
      %v3248 = vunpack.c.l.bf16 %v3198
      %v3249 = vunpack.c.l.bf16 %v3199
      %v3250 = vunpack.c.l.bf16 %v3200
      %v3251 = vunpack.c.l.bf16 %v3201
      %v3252 = vunpack.c.l.bf16 %v3202
      %v3253 = vunpack.c.l.bf16 %v3203
      %v3254 = vunpack.c.l.bf16 %v3204
      %v3255 = vunpack.c.l.bf16 %v3205
      %v3256 = vunpack.c.l.bf16 %v3206
      %v3257 = vunpack.c.l.bf16 %v3207
      %v3258 = vunpack.c.l.bf16 %v3208
      %v3259 = vunpack.c.l.bf16 %v3209
      %v3260 = vunpack.c.l.bf16 %v3210
      %v3261 = vunpack.c.l.bf16 %v3211
      %v3262 = vunpack.c.l.bf16 %v3212
      %v3263 = vunpack.c.l.bf16 %v3213
      %v3294 = vrot.slane %v3234, 2
      %v3295 = vrot.slane %v3235, 2
      %v3296 = vsel %vm2023, %v3294, %v3295
      %v3297 = vrot.slane %v3236, 2
      %v3298 = vsel %vm2023, %v3295, %v3297
      %v3299 = vrot.slane %v3237, 2
      %v3300 = vrot.slane %v3238, 2
      %v3301 = vsel %vm2023, %v3299, %v3300
      %v3302 = vrot.slane %v3239, 2
      %v3303 = vsel %vm2023, %v3300, %v3302
      %v3304 = vrot.slane %v3240, 2
      %v3305 = vrot.slane %v3241, 2
      %v3306 = vsel %vm2023, %v3304, %v3305
      %v3307 = vrot.slane %v3242, 2
      %v3308 = vsel %vm2023, %v3305, %v3307
      %v3309 = vrot.slane %v3243, 2
      %v3310 = vrot.slane %v3244, 2
      %v3311 = vsel %vm2023, %v3309, %v3310
      %v3312 = vrot.slane %v3245, 2
      %v3313 = vsel %vm2023, %v3310, %v3312
      %v3314 = vrot.slane %v3246, 2
      %v3315 = vrot.slane %v3247, 2
      %v3316 = vsel %vm2023, %v3314, %v3315
      %v3317 = vrot.slane %v3248, 2
      %v3318 = vsel %vm2023, %v3315, %v3317
      %v3319 = vrot.slane %v3249, 2
      %v3320 = vrot.slane %v3250, 2
      %v3321 = vsel %vm2023, %v3319, %v3320
      %v3322 = vrot.slane %v3251, 2
      %v3323 = vsel %vm2023, %v3320, %v3322
      %v3324 = vrot.slane %v3252, 2
      %v3325 = vrot.slane %v3253, 2
      %v3326 = vsel %vm2023, %v3324, %v3325
      %v3327 = vrot.slane %v3254, 2
      %v3328 = vsel %vm2023, %v3325, %v3327
      %v3329 = vrot.slane %v3255, 2
      %v3330 = vrot.slane %v3256, 2
      %v3331 = vsel %vm2023, %v3329, %v3330
      %v3332 = vrot.slane %v3257, 2
      %v3333 = vsel %vm2023, %v3330, %v3332
      %v3334 = vrot.slane %v3258, 2
      %v3335 = vrot.slane %v3259, 2
      %v3336 = vsel %vm2023, %v3334, %v3335
      %v3337 = vrot.slane %v3260, 2
      %v3338 = vsel %vm2023, %v3335, %v3337
      %v3339 = vrot.slane %v3261, 2
      %v3340 = vrot.slane %v3262, 2
      %v3341 = vsel %vm2023, %v3339, %v3340
      %v3342 = vrot.slane %v3263, 2
      %v3343 = vsel %vm2023, %v3340, %v3342
      %v3364 = vadd.f32 %v3214, %v3296
      %v3365 = vadd.f32 %v3215, %v3298
      %v3366 = vadd.f32 %v3216, %v3301
      %v3367 = vadd.f32 %v3217, %v3303
      %v3368 = vadd.f32 %v3218, %v3306
      %v3369 = vadd.f32 %v3219, %v3308
      %v3370 = vadd.f32 %v3220, %v3311
      %v3371 = vadd.f32 %v3221, %v3313
      %v3372 = vadd.f32 %v3222, %v3316
      %v3373 = vadd.f32 %v3223, %v3318
      %v3374 = vadd.f32 %v3224, %v3321
      %v3375 = vadd.f32 %v3225, %v3323
      %v3376 = vadd.f32 %v3226, %v3326
      %v3377 = vadd.f32 %v3227, %v3328
      %v3378 = vadd.f32 %v3228, %v3331
      %v3379 = vadd.f32 %v3229, %v3333
      %v3380 = vadd.f32 %v3230, %v3336
      %v3381 = vadd.f32 %v3231, %v3338
      %v3382 = vadd.f32 %v3232, %v3341
      %v3383 = vadd.f32 %v3233, %v3343
      %v3384 = vpack.c.bf16 %v3364, %v3364
      %v3385 = vpack.c.bf16 %v3365, %v3365
      %v3386 = vpack.c.bf16 %v3366, %v3366
      %v3387 = vpack.c.bf16 %v3367, %v3367
      %v3388 = vpack.c.bf16 %v3368, %v3368
      %v3389 = vpack.c.bf16 %v3369, %v3369
      %v3390 = vpack.c.bf16 %v3370, %v3370
      %v3391 = vpack.c.bf16 %v3371, %v3371
      %v3392 = vpack.c.bf16 %v3372, %v3372
      %v3393 = vpack.c.bf16 %v3373, %v3373
      %v3394 = vpack.c.bf16 %v3374, %v3374
      %v3395 = vpack.c.bf16 %v3375, %v3375
      %v3396 = vpack.c.bf16 %v3376, %v3376
      %v3397 = vpack.c.bf16 %v3377, %v3377
      %v3398 = vpack.c.bf16 %v3378, %v3378
      %v3399 = vpack.c.bf16 %v3379, %v3379
      %v3400 = vpack.c.bf16 %v3380, %v3380
      %v3401 = vpack.c.bf16 %v3381, %v3381
      %v3402 = vpack.c.bf16 %v3382, %v3382
      %v3403 = vpack.c.bf16 %v3383, %v3383
      %v3404 = vld [vmem:[%s6] sm:$0xf]
      %v3405 = vld [vmem:[%s6 + $0x4] sm:$0xf]
      %v3406 = vld [vmem:[%s6 + $0x8] sm:$0xf]
      %v3407 = vld [vmem:[%s6 + $0xc] sm:$0xf]
      %v3408 = vld [vmem:[%s7] sm:$0x1]
      %v3410 = vperm.slane %v3408, 0
      %v3432 = vunpack.c.l.b16 %v3384
      %v3433 = vunpack.c.l.b16 %v3385
      %v3434 = vunpack.c.l.b16 %v3386
      %v3435 = vunpack.c.l.b16 %v3387
      %v3436 = vunpack.c.l.b16 %v3388
      %v3437 = vunpack.c.l.b16 %v3389
      %v3438 = vunpack.c.l.b16 %v3390
      %v3439 = vunpack.c.l.b16 %v3391
      %v3440 = vunpack.c.l.b16 %v3392
      %v3441 = vunpack.c.l.b16 %v3393
      %v3442 = vunpack.c.l.b16 %v3394
      %v3443 = vunpack.c.l.b16 %v3395
      %v3444 = vunpack.c.l.b16 %v3396
      %v3445 = vunpack.c.l.b16 %v3397
      %v3446 = vunpack.c.l.b16 %v3398
      %v3447 = vunpack.c.l.b16 %v3399
      %v3448 = vunpack.c.l.b16 %v3400
      %v3449 = vunpack.c.l.b16 %v3401
      %v3450 = vunpack.c.l.b16 %v3402
      %v3451 = vunpack.c.l.b16 %v3403
      %v3452 = vpack.c.b16 %v3433, %v3432
      %v3453 = vpack.c.b16 %v3435, %v3434
      %v3454 = vpack.c.b16 %v3437, %v3436
      %v3455 = vpack.c.b16 %v3439, %v3438
      %v3456 = vpack.c.b16 %v3441, %v3440
      %v3457 = vpack.c.b16 %v3443, %v3442
      %v3458 = vpack.c.b16 %v3445, %v3444
      %v3459 = vpack.c.b16 %v3447, %v3446
      %v3460 = vpack.c.b16 %v3449, %v3448
      %v3461 = vpack.c.b16 %v3451, %v3450
      %v3466 = vunpack.c.l.b16 %v3404
      %v3467 = vunpack.c.l.b16 %v3405
      %v3468 = vunpack.c.l.b16 %v3406
      %v3469 = vunpack.c.l.b16 %v3407
      %v3470 = vpack.c.b16 %v3467, %v3466
      %v3471 = vpack.c.b16 %v3469, %v3468
      %v3475 = vsel %vm628, %v3452, 0
      %v3478 = vsel %vm628, %v3453, 0
      %v3481 = vsel %vm628, %v3454, 0
      %v3484 = vsel %vm628, %v3455, 0
      %v3487 = vsel %vm628, %v3456, 0
      %v3490 = vsel %vm628, %v3457, 0
      %v3493 = vsel %vm628, %v3458, 0
      %v3496 = vsel %vm628, %v3459, 0
      %v3499 = vsel %vm628, %v3460, 0
      %v3502 = vsel %vm628, %v3461, 0
      %3504 = vmatpush.bf16.msra.mxu0 0
      %3505 = vmatpush.bf16.msra.mxu0 0
      %3506 = vmatpush.bf16.msra.mxu0 0
      %3507 = vmatpush.bf16.msra.mxu0 0
      %3508 = vmatpush.bf16.msra.mxu0 0
      %3509 = vmatpush.bf16.msra.mxu0 0
      %3510 = vmatpush.bf16.msra.mxu0 %v3471
      %3511 = vmatpush.bf16.msra.mxu0 %v3470
      %3512 = vmatmul.bf16.gmra.mxu0 %v3475
      %v3513 = vpop.f32.mrf.mxu0
      %v3514 = vadd.f32 %v3410, %v3513
      %v3515 = vpop.f32.mrf.mxu0
      %v3516 = vadd.f32 %v3410, %v3515
      %3517 = vmatmul.bf16.gmra.mxu0 %v3478
      %v3518 = vpop.f32.mrf.mxu0
      %v3519 = vadd.f32 %v3410, %v3518
      %v3520 = vpop.f32.mrf.mxu0
      %v3521 = vadd.f32 %v3410, %v3520
      %3522 = vmatmul.bf16.gmra.mxu0 %v3481
      %v3523 = vpop.f32.mrf.mxu0
      %v3524 = vadd.f32 %v3410, %v3523
      %v3525 = vpop.f32.mrf.mxu0
      %v3526 = vadd.f32 %v3410, %v3525
      %3527 = vmatmul.bf16.gmra.mxu0 %v3484
      %v3528 = vpop.f32.mrf.mxu0
      %v3529 = vadd.f32 %v3410, %v3528
      %v3530 = vpop.f32.mrf.mxu0
      %v3531 = vadd.f32 %v3410, %v3530
      %3532 = vmatmul.bf16.gmra.mxu0 %v3487
      %v3533 = vpop.f32.mrf.mxu0
      %v3534 = vadd.f32 %v3410, %v3533
      %v3535 = vpop.f32.mrf.mxu0
      %v3536 = vadd.f32 %v3410, %v3535
      %3537 = vmatmul.bf16.gmra.mxu0 %v3490
      %v3538 = vpop.f32.mrf.mxu0
      %v3539 = vadd.f32 %v3410, %v3538
      %v3540 = vpop.f32.mrf.mxu0
      %v3541 = vadd.f32 %v3410, %v3540
      %3542 = vmatmul.bf16.gmra.mxu0 %v3493
      %v3543 = vpop.f32.mrf.mxu0
      %v3544 = vadd.f32 %v3410, %v3543
      %v3545 = vpop.f32.mrf.mxu0
      %v3546 = vadd.f32 %v3410, %v3545
      %3547 = vmatmul.bf16.gmra.mxu0 %v3496
      %v3548 = vpop.f32.mrf.mxu0
      %v3549 = vadd.f32 %v3410, %v3548
      %v3550 = vpop.f32.mrf.mxu0
      %v3551 = vadd.f32 %v3410, %v3550
      %3552 = vmatmul.bf16.gmra.mxu0 %v3499
      %v3553 = vpop.f32.mrf.mxu0
      %v3554 = vadd.f32 %v3410, %v3553
      %v3555 = vpop.f32.mrf.mxu0
      %v3556 = vadd.f32 %v3410, %v3555
      %3557 = vmatmul.bf16.gmra.mxu0 %v3502
      %v3558 = vpop.f32.mrf.mxu0
      %v3559 = vadd.f32 %v3410, %v3558
      %v3560 = vpop.f32.mrf.mxu0
      %v3561 = vadd.f32 %v3410, %v3560
      %3562 = vdwg.mxu0
      %vm3563 = vcmp.ge.f32.partialorder %v3514, 0.0
      %vm3564 = vcmp.ge.f32.partialorder %v3516, 0.0
      %vm3565 = vcmp.ge.f32.partialorder %v3519, 0.0
      %vm3566 = vcmp.ge.f32.partialorder %v3521, 0.0
      %vm3567 = vcmp.ge.f32.partialorder %v3524, 0.0
      %vm3568 = vcmp.ge.f32.partialorder %v3526, 0.0
      %vm3569 = vcmp.ge.f32.partialorder %v3529, 0.0
      %vm3570 = vcmp.ge.f32.partialorder %v3531, 0.0
      %vm3571 = vcmp.ge.f32.partialorder %v3534, 0.0
      %vm3572 = vcmp.ge.f32.partialorder %v3536, 0.0
      %vm3573 = vcmp.ge.f32.partialorder %v3539, 0.0
      %vm3574 = vcmp.ge.f32.partialorder %v3541, 0.0
      %vm3575 = vcmp.ge.f32.partialorder %v3544, 0.0
      %vm3576 = vcmp.ge.f32.partialorder %v3546, 0.0
      %vm3577 = vcmp.ge.f32.partialorder %v3549, 0.0
      %vm3578 = vcmp.ge.f32.partialorder %v3551, 0.0
      %vm3579 = vcmp.ge.f32.partialorder %v3554, 0.0
      %vm3580 = vcmp.ge.f32.partialorder %v3556, 0.0
      %vm3581 = vcmp.ge.f32.partialorder %v3559, 0.0
      %vm3582 = vcmp.ge.f32.partialorder %v3561, 0.0
      %v3583 = vmul.f32 %v3514, 0.2
      %v3584 = vmul.f32 %v3516, 0.2
      %v3585 = vmul.f32 %v3519, 0.2
      %v3586 = vmul.f32 %v3521, 0.2
      %v3587 = vmul.f32 %v3524, 0.2
      %v3588 = vmul.f32 %v3526, 0.2
      %v3589 = vmul.f32 %v3529, 0.2
      %v3590 = vmul.f32 %v3531, 0.2
      %v3591 = vmul.f32 %v3534, 0.2
      %v3592 = vmul.f32 %v3536, 0.2
      %v3593 = vmul.f32 %v3539, 0.2
      %v3594 = vmul.f32 %v3541, 0.2
      %v3595 = vmul.f32 %v3544, 0.2
      %v3596 = vmul.f32 %v3546, 0.2
      %v3597 = vmul.f32 %v3549, 0.2
      %v3598 = vmul.f32 %v3551, 0.2
      %v3599 = vmul.f32 %v3554, 0.2
      %v3600 = vmul.f32 %v3556, 0.2
      %v3601 = vmul.f32 %v3559, 0.2
      %v3602 = vmul.f32 %v3561, 0.2
      %v3603 = vsel %vm3563, %v3514, %v3583
      %v3604 = vsel %vm3564, %v3516, %v3584
      %v3605 = vsel %vm3565, %v3519, %v3585
      %v3606 = vsel %vm3566, %v3521, %v3586
      %v3607 = vsel %vm3567, %v3524, %v3587
      %v3608 = vsel %vm3568, %v3526, %v3588
      %v3609 = vsel %vm3569, %v3529, %v3589
      %v3610 = vsel %vm3570, %v3531, %v3590
      %v3611 = vsel %vm3571, %v3534, %v3591
      %v3612 = vsel %vm3572, %v3536, %v3592
      %v3613 = vsel %vm3573, %v3539, %v3593
      %v3614 = vsel %vm3574, %v3541, %v3594
      %v3615 = vsel %vm3575, %v3544, %v3595
      %v3616 = vsel %vm3576, %v3546, %v3596
      %v3617 = vsel %vm3577, %v3549, %v3597
      %v3618 = vsel %vm3578, %v3551, %v3598
      %v3619 = vsel %vm3579, %v3554, %v3599
      %v3620 = vsel %vm3580, %v3556, %v3600
      %v3621 = vsel %vm3581, %v3559, %v3601
      %v3622 = vsel %vm3582, %v3561, %v3602
      %v3623 = vmul.f32 %v3603, %v738
      %v3624 = vmul.f32 %v3604, %v738
      %v3625 = vmul.f32 %v3621, %v1283
      %v3626 = vmul.f32 %v3622, %v1283
      %v3627 = vpack.c.bf16 %v3623, %v3623
      %v3628 = vpack.c.bf16 %v3624, %v3624
      %v3629 = vpack.c.bf16 %v3605, %v3605
      %v3630 = vpack.c.bf16 %v3606, %v3606
      %v3631 = vpack.c.bf16 %v3607, %v3607
      %v3632 = vpack.c.bf16 %v3608, %v3608
      %v3633 = vpack.c.bf16 %v3609, %v3609
      %v3634 = vpack.c.bf16 %v3610, %v3610
      %v3635 = vpack.c.bf16 %v3611, %v3611
      %v3636 = vpack.c.bf16 %v3612, %v3612
      %v3637 = vpack.c.bf16 %v3613, %v3613
      %v3638 = vpack.c.bf16 %v3614, %v3614
      %v3639 = vpack.c.bf16 %v3615, %v3615
      %v3640 = vpack.c.bf16 %v3616, %v3616
      %v3641 = vpack.c.bf16 %v3617, %v3617
      %v3642 = vpack.c.bf16 %v3618, %v3618
      %v3643 = vpack.c.bf16 %v3619, %v3619
      %v3644 = vpack.c.bf16 %v3620, %v3620
      %v3645 = vpack.c.bf16 %v3625, %v3625
      %v3646 = vpack.c.bf16 %v3626, %v3626
      %v3667 = vunpack.c.l.b16 %v3627
      %v3668 = vunpack.c.l.b16 %v3628
      %v3669 = vunpack.c.l.b16 %v3629
      %v3670 = vunpack.c.l.b16 %v3630
      %v3671 = vunpack.c.l.b16 %v3631
      %v3672 = vunpack.c.l.b16 %v3632
      %v3673 = vunpack.c.l.b16 %v3633
      %v3674 = vunpack.c.l.b16 %v3634
      %v3675 = vunpack.c.l.b16 %v3635
      %v3676 = vunpack.c.l.b16 %v3636
      %v3677 = vunpack.c.l.b16 %v3637
      %v3678 = vunpack.c.l.b16 %v3638
      %v3679 = vunpack.c.l.b16 %v3639
      %v3680 = vunpack.c.l.b16 %v3640
      %v3681 = vunpack.c.l.b16 %v3641
      %v3682 = vunpack.c.l.b16 %v3642
      %v3683 = vunpack.c.l.b16 %v3643
      %v3684 = vunpack.c.l.b16 %v3644
      %v3685 = vunpack.c.l.b16 %v3645
      %v3686 = vunpack.c.l.b16 %v3646
      %v3687 = vpack.c.b16 %v3668, %v3667
      %v3688 = vpack.c.b16 %v3670, %v3669
      %v3689 = vpack.c.b16 %v3672, %v3671
      %v3690 = vpack.c.b16 %v3674, %v3673
      %v3691 = vpack.c.b16 %v3676, %v3675
      %v3692 = vpack.c.b16 %v3678, %v3677
      %v3693 = vpack.c.b16 %v3680, %v3679
      %v3694 = vpack.c.b16 %v3682, %v3681
      %v3695 = vpack.c.b16 %v3684, %v3683
      %v3696 = vpack.c.b16 %v3686, %v3685
      %v3698 = vshrl.u32 %v3687, 16
      %v3700 = vrot.slane %v3698, 7
      %v3701 = vshll.u32 %v3687, 16
      %v3703 = vor.u32 %v3700, %v3701
      %v3705 = vshrl.u32 %v3688, 16
      %v3707 = vrot.slane %v3705, 7
      %v3708 = vshll.u32 %v3688, 16
      %v3710 = vor.u32 %v3707, %v3708
      %v3712 = vshrl.u32 %v3689, 16
      %v3714 = vrot.slane %v3712, 7
      %v3715 = vshll.u32 %v3689, 16
      %v3717 = vor.u32 %v3714, %v3715
      %v3719 = vshrl.u32 %v3690, 16
      %v3721 = vrot.slane %v3719, 7
      %v3722 = vshll.u32 %v3690, 16
      %v3724 = vor.u32 %v3721, %v3722
      %v3726 = vshrl.u32 %v3691, 16
      %v3728 = vrot.slane %v3726, 7
      %v3729 = vshll.u32 %v3691, 16
      %v3731 = vor.u32 %v3728, %v3729
      %v3733 = vshrl.u32 %v3692, 16
      %v3735 = vrot.slane %v3733, 7
      %v3736 = vshll.u32 %v3692, 16
      %v3738 = vor.u32 %v3735, %v3736
      %v3740 = vshrl.u32 %v3693, 16
      %v3742 = vrot.slane %v3740, 7
      %v3743 = vshll.u32 %v3693, 16
      %v3745 = vor.u32 %v3742, %v3743
      %v3747 = vshrl.u32 %v3694, 16
      %v3749 = vrot.slane %v3747, 7
      %v3750 = vshll.u32 %v3694, 16
      %v3752 = vor.u32 %v3749, %v3750
      %v3754 = vshrl.u32 %v3695, 16
      %v3756 = vrot.slane %v3754, 7
      %v3757 = vshll.u32 %v3695, 16
      %v3759 = vor.u32 %v3756, %v3757
      %v3761 = vshrl.u32 %v3696, 16
      %v3763 = vrot.slane %v3761, 7
      %v3764 = vshll.u32 %v3696, 16
      %v3766 = vor.u32 %v3763, %v3764
      %v3787 = vsel %vm1462, 0, %v3703
      %v3788 = vsel %vm1462, 0, %v3710
      %v3789 = vsel %vm1462, 0, %v3717
      %v3790 = vsel %vm1462, 0, %v3724
      %v3791 = vsel %vm1462, 0, %v3731
      %v3792 = vsel %vm1462, 0, %v3738
      %v3793 = vsel %vm1462, 0, %v3745
      %v3794 = vsel %vm1462, 0, %v3752
      %v3795 = vsel %vm1462, 0, %v3759
      %v3796 = vsel %vm1462, 0, %v3766
      %v3797 = vsel %vm1462, %v3700, 0
      %v3798 = vsel %vm1462, %v3707, 0
      %v3799 = vsel %vm1462, %v3714, 0
      %v3800 = vsel %vm1462, %v3721, 0
      %v3801 = vsel %vm1462, %v3728, 0
      %v3802 = vsel %vm1462, %v3735, 0
      %v3803 = vsel %vm1462, %v3742, 0
      %v3804 = vsel %vm1462, %v3749, 0
      %v3805 = vsel %vm1462, %v3756, 0
      %v3806 = vsel %vm1462, %v3763, 0
      %v3807 = vld [vmem:[%s8] sm:$0x3]
      %v3808 = vld [vmem:[%s8 + $0x2] sm:$0x3]
      %v3809 = vld [vmem:[%s8 + $0x4] sm:$0x3]
      %v3811 = vpack.i.b16 %v3807, %v3807
      %v3813 = vperm.slane %v3811, 0
      %v3814 = vunpack.c.l.bf16 %v3787
      %v3815 = vunpack.c.h.bf16 %v3787
      %v3816 = vunpack.c.l.bf16 %v3788
      %v3817 = vunpack.c.h.bf16 %v3788
      %v3818 = vunpack.c.l.bf16 %v3789
      %v3819 = vunpack.c.h.bf16 %v3789
      %v3820 = vunpack.c.l.bf16 %v3790
      %v3821 = vunpack.c.h.bf16 %v3790
      %v3822 = vunpack.c.l.bf16 %v3791
      %v3823 = vunpack.c.h.bf16 %v3791
      %v3824 = vunpack.c.l.bf16 %v3792
      %v3825 = vunpack.c.h.bf16 %v3792
      %v3826 = vunpack.c.l.bf16 %v3793
      %v3827 = vunpack.c.h.bf16 %v3793
      %v3828 = vunpack.c.l.bf16 %v3794
      %v3829 = vunpack.c.h.bf16 %v3794
      %v3830 = vunpack.c.l.bf16 %v3813
      %v3831 = vmul.f32 %v3814, %v3830
      %v3832 = vmul.f32 %v3815, %v3830
      %v3833 = vmul.f32 %v3816, %v3830
      %v3834 = vmul.f32 %v3817, %v3830
      %v3835 = vmul.f32 %v3818, %v3830
      %v3836 = vmul.f32 %v3819, %v3830
      %v3837 = vmul.f32 %v3820, %v3830
      %v3838 = vmul.f32 %v3821, %v3830
      %v3839 = vmul.f32 %v3822, %v3830
      %v3840 = vmul.f32 %v3823, %v3830
      %v3841 = vmul.f32 %v3824, %v3830
      %v3842 = vmul.f32 %v3825, %v3830
      %v3843 = vmul.f32 %v3826, %v3830
      %v3844 = vmul.f32 %v3827, %v3830
      %v3845 = vmul.f32 %v3828, %v3830
      %v3846 = vmul.f32 %v3829, %v3830
      %v3847 = vpack.c.bf16 %v3831, %v3831
      %v3848 = vpack.c.bf16 %v3832, %v3832
      %v3849 = vpack.c.bf16 %v3833, %v3833
      %v3850 = vpack.c.bf16 %v3834, %v3834
      %v3851 = vpack.c.bf16 %v3835, %v3835
      %v3852 = vpack.c.bf16 %v3836, %v3836
      %v3853 = vpack.c.bf16 %v3837, %v3837
      %v3854 = vpack.c.bf16 %v3838, %v3838
      %v3855 = vpack.c.bf16 %v3839, %v3839
      %v3856 = vpack.c.bf16 %v3840, %v3840
      %v3857 = vpack.c.bf16 %v3841, %v3841
      %v3858 = vpack.c.bf16 %v3842, %v3842
      %v3859 = vpack.c.bf16 %v3843, %v3843
      %v3860 = vpack.c.bf16 %v3844, %v3844
      %v3861 = vpack.c.bf16 %v3845, %v3845
      %v3862 = vpack.c.bf16 %v3846, %v3846
      %v3863 = vunpack.c.l.bf16 %v3847
      %v3864 = vunpack.c.l.bf16 %v3848
      %v3865 = vunpack.c.l.bf16 %v3849
      %v3866 = vunpack.c.l.bf16 %v3850
      %v3867 = vunpack.c.l.bf16 %v3851
      %v3868 = vunpack.c.l.bf16 %v3852
      %v3869 = vunpack.c.l.bf16 %v3853
      %v3870 = vunpack.c.l.bf16 %v3854
      %v3871 = vunpack.c.l.bf16 %v3855
      %v3872 = vunpack.c.l.bf16 %v3856
      %v3873 = vunpack.c.l.bf16 %v3857
      %v3874 = vunpack.c.l.bf16 %v3858
      %v3875 = vunpack.c.l.bf16 %v3859
      %v3876 = vunpack.c.l.bf16 %v3860
      %v3877 = vunpack.c.l.bf16 %v3861
      %v3878 = vunpack.c.l.bf16 %v3862
      %v3879 = vadd.f32 %v3863, 0.0
      %v3880 = vadd.f32 %v3864, 0.0
      %v3881 = vadd.f32 %v3865, 0.0
      %v3882 = vadd.f32 %v3866, 0.0
      %v3883 = vadd.f32 %v3867, 0.0
      %v3884 = vadd.f32 %v3868, 0.0
      %v3885 = vadd.f32 %v3869, 0.0
      %v3886 = vadd.f32 %v3870, 0.0
      %v3887 = vadd.f32 %v3871, 0.0
      %v3888 = vadd.f32 %v3872, 0.0
      %v3889 = vadd.f32 %v3873, 0.0
      %v3890 = vadd.f32 %v3874, 0.0
      %v3891 = vadd.f32 %v3875, 0.0
      %v3892 = vadd.f32 %v3876, 0.0
      %v3893 = vadd.f32 %v3877, 0.0
      %v3894 = vadd.f32 %v3878, 0.0
      %v3895 = vpack.c.bf16 %v3879, %v3879
      %v3896 = vpack.c.bf16 %v3880, %v3880
      %v3897 = vpack.c.bf16 %v3881, %v3881
      %v3898 = vpack.c.bf16 %v3882, %v3882
      %v3899 = vpack.c.bf16 %v3883, %v3883
      %v3900 = vpack.c.bf16 %v3884, %v3884
      %v3901 = vpack.c.bf16 %v3885, %v3885
      %v3902 = vpack.c.bf16 %v3886, %v3886
      %v3903 = vpack.c.bf16 %v3887, %v3887
      %v3904 = vpack.c.bf16 %v3888, %v3888
      %v3905 = vpack.c.bf16 %v3889, %v3889
      %v3906 = vpack.c.bf16 %v3890, %v3890
      %v3907 = vpack.c.bf16 %v3891, %v3891
      %v3908 = vpack.c.bf16 %v3892, %v3892
      %v3909 = vpack.c.bf16 %v3893, %v3893
      %v3910 = vpack.c.bf16 %v3894, %v3894
      %v3911 = vshrl.u32 %v3807, 16
      %v3912 = vpack.i.b16 %v3911, %v3911
      %v3914 = vperm.slane %v3912, 0
      %v3915 = vunpack.c.l.bf16 %v3797
      %v3916 = vunpack.c.l.bf16 %v3798
      %v3917 = vunpack.c.l.bf16 %v3799
      %v3918 = vunpack.c.l.bf16 %v3800
      %v3919 = vunpack.c.l.bf16 %v3801
      %v3920 = vunpack.c.l.bf16 %v3802
      %v3921 = vunpack.c.l.bf16 %v3803
      %v3922 = vunpack.c.l.bf16 %v3804
      %v3923 = vunpack.c.l.bf16 %v3914
      %v3924 = vmul.f32 %v3814, %v3923
      %v3925 = vmul.f32 %v3815, %v3923
      %v3926 = vmul.f32 %v3915, %v3923
      %v3927 = vmul.f32 %v3816, %v3923
      %v3928 = vmul.f32 %v3817, %v3923
      %v3929 = vmul.f32 %v3916, %v3923
      %v3930 = vmul.f32 %v3818, %v3923
      %v3931 = vmul.f32 %v3819, %v3923
      %v3932 = vmul.f32 %v3917, %v3923
      %v3933 = vmul.f32 %v3820, %v3923
      %v3934 = vmul.f32 %v3821, %v3923
      %v3935 = vmul.f32 %v3918, %v3923
      %v3936 = vmul.f32 %v3822, %v3923
      %v3937 = vmul.f32 %v3823, %v3923
      %v3938 = vmul.f32 %v3919, %v3923
      %v3939 = vmul.f32 %v3824, %v3923
      %v3940 = vmul.f32 %v3825, %v3923
      %v3941 = vmul.f32 %v3920, %v3923
      %v3942 = vmul.f32 %v3826, %v3923
      %v3943 = vmul.f32 %v3827, %v3923
      %v3944 = vmul.f32 %v3921, %v3923
      %v3945 = vmul.f32 %v3828, %v3923
      %v3946 = vmul.f32 %v3829, %v3923
      %v3947 = vmul.f32 %v3922, %v3923
      %v3948 = vpack.c.bf16 %v3924, %v3924
      %v3949 = vpack.c.bf16 %v3925, %v3925
      %v3950 = vpack.c.bf16 %v3926, %v3926
      %v3951 = vpack.c.bf16 %v3927, %v3927
      %v3952 = vpack.c.bf16 %v3928, %v3928
      %v3953 = vpack.c.bf16 %v3929, %v3929
      %v3954 = vpack.c.bf16 %v3930, %v3930
      %v3955 = vpack.c.bf16 %v3931, %v3931
      %v3956 = vpack.c.bf16 %v3932, %v3932
      %v3957 = vpack.c.bf16 %v3933, %v3933
      %v3958 = vpack.c.bf16 %v3934, %v3934
      %v3959 = vpack.c.bf16 %v3935, %v3935
      %v3960 = vpack.c.bf16 %v3936, %v3936
      %v3961 = vpack.c.bf16 %v3937, %v3937
      %v3962 = vpack.c.bf16 %v3938, %v3938
      %v3963 = vpack.c.bf16 %v3939, %v3939
      %v3964 = vpack.c.bf16 %v3940, %v3940
      %v3965 = vpack.c.bf16 %v3941, %v3941
      %v3966 = vpack.c.bf16 %v3942, %v3942
      %v3967 = vpack.c.bf16 %v3943, %v3943
      %v3968 = vpack.c.bf16 %v3944, %v3944
      %v3969 = vpack.c.bf16 %v3945, %v3945
      %v3970 = vpack.c.bf16 %v3946, %v3946
      %v3971 = vpack.c.bf16 %v3947, %v3947
      %v3972 = vunpack.c.l.bf16 %v3895
      %v3973 = vunpack.c.l.bf16 %v3896
      %v3974 = vunpack.c.l.bf16 %v3897
      %v3975 = vunpack.c.l.bf16 %v3898
      %v3976 = vunpack.c.l.bf16 %v3899
      %v3977 = vunpack.c.l.bf16 %v3900
      %v3978 = vunpack.c.l.bf16 %v3901
      %v3979 = vunpack.c.l.bf16 %v3902
      %v3980 = vunpack.c.l.bf16 %v3903
      %v3981 = vunpack.c.l.bf16 %v3904
      %v3982 = vunpack.c.l.bf16 %v3905
      %v3983 = vunpack.c.l.bf16 %v3906
      %v3984 = vunpack.c.l.bf16 %v3907
      %v3985 = vunpack.c.l.bf16 %v3908
      %v3986 = vunpack.c.l.bf16 %v3909
      %v3987 = vunpack.c.l.bf16 %v3910
      %v3988 = vunpack.c.l.bf16 %v3948
      %v3989 = vunpack.c.l.bf16 %v3949
      %v3990 = vunpack.c.l.bf16 %v3950
      %v3991 = vunpack.c.l.bf16 %v3951
      %v3992 = vunpack.c.l.bf16 %v3952
      %v3993 = vunpack.c.l.bf16 %v3953
      %v3994 = vunpack.c.l.bf16 %v3954
      %v3995 = vunpack.c.l.bf16 %v3955
      %v3996 = vunpack.c.l.bf16 %v3956
      %v3997 = vunpack.c.l.bf16 %v3957
      %v3998 = vunpack.c.l.bf16 %v3958
      %v3999 = vunpack.c.l.bf16 %v3959
      %v4000 = vunpack.c.l.bf16 %v3960
      %v4001 = vunpack.c.l.bf16 %v3961
      %v4002 = vunpack.c.l.bf16 %v3962
      %v4003 = vunpack.c.l.bf16 %v3963
      %v4004 = vunpack.c.l.bf16 %v3964
      %v4005 = vunpack.c.l.bf16 %v3965
      %v4006 = vunpack.c.l.bf16 %v3966
      %v4007 = vunpack.c.l.bf16 %v3967
      %v4008 = vunpack.c.l.bf16 %v3968
      %v4009 = vunpack.c.l.bf16 %v3969
      %v4010 = vunpack.c.l.bf16 %v3970
      %v4011 = vunpack.c.l.bf16 %v3971
      %v4036 = vrot.slane %v3988, 1
      %v4037 = vrot.slane %v3989, 1
      %v4038 = vsel %vm1770, %v4036, %v4037
      %v4039 = vrot.slane %v3990, 1
      %v4040 = vsel %vm1770, %v4037, %v4039
      %v4041 = vrot.slane %v3991, 1
      %v4042 = vrot.slane %v3992, 1
      %v4043 = vsel %vm1770, %v4041, %v4042
      %v4044 = vrot.slane %v3993, 1
      %v4045 = vsel %vm1770, %v4042, %v4044
      %v4046 = vrot.slane %v3994, 1
      %v4047 = vrot.slane %v3995, 1
      %v4048 = vsel %vm1770, %v4046, %v4047
      %v4049 = vrot.slane %v3996, 1
      %v4050 = vsel %vm1770, %v4047, %v4049
      %v4051 = vrot.slane %v3997, 1
      %v4052 = vrot.slane %v3998, 1
      %v4053 = vsel %vm1770, %v4051, %v4052
      %v4054 = vrot.slane %v3999, 1
      %v4055 = vsel %vm1770, %v4052, %v4054
      %v4056 = vrot.slane %v4000, 1
      %v4057 = vrot.slane %v4001, 1
      %v4058 = vsel %vm1770, %v4056, %v4057
      %v4059 = vrot.slane %v4002, 1
      %v4060 = vsel %vm1770, %v4057, %v4059
      %v4061 = vrot.slane %v4003, 1
      %v4062 = vrot.slane %v4004, 1
      %v4063 = vsel %vm1770, %v4061, %v4062
      %v4064 = vrot.slane %v4005, 1
      %v4065 = vsel %vm1770, %v4062, %v4064
      %v4066 = vrot.slane %v4006, 1
      %v4067 = vrot.slane %v4007, 1
      %v4068 = vsel %vm1770, %v4066, %v4067
      %v4069 = vrot.slane %v4008, 1
      %v4070 = vsel %vm1770, %v4067, %v4069
      %v4071 = vrot.slane %v4009, 1
      %v4072 = vrot.slane %v4010, 1
      %v4073 = vsel %vm1770, %v4071, %v4072
      %v4074 = vrot.slane %v4011, 1
      %v4075 = vsel %vm1770, %v4072, %v4074
      %v4092 = vadd.f32 %v3972, %v4038
      %v4093 = vadd.f32 %v3973, %v4040
      %v4094 = vadd.f32 %v3974, %v4043
      %v4095 = vadd.f32 %v3975, %v4045
      %v4096 = vadd.f32 %v3976, %v4048
      %v4097 = vadd.f32 %v3977, %v4050
      %v4098 = vadd.f32 %v3978, %v4053
      %v4099 = vadd.f32 %v3979, %v4055
      %v4100 = vadd.f32 %v3980, %v4058
      %v4101 = vadd.f32 %v3981, %v4060
      %v4102 = vadd.f32 %v3982, %v4063
      %v4103 = vadd.f32 %v3983, %v4065
      %v4104 = vadd.f32 %v3984, %v4068
      %v4105 = vadd.f32 %v3985, %v4070
      %v4106 = vadd.f32 %v3986, %v4073
      %v4107 = vadd.f32 %v3987, %v4075
      %v4108 = vpack.c.bf16 %v4092, %v4092
      %v4109 = vpack.c.bf16 %v4093, %v4093
      %v4110 = vpack.c.bf16 %v4094, %v4094
      %v4111 = vpack.c.bf16 %v4095, %v4095
      %v4112 = vpack.c.bf16 %v4096, %v4096
      %v4113 = vpack.c.bf16 %v4097, %v4097
      %v4114 = vpack.c.bf16 %v4098, %v4098
      %v4115 = vpack.c.bf16 %v4099, %v4099
      %v4116 = vpack.c.bf16 %v4100, %v4100
      %v4117 = vpack.c.bf16 %v4101, %v4101
      %v4118 = vpack.c.bf16 %v4102, %v4102
      %v4119 = vpack.c.bf16 %v4103, %v4103
      %v4120 = vpack.c.bf16 %v4104, %v4104
      %v4121 = vpack.c.bf16 %v4105, %v4105
      %v4122 = vpack.c.bf16 %v4106, %v4106
      %v4123 = vpack.c.bf16 %v4107, %v4107
      %v4124 = vperm.slane %v3811, 1
      %v4125 = vunpack.c.l.bf16 %v4124
      %v4126 = vmul.f32 %v3814, %v4125
      %v4127 = vmul.f32 %v3815, %v4125
      %v4128 = vmul.f32 %v3915, %v4125
      %v4129 = vmul.f32 %v3816, %v4125
      %v4130 = vmul.f32 %v3817, %v4125
      %v4131 = vmul.f32 %v3916, %v4125
      %v4132 = vmul.f32 %v3818, %v4125
      %v4133 = vmul.f32 %v3819, %v4125
      %v4134 = vmul.f32 %v3917, %v4125
      %v4135 = vmul.f32 %v3820, %v4125
      %v4136 = vmul.f32 %v3821, %v4125
      %v4137 = vmul.f32 %v3918, %v4125
      %v4138 = vmul.f32 %v3822, %v4125
      %v4139 = vmul.f32 %v3823, %v4125
      %v4140 = vmul.f32 %v3919, %v4125
      %v4141 = vmul.f32 %v3824, %v4125
      %v4142 = vmul.f32 %v3825, %v4125
      %v4143 = vmul.f32 %v3920, %v4125
      %v4144 = vmul.f32 %v3826, %v4125
      %v4145 = vmul.f32 %v3827, %v4125
      %v4146 = vmul.f32 %v3921, %v4125
      %v4147 = vmul.f32 %v3828, %v4125
      %v4148 = vmul.f32 %v3829, %v4125
      %v4149 = vmul.f32 %v3922, %v4125
      %v4150 = vpack.c.bf16 %v4126, %v4126
      %v4151 = vpack.c.bf16 %v4127, %v4127
      %v4152 = vpack.c.bf16 %v4128, %v4128
      %v4153 = vpack.c.bf16 %v4129, %v4129
      %v4154 = vpack.c.bf16 %v4130, %v4130
      %v4155 = vpack.c.bf16 %v4131, %v4131
      %v4156 = vpack.c.bf16 %v4132, %v4132
      %v4157 = vpack.c.bf16 %v4133, %v4133
      %v4158 = vpack.c.bf16 %v4134, %v4134
      %v4159 = vpack.c.bf16 %v4135, %v4135
      %v4160 = vpack.c.bf16 %v4136, %v4136
      %v4161 = vpack.c.bf16 %v4137, %v4137
      %v4162 = vpack.c.bf16 %v4138, %v4138
      %v4163 = vpack.c.bf16 %v4139, %v4139
      %v4164 = vpack.c.bf16 %v4140, %v4140
      %v4165 = vpack.c.bf16 %v4141, %v4141
      %v4166 = vpack.c.bf16 %v4142, %v4142
      %v4167 = vpack.c.bf16 %v4143, %v4143
      %v4168 = vpack.c.bf16 %v4144, %v4144
      %v4169 = vpack.c.bf16 %v4145, %v4145
      %v4170 = vpack.c.bf16 %v4146, %v4146
      %v4171 = vpack.c.bf16 %v4147, %v4147
      %v4172 = vpack.c.bf16 %v4148, %v4148
      %v4173 = vpack.c.bf16 %v4149, %v4149
      %v4174 = vunpack.c.l.bf16 %v4108
      %v4175 = vunpack.c.l.bf16 %v4109
      %v4176 = vunpack.c.l.bf16 %v4110
      %v4177 = vunpack.c.l.bf16 %v4111
      %v4178 = vunpack.c.l.bf16 %v4112
      %v4179 = vunpack.c.l.bf16 %v4113
      %v4180 = vunpack.c.l.bf16 %v4114
      %v4181 = vunpack.c.l.bf16 %v4115
      %v4182 = vunpack.c.l.bf16 %v4116
      %v4183 = vunpack.c.l.bf16 %v4117
      %v4184 = vunpack.c.l.bf16 %v4118
      %v4185 = vunpack.c.l.bf16 %v4119
      %v4186 = vunpack.c.l.bf16 %v4120
      %v4187 = vunpack.c.l.bf16 %v4121
      %v4188 = vunpack.c.l.bf16 %v4122
      %v4189 = vunpack.c.l.bf16 %v4123
      %v4190 = vunpack.c.l.bf16 %v4150
      %v4191 = vunpack.c.l.bf16 %v4151
      %v4192 = vunpack.c.l.bf16 %v4152
      %v4193 = vunpack.c.l.bf16 %v4153
      %v4194 = vunpack.c.l.bf16 %v4154
      %v4195 = vunpack.c.l.bf16 %v4155
      %v4196 = vunpack.c.l.bf16 %v4156
      %v4197 = vunpack.c.l.bf16 %v4157
      %v4198 = vunpack.c.l.bf16 %v4158
      %v4199 = vunpack.c.l.bf16 %v4159
      %v4200 = vunpack.c.l.bf16 %v4160
      %v4201 = vunpack.c.l.bf16 %v4161
      %v4202 = vunpack.c.l.bf16 %v4162
      %v4203 = vunpack.c.l.bf16 %v4163
      %v4204 = vunpack.c.l.bf16 %v4164
      %v4205 = vunpack.c.l.bf16 %v4165
      %v4206 = vunpack.c.l.bf16 %v4166
      %v4207 = vunpack.c.l.bf16 %v4167
      %v4208 = vunpack.c.l.bf16 %v4168
      %v4209 = vunpack.c.l.bf16 %v4169
      %v4210 = vunpack.c.l.bf16 %v4170
      %v4211 = vunpack.c.l.bf16 %v4171
      %v4212 = vunpack.c.l.bf16 %v4172
      %v4213 = vunpack.c.l.bf16 %v4173
      %v4238 = vrot.slane %v4190, 2
      %v4239 = vrot.slane %v4191, 2
      %v4240 = vsel %vm2023, %v4238, %v4239
      %v4241 = vrot.slane %v4192, 2
      %v4242 = vsel %vm2023, %v4239, %v4241
      %v4243 = vrot.slane %v4193, 2
      %v4244 = vrot.slane %v4194, 2
      %v4245 = vsel %vm2023, %v4243, %v4244
      %v4246 = vrot.slane %v4195, 2
      %v4247 = vsel %vm2023, %v4244, %v4246
      %v4248 = vrot.slane %v4196, 2
      %v4249 = vrot.slane %v4197, 2
      %v4250 = vsel %vm2023, %v4248, %v4249
      %v4251 = vrot.slane %v4198, 2
      %v4252 = vsel %vm2023, %v4249, %v4251
      %v4253 = vrot.slane %v4199, 2
      %v4254 = vrot.slane %v4200, 2
      %v4255 = vsel %vm2023, %v4253, %v4254
      %v4256 = vrot.slane %v4201, 2
      %v4257 = vsel %vm2023, %v4254, %v4256
      %v4258 = vrot.slane %v4202, 2
      %v4259 = vrot.slane %v4203, 2
      %v4260 = vsel %vm2023, %v4258, %v4259
      %v4261 = vrot.slane %v4204, 2
      %v4262 = vsel %vm2023, %v4259, %v4261
      %v4263 = vrot.slane %v4205, 2
      %v4264 = vrot.slane %v4206, 2
      %v4265 = vsel %vm2023, %v4263, %v4264
      %v4266 = vrot.slane %v4207, 2
      %v4267 = vsel %vm2023, %v4264, %v4266
      %v4268 = vrot.slane %v4208, 2
      %v4269 = vrot.slane %v4209, 2
      %v4270 = vsel %vm2023, %v4268, %v4269
      %v4271 = vrot.slane %v4210, 2
      %v4272 = vsel %vm2023, %v4269, %v4271
      %v4273 = vrot.slane %v4211, 2
      %v4274 = vrot.slane %v4212, 2
      %v4275 = vsel %vm2023, %v4273, %v4274
      %v4276 = vrot.slane %v4213, 2
      %v4277 = vsel %vm2023, %v4274, %v4276
      %v4294 = vadd.f32 %v4174, %v4240
      %v4295 = vadd.f32 %v4175, %v4242
      %v4296 = vadd.f32 %v4176, %v4245
      %v4297 = vadd.f32 %v4177, %v4247
      %v4298 = vadd.f32 %v4178, %v4250
      %v4299 = vadd.f32 %v4179, %v4252
      %v4300 = vadd.f32 %v4180, %v4255
      %v4301 = vadd.f32 %v4181, %v4257
      %v4302 = vadd.f32 %v4182, %v4260
      %v4303 = vadd.f32 %v4183, %v4262
      %v4304 = vadd.f32 %v4184, %v4265
      %v4305 = vadd.f32 %v4185, %v4267
      %v4306 = vadd.f32 %v4186, %v4270
      %v4307 = vadd.f32 %v4187, %v4272
      %v4308 = vadd.f32 %v4188, %v4275
      %v4309 = vadd.f32 %v4189, %v4277
      %v4310 = vpack.c.bf16 %v4294, %v4294
      %v4311 = vpack.c.bf16 %v4295, %v4295
      %v4312 = vpack.c.bf16 %v4296, %v4296
      %v4313 = vpack.c.bf16 %v4297, %v4297
      %v4314 = vpack.c.bf16 %v4298, %v4298
      %v4315 = vpack.c.bf16 %v4299, %v4299
      %v4316 = vpack.c.bf16 %v4300, %v4300
      %v4317 = vpack.c.bf16 %v4301, %v4301
      %v4318 = vpack.c.bf16 %v4302, %v4302
      %v4319 = vpack.c.bf16 %v4303, %v4303
      %v4320 = vpack.c.bf16 %v4304, %v4304
      %v4321 = vpack.c.bf16 %v4305, %v4305
      %v4322 = vpack.c.bf16 %v4306, %v4306
      %v4323 = vpack.c.bf16 %v4307, %v4307
      %v4324 = vpack.c.bf16 %v4308, %v4308
      %v4325 = vpack.c.bf16 %v4309, %v4309
      %v4327 = vpack.i.b16 %v3808, %v3808
      %v4329 = vperm.slane %v4327, 0
      %v4330 = vunpack.c.l.bf16 %v3795
      %v4331 = vunpack.c.h.bf16 %v3795
      %v4332 = vunpack.c.l.bf16 %v4329
      %v4333 = vmul.f32 %v3816, %v4332
      %v4334 = vmul.f32 %v3817, %v4332
      %v4335 = vmul.f32 %v3818, %v4332
      %v4336 = vmul.f32 %v3819, %v4332
      %v4337 = vmul.f32 %v3820, %v4332
      %v4338 = vmul.f32 %v3821, %v4332
      %v4339 = vmul.f32 %v3822, %v4332
      %v4340 = vmul.f32 %v3823, %v4332
      %v4341 = vmul.f32 %v3824, %v4332
      %v4342 = vmul.f32 %v3825, %v4332
      %v4343 = vmul.f32 %v3826, %v4332
      %v4344 = vmul.f32 %v3827, %v4332
      %v4345 = vmul.f32 %v3828, %v4332
      %v4346 = vmul.f32 %v3829, %v4332
      %v4347 = vmul.f32 %v4330, %v4332
      %v4348 = vmul.f32 %v4331, %v4332
      %v4349 = vpack.c.bf16 %v4333, %v4333
      %v4350 = vpack.c.bf16 %v4334, %v4334
      %v4351 = vpack.c.bf16 %v4335, %v4335
      %v4352 = vpack.c.bf16 %v4336, %v4336
      %v4353 = vpack.c.bf16 %v4337, %v4337
      %v4354 = vpack.c.bf16 %v4338, %v4338
      %v4355 = vpack.c.bf16 %v4339, %v4339
      %v4356 = vpack.c.bf16 %v4340, %v4340
      %v4357 = vpack.c.bf16 %v4341, %v4341
      %v4358 = vpack.c.bf16 %v4342, %v4342
      %v4359 = vpack.c.bf16 %v4343, %v4343
      %v4360 = vpack.c.bf16 %v4344, %v4344
      %v4361 = vpack.c.bf16 %v4345, %v4345
      %v4362 = vpack.c.bf16 %v4346, %v4346
      %v4363 = vpack.c.bf16 %v4347, %v4347
      %v4364 = vpack.c.bf16 %v4348, %v4348
      %v4365 = vunpack.c.l.bf16 %v4310
      %v4366 = vunpack.c.l.bf16 %v4311
      %v4367 = vunpack.c.l.bf16 %v4312
      %v4368 = vunpack.c.l.bf16 %v4313
      %v4369 = vunpack.c.l.bf16 %v4314
      %v4370 = vunpack.c.l.bf16 %v4315
      %v4371 = vunpack.c.l.bf16 %v4316
      %v4372 = vunpack.c.l.bf16 %v4317
      %v4373 = vunpack.c.l.bf16 %v4318
      %v4374 = vunpack.c.l.bf16 %v4319
      %v4375 = vunpack.c.l.bf16 %v4320
      %v4376 = vunpack.c.l.bf16 %v4321
      %v4377 = vunpack.c.l.bf16 %v4322
      %v4378 = vunpack.c.l.bf16 %v4323
      %v4379 = vunpack.c.l.bf16 %v4324
      %v4380 = vunpack.c.l.bf16 %v4325
      %v4381 = vunpack.c.l.bf16 %v4349
      %v4382 = vunpack.c.l.bf16 %v4350
      %v4383 = vunpack.c.l.bf16 %v4351
      %v4384 = vunpack.c.l.bf16 %v4352
      %v4385 = vunpack.c.l.bf16 %v4353
      %v4386 = vunpack.c.l.bf16 %v4354
      %v4387 = vunpack.c.l.bf16 %v4355
      %v4388 = vunpack.c.l.bf16 %v4356
      %v4389 = vunpack.c.l.bf16 %v4357
      %v4390 = vunpack.c.l.bf16 %v4358
      %v4391 = vunpack.c.l.bf16 %v4359
      %v4392 = vunpack.c.l.bf16 %v4360
      %v4393 = vunpack.c.l.bf16 %v4361
      %v4394 = vunpack.c.l.bf16 %v4362
      %v4395 = vunpack.c.l.bf16 %v4363
      %v4396 = vunpack.c.l.bf16 %v4364
      %v4397 = vadd.f32 %v4365, %v4381
      %v4398 = vadd.f32 %v4366, %v4382
      %v4399 = vadd.f32 %v4367, %v4383
      %v4400 = vadd.f32 %v4368, %v4384
      %v4401 = vadd.f32 %v4369, %v4385
      %v4402 = vadd.f32 %v4370, %v4386
      %v4403 = vadd.f32 %v4371, %v4387
      %v4404 = vadd.f32 %v4372, %v4388
      %v4405 = vadd.f32 %v4373, %v4389
      %v4406 = vadd.f32 %v4374, %v4390
      %v4407 = vadd.f32 %v4375, %v4391
      %v4408 = vadd.f32 %v4376, %v4392
      %v4409 = vadd.f32 %v4377, %v4393
      %v4410 = vadd.f32 %v4378, %v4394
      %v4411 = vadd.f32 %v4379, %v4395
      %v4412 = vadd.f32 %v4380, %v4396
      %v4413 = vpack.c.bf16 %v4397, %v4397
      %v4414 = vpack.c.bf16 %v4398, %v4398
      %v4415 = vpack.c.bf16 %v4399, %v4399
      %v4416 = vpack.c.bf16 %v4400, %v4400
      %v4417 = vpack.c.bf16 %v4401, %v4401
      %v4418 = vpack.c.bf16 %v4402, %v4402
      %v4419 = vpack.c.bf16 %v4403, %v4403
      %v4420 = vpack.c.bf16 %v4404, %v4404
      %v4421 = vpack.c.bf16 %v4405, %v4405
      %v4422 = vpack.c.bf16 %v4406, %v4406
      %v4423 = vpack.c.bf16 %v4407, %v4407
      %v4424 = vpack.c.bf16 %v4408, %v4408
      %v4425 = vpack.c.bf16 %v4409, %v4409
      %v4426 = vpack.c.bf16 %v4410, %v4410
      %v4427 = vpack.c.bf16 %v4411, %v4411
      %v4428 = vpack.c.bf16 %v4412, %v4412
      %v4429 = vshrl.u32 %v3808, 16
      %v4430 = vpack.i.b16 %v4429, %v4429
      %v4432 = vperm.slane %v4430, 0
      %v4433 = vunpack.c.l.bf16 %v3805
      %v4434 = vunpack.c.l.bf16 %v4432
      %v4435 = vmul.f32 %v3816, %v4434
      %v4436 = vmul.f32 %v3817, %v4434
      %v4437 = vmul.f32 %v3916, %v4434
      %v4438 = vmul.f32 %v3818, %v4434
      %v4439 = vmul.f32 %v3819, %v4434
      %v4440 = vmul.f32 %v3917, %v4434
      %v4441 = vmul.f32 %v3820, %v4434
      %v4442 = vmul.f32 %v3821, %v4434
      %v4443 = vmul.f32 %v3918, %v4434
      %v4444 = vmul.f32 %v3822, %v4434
      %v4445 = vmul.f32 %v3823, %v4434
      %v4446 = vmul.f32 %v3919, %v4434
      %v4447 = vmul.f32 %v3824, %v4434
      %v4448 = vmul.f32 %v3825, %v4434
      %v4449 = vmul.f32 %v3920, %v4434
      %v4450 = vmul.f32 %v3826, %v4434
      %v4451 = vmul.f32 %v3827, %v4434
      %v4452 = vmul.f32 %v3921, %v4434
      %v4453 = vmul.f32 %v3828, %v4434
      %v4454 = vmul.f32 %v3829, %v4434
      %v4455 = vmul.f32 %v3922, %v4434
      %v4456 = vmul.f32 %v4330, %v4434
      %v4457 = vmul.f32 %v4331, %v4434
      %v4458 = vmul.f32 %v4433, %v4434
      %v4459 = vpack.c.bf16 %v4435, %v4435
      %v4460 = vpack.c.bf16 %v4436, %v4436
      %v4461 = vpack.c.bf16 %v4437, %v4437
      %v4462 = vpack.c.bf16 %v4438, %v4438
      %v4463 = vpack.c.bf16 %v4439, %v4439
      %v4464 = vpack.c.bf16 %v4440, %v4440
      %v4465 = vpack.c.bf16 %v4441, %v4441
      %v4466 = vpack.c.bf16 %v4442, %v4442
      %v4467 = vpack.c.bf16 %v4443, %v4443
      %v4468 = vpack.c.bf16 %v4444, %v4444
      %v4469 = vpack.c.bf16 %v4445, %v4445
      %v4470 = vpack.c.bf16 %v4446, %v4446
      %v4471 = vpack.c.bf16 %v4447, %v4447
      %v4472 = vpack.c.bf16 %v4448, %v4448
      %v4473 = vpack.c.bf16 %v4449, %v4449
      %v4474 = vpack.c.bf16 %v4450, %v4450
      %v4475 = vpack.c.bf16 %v4451, %v4451
      %v4476 = vpack.c.bf16 %v4452, %v4452
      %v4477 = vpack.c.bf16 %v4453, %v4453
      %v4478 = vpack.c.bf16 %v4454, %v4454
      %v4479 = vpack.c.bf16 %v4455, %v4455
      %v4480 = vpack.c.bf16 %v4456, %v4456
      %v4481 = vpack.c.bf16 %v4457, %v4457
      %v4482 = vpack.c.bf16 %v4458, %v4458
      %v4483 = vunpack.c.l.bf16 %v4413
      %v4484 = vunpack.c.l.bf16 %v4414
      %v4485 = vunpack.c.l.bf16 %v4415
      %v4486 = vunpack.c.l.bf16 %v4416
      %v4487 = vunpack.c.l.bf16 %v4417
      %v4488 = vunpack.c.l.bf16 %v4418
      %v4489 = vunpack.c.l.bf16 %v4419
      %v4490 = vunpack.c.l.bf16 %v4420
      %v4491 = vunpack.c.l.bf16 %v4421
      %v4492 = vunpack.c.l.bf16 %v4422
      %v4493 = vunpack.c.l.bf16 %v4423
      %v4494 = vunpack.c.l.bf16 %v4424
      %v4495 = vunpack.c.l.bf16 %v4425
      %v4496 = vunpack.c.l.bf16 %v4426
      %v4497 = vunpack.c.l.bf16 %v4427
      %v4498 = vunpack.c.l.bf16 %v4428
      %v4499 = vunpack.c.l.bf16 %v4459
      %v4500 = vunpack.c.l.bf16 %v4460
      %v4501 = vunpack.c.l.bf16 %v4461
      %v4502 = vunpack.c.l.bf16 %v4462
      %v4503 = vunpack.c.l.bf16 %v4463
      %v4504 = vunpack.c.l.bf16 %v4464
      %v4505 = vunpack.c.l.bf16 %v4465
      %v4506 = vunpack.c.l.bf16 %v4466
      %v4507 = vunpack.c.l.bf16 %v4467
      %v4508 = vunpack.c.l.bf16 %v4468
      %v4509 = vunpack.c.l.bf16 %v4469
      %v4510 = vunpack.c.l.bf16 %v4470
      %v4511 = vunpack.c.l.bf16 %v4471
      %v4512 = vunpack.c.l.bf16 %v4472
      %v4513 = vunpack.c.l.bf16 %v4473
      %v4514 = vunpack.c.l.bf16 %v4474
      %v4515 = vunpack.c.l.bf16 %v4475
      %v4516 = vunpack.c.l.bf16 %v4476
      %v4517 = vunpack.c.l.bf16 %v4477
      %v4518 = vunpack.c.l.bf16 %v4478
      %v4519 = vunpack.c.l.bf16 %v4479
      %v4520 = vunpack.c.l.bf16 %v4480
      %v4521 = vunpack.c.l.bf16 %v4481
      %v4522 = vunpack.c.l.bf16 %v4482
      %v4547 = vrot.slane %v4499, 1
      %v4548 = vrot.slane %v4500, 1
      %v4549 = vsel %vm1770, %v4547, %v4548
      %v4550 = vrot.slane %v4501, 1
      %v4551 = vsel %vm1770, %v4548, %v4550
      %v4552 = vrot.slane %v4502, 1
      %v4553 = vrot.slane %v4503, 1
      %v4554 = vsel %vm1770, %v4552, %v4553
      %v4555 = vrot.slane %v4504, 1
      %v4556 = vsel %vm1770, %v4553, %v4555
      %v4557 = vrot.slane %v4505, 1
      %v4558 = vrot.slane %v4506, 1
      %v4559 = vsel %vm1770, %v4557, %v4558
      %v4560 = vrot.slane %v4507, 1
      %v4561 = vsel %vm1770, %v4558, %v4560
      %v4562 = vrot.slane %v4508, 1
      %v4563 = vrot.slane %v4509, 1
      %v4564 = vsel %vm1770, %v4562, %v4563
      %v4565 = vrot.slane %v4510, 1
      %v4566 = vsel %vm1770, %v4563, %v4565
      %v4567 = vrot.slane %v4511, 1
      %v4568 = vrot.slane %v4512, 1
      %v4569 = vsel %vm1770, %v4567, %v4568
      %v4570 = vrot.slane %v4513, 1
      %v4571 = vsel %vm1770, %v4568, %v4570
      %v4572 = vrot.slane %v4514, 1
      %v4573 = vrot.slane %v4515, 1
      %v4574 = vsel %vm1770, %v4572, %v4573
      %v4575 = vrot.slane %v4516, 1
      %v4576 = vsel %vm1770, %v4573, %v4575
      %v4577 = vrot.slane %v4517, 1
      %v4578 = vrot.slane %v4518, 1
      %v4579 = vsel %vm1770, %v4577, %v4578
      %v4580 = vrot.slane %v4519, 1
      %v4581 = vsel %vm1770, %v4578, %v4580
      %v4582 = vrot.slane %v4520, 1
      %v4583 = vrot.slane %v4521, 1
      %v4584 = vsel %vm1770, %v4582, %v4583
      %v4585 = vrot.slane %v4522, 1
      %v4586 = vsel %vm1770, %v4583, %v4585
      %v4603 = vadd.f32 %v4483, %v4549
      %v4604 = vadd.f32 %v4484, %v4551
      %v4605 = vadd.f32 %v4485, %v4554
      %v4606 = vadd.f32 %v4486, %v4556
      %v4607 = vadd.f32 %v4487, %v4559
      %v4608 = vadd.f32 %v4488, %v4561
      %v4609 = vadd.f32 %v4489, %v4564
      %v4610 = vadd.f32 %v4490, %v4566
      %v4611 = vadd.f32 %v4491, %v4569
      %v4612 = vadd.f32 %v4492, %v4571
      %v4613 = vadd.f32 %v4493, %v4574
      %v4614 = vadd.f32 %v4494, %v4576
      %v4615 = vadd.f32 %v4495, %v4579
      %v4616 = vadd.f32 %v4496, %v4581
      %v4617 = vadd.f32 %v4497, %v4584
      %v4618 = vadd.f32 %v4498, %v4586
      %v4619 = vpack.c.bf16 %v4603, %v4603
      %v4620 = vpack.c.bf16 %v4604, %v4604
      %v4621 = vpack.c.bf16 %v4605, %v4605
      %v4622 = vpack.c.bf16 %v4606, %v4606
      %v4623 = vpack.c.bf16 %v4607, %v4607
      %v4624 = vpack.c.bf16 %v4608, %v4608
      %v4625 = vpack.c.bf16 %v4609, %v4609
      %v4626 = vpack.c.bf16 %v4610, %v4610
      %v4627 = vpack.c.bf16 %v4611, %v4611
      %v4628 = vpack.c.bf16 %v4612, %v4612
      %v4629 = vpack.c.bf16 %v4613, %v4613
      %v4630 = vpack.c.bf16 %v4614, %v4614
      %v4631 = vpack.c.bf16 %v4615, %v4615
      %v4632 = vpack.c.bf16 %v4616, %v4616
      %v4633 = vpack.c.bf16 %v4617, %v4617
      %v4634 = vpack.c.bf16 %v4618, %v4618
      %v4635 = vperm.slane %v4327, 1
      %v4636 = vunpack.c.l.bf16 %v4635
      %v4637 = vmul.f32 %v3816, %v4636
      %v4638 = vmul.f32 %v3817, %v4636
      %v4639 = vmul.f32 %v3916, %v4636
      %v4640 = vmul.f32 %v3818, %v4636
      %v4641 = vmul.f32 %v3819, %v4636
      %v4642 = vmul.f32 %v3917, %v4636
      %v4643 = vmul.f32 %v3820, %v4636
      %v4644 = vmul.f32 %v3821, %v4636
      %v4645 = vmul.f32 %v3918, %v4636
      %v4646 = vmul.f32 %v3822, %v4636
      %v4647 = vmul.f32 %v3823, %v4636
      %v4648 = vmul.f32 %v3919, %v4636
      %v4649 = vmul.f32 %v3824, %v4636
      %v4650 = vmul.f32 %v3825, %v4636
      %v4651 = vmul.f32 %v3920, %v4636
      %v4652 = vmul.f32 %v3826, %v4636
      %v4653 = vmul.f32 %v3827, %v4636
      %v4654 = vmul.f32 %v3921, %v4636
      %v4655 = vmul.f32 %v3828, %v4636
      %v4656 = vmul.f32 %v3829, %v4636
      %v4657 = vmul.f32 %v3922, %v4636
      %v4658 = vmul.f32 %v4330, %v4636
      %v4659 = vmul.f32 %v4331, %v4636
      %v4660 = vmul.f32 %v4433, %v4636
      %v4661 = vpack.c.bf16 %v4637, %v4637
      %v4662 = vpack.c.bf16 %v4638, %v4638
      %v4663 = vpack.c.bf16 %v4639, %v4639
      %v4664 = vpack.c.bf16 %v4640, %v4640
      %v4665 = vpack.c.bf16 %v4641, %v4641
      %v4666 = vpack.c.bf16 %v4642, %v4642
      %v4667 = vpack.c.bf16 %v4643, %v4643
      %v4668 = vpack.c.bf16 %v4644, %v4644
      %v4669 = vpack.c.bf16 %v4645, %v4645
      %v4670 = vpack.c.bf16 %v4646, %v4646
      %v4671 = vpack.c.bf16 %v4647, %v4647
      %v4672 = vpack.c.bf16 %v4648, %v4648
      %v4673 = vpack.c.bf16 %v4649, %v4649
      %v4674 = vpack.c.bf16 %v4650, %v4650
      %v4675 = vpack.c.bf16 %v4651, %v4651
      %v4676 = vpack.c.bf16 %v4652, %v4652
      %v4677 = vpack.c.bf16 %v4653, %v4653
      %v4678 = vpack.c.bf16 %v4654, %v4654
      %v4679 = vpack.c.bf16 %v4655, %v4655
      %v4680 = vpack.c.bf16 %v4656, %v4656
      %v4681 = vpack.c.bf16 %v4657, %v4657
      %v4682 = vpack.c.bf16 %v4658, %v4658
      %v4683 = vpack.c.bf16 %v4659, %v4659
      %v4684 = vpack.c.bf16 %v4660, %v4660
      %v4685 = vunpack.c.l.bf16 %v4619
      %v4686 = vunpack.c.l.bf16 %v4620
      %v4687 = vunpack.c.l.bf16 %v4621
      %v4688 = vunpack.c.l.bf16 %v4622
      %v4689 = vunpack.c.l.bf16 %v4623
      %v4690 = vunpack.c.l.bf16 %v4624
      %v4691 = vunpack.c.l.bf16 %v4625
      %v4692 = vunpack.c.l.bf16 %v4626
      %v4693 = vunpack.c.l.bf16 %v4627
      %v4694 = vunpack.c.l.bf16 %v4628
      %v4695 = vunpack.c.l.bf16 %v4629
      %v4696 = vunpack.c.l.bf16 %v4630
      %v4697 = vunpack.c.l.bf16 %v4631
      %v4698 = vunpack.c.l.bf16 %v4632
      %v4699 = vunpack.c.l.bf16 %v4633
      %v4700 = vunpack.c.l.bf16 %v4634
      %v4701 = vunpack.c.l.bf16 %v4661
      %v4702 = vunpack.c.l.bf16 %v4662
      %v4703 = vunpack.c.l.bf16 %v4663
      %v4704 = vunpack.c.l.bf16 %v4664
      %v4705 = vunpack.c.l.bf16 %v4665
      %v4706 = vunpack.c.l.bf16 %v4666
      %v4707 = vunpack.c.l.bf16 %v4667
      %v4708 = vunpack.c.l.bf16 %v4668
      %v4709 = vunpack.c.l.bf16 %v4669
      %v4710 = vunpack.c.l.bf16 %v4670
      %v4711 = vunpack.c.l.bf16 %v4671
      %v4712 = vunpack.c.l.bf16 %v4672
      %v4713 = vunpack.c.l.bf16 %v4673
      %v4714 = vunpack.c.l.bf16 %v4674
      %v4715 = vunpack.c.l.bf16 %v4675
      %v4716 = vunpack.c.l.bf16 %v4676
      %v4717 = vunpack.c.l.bf16 %v4677
      %v4718 = vunpack.c.l.bf16 %v4678
      %v4719 = vunpack.c.l.bf16 %v4679
      %v4720 = vunpack.c.l.bf16 %v4680
      %v4721 = vunpack.c.l.bf16 %v4681
      %v4722 = vunpack.c.l.bf16 %v4682
      %v4723 = vunpack.c.l.bf16 %v4683
      %v4724 = vunpack.c.l.bf16 %v4684
      %v4749 = vrot.slane %v4701, 2
      %v4750 = vrot.slane %v4702, 2
      %v4751 = vsel %vm2023, %v4749, %v4750
      %v4752 = vrot.slane %v4703, 2
      %v4753 = vsel %vm2023, %v4750, %v4752
      %v4754 = vrot.slane %v4704, 2
      %v4755 = vrot.slane %v4705, 2
      %v4756 = vsel %vm2023, %v4754, %v4755
      %v4757 = vrot.slane %v4706, 2
      %v4758 = vsel %vm2023, %v4755, %v4757
      %v4759 = vrot.slane %v4707, 2
      %v4760 = vrot.slane %v4708, 2
      %v4761 = vsel %vm2023, %v4759, %v4760
      %v4762 = vrot.slane %v4709, 2
      %v4763 = vsel %vm2023, %v4760, %v4762
      %v4764 = vrot.slane %v4710, 2
      %v4765 = vrot.slane %v4711, 2
      %v4766 = vsel %vm2023, %v4764, %v4765
      %v4767 = vrot.slane %v4712, 2
      %v4768 = vsel %vm2023, %v4765, %v4767
      %v4769 = vrot.slane %v4713, 2
      %v4770 = vrot.slane %v4714, 2
      %v4771 = vsel %vm2023, %v4769, %v4770
      %v4772 = vrot.slane %v4715, 2
      %v4773 = vsel %vm2023, %v4770, %v4772
      %v4774 = vrot.slane %v4716, 2
      %v4775 = vrot.slane %v4717, 2
      %v4776 = vsel %vm2023, %v4774, %v4775
      %v4777 = vrot.slane %v4718, 2
      %v4778 = vsel %vm2023, %v4775, %v4777
      %v4779 = vrot.slane %v4719, 2
      %v4780 = vrot.slane %v4720, 2
      %v4781 = vsel %vm2023, %v4779, %v4780
      %v4782 = vrot.slane %v4721, 2
      %v4783 = vsel %vm2023, %v4780, %v4782
      %v4784 = vrot.slane %v4722, 2
      %v4785 = vrot.slane %v4723, 2
      %v4786 = vsel %vm2023, %v4784, %v4785
      %v4787 = vrot.slane %v4724, 2
      %v4788 = vsel %vm2023, %v4785, %v4787
      %v4805 = vadd.f32 %v4685, %v4751
      %v4806 = vadd.f32 %v4686, %v4753
      %v4807 = vadd.f32 %v4687, %v4756
      %v4808 = vadd.f32 %v4688, %v4758
      %v4809 = vadd.f32 %v4689, %v4761
      %v4810 = vadd.f32 %v4690, %v4763
      %v4811 = vadd.f32 %v4691, %v4766
      %v4812 = vadd.f32 %v4692, %v4768
      %v4813 = vadd.f32 %v4693, %v4771
      %v4814 = vadd.f32 %v4694, %v4773
      %v4815 = vadd.f32 %v4695, %v4776
      %v4816 = vadd.f32 %v4696, %v4778
      %v4817 = vadd.f32 %v4697, %v4781
      %v4818 = vadd.f32 %v4698, %v4783
      %v4819 = vadd.f32 %v4699, %v4786
      %v4820 = vadd.f32 %v4700, %v4788
      %v4821 = vpack.c.bf16 %v4805, %v4805
      %v4822 = vpack.c.bf16 %v4806, %v4806
      %v4823 = vpack.c.bf16 %v4807, %v4807
      %v4824 = vpack.c.bf16 %v4808, %v4808
      %v4825 = vpack.c.bf16 %v4809, %v4809
      %v4826 = vpack.c.bf16 %v4810, %v4810
      %v4827 = vpack.c.bf16 %v4811, %v4811
      %v4828 = vpack.c.bf16 %v4812, %v4812
      %v4829 = vpack.c.bf16 %v4813, %v4813
      %v4830 = vpack.c.bf16 %v4814, %v4814
      %v4831 = vpack.c.bf16 %v4815, %v4815
      %v4832 = vpack.c.bf16 %v4816, %v4816
      %v4833 = vpack.c.bf16 %v4817, %v4817
      %v4834 = vpack.c.bf16 %v4818, %v4818
      %v4835 = vpack.c.bf16 %v4819, %v4819
      %v4836 = vpack.c.bf16 %v4820, %v4820
      %v4838 = vpack.i.b16 %v3809, %v3809
      %v4840 = vperm.slane %v4838, 0
      %v4841 = vunpack.c.l.bf16 %v3796
      %v4842 = vunpack.c.h.bf16 %v3796
      %v4843 = vunpack.c.l.bf16 %v4840
      %v4844 = vmul.f32 %v3818, %v4843
      %v4845 = vmul.f32 %v3819, %v4843
      %v4846 = vmul.f32 %v3820, %v4843
      %v4847 = vmul.f32 %v3821, %v4843
      %v4848 = vmul.f32 %v3822, %v4843
      %v4849 = vmul.f32 %v3823, %v4843
      %v4850 = vmul.f32 %v3824, %v4843
      %v4851 = vmul.f32 %v3825, %v4843
      %v4852 = vmul.f32 %v3826, %v4843
      %v4853 = vmul.f32 %v3827, %v4843
      %v4854 = vmul.f32 %v3828, %v4843
      %v4855 = vmul.f32 %v3829, %v4843
      %v4856 = vmul.f32 %v4330, %v4843
      %v4857 = vmul.f32 %v4331, %v4843
      %v4858 = vmul.f32 %v4841, %v4843
      %v4859 = vmul.f32 %v4842, %v4843
      %v4860 = vpack.c.bf16 %v4844, %v4844
      %v4861 = vpack.c.bf16 %v4845, %v4845
      %v4862 = vpack.c.bf16 %v4846, %v4846
      %v4863 = vpack.c.bf16 %v4847, %v4847
      %v4864 = vpack.c.bf16 %v4848, %v4848
      %v4865 = vpack.c.bf16 %v4849, %v4849
      %v4866 = vpack.c.bf16 %v4850, %v4850
      %v4867 = vpack.c.bf16 %v4851, %v4851
      %v4868 = vpack.c.bf16 %v4852, %v4852
      %v4869 = vpack.c.bf16 %v4853, %v4853
      %v4870 = vpack.c.bf16 %v4854, %v4854
      %v4871 = vpack.c.bf16 %v4855, %v4855
      %v4872 = vpack.c.bf16 %v4856, %v4856
      %v4873 = vpack.c.bf16 %v4857, %v4857
      %v4874 = vpack.c.bf16 %v4858, %v4858
      %v4875 = vpack.c.bf16 %v4859, %v4859
      %v4876 = vunpack.c.l.bf16 %v4821
      %v4877 = vunpack.c.l.bf16 %v4822
      %v4878 = vunpack.c.l.bf16 %v4823
      %v4879 = vunpack.c.l.bf16 %v4824
      %v4880 = vunpack.c.l.bf16 %v4825
      %v4881 = vunpack.c.l.bf16 %v4826
      %v4882 = vunpack.c.l.bf16 %v4827
      %v4883 = vunpack.c.l.bf16 %v4828
      %v4884 = vunpack.c.l.bf16 %v4829
      %v4885 = vunpack.c.l.bf16 %v4830
      %v4886 = vunpack.c.l.bf16 %v4831
      %v4887 = vunpack.c.l.bf16 %v4832
      %v4888 = vunpack.c.l.bf16 %v4833
      %v4889 = vunpack.c.l.bf16 %v4834
      %v4890 = vunpack.c.l.bf16 %v4835
      %v4891 = vunpack.c.l.bf16 %v4836
      %v4892 = vunpack.c.l.bf16 %v4860
      %v4893 = vunpack.c.l.bf16 %v4861
      %v4894 = vunpack.c.l.bf16 %v4862
      %v4895 = vunpack.c.l.bf16 %v4863
      %v4896 = vunpack.c.l.bf16 %v4864
      %v4897 = vunpack.c.l.bf16 %v4865
      %v4898 = vunpack.c.l.bf16 %v4866
      %v4899 = vunpack.c.l.bf16 %v4867
      %v4900 = vunpack.c.l.bf16 %v4868
      %v4901 = vunpack.c.l.bf16 %v4869
      %v4902 = vunpack.c.l.bf16 %v4870
      %v4903 = vunpack.c.l.bf16 %v4871
      %v4904 = vunpack.c.l.bf16 %v4872
      %v4905 = vunpack.c.l.bf16 %v4873
      %v4906 = vunpack.c.l.bf16 %v4874
      %v4907 = vunpack.c.l.bf16 %v4875
      %v4908 = vadd.f32 %v4876, %v4892
      %v4909 = vadd.f32 %v4877, %v4893
      %v4910 = vadd.f32 %v4878, %v4894
      %v4911 = vadd.f32 %v4879, %v4895
      %v4912 = vadd.f32 %v4880, %v4896
      %v4913 = vadd.f32 %v4881, %v4897
      %v4914 = vadd.f32 %v4882, %v4898
      %v4915 = vadd.f32 %v4883, %v4899
      %v4916 = vadd.f32 %v4884, %v4900
      %v4917 = vadd.f32 %v4885, %v4901
      %v4918 = vadd.f32 %v4886, %v4902
      %v4919 = vadd.f32 %v4887, %v4903
      %v4920 = vadd.f32 %v4888, %v4904
      %v4921 = vadd.f32 %v4889, %v4905
      %v4922 = vadd.f32 %v4890, %v4906
      %v4923 = vadd.f32 %v4891, %v4907
      %v4924 = vpack.c.bf16 %v4908, %v4908
      %v4925 = vpack.c.bf16 %v4909, %v4909
      %v4926 = vpack.c.bf16 %v4910, %v4910
      %v4927 = vpack.c.bf16 %v4911, %v4911
      %v4928 = vpack.c.bf16 %v4912, %v4912
      %v4929 = vpack.c.bf16 %v4913, %v4913
      %v4930 = vpack.c.bf16 %v4914, %v4914
      %v4931 = vpack.c.bf16 %v4915, %v4915
      %v4932 = vpack.c.bf16 %v4916, %v4916
      %v4933 = vpack.c.bf16 %v4917, %v4917
      %v4934 = vpack.c.bf16 %v4918, %v4918
      %v4935 = vpack.c.bf16 %v4919, %v4919
      %v4936 = vpack.c.bf16 %v4920, %v4920
      %v4937 = vpack.c.bf16 %v4921, %v4921
      %v4938 = vpack.c.bf16 %v4922, %v4922
      %v4939 = vpack.c.bf16 %v4923, %v4923
      %v4940 = vshrl.u32 %v3809, 16
      %v4941 = vpack.i.b16 %v4940, %v4940
      %v4943 = vperm.slane %v4941, 0
      %v4944 = vunpack.c.l.bf16 %v3806
      %v4945 = vunpack.c.l.bf16 %v4943
      %v4946 = vmul.f32 %v3818, %v4945
      %v4947 = vmul.f32 %v3819, %v4945
      %v4948 = vmul.f32 %v3917, %v4945
      %v4949 = vmul.f32 %v3820, %v4945
      %v4950 = vmul.f32 %v3821, %v4945
      %v4951 = vmul.f32 %v3918, %v4945
      %v4952 = vmul.f32 %v3822, %v4945
      %v4953 = vmul.f32 %v3823, %v4945
      %v4954 = vmul.f32 %v3919, %v4945
      %v4955 = vmul.f32 %v3824, %v4945
      %v4956 = vmul.f32 %v3825, %v4945
      %v4957 = vmul.f32 %v3920, %v4945
      %v4958 = vmul.f32 %v3826, %v4945
      %v4959 = vmul.f32 %v3827, %v4945
      %v4960 = vmul.f32 %v3921, %v4945
      %v4961 = vmul.f32 %v3828, %v4945
      %v4962 = vmul.f32 %v3829, %v4945
      %v4963 = vmul.f32 %v3922, %v4945
      %v4964 = vmul.f32 %v4330, %v4945
      %v4965 = vmul.f32 %v4331, %v4945
      %v4966 = vmul.f32 %v4433, %v4945
      %v4967 = vmul.f32 %v4841, %v4945
      %v4968 = vmul.f32 %v4842, %v4945
      %v4969 = vmul.f32 %v4944, %v4945
      %v4970 = vpack.c.bf16 %v4946, %v4946
      %v4971 = vpack.c.bf16 %v4947, %v4947
      %v4972 = vpack.c.bf16 %v4948, %v4948
      %v4973 = vpack.c.bf16 %v4949, %v4949
      %v4974 = vpack.c.bf16 %v4950, %v4950
      %v4975 = vpack.c.bf16 %v4951, %v4951
      %v4976 = vpack.c.bf16 %v4952, %v4952
      %v4977 = vpack.c.bf16 %v4953, %v4953
      %v4978 = vpack.c.bf16 %v4954, %v4954
      %v4979 = vpack.c.bf16 %v4955, %v4955
      %v4980 = vpack.c.bf16 %v4956, %v4956
      %v4981 = vpack.c.bf16 %v4957, %v4957
      %v4982 = vpack.c.bf16 %v4958, %v4958
      %v4983 = vpack.c.bf16 %v4959, %v4959
      %v4984 = vpack.c.bf16 %v4960, %v4960
      %v4985 = vpack.c.bf16 %v4961, %v4961
      %v4986 = vpack.c.bf16 %v4962, %v4962
      %v4987 = vpack.c.bf16 %v4963, %v4963
      %v4988 = vpack.c.bf16 %v4964, %v4964
      %v4989 = vpack.c.bf16 %v4965, %v4965
      %v4990 = vpack.c.bf16 %v4966, %v4966
      %v4991 = vpack.c.bf16 %v4967, %v4967
      %v4992 = vpack.c.bf16 %v4968, %v4968
      %v4993 = vpack.c.bf16 %v4969, %v4969
      %v4994 = vunpack.c.l.bf16 %v4924
      %v4995 = vunpack.c.l.bf16 %v4925
      %v4996 = vunpack.c.l.bf16 %v4926
      %v4997 = vunpack.c.l.bf16 %v4927
      %v4998 = vunpack.c.l.bf16 %v4928
      %v4999 = vunpack.c.l.bf16 %v4929
      %v5000 = vunpack.c.l.bf16 %v4930
      %v5001 = vunpack.c.l.bf16 %v4931
      %v5002 = vunpack.c.l.bf16 %v4932
      %v5003 = vunpack.c.l.bf16 %v4933
      %v5004 = vunpack.c.l.bf16 %v4934
      %v5005 = vunpack.c.l.bf16 %v4935
      %v5006 = vunpack.c.l.bf16 %v4936
      %v5007 = vunpack.c.l.bf16 %v4937
      %v5008 = vunpack.c.l.bf16 %v4938
      %v5009 = vunpack.c.l.bf16 %v4939
      %v5010 = vunpack.c.l.bf16 %v4970
      %v5011 = vunpack.c.l.bf16 %v4971
      %v5012 = vunpack.c.l.bf16 %v4972
      %v5013 = vunpack.c.l.bf16 %v4973
      %v5014 = vunpack.c.l.bf16 %v4974
      %v5015 = vunpack.c.l.bf16 %v4975
      %v5016 = vunpack.c.l.bf16 %v4976
      %v5017 = vunpack.c.l.bf16 %v4977
      %v5018 = vunpack.c.l.bf16 %v4978
      %v5019 = vunpack.c.l.bf16 %v4979
      %v5020 = vunpack.c.l.bf16 %v4980
      %v5021 = vunpack.c.l.bf16 %v4981
      %v5022 = vunpack.c.l.bf16 %v4982
      %v5023 = vunpack.c.l.bf16 %v4983
      %v5024 = vunpack.c.l.bf16 %v4984
      %v5025 = vunpack.c.l.bf16 %v4985
      %v5026 = vunpack.c.l.bf16 %v4986
      %v5027 = vunpack.c.l.bf16 %v4987
      %v5028 = vunpack.c.l.bf16 %v4988
      %v5029 = vunpack.c.l.bf16 %v4989
      %v5030 = vunpack.c.l.bf16 %v4990
      %v5031 = vunpack.c.l.bf16 %v4991
      %v5032 = vunpack.c.l.bf16 %v4992
      %v5033 = vunpack.c.l.bf16 %v4993
      %v5058 = vrot.slane %v5010, 1
      %v5059 = vrot.slane %v5011, 1
      %v5060 = vsel %vm1770, %v5058, %v5059
      %v5061 = vrot.slane %v5012, 1
      %v5062 = vsel %vm1770, %v5059, %v5061
      %v5063 = vrot.slane %v5013, 1
      %v5064 = vrot.slane %v5014, 1
      %v5065 = vsel %vm1770, %v5063, %v5064
      %v5066 = vrot.slane %v5015, 1
      %v5067 = vsel %vm1770, %v5064, %v5066
      %v5068 = vrot.slane %v5016, 1
      %v5069 = vrot.slane %v5017, 1
      %v5070 = vsel %vm1770, %v5068, %v5069
      %v5071 = vrot.slane %v5018, 1
      %v5072 = vsel %vm1770, %v5069, %v5071
      %v5073 = vrot.slane %v5019, 1
      %v5074 = vrot.slane %v5020, 1
      %v5075 = vsel %vm1770, %v5073, %v5074
      %v5076 = vrot.slane %v5021, 1
      %v5077 = vsel %vm1770, %v5074, %v5076
      %v5078 = vrot.slane %v5022, 1
      %v5079 = vrot.slane %v5023, 1
      %v5080 = vsel %vm1770, %v5078, %v5079
      %v5081 = vrot.slane %v5024, 1
      %v5082 = vsel %vm1770, %v5079, %v5081
      %v5083 = vrot.slane %v5025, 1
      %v5084 = vrot.slane %v5026, 1
      %v5085 = vsel %vm1770, %v5083, %v5084
      %v5086 = vrot.slane %v5027, 1
      %v5087 = vsel %vm1770, %v5084, %v5086
      %v5088 = vrot.slane %v5028, 1
      %v5089 = vrot.slane %v5029, 1
      %v5090 = vsel %vm1770, %v5088, %v5089
      %v5091 = vrot.slane %v5030, 1
      %v5092 = vsel %vm1770, %v5089, %v5091
      %v5093 = vrot.slane %v5031, 1
      %v5094 = vrot.slane %v5032, 1
      %v5095 = vsel %vm1770, %v5093, %v5094
      %v5096 = vrot.slane %v5033, 1
      %v5097 = vsel %vm1770, %v5094, %v5096
      %v5114 = vadd.f32 %v4994, %v5060
      %v5115 = vadd.f32 %v4995, %v5062
      %v5116 = vadd.f32 %v4996, %v5065
      %v5117 = vadd.f32 %v4997, %v5067
      %v5118 = vadd.f32 %v4998, %v5070
      %v5119 = vadd.f32 %v4999, %v5072
      %v5120 = vadd.f32 %v5000, %v5075
      %v5121 = vadd.f32 %v5001, %v5077
      %v5122 = vadd.f32 %v5002, %v5080
      %v5123 = vadd.f32 %v5003, %v5082
      %v5124 = vadd.f32 %v5004, %v5085
      %v5125 = vadd.f32 %v5005, %v5087
      %v5126 = vadd.f32 %v5006, %v5090
      %v5127 = vadd.f32 %v5007, %v5092
      %v5128 = vadd.f32 %v5008, %v5095
      %v5129 = vadd.f32 %v5009, %v5097
      %v5130 = vpack.c.bf16 %v5114, %v5114
      %v5131 = vpack.c.bf16 %v5115, %v5115
      %v5132 = vpack.c.bf16 %v5116, %v5116
      %v5133 = vpack.c.bf16 %v5117, %v5117
      %v5134 = vpack.c.bf16 %v5118, %v5118
      %v5135 = vpack.c.bf16 %v5119, %v5119
      %v5136 = vpack.c.bf16 %v5120, %v5120
      %v5137 = vpack.c.bf16 %v5121, %v5121
      %v5138 = vpack.c.bf16 %v5122, %v5122
      %v5139 = vpack.c.bf16 %v5123, %v5123
      %v5140 = vpack.c.bf16 %v5124, %v5124
      %v5141 = vpack.c.bf16 %v5125, %v5125
      %v5142 = vpack.c.bf16 %v5126, %v5126
      %v5143 = vpack.c.bf16 %v5127, %v5127
      %v5144 = vpack.c.bf16 %v5128, %v5128
      %v5145 = vpack.c.bf16 %v5129, %v5129
      %v5146 = vperm.slane %v4838, 1
      %v5147 = vunpack.c.l.bf16 %v5146
      %v5148 = vmul.f32 %v3818, %v5147
      %v5149 = vmul.f32 %v3819, %v5147
      %v5150 = vmul.f32 %v3917, %v5147
      %v5151 = vmul.f32 %v3820, %v5147
      %v5152 = vmul.f32 %v3821, %v5147
      %v5153 = vmul.f32 %v3918, %v5147
      %v5154 = vmul.f32 %v3822, %v5147
      %v5155 = vmul.f32 %v3823, %v5147
      %v5156 = vmul.f32 %v3919, %v5147
      %v5157 = vmul.f32 %v3824, %v5147
      %v5158 = vmul.f32 %v3825, %v5147
      %v5159 = vmul.f32 %v3920, %v5147
      %v5160 = vmul.f32 %v3826, %v5147
      %v5161 = vmul.f32 %v3827, %v5147
      %v5162 = vmul.f32 %v3921, %v5147
      %v5163 = vmul.f32 %v3828, %v5147
      %v5164 = vmul.f32 %v3829, %v5147
      %v5165 = vmul.f32 %v3922, %v5147
      %v5166 = vmul.f32 %v4330, %v5147
      %v5167 = vmul.f32 %v4331, %v5147
      %v5168 = vmul.f32 %v4433, %v5147
      %v5169 = vmul.f32 %v4841, %v5147
      %v5170 = vmul.f32 %v4842, %v5147
      %v5171 = vmul.f32 %v4944, %v5147
      %v5172 = vpack.c.bf16 %v5148, %v5148
      %v5173 = vpack.c.bf16 %v5149, %v5149
      %v5174 = vpack.c.bf16 %v5150, %v5150
      %v5175 = vpack.c.bf16 %v5151, %v5151
      %v5176 = vpack.c.bf16 %v5152, %v5152
      %v5177 = vpack.c.bf16 %v5153, %v5153
      %v5178 = vpack.c.bf16 %v5154, %v5154
      %v5179 = vpack.c.bf16 %v5155, %v5155
      %v5180 = vpack.c.bf16 %v5156, %v5156
      %v5181 = vpack.c.bf16 %v5157, %v5157
      %v5182 = vpack.c.bf16 %v5158, %v5158
      %v5183 = vpack.c.bf16 %v5159, %v5159
      %v5184 = vpack.c.bf16 %v5160, %v5160
      %v5185 = vpack.c.bf16 %v5161, %v5161
      %v5186 = vpack.c.bf16 %v5162, %v5162
      %v5187 = vpack.c.bf16 %v5163, %v5163
      %v5188 = vpack.c.bf16 %v5164, %v5164
      %v5189 = vpack.c.bf16 %v5165, %v5165
      %v5190 = vpack.c.bf16 %v5166, %v5166
      %v5191 = vpack.c.bf16 %v5167, %v5167
      %v5192 = vpack.c.bf16 %v5168, %v5168
      %v5193 = vpack.c.bf16 %v5169, %v5169
      %v5194 = vpack.c.bf16 %v5170, %v5170
      %v5195 = vpack.c.bf16 %v5171, %v5171
      %v5196 = vunpack.c.l.bf16 %v5130
      %v5197 = vunpack.c.l.bf16 %v5131
      %v5198 = vunpack.c.l.bf16 %v5132
      %v5199 = vunpack.c.l.bf16 %v5133
      %v5200 = vunpack.c.l.bf16 %v5134
      %v5201 = vunpack.c.l.bf16 %v5135
      %v5202 = vunpack.c.l.bf16 %v5136
      %v5203 = vunpack.c.l.bf16 %v5137
      %v5204 = vunpack.c.l.bf16 %v5138
      %v5205 = vunpack.c.l.bf16 %v5139
      %v5206 = vunpack.c.l.bf16 %v5140
      %v5207 = vunpack.c.l.bf16 %v5141
      %v5208 = vunpack.c.l.bf16 %v5142
      %v5209 = vunpack.c.l.bf16 %v5143
      %v5210 = vunpack.c.l.bf16 %v5144
      %v5211 = vunpack.c.l.bf16 %v5145
      %v5212 = vunpack.c.l.bf16 %v5172
      %v5213 = vunpack.c.l.bf16 %v5173
      %v5214 = vunpack.c.l.bf16 %v5174
      %v5215 = vunpack.c.l.bf16 %v5175
      %v5216 = vunpack.c.l.bf16 %v5176
      %v5217 = vunpack.c.l.bf16 %v5177
      %v5218 = vunpack.c.l.bf16 %v5178
      %v5219 = vunpack.c.l.bf16 %v5179
      %v5220 = vunpack.c.l.bf16 %v5180
      %v5221 = vunpack.c.l.bf16 %v5181
      %v5222 = vunpack.c.l.bf16 %v5182
      %v5223 = vunpack.c.l.bf16 %v5183
      %v5224 = vunpack.c.l.bf16 %v5184
      %v5225 = vunpack.c.l.bf16 %v5185
      %v5226 = vunpack.c.l.bf16 %v5186
      %v5227 = vunpack.c.l.bf16 %v5187
      %v5228 = vunpack.c.l.bf16 %v5188
      %v5229 = vunpack.c.l.bf16 %v5189
      %v5230 = vunpack.c.l.bf16 %v5190
      %v5231 = vunpack.c.l.bf16 %v5191
      %v5232 = vunpack.c.l.bf16 %v5192
      %v5233 = vunpack.c.l.bf16 %v5193
      %v5234 = vunpack.c.l.bf16 %v5194
      %v5235 = vunpack.c.l.bf16 %v5195
      %v5260 = vrot.slane %v5212, 2
      %v5261 = vrot.slane %v5213, 2
      %v5262 = vsel %vm2023, %v5260, %v5261
      %v5263 = vrot.slane %v5214, 2
      %v5264 = vsel %vm2023, %v5261, %v5263
      %v5265 = vrot.slane %v5215, 2
      %v5266 = vrot.slane %v5216, 2
      %v5267 = vsel %vm2023, %v5265, %v5266
      %v5268 = vrot.slane %v5217, 2
      %v5269 = vsel %vm2023, %v5266, %v5268
      %v5270 = vrot.slane %v5218, 2
      %v5271 = vrot.slane %v5219, 2
      %v5272 = vsel %vm2023, %v5270, %v5271
      %v5273 = vrot.slane %v5220, 2
      %v5274 = vsel %vm2023, %v5271, %v5273
      %v5275 = vrot.slane %v5221, 2
      %v5276 = vrot.slane %v5222, 2
      %v5277 = vsel %vm2023, %v5275, %v5276
      %v5278 = vrot.slane %v5223, 2
      %v5279 = vsel %vm2023, %v5276, %v5278
      %v5280 = vrot.slane %v5224, 2
      %v5281 = vrot.slane %v5225, 2
      %v5282 = vsel %vm2023, %v5280, %v5281
      %v5283 = vrot.slane %v5226, 2
      %v5284 = vsel %vm2023, %v5281, %v5283
      %v5285 = vrot.slane %v5227, 2
      %v5286 = vrot.slane %v5228, 2
      %v5287 = vsel %vm2023, %v5285, %v5286
      %v5288 = vrot.slane %v5229, 2
      %v5289 = vsel %vm2023, %v5286, %v5288
      %v5290 = vrot.slane %v5230, 2
      %v5291 = vrot.slane %v5231, 2
      %v5292 = vsel %vm2023, %v5290, %v5291
      %v5293 = vrot.slane %v5232, 2
      %v5294 = vsel %vm2023, %v5291, %v5293
      %v5295 = vrot.slane %v5233, 2
      %v5296 = vrot.slane %v5234, 2
      %v5297 = vsel %vm2023, %v5295, %v5296
      %v5298 = vrot.slane %v5235, 2
      %v5299 = vsel %vm2023, %v5296, %v5298
      %v5316 = vadd.f32 %v5196, %v5262
      %v5317 = vadd.f32 %v5197, %v5264
      %v5318 = vadd.f32 %v5198, %v5267
      %v5319 = vadd.f32 %v5199, %v5269
      %v5320 = vadd.f32 %v5200, %v5272
      %v5321 = vadd.f32 %v5201, %v5274
      %v5322 = vadd.f32 %v5202, %v5277
      %v5323 = vadd.f32 %v5203, %v5279
      %v5324 = vadd.f32 %v5204, %v5282
      %v5325 = vadd.f32 %v5205, %v5284
      %v5326 = vadd.f32 %v5206, %v5287
      %v5327 = vadd.f32 %v5207, %v5289
      %v5328 = vadd.f32 %v5208, %v5292
      %v5329 = vadd.f32 %v5209, %v5294
      %v5330 = vadd.f32 %v5210, %v5297
      %v5331 = vadd.f32 %v5211, %v5299
      %v5332 = vpack.c.bf16 %v5316, %v5316
      %v5333 = vpack.c.bf16 %v5317, %v5317
      %v5334 = vpack.c.bf16 %v5318, %v5318
      %v5335 = vpack.c.bf16 %v5319, %v5319
      %v5336 = vpack.c.bf16 %v5320, %v5320
      %v5337 = vpack.c.bf16 %v5321, %v5321
      %v5338 = vpack.c.bf16 %v5322, %v5322
      %v5339 = vpack.c.bf16 %v5323, %v5323
      %v5340 = vpack.c.bf16 %v5324, %v5324
      %v5341 = vpack.c.bf16 %v5325, %v5325
      %v5342 = vpack.c.bf16 %v5326, %v5326
      %v5343 = vpack.c.bf16 %v5327, %v5327
      %v5344 = vpack.c.bf16 %v5328, %v5328
      %v5345 = vpack.c.bf16 %v5329, %v5329
      %v5346 = vpack.c.bf16 %v5330, %v5330
      %v5347 = vpack.c.bf16 %v5331, %v5331
      %v5348 = vld [vmem:[%s9] sm:$0xf]
      %v5349 = vld [vmem:[%s9 + $0x4] sm:$0xf]
      %v5350 = vld [vmem:[%s9 + $0x8] sm:$0xf]
      %v5351 = vld [vmem:[%s9 + $0xc] sm:$0xf]
      %v5352 = vld [vmem:[%s10] sm:$0x1]
      %v5354 = vperm.slane %v5352, 0
      %v5372 = vunpack.c.l.b16 %v5332
      %v5373 = vunpack.c.l.b16 %v5333
      %v5374 = vunpack.c.l.b16 %v5334
      %v5375 = vunpack.c.l.b16 %v5335
      %v5376 = vunpack.c.l.b16 %v5336
      %v5377 = vunpack.c.l.b16 %v5337
      %v5378 = vunpack.c.l.b16 %v5338
      %v5379 = vunpack.c.l.b16 %v5339
      %v5380 = vunpack.c.l.b16 %v5340
      %v5381 = vunpack.c.l.b16 %v5341
      %v5382 = vunpack.c.l.b16 %v5342
      %v5383 = vunpack.c.l.b16 %v5343
      %v5384 = vunpack.c.l.b16 %v5344
      %v5385 = vunpack.c.l.b16 %v5345
      %v5386 = vunpack.c.l.b16 %v5346
      %v5387 = vunpack.c.l.b16 %v5347
      %v5388 = vpack.c.b16 %v5373, %v5372
      %v5389 = vpack.c.b16 %v5375, %v5374
      %v5390 = vpack.c.b16 %v5377, %v5376
      %v5391 = vpack.c.b16 %v5379, %v5378
      %v5392 = vpack.c.b16 %v5381, %v5380
      %v5393 = vpack.c.b16 %v5383, %v5382
      %v5394 = vpack.c.b16 %v5385, %v5384
      %v5395 = vpack.c.b16 %v5387, %v5386
      %v5400 = vunpack.c.l.b16 %v5348
      %v5401 = vunpack.c.l.b16 %v5349
      %v5402 = vunpack.c.l.b16 %v5350
      %v5403 = vunpack.c.l.b16 %v5351
      %v5404 = vpack.c.b16 %v5401, %v5400
      %v5405 = vpack.c.b16 %v5403, %v5402
      %v5409 = vsel %vm628, %v5388, 0
      %v5412 = vsel %vm628, %v5389, 0
      %v5415 = vsel %vm628, %v5390, 0
      %v5418 = vsel %vm628, %v5391, 0
      %v5421 = vsel %vm628, %v5392, 0
      %v5424 = vsel %vm628, %v5393, 0
      %v5427 = vsel %vm628, %v5394, 0
      %v5430 = vsel %vm628, %v5395, 0
      %5432 = vmatpush.bf16.msra.mxu0 0
      %5433 = vmatpush.bf16.msra.mxu0 0
      %5434 = vmatpush.bf16.msra.mxu0 0
      %5435 = vmatpush.bf16.msra.mxu0 0
      %5436 = vmatpush.bf16.msra.mxu0 0
      %5437 = vmatpush.bf16.msra.mxu0 0
      %5438 = vmatpush.bf16.msra.mxu0 %v5405
      %5439 = vmatpush.bf16.msra.mxu0 %v5404
      %5440 = vmatmul.bf16.gmra.mxu0 %v5409
      %v5441 = vpop.f32.mrf.mxu0
      %v5442 = vadd.f32 %v5354, %v5441
      %v5443 = vpop.f32.mrf.mxu0
      %v5444 = vadd.f32 %v5354, %v5443
      %5445 = vmatmul.bf16.gmra.mxu0 %v5412
      %v5446 = vpop.f32.mrf.mxu0
      %v5447 = vadd.f32 %v5354, %v5446
      %v5448 = vpop.f32.mrf.mxu0
      %v5449 = vadd.f32 %v5354, %v5448
      %5450 = vmatmul.bf16.gmra.mxu0 %v5415
      %v5451 = vpop.f32.mrf.mxu0
      %v5452 = vadd.f32 %v5354, %v5451
      %v5453 = vpop.f32.mrf.mxu0
      %v5454 = vadd.f32 %v5354, %v5453
      %5455 = vmatmul.bf16.gmra.mxu0 %v5418
      %v5456 = vpop.f32.mrf.mxu0
      %v5457 = vadd.f32 %v5354, %v5456
      %v5458 = vpop.f32.mrf.mxu0
      %v5459 = vadd.f32 %v5354, %v5458
      %5460 = vmatmul.bf16.gmra.mxu0 %v5421
      %v5461 = vpop.f32.mrf.mxu0
      %v5462 = vadd.f32 %v5354, %v5461
      %v5463 = vpop.f32.mrf.mxu0
      %v5464 = vadd.f32 %v5354, %v5463
      %5465 = vmatmul.bf16.gmra.mxu0 %v5424
      %v5466 = vpop.f32.mrf.mxu0
      %v5467 = vadd.f32 %v5354, %v5466
      %v5468 = vpop.f32.mrf.mxu0
      %v5469 = vadd.f32 %v5354, %v5468
      %5470 = vmatmul.bf16.gmra.mxu0 %v5427
      %v5471 = vpop.f32.mrf.mxu0
      %v5472 = vadd.f32 %v5354, %v5471
      %v5473 = vpop.f32.mrf.mxu0
      %v5474 = vadd.f32 %v5354, %v5473
      %5475 = vmatmul.bf16.gmra.mxu0 %v5430
      %v5476 = vpop.f32.mrf.mxu0
      %v5477 = vadd.f32 %v5354, %v5476
      %v5478 = vpop.f32.mrf.mxu0
      %v5479 = vadd.f32 %v5354, %v5478
      %5480 = vdwg.mxu0
      %v5481 = vsel %vm628, %v5442, 0.0
      %v5482 = vsel %vm628, %v5444, 0.0
      %v5483 = vadd.f32 %v5481, %v5482
      %v5484 = vsel %vm628, %v5447, 0.0
      %v5485 = vadd.f32 %v5483, %v5484
      %v5486 = vsel %vm628, %v5449, 0.0
      %v5487 = vadd.f32 %v5485, %v5486
      %v5488 = vsel %vm628, %v5452, 0.0
      %v5489 = vadd.f32 %v5487, %v5488
      %v5490 = vsel %vm628, %v5454, 0.0
      %v5491 = vadd.f32 %v5489, %v5490
      %v5492 = vsel %vm628, %v5457, 0.0
      %v5493 = vadd.f32 %v5491, %v5492
      %v5494 = vsel %vm628, %v5459, 0.0
      %v5495 = vadd.f32 %v5493, %v5494
      %v5496 = vsel %vm628, %v5462, 0.0
      %v5497 = vadd.f32 %v5495, %v5496
      %v5498 = vsel %vm628, %v5464, 0.0
      %v5499 = vadd.f32 %v5497, %v5498
      %v5500 = vsel %vm628, %v5467, 0.0
      %v5501 = vadd.f32 %v5499, %v5500
      %v5502 = vsel %vm628, %v5469, 0.0
      %v5503 = vadd.f32 %v5501, %v5502
      %v5504 = vsel %vm628, %v5472, 0.0
      %v5505 = vadd.f32 %v5503, %v5504
      %v5506 = vsel %vm628, %v5474, 0.0
      %v5507 = vadd.f32 %v5505, %v5506
      %v5508 = vsel %vm628, %v5477, 0.0
      %v5509 = vadd.f32 %v5507, %v5508
      %v5510 = vsel %vm628, %v5479, 0.0
      %v5511 = vadd.f32 %v5509, %v5510
      %v5512 = vrot.slane %v5511, 4
      %v5513 = vadd.f32 %v5511, %v5512
      %v5514 = vrot.slane %v5513, 2
      %v5515 = vadd.f32 %v5513, %v5514
      %v5516 = vrot.slane %v5515, 1
      %v5517 = vadd.f32 %v5515, %v5516
      %vm5518 = vcmask 253952
      %5519 = vst.msk [vmem:[%s610] sm:$0x1] %vm5518, %v5517
      %v5520 = vpack.c.bf16 %v5442, %v5442
      %v5521 = vpack.c.bf16 %v5444, %v5444
      %v5522 = vpack.c.bf16 %v5447, %v5447
      %v5523 = vpack.c.bf16 %v5449, %v5449
      %v5524 = vpack.c.bf16 %v5452, %v5452
      %v5525 = vpack.c.bf16 %v5454, %v5454
      %v5526 = vpack.c.bf16 %v5457, %v5457
      %v5527 = vpack.c.bf16 %v5459, %v5459
      %v5528 = vpack.c.bf16 %v5462, %v5462
      %v5529 = vpack.c.bf16 %v5464, %v5464
      %v5530 = vpack.c.bf16 %v5467, %v5467
      %v5531 = vpack.c.bf16 %v5469, %v5469
      %v5532 = vpack.c.bf16 %v5472, %v5472
      %v5533 = vpack.c.bf16 %v5474, %v5474
      %v5534 = vpack.c.bf16 %v5477, %v5477
      %v5535 = vpack.c.bf16 %v5479, %v5479
      %vm5536 = vcmask 257024
      %5537 = vst.msk [vmem:[%s602] sm:$0xf] %vm5536, %v5520
      %5538 = vst.msk [vmem:[%s602 + $0x4] sm:$0xf] %vm5536, %v5521
      %5539 = vst.msk [vmem:[%s602 + $0x8] sm:$0xf] %vm5536, %v5522
      %5540 = vst.msk [vmem:[%s602 + $0xc] sm:$0xf] %vm5536, %v5523
      %5541 = vst.msk [vmem:[%s602 + $0x10] sm:$0xf] %vm5536, %v5524
      %5542 = vst.msk [vmem:[%s602 + $0x14] sm:$0xf] %vm5536, %v5525
      %5543 = vst.msk [vmem:[%s602 + $0x18] sm:$0xf] %vm5536, %v5526
      %5544 = vst.msk [vmem:[%s602 + $0x1c] sm:$0xf] %vm5536, %v5527
      %5545 = vst.msk [vmem:[%s602 + $0x20] sm:$0xf] %vm5536, %v5528
      %5546 = vst.msk [vmem:[%s602 + $0x24] sm:$0xf] %vm5536, %v5529
      %5547 = vst.msk [vmem:[%s602 + $0x28] sm:$0xf] %vm5536, %v5530
      %5548 = vst.msk [vmem:[%s602 + $0x2c] sm:$0xf] %vm5536, %v5531
      %5549 = vst.msk [vmem:[%s602 + $0x30] sm:$0xf] %vm5536, %v5532
      %5550 = vst.msk [vmem:[%s602 + $0x34] sm:$0xf] %vm5536, %v5533
      %5551 = vst.msk [vmem:[%s602 + $0x38] sm:$0xf] %vm5536, %v5534
      %5552 = vst.msk [vmem:[%s602 + $0x3c] sm:$0xf] %vm5536, %v5535
      %s5553 = smul.u32 8, %s29
      %p5554 = scmp.lt.s32.totalorder %s28, 1
      %s5555 = scalar_select %p5554, %s28, 1
      %p5556 = scmp.lt.s32.totalorder %s5553, 15
      %s5557 = scalar_select %p5556, %s5553, 15
      %s5558 = smul.addr %s5557, 2
      %s5559 = smul.addr %s5555, 32
      %s5560 = sadd.s32 %s5558, %s5559
      %s5561 = smul.addr %s5560, 4
      %s5562 = scalar_lea.vmem %s11, %s5561
      %p5563 = scmp.lt.s32.totalorder %s28, 1
      %s5564 = scalar_select %p5563, %s28, 1
      %p5565 = scmp.lt.s32.totalorder %s29, 1
      %s5566 = scalar_select %p5565, %s29, 1
      %s5567 = smul.addr %s5564, 2
      %s5568 = sadd.s32 %s5566, %s5567
      %s5569 = scalar_lea.vmem %s12, %s5568
      // Predicated region
      $region65: #{unet_encoder_block.5} parent=63 // pred_check
        %p5570 = pneg %p324
      $region66: #{unet_encoder_block.5} parent=63 // pred_check_branch
        %5572 = sbr.rel (%p5570) target = $region68
      $region67: #{unet_encoder_block.5} parent=63 // pred_region
        %s5573 = smul.u32 8, %s29
      $region68: #{unet_encoder_block.5} parent=63 // pred_fallthru
        _
      // Predicated region
      $region69: #{unet_encoder_block.5} parent=63 // pred_check
        %p5574 = pneg %p352
      $region70: #{unet_encoder_block.5} parent=63 // pred_check_branch
        %5576 = sbr.rel (%p5574) target = $region72
      $region71: #{unet_encoder_block.5} parent=63 // pred_region
        _
      $region72: #{unet_encoder_block.5} parent=63 // pred_fallthru
        _
    $region64: #{unet_encoder_block.5} parent=5 // pred_fallthru
      _
    %p5577 = scmp.le.s32.totalorder 2, %s19
    // Predicated region
    $region73: #{unet_encoder_block.5} parent=5 // pred_check
      %p5578 = pneg %p5577
    $region74: #{unet_encoder_block.5} parent=5 // pred_check_branch
      %5580 = sbr.rel (%p5578) target = $region76
    $region75: #{unet_encoder_block.5} parent=5 // pred_region
      %s5581 = ssub.s32 %s19, 2
      // Predicated region
      $region77: #{unet_encoder_block.5} parent=75 // pred_check
        %p5582 = pneg %p330
      $region78: #{unet_encoder_block.5} parent=75 // pred_check_branch
        %5584 = sbr.rel (%p5582) target = $region80
      $region79: #{unet_encoder_block.5} parent=75 // pred_region
        %s5585 = smul.u32 8, %s31
        %p5586 = scmp.lt.s32.totalorder %s30, 1
        %s5587 = scalar_select %p5586, %s30, 1
        %p5588 = scmp.lt.s32.totalorder %s5585, 15
        %s5589 = scalar_select %p5588, %s5585, 15
        %s5590 = smul.addr %s5589, 2
        %s5591 = smul.addr %s5587, 32
        %s5592 = sadd.s32 %s5590, %s5591
        %s5593 = smul.addr %s5592, 4
        %s5594 = scalar_lea.vmem %s11, %s5593
      $region80: #{unet_encoder_block.5} parent=75 // pred_fallthru
        _
      // Predicated region
      $region81: #{unet_encoder_block.5} parent=75 // pred_check
        %p5595 = pneg %p358
      $region82: #{unet_encoder_block.5} parent=75 // pred_check_branch
        %5597 = sbr.rel (%p5595) target = $region84
      $region83: #{unet_encoder_block.5} parent=75 // pred_region
        %p5598 = scmp.lt.s32.totalorder %s30, 1
        %s5599 = scalar_select %p5598, %s30, 1
        %p5600 = scmp.lt.s32.totalorder %s31, 1
        %s5601 = scalar_select %p5600, %s31, 1
        %s5602 = smul.addr %s5599, 2
        %s5603 = sadd.s32 %s5601, %s5602
        %s5604 = scalar_lea.vmem %s12, %s5603
      $region84: #{unet_encoder_block.5} parent=75 // pred_fallthru
        _
    $region76: #{unet_encoder_block.5} parent=5 // pred_fallthru
      _
  $region6: #{unet_encoder_block.5} parent=0 // loop_footer
    %s23 = sadd.s32 1, %s19
  $region7: #{unet_encoder_block.5} parent=0 // loop_footer_branch
    %18 = sbr.rel target = $region3
  $region8: #{unet_encoder_block.5} parent=0 // loop_exit
    _

</llo_original>
